<compile_context>
chip_gen: v7x
topology: tpu7x:2x2x1
jax: 0.10.0
libtpu: 0.0.40
codegen_flags: <defaults>
</compile_context>

<pallas_src>
import jax
import jax.numpy as jnp
from jax.experimental import pallas as pl
from jax.experimental.pallas import tpu as pltpu

H1 = 1024      # hidden1 width
H2 = 391       # hidden2 width (valid)
H2P = 512      # hidden2 padded width (lane aligned; pad cols are zero)
OUT = 782      # output width = 2 * 391 (compact, no padding)


def _net_kernel(x_ref, w1_ref, b1_ref, w2_ref, b2_ref,
                w3a_ref, b3a_ref, w3b_ref, b3b_ref, o_ref):
    # hid1 -> (identity) dropout -> relu      (bf16 MXU inputs, f32 accumulate)
    x = x_ref[...].astype(jnp.bfloat16)                               # (tb, 1024)
    h1 = jnp.dot(x, w1_ref[...], preferred_element_type=jnp.float32) + b1_ref[...]
    h1 = jnp.maximum(h1, 0.0).astype(jnp.bfloat16)                    # (tb, 1024)

    # hid2 -> (identity) dropout -> relu      (391 cols zero-padded to 512)
    h2 = jnp.dot(h1, w2_ref[...], preferred_element_type=jnp.float32) + b2_ref[...]
    h2 = jnp.maximum(h2, 0.0).astype(jnp.bfloat16)                    # (tb, 512)

    # out -> relu, computed twice directly in the compact (tb, 782) layout:
    #   oa[:, c]       = relu(logit of softmax-row 0, unit c)   for c < 391
    #   oa[:, 391 + c] = relu(logit of softmax-row 1, unit c)
    #   ob             = oa with its two 391-wide column halves swapped
    oa = jnp.dot(h2, w3a_ref[...], preferred_element_type=jnp.float32) + b3a_ref[...]
    oa = jnp.maximum(oa, 0.0)                                         # (tb, 782)
    ob = jnp.dot(h2, w3b_ref[...], preferred_element_type=jnp.float32) + b3b_ref[...]
    ob = jnp.maximum(ob, 0.0)                                         # (tb, 782)

    # softmax over the size-2 axis == sigmoid of the paired logit difference.
    p = pl.reciprocal(1.0 + jnp.exp(ob - oa))        # exact reciprocal
    o_ref[...] = p.astype(o_ref.dtype)


def _round_up(n, m):
    return ((n + m - 1) // m) * m


def _choose_tile(batch, tile_b):
    """Pick (tile_rows, padded_batch)."""
    pb_min = _round_up(batch, 8)
    if pb_min <= 2 * tile_b:
        # Guarantee >= 2 grid steps (when the batch allows it) so the
        # "parallel" batch axis can shard across both v7x TensorCores.
        tb = pb_min if pb_min <= 8 else _round_up((pb_min + 1) // 2, 8)
        return tb, _round_up(pb_min, tb)
    # Large batch: prefer a tile in [tile_b/2, tile_b] that divides the
    # (8-aligned) batch so no host-side jnp.pad copy of x is needed.
    for tb in range(tile_b, tile_b // 2 - 1, -8):
        if pb_min % tb == 0:
            return tb, pb_min
    return tile_b, _round_up(pb_min, tile_b)


def net_forward(x, params, *, tile_b=512, out_dtype=jnp.float32):
    """x: (B, 1024) f32 (or bf16). Returns (B, 782) in `out_dtype`."""
    w1, b1, w2, b2, w3a, b3a, w3b, b3b = params
    B = x.shape[0]
    tb, pB = _choose_tile(B, tile_b)
    if pB != B:
        x = jnp.pad(x, ((0, pB - B), (0, 0)))

    # Weights / biases: constant block index => fetched once, VMEM-resident.
    def const(shape):
        return pl.BlockSpec(shape, lambda i: (0, 0))

    out = pl.pallas_call(
        _net_kernel,
        out_shape=jax.ShapeDtypeStruct((pB, OUT), out_dtype),
        grid=(pB // tb,),
        in_specs=[
            pl.BlockSpec((tb, H1), lambda i: (i, 0)),   # x   (batch tiled)
            const((H1, H1)),                            # w1  bf16
            const((1, H1)),                             # b1  f32
            const((H1, H2P)),                           # w2  bf16 (padded cols)
            const((1, H2P)),                            # b2  f32
            const((H2P, OUT)),                          # w3a bf16 (compact cols)
            const((1, OUT)),                            # b3a f32
            const((H2P, OUT)),                          # w3b bf16 (swapped halves)
            const((1, OUT)),                            # b3b f32
        ],
        out_specs=pl.BlockSpec((tb, OUT), lambda i: (i, 0)),
        compiler_params=pltpu.CompilerParams(
            dimension_semantics=("parallel",),
            vmem_limit_bytes=48 << 20,
        ),
    )(x, w1, b1, w2, b2, w3a, b3a, w3b, b3b)

    return out if pB == B else out[:B]


def init_params(key):
    """Returns (kernel_params, raw_params).

    raw_params: f32 nn.Linear weights/biases in PyTorch (out, in) layout.
    kernel_params: transposed / padded / bf16 versions the kernel consumes."""
    k1, k2, k3, k4, k5, k6 = jax.random.split(key, 6)
    scale = 0.02
    w1 = jax.random.normal(k1, (H1, H1), jnp.float32) * scale     # (1024, 1024)
    b1 = jax.random.normal(k2, (H1,), jnp.float32) * scale
    w2 = jax.random.normal(k3, (H2, H1), jnp.float32) * scale     # (391, 1024)
    b2 = jax.random.normal(k4, (H2,), jnp.float32) * scale
    w3 = jax.random.normal(k5, (OUT, H2), jnp.float32) * scale    # (782, 391)
    b3 = jax.random.normal(k6, (OUT,), jnp.float32) * scale
    raw = (w1, b1, w2, b2, w3, b3)

    # Kernel layout: x @ W, weights bf16 (MXU native), biases f32.
    w1k = w1.T.astype(jnp.bfloat16)                                     # (1024, 1024)
    b1k = b1.reshape(1, H1)
    w2k = jnp.zeros((H1, H2P), jnp.float32).at[:, :H2].set(w2.T).astype(jnp.bfloat16)
    b2k = jnp.zeros((1, H2P), jnp.float32).at[0, :H2].set(b2)
    # Output projection in the compact 782-wide layout + a half-swapped copy.
    w3t = jnp.zeros((H2P, OUT), jnp.float32).at[:H2, :].set(w3.T)       # (512, 782)
    b3t = b3.reshape(1, OUT)
    w3a = w3t.astype(jnp.bfloat16)
    b3a = b3t
    w3b = jnp.concatenate([w3t[:, H2:], w3t[:, :H2]], axis=1).astype(jnp.bfloat16)
    b3b = jnp.concatenate([b3t[:, H2:], b3t[:, :H2]], axis=1)
    kernel_params = (w1k, b1k, w2k, b2k, w3a, b3a, w3b, b3b)
    return kernel_params, raw


def net_forward_ref(x, raw_params):
    """Pure-JAX f32 reference faithful to the PyTorch module (eval mode)."""
    w1, b1, w2, b2, w3, b3 = raw_params
    h1 = jax.nn.relu(x @ w1.T + b1)
    h2 = jax.nn.relu(h1 @ w2.T + b2)
    o = jax.nn.relu(h2 @ w3.T + b3)
    p = jax.nn.softmax(o.reshape(x.shape[0], 2, H2), axis=1)
    return p.reshape(x.shape[0], OUT)


if __name__ == "__main__":
    key = jax.random.PRNGKey(0)
    pkey, xkey = jax.random.split(key)
    kernel_params, raw_params = init_params(pkey)

    B = 8
    x = jax.random.normal(xkey, (B, H1), jnp.float32)

    out = jax.block_until_ready(net_forward(x, kernel_params))
    assert out.shape == (B, OUT), out.shape

    ref = net_forward_ref(x, raw_params)
    # bf16 weights/activations inside the kernel vs the f32 reference.
    max_err = float(jnp.max(jnp.abs(out - ref)))
    assert jnp.allclose(out, ref, atol=1e-2, rtol=1e-2), max_err
    # each 2-way softmax pair must sum to 1
    pair_sum = out[:, :H2] + out[:, H2:]
    assert jnp.allclose(pair_sum, 1.0, atol=1e-3), float(jnp.max(jnp.abs(pair_sum - 1.0)))

    print("KERNEL_OK")
</pallas_src>

<mosaic_0001>
module attributes {stable_mosaic.version = 11 : i64} {
  func.func @_net_kernel(%arg0: i32, %arg1: memref<8x1024xf32, #tpu.memory_space<vmem>>, %arg2: memref<1024x1024xbf16, #tpu.memory_space<vmem>>, %arg3: memref<1x1024xf32, #tpu.memory_space<vmem>>, %arg4: memref<1024x512xbf16, #tpu.memory_space<vmem>>, %arg5: memref<1x512xf32, #tpu.memory_space<vmem>>, %arg6: memref<512x782xbf16, #tpu.memory_space<vmem>>, %arg7: memref<1x782xf32, #tpu.memory_space<vmem>>, %arg8: memref<512x782xbf16, #tpu.memory_space<vmem>>, %arg9: memref<1x782xf32, #tpu.memory_space<vmem>>, %arg10: memref<8x782xf32, #tpu.memory_space<vmem>>) attributes {dimension_semantics = [#tpu.dimension_semantics<parallel>], iteration_bounds = array<i64: 1>, scalar_prefetch = 0 : i64, scratch_operands = 0 : i64, tpu.core_type = #tpu.core_type<tc>, window_params = [{transform_indices = @transform_0, window_bounds = array<i64: 8, 1024>}, {pipeline_mode = #tpu.pipeline_mode<synchronous>, transform_indices = @transform_1, window_bounds = array<i64: 1024, 1024>}, {pipeline_mode = #tpu.pipeline_mode<synchronous>, transform_indices = @transform_2, window_bounds = array<i64: 1, 1024>}, {pipeline_mode = #tpu.pipeline_mode<synchronous>, transform_indices = @transform_3, window_bounds = array<i64: 1024, 512>}, {pipeline_mode = #tpu.pipeline_mode<synchronous>, transform_indices = @transform_4, window_bounds = array<i64: 1, 512>}, {pipeline_mode = #tpu.pipeline_mode<synchronous>, transform_indices = @transform_5, window_bounds = array<i64: 512, 782>}, {pipeline_mode = #tpu.pipeline_mode<synchronous>, transform_indices = @transform_6, window_bounds = array<i64: 1, 782>}, {pipeline_mode = #tpu.pipeline_mode<synchronous>, transform_indices = @transform_7, window_bounds = array<i64: 512, 782>}, {pipeline_mode = #tpu.pipeline_mode<synchronous>, transform_indices = @transform_8, window_bounds = array<i64: 1, 782>}, {transform_indices = @transform_9, window_bounds = array<i64: 8, 782>}]} {
    %c0 = arith.constant 0 : index
    %c0_0 = arith.constant 0 : index
    %0 = vector.load %arg1[%c0, %c0_0] : memref<8x1024xf32, #tpu.memory_space<vmem>>, vector<8x1024xf32>
    %1 = arith.truncf %0 : vector<8x1024xf32> to vector<8x1024xbf16>
    %c0_1 = arith.constant 0 : index
    %c0_2 = arith.constant 0 : index
    %2 = vector.load %arg2[%c0_1, %c0_2] : memref<1024x1024xbf16, #tpu.memory_space<vmem>>, vector<1024x1024xbf16>
    %cst = arith.constant dense<0.000000e+00> : vector<8x1024xf32>
    %3 = tpu.matmul %1, %2, %cst {dimension_numbers = #tpu.dot_dimension_numbers<[1], [0], [0], [1], [0, 0, 1, 1], [], []>} : vector<8x1024xbf16>, vector<1024x1024xbf16>, vector<8x1024xf32> -> vector<8x1024xf32>
    %c0_3 = arith.constant 0 : index
    %c0_4 = arith.constant 0 : index
    %4 = vector.load %arg3[%c0_3, %c0_4] : memref<1x1024xf32, #tpu.memory_space<vmem>>, vector<1x1024xf32>
    %5 = vector.broadcast %4 : vector<1x1024xf32> to vector<8x1024xf32>
    %6 = arith.addf %3, %5 : vector<8x1024xf32>
    %cst_5 = arith.constant 0.000000e+00 : f32
    %7 = vector.broadcast %cst_5 : f32 to vector<8x1024xf32>
    %8 = arith.maximumf %6, %7 : vector<8x1024xf32>
    %9 = arith.truncf %8 : vector<8x1024xf32> to vector<8x1024xbf16>
    %c0_6 = arith.constant 0 : index
    %c0_7 = arith.constant 0 : index
    %10 = vector.load %arg4[%c0_6, %c0_7] : memref<1024x512xbf16, #tpu.memory_space<vmem>>, vector<1024x512xbf16>
    %cst_8 = arith.constant dense<0.000000e+00> : vector<8x512xf32>
    %11 = tpu.matmul %9, %10, %cst_8 {dimension_numbers = #tpu.dot_dimension_numbers<[1], [0], [0], [1], [0, 0, 1, 1], [], []>} : vector<8x1024xbf16>, vector<1024x512xbf16>, vector<8x512xf32> -> vector<8x512xf32>
    %c0_9 = arith.constant 0 : index
    %c0_10 = arith.constant 0 : index
    %12 = vector.load %arg5[%c0_9, %c0_10] : memref<1x512xf32, #tpu.memory_space<vmem>>, vector<1x512xf32>
    %13 = vector.broadcast %12 : vector<1x512xf32> to vector<8x512xf32>
    %14 = arith.addf %11, %13 : vector<8x512xf32>
    %cst_11 = arith.constant 0.000000e+00 : f32
    %15 = vector.broadcast %cst_11 : f32 to vector<8x512xf32>
    %16 = arith.maximumf %14, %15 : vector<8x512xf32>
    %17 = arith.truncf %16 : vector<8x512xf32> to vector<8x512xbf16>
    %c0_12 = arith.constant 0 : index
    %c0_13 = arith.constant 0 : index
    %18 = vector.load %arg6[%c0_12, %c0_13] : memref<512x782xbf16, #tpu.memory_space<vmem>>, vector<512x782xbf16>
    %cst_14 = arith.constant dense<0.000000e+00> : vector<8x782xf32>
    %19 = tpu.matmul %17, %18, %cst_14 {dimension_numbers = #tpu.dot_dimension_numbers<[1], [0], [0], [1], [0, 0, 1, 1], [], []>} : vector<8x512xbf16>, vector<512x782xbf16>, vector<8x782xf32> -> vector<8x782xf32>
    %c0_15 = arith.constant 0 : index
    %c0_16 = arith.constant 0 : index
    %20 = vector.load %arg7[%c0_15, %c0_16] : memref<1x782xf32, #tpu.memory_space<vmem>>, vector<1x782xf32>
    %21 = vector.broadcast %20 : vector<1x782xf32> to vector<8x782xf32>
    %22 = arith.addf %19, %21 : vector<8x782xf32>
    %cst_17 = arith.constant 0.000000e+00 : f32
    %23 = vector.broadcast %cst_17 : f32 to vector<8x782xf32>
    %24 = arith.maximumf %22, %23 : vector<8x782xf32>
    %c0_18 = arith.constant 0 : index
    %c0_19 = arith.constant 0 : index
    %25 = vector.load %arg8[%c0_18, %c0_19] : memref<512x782xbf16, #tpu.memory_space<vmem>>, vector<512x782xbf16>
    %cst_20 = arith.constant dense<0.000000e+00> : vector<8x782xf32>
    %26 = tpu.matmul %17, %25, %cst_20 {dimension_numbers = #tpu.dot_dimension_numbers<[1], [0], [0], [1], [0, 0, 1, 1], [], []>} : vector<8x512xbf16>, vector<512x782xbf16>, vector<8x782xf32> -> vector<8x782xf32>
    %c0_21 = arith.constant 0 : index
    %c0_22 = arith.constant 0 : index
    %27 = vector.load %arg9[%c0_21, %c0_22] : memref<1x782xf32, #tpu.memory_space<vmem>>, vector<1x782xf32>
    %28 = vector.broadcast %27 : vector<1x782xf32> to vector<8x782xf32>
    %29 = arith.addf %26, %28 : vector<8x782xf32>
    %cst_23 = arith.constant 0.000000e+00 : f32
    %30 = vector.broadcast %cst_23 : f32 to vector<8x782xf32>
    %31 = arith.maximumf %29, %30 : vector<8x782xf32>
    %32 = arith.subf %31, %24 : vector<8x782xf32>
    %33 = math.exp %32 : vector<8x782xf32>
    %cst_24 = arith.constant 1.000000e+00 : f32
    %34 = vector.broadcast %cst_24 : f32 to vector<8x782xf32>
    %35 = arith.addf %34, %33 : vector<8x782xf32>
    %36 = tpu.reciprocal %35 : vector<8x782xf32> -> vector<8x782xf32>
    %c0_25 = arith.constant 0 : index
    %c0_26 = arith.constant 0 : index
    %37 = vector.load %arg10[%c0_25, %c0_26] : memref<8x782xf32, #tpu.memory_space<vmem>>, vector<8x782xf32>
    tpu.vector_store %arg10[%c0_25, %c0_26], %36 {strides = array<i32>} : memref<8x782xf32, #tpu.memory_space<vmem>>, vector<8x782xf32>,
    return
  }
  func.func @transform_0(%arg0: i32) -> (i32, i32) {
    %c0_i32 = arith.constant 0 : i32
    %c0_i32_0 = arith.constant 0 : i32
    return %arg0, %c0_i32 : i32, i32
  }
  func.func @transform_1(%arg0: i32) -> (i32, i32) {
    %c0_i32 = arith.constant 0 : i32
    %c0_i32_0 = arith.constant 0 : i32
    %c0_i32_1 = arith.constant 0 : i32
    return %c0_i32, %c0_i32_0 : i32, i32
  }
  func.func @transform_2(%arg0: i32) -> (i32, i32) {
    %c0_i32 = arith.constant 0 : i32
    %c0_i32_0 = arith.constant 0 : i32
    %c0_i32_1 = arith.constant 0 : i32
    return %c0_i32, %c0_i32_0 : i32, i32
  }
  func.func @transform_3(%arg0: i32) -> (i32, i32) {
    %c0_i32 = arith.constant 0 : i32
    %c0_i32_0 = arith.constant 0 : i32
    %c0_i32_1 = arith.constant 0 : i32
    return %c0_i32, %c0_i32_0 : i32, i32
  }
  func.func @transform_4(%arg0: i32) -> (i32, i32) {
    %c0_i32 = arith.constant 0 : i32
    %c0_i32_0 = arith.constant 0 : i32
    %c0_i32_1 = arith.constant 0 : i32
    return %c0_i32, %c0_i32_0 : i32, i32
  }
  func.func @transform_5(%arg0: i32) -> (i32, i32) {
    %c0_i32 = arith.constant 0 : i32
    %c0_i32_0 = arith.constant 0 : i32
    %c0_i32_1 = arith.constant 0 : i32
    return %c0_i32, %c0_i32_0 : i32, i32
  }
  func.func @transform_6(%arg0: i32) -> (i32, i32) {
    %c0_i32 = arith.constant 0 : i32
    %c0_i32_0 = arith.constant 0 : i32
    %c0_i32_1 = arith.constant 0 : i32
    return %c0_i32, %c0_i32_0 : i32, i32
  }
  func.func @transform_7(%arg0: i32) -> (i32, i32) {
    %c0_i32 = arith.constant 0 : i32
    %c0_i32_0 = arith.constant 0 : i32
    %c0_i32_1 = arith.constant 0 : i32
    return %c0_i32, %c0_i32_0 : i32, i32
  }
  func.func @transform_8(%arg0: i32) -> (i32, i32) {
    %c0_i32 = arith.constant 0 : i32
    %c0_i32_0 = arith.constant 0 : i32
    %c0_i32_1 = arith.constant 0 : i32
    return %c0_i32, %c0_i32_0 : i32, i32
  }
  func.func @transform_9(%arg0: i32) -> (i32, i32) {
    %c0_i32 = arith.constant 0 : i32
    %c0_i32_0 = arith.constant 0 : i32
    return %arg0, %c0_i32 : i32, i32
  }
}

</mosaic_0001>

<llo_original>
// kernel: tpu_custom_call.1
$region0: #{tpu_custom_call.1}
  #allocation0 [shape = 'u32[]', space=smem, size = 0x4, offset = 0x4, fixed_abs, tag = 'smem constant byte address 0x4 - core index']
  #allocation1 [shape = 'u32[144,128]{1,0:T(1,128)}', space=vmem, size = 0x12000, scoped, tag = 'internal scratch']
  %s0 = inlined_call_operand.vmem [shape: f32[8,1024], index: 0, kind: input, shape index: {}]
  %s1 = inlined_call_operand.vmem [shape: bf16[1024,1024], index: 1, kind: input, shape index: {}]
  %s2 = inlined_call_operand.vmem [shape: f32[1,1024], index: 2, kind: input, shape index: {}]
  %s3 = inlined_call_operand.vmem [shape: bf16[1024,512], index: 3, kind: input, shape index: {}]
  %s4 = inlined_call_operand.vmem [shape: f32[1,512], index: 4, kind: input, shape index: {}]
  %s5 = inlined_call_operand.vmem [shape: bf16[512,782], index: 5, kind: input, shape index: {}]
  %s6 = inlined_call_operand.vmem [shape: f32[1,782], index: 6, kind: input, shape index: {}]
  %s7 = inlined_call_operand.vmem [shape: bf16[512,782], index: 7, kind: input, shape index: {}]
  %s8 = inlined_call_operand.vmem [shape: f32[1,782], index: 8, kind: input, shape index: {}]
  %s9 = inlined_call_operand.hbm [shape: f32[8,782], index: 9, kind: output, shape index: {}]
  %s10 = sld [smem:[#allocation0]]
  $region46: #{tpu_custom_call.1} parent=0
    _
  %s12 = ssub.s32 1, %s10
  %s13 = scalar_select 0, %s12, %s10
  $region1: #{tpu_custom_call.1} parent=0
    #allocation2 [shape = 'u8[28672]{0}', space=vmem, size = 0x7000, scoped, tag = 'output window, operand 0, single buffered']
    #allocation3 [shape = 's32[1]{0}', space=sflag, size = 0x4, scoped, tag = 'scoped memory for tpu_custom_call.1']
    %14 = vsyncpa [#allocation3], 0
    // Predicated region
    $region2: #{tpu_custom_call.1} parent=1 // pred_check
      _
    $region3: #{tpu_custom_call.1} parent=1 // pred_check_branch
      %16 = sbr.rel (0) target = $region5
    $region4: #{tpu_custom_call.1} parent=1 // pred_region
      _
    $region5: #{tpu_custom_call.1} parent=1 // pred_fallthru
      _
    // Predicated region
    $region6: #{tpu_custom_call.1} parent=1 // pred_check
      _
    $region7: #{tpu_custom_call.1} parent=1 // pred_check_branch
      %18 = sbr.rel (0) target = $region9
    $region8: #{tpu_custom_call.1} parent=1 // pred_region
      _
    $region9: #{tpu_custom_call.1} parent=1 // pred_fallthru
      _
    // Predicated region
    $region10: #{tpu_custom_call.1} parent=1 // pred_check
      _
    $region11: #{tpu_custom_call.1} parent=1 // pred_check_branch
      %20 = sbr.rel (0) target = $region13
    $region12: #{tpu_custom_call.1} parent=1 // pred_region
      _
    $region13: #{tpu_custom_call.1} parent=1 // pred_fallthru
      _
    // Predicated region
    $region14: #{tpu_custom_call.1} parent=1 // pred_check
      _
    $region15: #{tpu_custom_call.1} parent=1 // pred_check_branch
      %22 = sbr.rel (0) target = $region17
    $region16: #{tpu_custom_call.1} parent=1 // pred_region
      _
    $region17: #{tpu_custom_call.1} parent=1 // pred_fallthru
      _
    // Predicated region
    $region18: #{tpu_custom_call.1} parent=1 // pred_check
      _
    $region19: #{tpu_custom_call.1} parent=1 // pred_check_branch
      %24 = sbr.rel (0) target = $region21
    $region20: #{tpu_custom_call.1} parent=1 // pred_region
      _
    $region21: #{tpu_custom_call.1} parent=1 // pred_fallthru
      _
    // Predicated region
    $region22: #{tpu_custom_call.1} parent=1 // pred_check
      _
    $region23: #{tpu_custom_call.1} parent=1 // pred_check_branch
      %26 = sbr.rel (0) target = $region25
    $region24: #{tpu_custom_call.1} parent=1 // pred_region
      _
    $region25: #{tpu_custom_call.1} parent=1 // pred_fallthru
      _
    // Predicated region
    $region26: #{tpu_custom_call.1} parent=1 // pred_check
      _
    $region27: #{tpu_custom_call.1} parent=1 // pred_check_branch
      %28 = sbr.rel (0) target = $region29
    $region28: #{tpu_custom_call.1} parent=1 // pred_region
      _
    $region29: #{tpu_custom_call.1} parent=1 // pred_fallthru
      _
    // Predicated region
    $region30: #{tpu_custom_call.1} parent=1 // pred_check
      _
    $region31: #{tpu_custom_call.1} parent=1 // pred_check_branch
      %30 = sbr.rel (0) target = $region33
    $region32: #{tpu_custom_call.1} parent=1 // pred_region
      _
    $region33: #{tpu_custom_call.1} parent=1 // pred_fallthru
      _
    // Predicated region
    $region34: #{tpu_custom_call.1} parent=1 // pred_check
      _
    $region35: #{tpu_custom_call.1} parent=1 // pred_check_branch
      %32 = sbr.rel (0) target = $region37
    $region36: #{tpu_custom_call.1} parent=1 // pred_region
      _
    $region37: #{tpu_custom_call.1} parent=1 // pred_fallthru
      _
    %v34 = vld [vmem:[%s0] sm:$0xff]
    %v35 = vld [vmem:[%s0 + $0x8] sm:$0xff]
    %v36 = vld [vmem:[%s0 + $0x10] sm:$0xff]
    %v37 = vld [vmem:[%s0 + $0x18] sm:$0xff]
    %v38 = vld [vmem:[%s0 + $0x20] sm:$0xff]
    %v39 = vld [vmem:[%s0 + $0x28] sm:$0xff]
    %v40 = vld [vmem:[%s0 + $0x30] sm:$0xff]
    %v41 = vld [vmem:[%s0 + $0x38] sm:$0xff]
    %v42 = vpack.c.bf16 %v34, %v34
    %v43 = vpack.c.bf16 %v35, %v35
    %v44 = vpack.c.bf16 %v36, %v36
    %v45 = vpack.c.bf16 %v37, %v37
    %v46 = vpack.c.bf16 %v38, %v38
    %v47 = vpack.c.bf16 %v39, %v39
    %v48 = vpack.c.bf16 %v40, %v40
    %v49 = vpack.c.bf16 %v41, %v41
    %v50 = vld [vmem:[%s1] sm:$0xff]
    %v51 = vld [vmem:[%s1 + $0x8] sm:$0xff]
    %v52 = vld [vmem:[%s1 + $0x10] sm:$0xff]
    %v53 = vld [vmem:[%s1 + $0x18] sm:$0xff]
    %v54 = vld [vmem:[%s1 + $0x20] sm:$0xff]
    %v55 = vld [vmem:[%s1 + $0x28] sm:$0xff]
    %v56 = vld [vmem:[%s1 + $0x30] sm:$0xff]
    %v57 = vld [vmem:[%s1 + $0x38] sm:$0xff]
    %v58 = vld [vmem:[%s1 + $0x40] sm:$0xff]
    %v59 = vld [vmem:[%s1 + $0x48] sm:$0xff]
    %v60 = vld [vmem:[%s1 + $0x50] sm:$0xff]
    %v61 = vld [vmem:[%s1 + $0x58] sm:$0xff]
    %v62 = vld [vmem:[%s1 + $0x60] sm:$0xff]
    %v63 = vld [vmem:[%s1 + $0x68] sm:$0xff]
    %v64 = vld [vmem:[%s1 + $0x70] sm:$0xff]
    %v65 = vld [vmem:[%s1 + $0x78] sm:$0xff]
    %v66 = vld [vmem:[%s1 + $0x80] sm:$0xff]
    %v67 = vld [vmem:[%s1 + $0x88] sm:$0xff]
    %v68 = vld [vmem:[%s1 + $0x90] sm:$0xff]
    %v69 = vld [vmem:[%s1 + $0x98] sm:$0xff]
    %v70 = vld [vmem:[%s1 + $0xa0] sm:$0xff]
    %v71 = vld [vmem:[%s1 + $0xa8] sm:$0xff]
    %v72 = vld [vmem:[%s1 + $0xb0] sm:$0xff]
    %v73 = vld [vmem:[%s1 + $0xb8] sm:$0xff]
    %v74 = vld [vmem:[%s1 + $0xc0] sm:$0xff]
    %v75 = vld [vmem:[%s1 + $0xc8] sm:$0xff]
    %v76 = vld [vmem:[%s1 + $0xd0] sm:$0xff]
    %v77 = vld [vmem:[%s1 + $0xd8] sm:$0xff]
    %v78 = vld [vmem:[%s1 + $0xe0] sm:$0xff]
    %v79 = vld [vmem:[%s1 + $0xe8] sm:$0xff]
    %v80 = vld [vmem:[%s1 + $0xf0] sm:$0xff]
    %v81 = vld [vmem:[%s1 + $0xf8] sm:$0xff]
    %v82 = vld [vmem:[%s1 + $0x100] sm:$0xff]
    %v83 = vld [vmem:[%s1 + $0x108] sm:$0xff]
    %v84 = vld [vmem:[%s1 + $0x110] sm:$0xff]
    %v85 = vld [vmem:[%s1 + $0x118] sm:$0xff]
    %v86 = vld [vmem:[%s1 + $0x120] sm:$0xff]
    %v87 = vld [vmem:[%s1 + $0x128] sm:$0xff]
    %v88 = vld [vmem:[%s1 + $0x130] sm:$0xff]
    %v89 = vld [vmem:[%s1 + $0x138] sm:$0xff]
    %v90 = vld [vmem:[%s1 + $0x140] sm:$0xff]
    %v91 = vld [vmem:[%s1 + $0x148] sm:$0xff]
    %v92 = vld [vmem:[%s1 + $0x150] sm:$0xff]
    %v93 = vld [vmem:[%s1 + $0x158] sm:$0xff]
    %v94 = vld [vmem:[%s1 + $0x160] sm:$0xff]
    %v95 = vld [vmem:[%s1 + $0x168] sm:$0xff]
    %v96 = vld [vmem:[%s1 + $0x170] sm:$0xff]
    %v97 = vld [vmem:[%s1 + $0x178] sm:$0xff]
    %v98 = vld [vmem:[%s1 + $0x180] sm:$0xff]
    %v99 = vld [vmem:[%s1 + $0x188] sm:$0xff]
    %v100 = vld [vmem:[%s1 + $0x190] sm:$0xff]
    %v101 = vld [vmem:[%s1 + $0x198] sm:$0xff]
    %v102 = vld [vmem:[%s1 + $0x1a0] sm:$0xff]
    %v103 = vld [vmem:[%s1 + $0x1a8] sm:$0xff]
    %v104 = vld [vmem:[%s1 + $0x1b0] sm:$0xff]
    %v105 = vld [vmem:[%s1 + $0x1b8] sm:$0xff]
    %v106 = vld [vmem:[%s1 + $0x1c0] sm:$0xff]
    %v107 = vld [vmem:[%s1 + $0x1c8] sm:$0xff]
    %v108 = vld [vmem:[%s1 + $0x1d0] sm:$0xff]
    %v109 = vld [vmem:[%s1 + $0x1d8] sm:$0xff]
    %v110 = vld [vmem:[%s1 + $0x1e0] sm:$0xff]
    %v111 = vld [vmem:[%s1 + $0x1e8] sm:$0xff]
    %v112 = vld [vmem:[%s1 + $0x1f0] sm:$0xff]
    %v113 = vld [vmem:[%s1 + $0x1f8] sm:$0xff]
    %v114 = vld [vmem:[%s1 + $0x200] sm:$0xff]
    %v115 = vld [vmem:[%s1 + $0x208] sm:$0xff]
    %v116 = vld [vmem:[%s1 + $0x210] sm:$0xff]
    %v117 = vld [vmem:[%s1 + $0x218] sm:$0xff]
    %v118 = vld [vmem:[%s1 + $0x220] sm:$0xff]
    %v119 = vld [vmem:[%s1 + $0x228] sm:$0xff]
    %v120 = vld [vmem:[%s1 + $0x230] sm:$0xff]
    %v121 = vld [vmem:[%s1 + $0x238] sm:$0xff]
    %v122 = vld [vmem:[%s1 + $0x240] sm:$0xff]
    %v123 = vld [vmem:[%s1 + $0x248] sm:$0xff]
    %v124 = vld [vmem:[%s1 + $0x250] sm:$0xff]
    %v125 = vld [vmem:[%s1 + $0x258] sm:$0xff]
    %v126 = vld [vmem:[%s1 + $0x260] sm:$0xff]
    %v127 = vld [vmem:[%s1 + $0x268] sm:$0xff]
    %v128 = vld [vmem:[%s1 + $0x270] sm:$0xff]
    %v129 = vld [vmem:[%s1 + $0x278] sm:$0xff]
    %v130 = vld [vmem:[%s1 + $0x280] sm:$0xff]
    %v131 = vld [vmem:[%s1 + $0x288] sm:$0xff]
    %v132 = vld [vmem:[%s1 + $0x290] sm:$0xff]
    %v133 = vld [vmem:[%s1 + $0x298] sm:$0xff]
    %v134 = vld [vmem:[%s1 + $0x2a0] sm:$0xff]
    %v135 = vld [vmem:[%s1 + $0x2a8] sm:$0xff]
    %v136 = vld [vmem:[%s1 + $0x2b0] sm:$0xff]
    %v137 = vld [vmem:[%s1 + $0x2b8] sm:$0xff]
    %v138 = vld [vmem:[%s1 + $0x2c0] sm:$0xff]
    %v139 = vld [vmem:[%s1 + $0x2c8] sm:$0xff]
    %v140 = vld [vmem:[%s1 + $0x2d0] sm:$0xff]
    %v141 = vld [vmem:[%s1 + $0x2d8] sm:$0xff]
    %v142 = vld [vmem:[%s1 + $0x2e0] sm:$0xff]
    %v143 = vld [vmem:[%s1 + $0x2e8] sm:$0xff]
    %v144 = vld [vmem:[%s1 + $0x2f0] sm:$0xff]
    %v145 = vld [vmem:[%s1 + $0x2f8] sm:$0xff]
    %v146 = vld [vmem:[%s1 + $0x300] sm:$0xff]
    %v147 = vld [vmem:[%s1 + $0x308] sm:$0xff]
    %v148 = vld [vmem:[%s1 + $0x310] sm:$0xff]
    %v149 = vld [vmem:[%s1 + $0x318] sm:$0xff]
    %v150 = vld [vmem:[%s1 + $0x320] sm:$0xff]
    %v151 = vld [vmem:[%s1 + $0x328] sm:$0xff]
    %v152 = vld [vmem:[%s1 + $0x330] sm:$0xff]
    %v153 = vld [vmem:[%s1 + $0x338] sm:$0xff]
    %v154 = vld [vmem:[%s1 + $0x340] sm:$0xff]
    %v155 = vld [vmem:[%s1 + $0x348] sm:$0xff]
    %v156 = vld [vmem:[%s1 + $0x350] sm:$0xff]
    %v157 = vld [vmem:[%s1 + $0x358] sm:$0xff]
    %v158 = vld [vmem:[%s1 + $0x360] sm:$0xff]
    %v159 = vld [vmem:[%s1 + $0x368] sm:$0xff]
    %v160 = vld [vmem:[%s1 + $0x370] sm:$0xff]
    %v161 = vld [vmem:[%s1 + $0x378] sm:$0xff]
    %v162 = vld [vmem:[%s1 + $0x380] sm:$0xff]
    %v163 = vld [vmem:[%s1 + $0x388] sm:$0xff]
    %v164 = vld [vmem:[%s1 + $0x390] sm:$0xff]
    %v165 = vld [vmem:[%s1 + $0x398] sm:$0xff]
    %v166 = vld [vmem:[%s1 + $0x3a0] sm:$0xff]
    %v167 = vld [vmem:[%s1 + $0x3a8] sm:$0xff]
    %v168 = vld [vmem:[%s1 + $0x3b0] sm:$0xff]
    %v169 = vld [vmem:[%s1 + $0x3b8] sm:$0xff]
    %v170 = vld [vmem:[%s1 + $0x3c0] sm:$0xff]
    %v171 = vld [vmem:[%s1 + $0x3c8] sm:$0xff]
    %v172 = vld [vmem:[%s1 + $0x3d0] sm:$0xff]
    %v173 = vld [vmem:[%s1 + $0x3d8] sm:$0xff]
    %v174 = vld [vmem:[%s1 + $0x3e0] sm:$0xff]
    %v175 = vld [vmem:[%s1 + $0x3e8] sm:$0xff]
    %v176 = vld [vmem:[%s1 + $0x3f0] sm:$0xff]
    %v177 = vld [vmem:[%s1 + $0x3f8] sm:$0xff]
    %v178 = vld [vmem:[%s1 + $0x400] sm:$0xff]
    %v179 = vld [vmem:[%s1 + $0x408] sm:$0xff]
    %v180 = vld [vmem:[%s1 + $0x410] sm:$0xff]
    %v181 = vld [vmem:[%s1 + $0x418] sm:$0xff]
    %v182 = vld [vmem:[%s1 + $0x420] sm:$0xff]
    %v183 = vld [vmem:[%s1 + $0x428] sm:$0xff]
    %v184 = vld [vmem:[%s1 + $0x430] sm:$0xff]
    %v185 = vld [vmem:[%s1 + $0x438] sm:$0xff]
    %v186 = vld [vmem:[%s1 + $0x440] sm:$0xff]
    %v187 = vld [vmem:[%s1 + $0x448] sm:$0xff]
    %v188 = vld [vmem:[%s1 + $0x450] sm:$0xff]
    %v189 = vld [vmem:[%s1 + $0x458] sm:$0xff]
    %v190 = vld [vmem:[%s1 + $0x460] sm:$0xff]
    %v191 = vld [vmem:[%s1 + $0x468] sm:$0xff]
    %v192 = vld [vmem:[%s1 + $0x470] sm:$0xff]
    %v193 = vld [vmem:[%s1 + $0x478] sm:$0xff]
    %v194 = vld [vmem:[%s1 + $0x480] sm:$0xff]
    %v195 = vld [vmem:[%s1 + $0x488] sm:$0xff]
    %v196 = vld [vmem:[%s1 + $0x490] sm:$0xff]
    %v197 = vld [vmem:[%s1 + $0x498] sm:$0xff]
    %v198 = vld [vmem:[%s1 + $0x4a0] sm:$0xff]
    %v199 = vld [vmem:[%s1 + $0x4a8] sm:$0xff]
    %v200 = vld [vmem:[%s1 + $0x4b0] sm:$0xff]
    %v201 = vld [vmem:[%s1 + $0x4b8] sm:$0xff]
    %v202 = vld [vmem:[%s1 + $0x4c0] sm:$0xff]
    %v203 = vld [vmem:[%s1 + $0x4c8] sm:$0xff]
    %v204 = vld [vmem:[%s1 + $0x4d0] sm:$0xff]
    %v205 = vld [vmem:[%s1 + $0x4d8] sm:$0xff]
    %v206 = vld [vmem:[%s1 + $0x4e0] sm:$0xff]
    %v207 = vld [vmem:[%s1 + $0x4e8] sm:$0xff]
    %v208 = vld [vmem:[%s1 + $0x4f0] sm:$0xff]
    %v209 = vld [vmem:[%s1 + $0x4f8] sm:$0xff]
    %v210 = vld [vmem:[%s1 + $0x500] sm:$0xff]
    %v211 = vld [vmem:[%s1 + $0x508] sm:$0xff]
    %v212 = vld [vmem:[%s1 + $0x510] sm:$0xff]
    %v213 = vld [vmem:[%s1 + $0x518] sm:$0xff]
    %v214 = vld [vmem:[%s1 + $0x520] sm:$0xff]
    %v215 = vld [vmem:[%s1 + $0x528] sm:$0xff]
    %v216 = vld [vmem:[%s1 + $0x530] sm:$0xff]
    %v217 = vld [vmem:[%s1 + $0x538] sm:$0xff]
    %v218 = vld [vmem:[%s1 + $0x540] sm:$0xff]
    %v219 = vld [vmem:[%s1 + $0x548] sm:$0xff]
    %v220 = vld [vmem:[%s1 + $0x550] sm:$0xff]
    %v221 = vld [vmem:[%s1 + $0x558] sm:$0xff]
    %v222 = vld [vmem:[%s1 + $0x560] sm:$0xff]
    %v223 = vld [vmem:[%s1 + $0x568] sm:$0xff]
    %v224 = vld [vmem:[%s1 + $0x570] sm:$0xff]
    %v225 = vld [vmem:[%s1 + $0x578] sm:$0xff]
    %v226 = vld [vmem:[%s1 + $0x580] sm:$0xff]
    %v227 = vld [vmem:[%s1 + $0x588] sm:$0xff]
    %v228 = vld [vmem:[%s1 + $0x590] sm:$0xff]
    %v229 = vld [vmem:[%s1 + $0x598] sm:$0xff]
    %v230 = vld [vmem:[%s1 + $0x5a0] sm:$0xff]
    %v231 = vld [vmem:[%s1 + $0x5a8] sm:$0xff]
    %v232 = vld [vmem:[%s1 + $0x5b0] sm:$0xff]
    %v233 = vld [vmem:[%s1 + $0x5b8] sm:$0xff]
    %v234 = vld [vmem:[%s1 + $0x5c0] sm:$0xff]
    %v235 = vld [vmem:[%s1 + $0x5c8] sm:$0xff]
    %v236 = vld [vmem:[%s1 + $0x5d0] sm:$0xff]
    %v237 = vld [vmem:[%s1 + $0x5d8] sm:$0xff]
    %v238 = vld [vmem:[%s1 + $0x5e0] sm:$0xff]
    %v239 = vld [vmem:[%s1 + $0x5e8] sm:$0xff]
    %v240 = vld [vmem:[%s1 + $0x5f0] sm:$0xff]
    %v241 = vld [vmem:[%s1 + $0x5f8] sm:$0xff]
    %v242 = vld [vmem:[%s1 + $0x600] sm:$0xff]
    %v243 = vld [vmem:[%s1 + $0x608] sm:$0xff]
    %v244 = vld [vmem:[%s1 + $0x610] sm:$0xff]
    %v245 = vld [vmem:[%s1 + $0x618] sm:$0xff]
    %v246 = vld [vmem:[%s1 + $0x620] sm:$0xff]
    %v247 = vld [vmem:[%s1 + $0x628] sm:$0xff]
    %v248 = vld [vmem:[%s1 + $0x630] sm:$0xff]
    %v249 = vld [vmem:[%s1 + $0x638] sm:$0xff]
    %v250 = vld [vmem:[%s1 + $0x640] sm:$0xff]
    %v251 = vld [vmem:[%s1 + $0x648] sm:$0xff]
    %v252 = vld [vmem:[%s1 + $0x650] sm:$0xff]
    %v253 = vld [vmem:[%s1 + $0x658] sm:$0xff]
    %v254 = vld [vmem:[%s1 + $0x660] sm:$0xff]
    %v255 = vld [vmem:[%s1 + $0x668] sm:$0xff]
    %v256 = vld [vmem:[%s1 + $0x670] sm:$0xff]
    %v257 = vld [vmem:[%s1 + $0x678] sm:$0xff]
    %v258 = vld [vmem:[%s1 + $0x680] sm:$0xff]
    %v259 = vld [vmem:[%s1 + $0x688] sm:$0xff]
    %v260 = vld [vmem:[%s1 + $0x690] sm:$0xff]
    %v261 = vld [vmem:[%s1 + $0x698] sm:$0xff]
    %v262 = vld [vmem:[%s1 + $0x6a0] sm:$0xff]
    %v263 = vld [vmem:[%s1 + $0x6a8] sm:$0xff]
    %v264 = vld [vmem:[%s1 + $0x6b0] sm:$0xff]
    %v265 = vld [vmem:[%s1 + $0x6b8] sm:$0xff]
    %v266 = vld [vmem:[%s1 + $0x6c0] sm:$0xff]
    %v267 = vld [vmem:[%s1 + $0x6c8] sm:$0xff]
    %v268 = vld [vmem:[%s1 + $0x6d0] sm:$0xff]
    %v269 = vld [vmem:[%s1 + $0x6d8] sm:$0xff]
    %v270 = vld [vmem:[%s1 + $0x6e0] sm:$0xff]
    %v271 = vld [vmem:[%s1 + $0x6e8] sm:$0xff]
    %v272 = vld [vmem:[%s1 + $0x6f0] sm:$0xff]
    %v273 = vld [vmem:[%s1 + $0x6f8] sm:$0xff]
    %v274 = vld [vmem:[%s1 + $0x700] sm:$0xff]
    %v275 = vld [vmem:[%s1 + $0x708] sm:$0xff]
    %v276 = vld [vmem:[%s1 + $0x710] sm:$0xff]
    %v277 = vld [vmem:[%s1 + $0x718] sm:$0xff]
    %v278 = vld [vmem:[%s1 + $0x720] sm:$0xff]
    %v279 = vld [vmem:[%s1 + $0x728] sm:$0xff]
    %v280 = vld [vmem:[%s1 + $0x730] sm:$0xff]
    %v281 = vld [vmem:[%s1 + $0x738] sm:$0xff]
    %v282 = vld [vmem:[%s1 + $0x740] sm:$0xff]
    %v283 = vld [vmem:[%s1 + $0x748] sm:$0xff]
    %v284 = vld [vmem:[%s1 + $0x750] sm:$0xff]
    %v285 = vld [vmem:[%s1 + $0x758] sm:$0xff]
    %v286 = vld [vmem:[%s1 + $0x760] sm:$0xff]
    %v287 = vld [vmem:[%s1 + $0x768] sm:$0xff]
    %v288 = vld [vmem:[%s1 + $0x770] sm:$0xff]
    %v289 = vld [vmem:[%s1 + $0x778] sm:$0xff]
    %v290 = vld [vmem:[%s1 + $0x780] sm:$0xff]
    %v291 = vld [vmem:[%s1 + $0x788] sm:$0xff]
    %v292 = vld [vmem:[%s1 + $0x790] sm:$0xff]
    %v293 = vld [vmem:[%s1 + $0x798] sm:$0xff]
    %v294 = vld [vmem:[%s1 + $0x7a0] sm:$0xff]
    %v295 = vld [vmem:[%s1 + $0x7a8] sm:$0xff]
    %v296 = vld [vmem:[%s1 + $0x7b0] sm:$0xff]
    %v297 = vld [vmem:[%s1 + $0x7b8] sm:$0xff]
    %v298 = vld [vmem:[%s1 + $0x7c0] sm:$0xff]
    %v299 = vld [vmem:[%s1 + $0x7c8] sm:$0xff]
    %v300 = vld [vmem:[%s1 + $0x7d0] sm:$0xff]
    %v301 = vld [vmem:[%s1 + $0x7d8] sm:$0xff]
    %v302 = vld [vmem:[%s1 + $0x7e0] sm:$0xff]
    %v303 = vld [vmem:[%s1 + $0x7e8] sm:$0xff]
    %v304 = vld [vmem:[%s1 + $0x7f0] sm:$0xff]
    %v305 = vld [vmem:[%s1 + $0x7f8] sm:$0xff]
    %v306 = vld [vmem:[%s1 + $0x800] sm:$0xff]
    %v307 = vld [vmem:[%s1 + $0x808] sm:$0xff]
    %v308 = vld [vmem:[%s1 + $0x810] sm:$0xff]
    %v309 = vld [vmem:[%s1 + $0x818] sm:$0xff]
    %v310 = vld [vmem:[%s1 + $0x820] sm:$0xff]
    %v311 = vld [vmem:[%s1 + $0x828] sm:$0xff]
    %v312 = vld [vmem:[%s1 + $0x830] sm:$0xff]
    %v313 = vld [vmem:[%s1 + $0x838] sm:$0xff]
    %v314 = vld [vmem:[%s1 + $0x840] sm:$0xff]
    %v315 = vld [vmem:[%s1 + $0x848] sm:$0xff]
    %v316 = vld [vmem:[%s1 + $0x850] sm:$0xff]
    %v317 = vld [vmem:[%s1 + $0x858] sm:$0xff]
    %v318 = vld [vmem:[%s1 + $0x860] sm:$0xff]
    %v319 = vld [vmem:[%s1 + $0x868] sm:$0xff]
    %v320 = vld [vmem:[%s1 + $0x870] sm:$0xff]
    %v321 = vld [vmem:[%s1 + $0x878] sm:$0xff]
    %v322 = vld [vmem:[%s1 + $0x880] sm:$0xff]
    %v323 = vld [vmem:[%s1 + $0x888] sm:$0xff]
    %v324 = vld [vmem:[%s1 + $0x890] sm:$0xff]
    %v325 = vld [vmem:[%s1 + $0x898] sm:$0xff]
    %v326 = vld [vmem:[%s1 + $0x8a0] sm:$0xff]
    %v327 = vld [vmem:[%s1 + $0x8a8] sm:$0xff]
    %v328 = vld [vmem:[%s1 + $0x8b0] sm:$0xff]
    %v329 = vld [vmem:[%s1 + $0x8b8] sm:$0xff]
    %v330 = vld [vmem:[%s1 + $0x8c0] sm:$0xff]
    %v331 = vld [vmem:[%s1 + $0x8c8] sm:$0xff]
    %v332 = vld [vmem:[%s1 + $0x8d0] sm:$0xff]
    %v333 = vld [vmem:[%s1 + $0x8d8] sm:$0xff]
    %v334 = vld [vmem:[%s1 + $0x8e0] sm:$0xff]
    %v335 = vld [vmem:[%s1 + $0x8e8] sm:$0xff]
    %v336 = vld [vmem:[%s1 + $0x8f0] sm:$0xff]
    %v337 = vld [vmem:[%s1 + $0x8f8] sm:$0xff]
    %v338 = vld [vmem:[%s1 + $0x900] sm:$0xff]
    %v339 = vld [vmem:[%s1 + $0x908] sm:$0xff]
    %v340 = vld [vmem:[%s1 + $0x910] sm:$0xff]
    %v341 = vld [vmem:[%s1 + $0x918] sm:$0xff]
    %v342 = vld [vmem:[%s1 + $0x920] sm:$0xff]
    %v343 = vld [vmem:[%s1 + $0x928] sm:$0xff]
    %v344 = vld [vmem:[%s1 + $0x930] sm:$0xff]
    %v345 = vld [vmem:[%s1 + $0x938] sm:$0xff]
    %v346 = vld [vmem:[%s1 + $0x940] sm:$0xff]
    %v347 = vld [vmem:[%s1 + $0x948] sm:$0xff]
    %v348 = vld [vmem:[%s1 + $0x950] sm:$0xff]
    %v349 = vld [vmem:[%s1 + $0x958] sm:$0xff]
    %v350 = vld [vmem:[%s1 + $0x960] sm:$0xff]
    %v351 = vld [vmem:[%s1 + $0x968] sm:$0xff]
    %v352 = vld [vmem:[%s1 + $0x970] sm:$0xff]
    %v353 = vld [vmem:[%s1 + $0x978] sm:$0xff]
    %v354 = vld [vmem:[%s1 + $0x980] sm:$0xff]
    %v355 = vld [vmem:[%s1 + $0x988] sm:$0xff]
    %v356 = vld [vmem:[%s1 + $0x990] sm:$0xff]
    %v357 = vld [vmem:[%s1 + $0x998] sm:$0xff]
    %v358 = vld [vmem:[%s1 + $0x9a0] sm:$0xff]
    %v359 = vld [vmem:[%s1 + $0x9a8] sm:$0xff]
    %v360 = vld [vmem:[%s1 + $0x9b0] sm:$0xff]
    %v361 = vld [vmem:[%s1 + $0x9b8] sm:$0xff]
    %v362 = vld [vmem:[%s1 + $0x9c0] sm:$0xff]
    %v363 = vld [vmem:[%s1 + $0x9c8] sm:$0xff]
    %v364 = vld [vmem:[%s1 + $0x9d0] sm:$0xff]
    %v365 = vld [vmem:[%s1 + $0x9d8] sm:$0xff]
    %v366 = vld [vmem:[%s1 + $0x9e0] sm:$0xff]
    %v367 = vld [vmem:[%s1 + $0x9e8] sm:$0xff]
    %v368 = vld [vmem:[%s1 + $0x9f0] sm:$0xff]
    %v369 = vld [vmem:[%s1 + $0x9f8] sm:$0xff]
    %v370 = vld [vmem:[%s1 + $0xa00] sm:$0xff]
    %v371 = vld [vmem:[%s1 + $0xa08] sm:$0xff]
    %v372 = vld [vmem:[%s1 + $0xa10] sm:$0xff]
    %v373 = vld [vmem:[%s1 + $0xa18] sm:$0xff]
    %v374 = vld [vmem:[%s1 + $0xa20] sm:$0xff]
    %v375 = vld [vmem:[%s1 + $0xa28] sm:$0xff]
    %v376 = vld [vmem:[%s1 + $0xa30] sm:$0xff]
    %v377 = vld [vmem:[%s1 + $0xa38] sm:$0xff]
    %v378 = vld [vmem:[%s1 + $0xa40] sm:$0xff]
    %v379 = vld [vmem:[%s1 + $0xa48] sm:$0xff]
    %v380 = vld [vmem:[%s1 + $0xa50] sm:$0xff]
    %v381 = vld [vmem:[%s1 + $0xa58] sm:$0xff]
    %v382 = vld [vmem:[%s1 + $0xa60] sm:$0xff]
    %v383 = vld [vmem:[%s1 + $0xa68] sm:$0xff]
    %v384 = vld [vmem:[%s1 + $0xa70] sm:$0xff]
    %v385 = vld [vmem:[%s1 + $0xa78] sm:$0xff]
    %v386 = vld [vmem:[%s1 + $0xa80] sm:$0xff]
    %v387 = vld [vmem:[%s1 + $0xa88] sm:$0xff]
    %v388 = vld [vmem:[%s1 + $0xa90] sm:$0xff]
    %v389 = vld [vmem:[%s1 + $0xa98] sm:$0xff]
    %v390 = vld [vmem:[%s1 + $0xaa0] sm:$0xff]
    %v391 = vld [vmem:[%s1 + $0xaa8] sm:$0xff]
    %v392 = vld [vmem:[%s1 + $0xab0] sm:$0xff]
    %v393 = vld [vmem:[%s1 + $0xab8] sm:$0xff]
    %v394 = vld [vmem:[%s1 + $0xac0] sm:$0xff]
    %v395 = vld [vmem:[%s1 + $0xac8] sm:$0xff]
    %v396 = vld [vmem:[%s1 + $0xad0] sm:$0xff]
    %v397 = vld [vmem:[%s1 + $0xad8] sm:$0xff]
    %v398 = vld [vmem:[%s1 + $0xae0] sm:$0xff]
    %v399 = vld [vmem:[%s1 + $0xae8] sm:$0xff]
    %v400 = vld [vmem:[%s1 + $0xaf0] sm:$0xff]
    %v401 = vld [vmem:[%s1 + $0xaf8] sm:$0xff]
    %v402 = vld [vmem:[%s1 + $0xb00] sm:$0xff]
    %v403 = vld [vmem:[%s1 + $0xb08] sm:$0xff]
    %v404 = vld [vmem:[%s1 + $0xb10] sm:$0xff]
    %v405 = vld [vmem:[%s1 + $0xb18] sm:$0xff]
    %v406 = vld [vmem:[%s1 + $0xb20] sm:$0xff]
    %v407 = vld [vmem:[%s1 + $0xb28] sm:$0xff]
    %v408 = vld [vmem:[%s1 + $0xb30] sm:$0xff]
    %v409 = vld [vmem:[%s1 + $0xb38] sm:$0xff]
    %v410 = vld [vmem:[%s1 + $0xb40] sm:$0xff]
    %v411 = vld [vmem:[%s1 + $0xb48] sm:$0xff]
    %v412 = vld [vmem:[%s1 + $0xb50] sm:$0xff]
    %v413 = vld [vmem:[%s1 + $0xb58] sm:$0xff]
    %v414 = vld [vmem:[%s1 + $0xb60] sm:$0xff]
    %v415 = vld [vmem:[%s1 + $0xb68] sm:$0xff]
    %v416 = vld [vmem:[%s1 + $0xb70] sm:$0xff]
    %v417 = vld [vmem:[%s1 + $0xb78] sm:$0xff]
    %v418 = vld [vmem:[%s1 + $0xb80] sm:$0xff]
    %v419 = vld [vmem:[%s1 + $0xb88] sm:$0xff]
    %v420 = vld [vmem:[%s1 + $0xb90] sm:$0xff]
    %v421 = vld [vmem:[%s1 + $0xb98] sm:$0xff]
    %v422 = vld [vmem:[%s1 + $0xba0] sm:$0xff]
    %v423 = vld [vmem:[%s1 + $0xba8] sm:$0xff]
    %v424 = vld [vmem:[%s1 + $0xbb0] sm:$0xff]
    %v425 = vld [vmem:[%s1 + $0xbb8] sm:$0xff]
    %v426 = vld [vmem:[%s1 + $0xbc0] sm:$0xff]
    %v427 = vld [vmem:[%s1 + $0xbc8] sm:$0xff]
    %v428 = vld [vmem:[%s1 + $0xbd0] sm:$0xff]
    %v429 = vld [vmem:[%s1 + $0xbd8] sm:$0xff]
    %v430 = vld [vmem:[%s1 + $0xbe0] sm:$0xff]
    %v431 = vld [vmem:[%s1 + $0xbe8] sm:$0xff]
    %v432 = vld [vmem:[%s1 + $0xbf0] sm:$0xff]
    %v433 = vld [vmem:[%s1 + $0xbf8] sm:$0xff]
    %v434 = vld [vmem:[%s1 + $0xc00] sm:$0xff]
    %v435 = vld [vmem:[%s1 + $0xc08] sm:$0xff]
    %v436 = vld [vmem:[%s1 + $0xc10] sm:$0xff]
    %v437 = vld [vmem:[%s1 + $0xc18] sm:$0xff]
    %v438 = vld [vmem:[%s1 + $0xc20] sm:$0xff]
    %v439 = vld [vmem:[%s1 + $0xc28] sm:$0xff]
    %v440 = vld [vmem:[%s1 + $0xc30] sm:$0xff]
    %v441 = vld [vmem:[%s1 + $0xc38] sm:$0xff]
    %v442 = vld [vmem:[%s1 + $0xc40] sm:$0xff]
    %v443 = vld [vmem:[%s1 + $0xc48] sm:$0xff]
    %v444 = vld [vmem:[%s1 + $0xc50] sm:$0xff]
    %v445 = vld [vmem:[%s1 + $0xc58] sm:$0xff]
    %v446 = vld [vmem:[%s1 + $0xc60] sm:$0xff]
    %v447 = vld [vmem:[%s1 + $0xc68] sm:$0xff]
    %v448 = vld [vmem:[%s1 + $0xc70] sm:$0xff]
    %v449 = vld [vmem:[%s1 + $0xc78] sm:$0xff]
    %v450 = vld [vmem:[%s1 + $0xc80] sm:$0xff]
    %v451 = vld [vmem:[%s1 + $0xc88] sm:$0xff]
    %v452 = vld [vmem:[%s1 + $0xc90] sm:$0xff]
    %v453 = vld [vmem:[%s1 + $0xc98] sm:$0xff]
    %v454 = vld [vmem:[%s1 + $0xca0] sm:$0xff]
    %v455 = vld [vmem:[%s1 + $0xca8] sm:$0xff]
    %v456 = vld [vmem:[%s1 + $0xcb0] sm:$0xff]
    %v457 = vld [vmem:[%s1 + $0xcb8] sm:$0xff]
    %v458 = vld [vmem:[%s1 + $0xcc0] sm:$0xff]
    %v459 = vld [vmem:[%s1 + $0xcc8] sm:$0xff]
    %v460 = vld [vmem:[%s1 + $0xcd0] sm:$0xff]
    %v461 = vld [vmem:[%s1 + $0xcd8] sm:$0xff]
    %v462 = vld [vmem:[%s1 + $0xce0] sm:$0xff]
    %v463 = vld [vmem:[%s1 + $0xce8] sm:$0xff]
    %v464 = vld [vmem:[%s1 + $0xcf0] sm:$0xff]
    %v465 = vld [vmem:[%s1 + $0xcf8] sm:$0xff]
    %v466 = vld [vmem:[%s1 + $0xd00] sm:$0xff]
    %v467 = vld [vmem:[%s1 + $0xd08] sm:$0xff]
    %v468 = vld [vmem:[%s1 + $0xd10] sm:$0xff]
    %v469 = vld [vmem:[%s1 + $0xd18] sm:$0xff]
    %v470 = vld [vmem:[%s1 + $0xd20] sm:$0xff]
    %v471 = vld [vmem:[%s1 + $0xd28] sm:$0xff]
    %v472 = vld [vmem:[%s1 + $0xd30] sm:$0xff]
    %v473 = vld [vmem:[%s1 + $0xd38] sm:$0xff]
    %v474 = vld [vmem:[%s1 + $0xd40] sm:$0xff]
    %v475 = vld [vmem:[%s1 + $0xd48] sm:$0xff]
    %v476 = vld [vmem:[%s1 + $0xd50] sm:$0xff]
    %v477 = vld [vmem:[%s1 + $0xd58] sm:$0xff]
    %v478 = vld [vmem:[%s1 + $0xd60] sm:$0xff]
    %v479 = vld [vmem:[%s1 + $0xd68] sm:$0xff]
    %v480 = vld [vmem:[%s1 + $0xd70] sm:$0xff]
    %v481 = vld [vmem:[%s1 + $0xd78] sm:$0xff]
    %v482 = vld [vmem:[%s1 + $0xd80] sm:$0xff]
    %v483 = vld [vmem:[%s1 + $0xd88] sm:$0xff]
    %v484 = vld [vmem:[%s1 + $0xd90] sm:$0xff]
    %v485 = vld [vmem:[%s1 + $0xd98] sm:$0xff]
    %v486 = vld [vmem:[%s1 + $0xda0] sm:$0xff]
    %v487 = vld [vmem:[%s1 + $0xda8] sm:$0xff]
    %v488 = vld [vmem:[%s1 + $0xdb0] sm:$0xff]
    %v489 = vld [vmem:[%s1 + $0xdb8] sm:$0xff]
    %v490 = vld [vmem:[%s1 + $0xdc0] sm:$0xff]
    %v491 = vld [vmem:[%s1 + $0xdc8] sm:$0xff]
    %v492 = vld [vmem:[%s1 + $0xdd0] sm:$0xff]
    %v493 = vld [vmem:[%s1 + $0xdd8] sm:$0xff]
    %v494 = vld [vmem:[%s1 + $0xde0] sm:$0xff]
    %v495 = vld [vmem:[%s1 + $0xde8] sm:$0xff]
    %v496 = vld [vmem:[%s1 + $0xdf0] sm:$0xff]
    %v497 = vld [vmem:[%s1 + $0xdf8] sm:$0xff]
    %v498 = vld [vmem:[%s1 + $0xe00] sm:$0xff]
    %v499 = vld [vmem:[%s1 + $0xe08] sm:$0xff]
    %v500 = vld [vmem:[%s1 + $0xe10] sm:$0xff]
    %v501 = vld [vmem:[%s1 + $0xe18] sm:$0xff]
    %v502 = vld [vmem:[%s1 + $0xe20] sm:$0xff]
    %v503 = vld [vmem:[%s1 + $0xe28] sm:$0xff]
    %v504 = vld [vmem:[%s1 + $0xe30] sm:$0xff]
    %v505 = vld [vmem:[%s1 + $0xe38] sm:$0xff]
    %v506 = vld [vmem:[%s1 + $0xe40] sm:$0xff]
    %v507 = vld [vmem:[%s1 + $0xe48] sm:$0xff]
    %v508 = vld [vmem:[%s1 + $0xe50] sm:$0xff]
    %v509 = vld [vmem:[%s1 + $0xe58] sm:$0xff]
    %v510 = vld [vmem:[%s1 + $0xe60] sm:$0xff]
    %v511 = vld [vmem:[%s1 + $0xe68] sm:$0xff]
    %v512 = vld [vmem:[%s1 + $0xe70] sm:$0xff]
    %v513 = vld [vmem:[%s1 + $0xe78] sm:$0xff]
    %v514 = vld [vmem:[%s1 + $0xe80] sm:$0xff]
    %v515 = vld [vmem:[%s1 + $0xe88] sm:$0xff]
    %v516 = vld [vmem:[%s1 + $0xe90] sm:$0xff]
    %v517 = vld [vmem:[%s1 + $0xe98] sm:$0xff]
    %v518 = vld [vmem:[%s1 + $0xea0] sm:$0xff]
    %v519 = vld [vmem:[%s1 + $0xea8] sm:$0xff]
    %v520 = vld [vmem:[%s1 + $0xeb0] sm:$0xff]
    %v521 = vld [vmem:[%s1 + $0xeb8] sm:$0xff]
    %v522 = vld [vmem:[%s1 + $0xec0] sm:$0xff]
    %v523 = vld [vmem:[%s1 + $0xec8] sm:$0xff]
    %v524 = vld [vmem:[%s1 + $0xed0] sm:$0xff]
    %v525 = vld [vmem:[%s1 + $0xed8] sm:$0xff]
    %v526 = vld [vmem:[%s1 + $0xee0] sm:$0xff]
    %v527 = vld [vmem:[%s1 + $0xee8] sm:$0xff]
    %v528 = vld [vmem:[%s1 + $0xef0] sm:$0xff]
    %v529 = vld [vmem:[%s1 + $0xef8] sm:$0xff]
    %v530 = vld [vmem:[%s1 + $0xf00] sm:$0xff]
    %v531 = vld [vmem:[%s1 + $0xf08] sm:$0xff]
    %v532 = vld [vmem:[%s1 + $0xf10] sm:$0xff]
    %v533 = vld [vmem:[%s1 + $0xf18] sm:$0xff]
    %v534 = vld [vmem:[%s1 + $0xf20] sm:$0xff]
    %v535 = vld [vmem:[%s1 + $0xf28] sm:$0xff]
    %v536 = vld [vmem:[%s1 + $0xf30] sm:$0xff]
    %v537 = vld [vmem:[%s1 + $0xf38] sm:$0xff]
    %v538 = vld [vmem:[%s1 + $0xf40] sm:$0xff]
    %v539 = vld [vmem:[%s1 + $0xf48] sm:$0xff]
    %v540 = vld [vmem:[%s1 + $0xf50] sm:$0xff]
    %v541 = vld [vmem:[%s1 + $0xf58] sm:$0xff]
    %v542 = vld [vmem:[%s1 + $0xf60] sm:$0xff]
    %v543 = vld [vmem:[%s1 + $0xf68] sm:$0xff]
    %v544 = vld [vmem:[%s1 + $0xf70] sm:$0xff]
    %v545 = vld [vmem:[%s1 + $0xf78] sm:$0xff]
    %v546 = vld [vmem:[%s1 + $0xf80] sm:$0xff]
    %v547 = vld [vmem:[%s1 + $0xf88] sm:$0xff]
    %v548 = vld [vmem:[%s1 + $0xf90] sm:$0xff]
    %v549 = vld [vmem:[%s1 + $0xf98] sm:$0xff]
    %v550 = vld [vmem:[%s1 + $0xfa0] sm:$0xff]
    %v551 = vld [vmem:[%s1 + $0xfa8] sm:$0xff]
    %v552 = vld [vmem:[%s1 + $0xfb0] sm:$0xff]
    %v553 = vld [vmem:[%s1 + $0xfb8] sm:$0xff]
    %v554 = vld [vmem:[%s1 + $0xfc0] sm:$0xff]
    %v555 = vld [vmem:[%s1 + $0xfc8] sm:$0xff]
    %v556 = vld [vmem:[%s1 + $0xfd0] sm:$0xff]
    %v557 = vld [vmem:[%s1 + $0xfd8] sm:$0xff]
    %v558 = vld [vmem:[%s1 + $0xfe0] sm:$0xff]
    %v559 = vld [vmem:[%s1 + $0xfe8] sm:$0xff]
    %v560 = vld [vmem:[%s1 + $0xff0] sm:$0xff]
    %v561 = vld [vmem:[%s1 + $0xff8] sm:$0xff]
    %v562 = vld [vmem:[%s2] sm:$0xff]
    %v564 = vlaneseq
    %v565 = vshrl.u32 %v564, 7
    %v566 = vsub.s32 0, %v565
    %v567 = vrot.slane %v562, %v566
    %v568 = vlaneseq
    %v569 = vshrl.u32 %v568, 7
    %v570 = vsub.s32 1, %v569
    %v571 = vrot.slane %v562, %v570
    %v572 = vlaneseq
    %v573 = vshrl.u32 %v572, 7
    %v574 = vsub.s32 2, %v573
    %v575 = vrot.slane %v562, %v574
    %v576 = vlaneseq
    %v577 = vshrl.u32 %v576, 7
    %v578 = vsub.s32 3, %v577
    %v579 = vrot.slane %v562, %v578
    %v580 = vlaneseq
    %v581 = vshrl.u32 %v580, 7
    %v582 = vsub.s32 4, %v581
    %v583 = vrot.slane %v562, %v582
    %v584 = vlaneseq
    %v585 = vshrl.u32 %v584, 7
    %v586 = vsub.s32 5, %v585
    %v587 = vrot.slane %v562, %v586
    %v588 = vlaneseq
    %v589 = vshrl.u32 %v588, 7
    %v590 = vsub.s32 6, %v589
    %v591 = vrot.slane %v562, %v590
    %v592 = vlaneseq
    %v593 = vshrl.u32 %v592, 7
    %v594 = vsub.s32 7, %v593
    %v595 = vrot.slane %v562, %v594
    %v1116 = vunpack.c.l.b16 %v50
    %v1117 = vunpack.c.h.b16 %v50
    %v1118 = vunpack.c.l.b16 %v51
    %v1119 = vunpack.c.h.b16 %v51
    %v1120 = vunpack.c.l.b16 %v52
    %v1121 = vunpack.c.h.b16 %v52
    %v1122 = vunpack.c.l.b16 %v53
    %v1123 = vunpack.c.h.b16 %v53
    %v1124 = vunpack.c.l.b16 %v54
    %v1125 = vunpack.c.h.b16 %v54
    %v1126 = vunpack.c.l.b16 %v55
    %v1127 = vunpack.c.h.b16 %v55
    %v1128 = vunpack.c.l.b16 %v56
    %v1129 = vunpack.c.h.b16 %v56
    %v1130 = vunpack.c.l.b16 %v57
    %v1131 = vunpack.c.h.b16 %v57
    %v1132 = vunpack.c.l.b16 %v58
    %v1133 = vunpack.c.h.b16 %v58
    %v1134 = vunpack.c.l.b16 %v59
    %v1135 = vunpack.c.h.b16 %v59
    %v1136 = vunpack.c.l.b16 %v60
    %v1137 = vunpack.c.h.b16 %v60
    %v1138 = vunpack.c.l.b16 %v61
    %v1139 = vunpack.c.h.b16 %v61
    %v1140 = vunpack.c.l.b16 %v62
    %v1141 = vunpack.c.h.b16 %v62
    %v1142 = vunpack.c.l.b16 %v63
    %v1143 = vunpack.c.h.b16 %v63
    %v1144 = vunpack.c.l.b16 %v64
    %v1145 = vunpack.c.h.b16 %v64
    %v1146 = vunpack.c.l.b16 %v65
    %v1147 = vunpack.c.h.b16 %v65
    %v1148 = vunpack.c.l.b16 %v66
    %v1149 = vunpack.c.h.b16 %v66
    %v1150 = vunpack.c.l.b16 %v67
    %v1151 = vunpack.c.h.b16 %v67
    %v1152 = vunpack.c.l.b16 %v68
    %v1153 = vunpack.c.h.b16 %v68
    %v1154 = vunpack.c.l.b16 %v69
    %v1155 = vunpack.c.h.b16 %v69
    %v1156 = vunpack.c.l.b16 %v70
    %v1157 = vunpack.c.h.b16 %v70
    %v1158 = vunpack.c.l.b16 %v71
    %v1159 = vunpack.c.h.b16 %v71
    %v1160 = vunpack.c.l.b16 %v72
    %v1161 = vunpack.c.h.b16 %v72
    %v1162 = vunpack.c.l.b16 %v73
    %v1163 = vunpack.c.h.b16 %v73
    %v1164 = vunpack.c.l.b16 %v74
    %v1165 = vunpack.c.h.b16 %v74
    %v1166 = vunpack.c.l.b16 %v75
    %v1167 = vunpack.c.h.b16 %v75
    %v1168 = vunpack.c.l.b16 %v76
    %v1169 = vunpack.c.h.b16 %v76
    %v1170 = vunpack.c.l.b16 %v77
    %v1171 = vunpack.c.h.b16 %v77
    %v1172 = vunpack.c.l.b16 %v78
    %v1173 = vunpack.c.h.b16 %v78
    %v1174 = vunpack.c.l.b16 %v79
    %v1175 = vunpack.c.h.b16 %v79
    %v1176 = vunpack.c.l.b16 %v80
    %v1177 = vunpack.c.h.b16 %v80
    %v1178 = vunpack.c.l.b16 %v81
    %v1179 = vunpack.c.h.b16 %v81
    %v1180 = vunpack.c.l.b16 %v82
    %v1181 = vunpack.c.h.b16 %v82
    %v1182 = vunpack.c.l.b16 %v83
    %v1183 = vunpack.c.h.b16 %v83
    %v1184 = vunpack.c.l.b16 %v84
    %v1185 = vunpack.c.h.b16 %v84
    %v1186 = vunpack.c.l.b16 %v85
    %v1187 = vunpack.c.h.b16 %v85
    %v1188 = vunpack.c.l.b16 %v86
    %v1189 = vunpack.c.h.b16 %v86
    %v1190 = vunpack.c.l.b16 %v87
    %v1191 = vunpack.c.h.b16 %v87
    %v1192 = vunpack.c.l.b16 %v88
    %v1193 = vunpack.c.h.b16 %v88
    %v1194 = vunpack.c.l.b16 %v89
    %v1195 = vunpack.c.h.b16 %v89
    %v1196 = vunpack.c.l.b16 %v90
    %v1197 = vunpack.c.h.b16 %v90
    %v1198 = vunpack.c.l.b16 %v91
    %v1199 = vunpack.c.h.b16 %v91
    %v1200 = vunpack.c.l.b16 %v92
    %v1201 = vunpack.c.h.b16 %v92
    %v1202 = vunpack.c.l.b16 %v93
    %v1203 = vunpack.c.h.b16 %v93
    %v1204 = vunpack.c.l.b16 %v94
    %v1205 = vunpack.c.h.b16 %v94
    %v1206 = vunpack.c.l.b16 %v95
    %v1207 = vunpack.c.h.b16 %v95
    %v1208 = vunpack.c.l.b16 %v96
    %v1209 = vunpack.c.h.b16 %v96
    %v1210 = vunpack.c.l.b16 %v97
    %v1211 = vunpack.c.h.b16 %v97
    %v1212 = vunpack.c.l.b16 %v98
    %v1213 = vunpack.c.h.b16 %v98
    %v1214 = vunpack.c.l.b16 %v99
    %v1215 = vunpack.c.h.b16 %v99
    %v1216 = vunpack.c.l.b16 %v100
    %v1217 = vunpack.c.h.b16 %v100
    %v1218 = vunpack.c.l.b16 %v101
    %v1219 = vunpack.c.h.b16 %v101
    %v1220 = vunpack.c.l.b16 %v102
    %v1221 = vunpack.c.h.b16 %v102
    %v1222 = vunpack.c.l.b16 %v103
    %v1223 = vunpack.c.h.b16 %v103
    %v1224 = vunpack.c.l.b16 %v104
    %v1225 = vunpack.c.h.b16 %v104
    %v1226 = vunpack.c.l.b16 %v105
    %v1227 = vunpack.c.h.b16 %v105
    %v1228 = vunpack.c.l.b16 %v106
    %v1229 = vunpack.c.h.b16 %v106
    %v1230 = vunpack.c.l.b16 %v107
    %v1231 = vunpack.c.h.b16 %v107
    %v1232 = vunpack.c.l.b16 %v108
    %v1233 = vunpack.c.h.b16 %v108
    %v1234 = vunpack.c.l.b16 %v109
    %v1235 = vunpack.c.h.b16 %v109
    %v1236 = vunpack.c.l.b16 %v110
    %v1237 = vunpack.c.h.b16 %v110
    %v1238 = vunpack.c.l.b16 %v111
    %v1239 = vunpack.c.h.b16 %v111
    %v1240 = vunpack.c.l.b16 %v112
    %v1241 = vunpack.c.h.b16 %v112
    %v1242 = vunpack.c.l.b16 %v113
    %v1243 = vunpack.c.h.b16 %v113
    %v1244 = vunpack.c.l.b16 %v114
    %v1245 = vunpack.c.h.b16 %v114
    %v1246 = vunpack.c.l.b16 %v115
    %v1247 = vunpack.c.h.b16 %v115
    %v1248 = vunpack.c.l.b16 %v116
    %v1249 = vunpack.c.h.b16 %v116
    %v1250 = vunpack.c.l.b16 %v117
    %v1251 = vunpack.c.h.b16 %v117
    %v1252 = vunpack.c.l.b16 %v118
    %v1253 = vunpack.c.h.b16 %v118
    %v1254 = vunpack.c.l.b16 %v119
    %v1255 = vunpack.c.h.b16 %v119
    %v1256 = vunpack.c.l.b16 %v120
    %v1257 = vunpack.c.h.b16 %v120
    %v1258 = vunpack.c.l.b16 %v121
    %v1259 = vunpack.c.h.b16 %v121
    %v1260 = vunpack.c.l.b16 %v122
    %v1261 = vunpack.c.h.b16 %v122
    %v1262 = vunpack.c.l.b16 %v123
    %v1263 = vunpack.c.h.b16 %v123
    %v1264 = vunpack.c.l.b16 %v124
    %v1265 = vunpack.c.h.b16 %v124
    %v1266 = vunpack.c.l.b16 %v125
    %v1267 = vunpack.c.h.b16 %v125
    %v1268 = vunpack.c.l.b16 %v126
    %v1269 = vunpack.c.h.b16 %v126
    %v1270 = vunpack.c.l.b16 %v127
    %v1271 = vunpack.c.h.b16 %v127
    %v1272 = vunpack.c.l.b16 %v128
    %v1273 = vunpack.c.h.b16 %v128
    %v1274 = vunpack.c.l.b16 %v129
    %v1275 = vunpack.c.h.b16 %v129
    %v1276 = vunpack.c.l.b16 %v130
    %v1277 = vunpack.c.h.b16 %v130
    %v1278 = vunpack.c.l.b16 %v131
    %v1279 = vunpack.c.h.b16 %v131
    %v1280 = vunpack.c.l.b16 %v132
    %v1281 = vunpack.c.h.b16 %v132
    %v1282 = vunpack.c.l.b16 %v133
    %v1283 = vunpack.c.h.b16 %v133
    %v1284 = vunpack.c.l.b16 %v134
    %v1285 = vunpack.c.h.b16 %v134
    %v1286 = vunpack.c.l.b16 %v135
    %v1287 = vunpack.c.h.b16 %v135
    %v1288 = vunpack.c.l.b16 %v136
    %v1289 = vunpack.c.h.b16 %v136
    %v1290 = vunpack.c.l.b16 %v137
    %v1291 = vunpack.c.h.b16 %v137
    %v1292 = vunpack.c.l.b16 %v138
    %v1293 = vunpack.c.h.b16 %v138
    %v1294 = vunpack.c.l.b16 %v139
    %v1295 = vunpack.c.h.b16 %v139
    %v1296 = vunpack.c.l.b16 %v140
    %v1297 = vunpack.c.h.b16 %v140
    %v1298 = vunpack.c.l.b16 %v141
    %v1299 = vunpack.c.h.b16 %v141
    %v1300 = vunpack.c.l.b16 %v142
    %v1301 = vunpack.c.h.b16 %v142
    %v1302 = vunpack.c.l.b16 %v143
    %v1303 = vunpack.c.h.b16 %v143
    %v1304 = vunpack.c.l.b16 %v144
    %v1305 = vunpack.c.h.b16 %v144
    %v1306 = vunpack.c.l.b16 %v145
    %v1307 = vunpack.c.h.b16 %v145
    %v1308 = vunpack.c.l.b16 %v146
    %v1309 = vunpack.c.h.b16 %v146
    %v1310 = vunpack.c.l.b16 %v147
    %v1311 = vunpack.c.h.b16 %v147
    %v1312 = vunpack.c.l.b16 %v148
    %v1313 = vunpack.c.h.b16 %v148
    %v1314 = vunpack.c.l.b16 %v149
    %v1315 = vunpack.c.h.b16 %v149
    %v1316 = vunpack.c.l.b16 %v150
    %v1317 = vunpack.c.h.b16 %v150
    %v1318 = vunpack.c.l.b16 %v151
    %v1319 = vunpack.c.h.b16 %v151
    %v1320 = vunpack.c.l.b16 %v152
    %v1321 = vunpack.c.h.b16 %v152
    %v1322 = vunpack.c.l.b16 %v153
    %v1323 = vunpack.c.h.b16 %v153
    %v1324 = vunpack.c.l.b16 %v154
    %v1325 = vunpack.c.h.b16 %v154
    %v1326 = vunpack.c.l.b16 %v155
    %v1327 = vunpack.c.h.b16 %v155
    %v1328 = vunpack.c.l.b16 %v156
    %v1329 = vunpack.c.h.b16 %v156
    %v1330 = vunpack.c.l.b16 %v157
    %v1331 = vunpack.c.h.b16 %v157
    %v1332 = vunpack.c.l.b16 %v158
    %v1333 = vunpack.c.h.b16 %v158
    %v1334 = vunpack.c.l.b16 %v159
    %v1335 = vunpack.c.h.b16 %v159
    %v1336 = vunpack.c.l.b16 %v160
    %v1337 = vunpack.c.h.b16 %v160
    %v1338 = vunpack.c.l.b16 %v161
    %v1339 = vunpack.c.h.b16 %v161
    %v1340 = vunpack.c.l.b16 %v162
    %v1341 = vunpack.c.h.b16 %v162
    %v1342 = vunpack.c.l.b16 %v163
    %v1343 = vunpack.c.h.b16 %v163
    %v1344 = vunpack.c.l.b16 %v164
    %v1345 = vunpack.c.h.b16 %v164
    %v1346 = vunpack.c.l.b16 %v165
    %v1347 = vunpack.c.h.b16 %v165
    %v1348 = vunpack.c.l.b16 %v166
    %v1349 = vunpack.c.h.b16 %v166
    %v1350 = vunpack.c.l.b16 %v167
    %v1351 = vunpack.c.h.b16 %v167
    %v1352 = vunpack.c.l.b16 %v168
    %v1353 = vunpack.c.h.b16 %v168
    %v1354 = vunpack.c.l.b16 %v169
    %v1355 = vunpack.c.h.b16 %v169
    %v1356 = vunpack.c.l.b16 %v170
    %v1357 = vunpack.c.h.b16 %v170
    %v1358 = vunpack.c.l.b16 %v171
    %v1359 = vunpack.c.h.b16 %v171
    %v1360 = vunpack.c.l.b16 %v172
    %v1361 = vunpack.c.h.b16 %v172
    %v1362 = vunpack.c.l.b16 %v173
    %v1363 = vunpack.c.h.b16 %v173
    %v1364 = vunpack.c.l.b16 %v174
    %v1365 = vunpack.c.h.b16 %v174
    %v1366 = vunpack.c.l.b16 %v175
    %v1367 = vunpack.c.h.b16 %v175
    %v1368 = vunpack.c.l.b16 %v176
    %v1369 = vunpack.c.h.b16 %v176
    %v1370 = vunpack.c.l.b16 %v177
    %v1371 = vunpack.c.h.b16 %v177
    %v1372 = vunpack.c.l.b16 %v178
    %v1373 = vunpack.c.h.b16 %v178
    %v1374 = vunpack.c.l.b16 %v179
    %v1375 = vunpack.c.h.b16 %v179
    %v1376 = vunpack.c.l.b16 %v180
    %v1377 = vunpack.c.h.b16 %v180
    %v1378 = vunpack.c.l.b16 %v181
    %v1379 = vunpack.c.h.b16 %v181
    %v1380 = vunpack.c.l.b16 %v182
    %v1381 = vunpack.c.h.b16 %v182
    %v1382 = vunpack.c.l.b16 %v183
    %v1383 = vunpack.c.h.b16 %v183
    %v1384 = vunpack.c.l.b16 %v184
    %v1385 = vunpack.c.h.b16 %v184
    %v1386 = vunpack.c.l.b16 %v185
    %v1387 = vunpack.c.h.b16 %v185
    %v1388 = vunpack.c.l.b16 %v186
    %v1389 = vunpack.c.h.b16 %v186
    %v1390 = vunpack.c.l.b16 %v187
    %v1391 = vunpack.c.h.b16 %v187
    %v1392 = vunpack.c.l.b16 %v188
    %v1393 = vunpack.c.h.b16 %v188
    %v1394 = vunpack.c.l.b16 %v189
    %v1395 = vunpack.c.h.b16 %v189
    %v1396 = vunpack.c.l.b16 %v190
    %v1397 = vunpack.c.h.b16 %v190
    %v1398 = vunpack.c.l.b16 %v191
    %v1399 = vunpack.c.h.b16 %v191
    %v1400 = vunpack.c.l.b16 %v192
    %v1401 = vunpack.c.h.b16 %v192
    %v1402 = vunpack.c.l.b16 %v193
    %v1403 = vunpack.c.h.b16 %v193
    %v1404 = vunpack.c.l.b16 %v194
    %v1405 = vunpack.c.h.b16 %v194
    %v1406 = vunpack.c.l.b16 %v195
    %v1407 = vunpack.c.h.b16 %v195
    %v1408 = vunpack.c.l.b16 %v196
    %v1409 = vunpack.c.h.b16 %v196
    %v1410 = vunpack.c.l.b16 %v197
    %v1411 = vunpack.c.h.b16 %v197
    %v1412 = vunpack.c.l.b16 %v198
    %v1413 = vunpack.c.h.b16 %v198
    %v1414 = vunpack.c.l.b16 %v199
    %v1415 = vunpack.c.h.b16 %v199
    %v1416 = vunpack.c.l.b16 %v200
    %v1417 = vunpack.c.h.b16 %v200
    %v1418 = vunpack.c.l.b16 %v201
    %v1419 = vunpack.c.h.b16 %v201
    %v1420 = vunpack.c.l.b16 %v202
    %v1421 = vunpack.c.h.b16 %v202
    %v1422 = vunpack.c.l.b16 %v203
    %v1423 = vunpack.c.h.b16 %v203
    %v1424 = vunpack.c.l.b16 %v204
    %v1425 = vunpack.c.h.b16 %v204
    %v1426 = vunpack.c.l.b16 %v205
    %v1427 = vunpack.c.h.b16 %v205
    %v1428 = vunpack.c.l.b16 %v206
    %v1429 = vunpack.c.h.b16 %v206
    %v1430 = vunpack.c.l.b16 %v207
    %v1431 = vunpack.c.h.b16 %v207
    %v1432 = vunpack.c.l.b16 %v208
    %v1433 = vunpack.c.h.b16 %v208
    %v1434 = vunpack.c.l.b16 %v209
    %v1435 = vunpack.c.h.b16 %v209
    %v1436 = vunpack.c.l.b16 %v210
    %v1437 = vunpack.c.h.b16 %v210
    %v1438 = vunpack.c.l.b16 %v211
    %v1439 = vunpack.c.h.b16 %v211
    %v1440 = vunpack.c.l.b16 %v212
    %v1441 = vunpack.c.h.b16 %v212
    %v1442 = vunpack.c.l.b16 %v213
    %v1443 = vunpack.c.h.b16 %v213
    %v1444 = vunpack.c.l.b16 %v214
    %v1445 = vunpack.c.h.b16 %v214
    %v1446 = vunpack.c.l.b16 %v215
    %v1447 = vunpack.c.h.b16 %v215
    %v1448 = vunpack.c.l.b16 %v216
    %v1449 = vunpack.c.h.b16 %v216
    %v1450 = vunpack.c.l.b16 %v217
    %v1451 = vunpack.c.h.b16 %v217
    %v1452 = vunpack.c.l.b16 %v218
    %v1453 = vunpack.c.h.b16 %v218
    %v1454 = vunpack.c.l.b16 %v219
    %v1455 = vunpack.c.h.b16 %v219
    %v1456 = vunpack.c.l.b16 %v220
    %v1457 = vunpack.c.h.b16 %v220
    %v1458 = vunpack.c.l.b16 %v221
    %v1459 = vunpack.c.h.b16 %v221
    %v1460 = vunpack.c.l.b16 %v222
    %v1461 = vunpack.c.h.b16 %v222
    %v1462 = vunpack.c.l.b16 %v223
    %v1463 = vunpack.c.h.b16 %v223
    %v1464 = vunpack.c.l.b16 %v224
    %v1465 = vunpack.c.h.b16 %v224
    %v1466 = vunpack.c.l.b16 %v225
    %v1467 = vunpack.c.h.b16 %v225
    %v1468 = vunpack.c.l.b16 %v226
    %v1469 = vunpack.c.h.b16 %v226
    %v1470 = vunpack.c.l.b16 %v227
    %v1471 = vunpack.c.h.b16 %v227
    %v1472 = vunpack.c.l.b16 %v228
    %v1473 = vunpack.c.h.b16 %v228
    %v1474 = vunpack.c.l.b16 %v229
    %v1475 = vunpack.c.h.b16 %v229
    %v1476 = vunpack.c.l.b16 %v230
    %v1477 = vunpack.c.h.b16 %v230
    %v1478 = vunpack.c.l.b16 %v231
    %v1479 = vunpack.c.h.b16 %v231
    %v1480 = vunpack.c.l.b16 %v232
    %v1481 = vunpack.c.h.b16 %v232
    %v1482 = vunpack.c.l.b16 %v233
    %v1483 = vunpack.c.h.b16 %v233
    %v1484 = vunpack.c.l.b16 %v234
    %v1485 = vunpack.c.h.b16 %v234
    %v1486 = vunpack.c.l.b16 %v235
    %v1487 = vunpack.c.h.b16 %v235
    %v1488 = vunpack.c.l.b16 %v236
    %v1489 = vunpack.c.h.b16 %v236
    %v1490 = vunpack.c.l.b16 %v237
    %v1491 = vunpack.c.h.b16 %v237
    %v1492 = vunpack.c.l.b16 %v238
    %v1493 = vunpack.c.h.b16 %v238
    %v1494 = vunpack.c.l.b16 %v239
    %v1495 = vunpack.c.h.b16 %v239
    %v1496 = vunpack.c.l.b16 %v240
    %v1497 = vunpack.c.h.b16 %v240
    %v1498 = vunpack.c.l.b16 %v241
    %v1499 = vunpack.c.h.b16 %v241
    %v1500 = vunpack.c.l.b16 %v242
    %v1501 = vunpack.c.h.b16 %v242
    %v1502 = vunpack.c.l.b16 %v243
    %v1503 = vunpack.c.h.b16 %v243
    %v1504 = vunpack.c.l.b16 %v244
    %v1505 = vunpack.c.h.b16 %v244
    %v1506 = vunpack.c.l.b16 %v245
    %v1507 = vunpack.c.h.b16 %v245
    %v1508 = vunpack.c.l.b16 %v246
    %v1509 = vunpack.c.h.b16 %v246
    %v1510 = vunpack.c.l.b16 %v247
    %v1511 = vunpack.c.h.b16 %v247
    %v1512 = vunpack.c.l.b16 %v248
    %v1513 = vunpack.c.h.b16 %v248
    %v1514 = vunpack.c.l.b16 %v249
    %v1515 = vunpack.c.h.b16 %v249
    %v1516 = vunpack.c.l.b16 %v250
    %v1517 = vunpack.c.h.b16 %v250
    %v1518 = vunpack.c.l.b16 %v251
    %v1519 = vunpack.c.h.b16 %v251
    %v1520 = vunpack.c.l.b16 %v252
    %v1521 = vunpack.c.h.b16 %v252
    %v1522 = vunpack.c.l.b16 %v253
    %v1523 = vunpack.c.h.b16 %v253
    %v1524 = vunpack.c.l.b16 %v254
    %v1525 = vunpack.c.h.b16 %v254
    %v1526 = vunpack.c.l.b16 %v255
    %v1527 = vunpack.c.h.b16 %v255
    %v1528 = vunpack.c.l.b16 %v256
    %v1529 = vunpack.c.h.b16 %v256
    %v1530 = vunpack.c.l.b16 %v257
    %v1531 = vunpack.c.h.b16 %v257
    %v1532 = vunpack.c.l.b16 %v258
    %v1533 = vunpack.c.h.b16 %v258
    %v1534 = vunpack.c.l.b16 %v259
    %v1535 = vunpack.c.h.b16 %v259
    %v1536 = vunpack.c.l.b16 %v260
    %v1537 = vunpack.c.h.b16 %v260
    %v1538 = vunpack.c.l.b16 %v261
    %v1539 = vunpack.c.h.b16 %v261
    %v1540 = vunpack.c.l.b16 %v262
    %v1541 = vunpack.c.h.b16 %v262
    %v1542 = vunpack.c.l.b16 %v263
    %v1543 = vunpack.c.h.b16 %v263
    %v1544 = vunpack.c.l.b16 %v264
    %v1545 = vunpack.c.h.b16 %v264
    %v1546 = vunpack.c.l.b16 %v265
    %v1547 = vunpack.c.h.b16 %v265
    %v1548 = vunpack.c.l.b16 %v266
    %v1549 = vunpack.c.h.b16 %v266
    %v1550 = vunpack.c.l.b16 %v267
    %v1551 = vunpack.c.h.b16 %v267
    %v1552 = vunpack.c.l.b16 %v268
    %v1553 = vunpack.c.h.b16 %v268
    %v1554 = vunpack.c.l.b16 %v269
    %v1555 = vunpack.c.h.b16 %v269
    %v1556 = vunpack.c.l.b16 %v270
    %v1557 = vunpack.c.h.b16 %v270
    %v1558 = vunpack.c.l.b16 %v271
    %v1559 = vunpack.c.h.b16 %v271
    %v1560 = vunpack.c.l.b16 %v272
    %v1561 = vunpack.c.h.b16 %v272
    %v1562 = vunpack.c.l.b16 %v273
    %v1563 = vunpack.c.h.b16 %v273
    %v1564 = vunpack.c.l.b16 %v274
    %v1565 = vunpack.c.h.b16 %v274
    %v1566 = vunpack.c.l.b16 %v275
    %v1567 = vunpack.c.h.b16 %v275
    %v1568 = vunpack.c.l.b16 %v276
    %v1569 = vunpack.c.h.b16 %v276
    %v1570 = vunpack.c.l.b16 %v277
    %v1571 = vunpack.c.h.b16 %v277
    %v1572 = vunpack.c.l.b16 %v278
    %v1573 = vunpack.c.h.b16 %v278
    %v1574 = vunpack.c.l.b16 %v279
    %v1575 = vunpack.c.h.b16 %v279
    %v1576 = vunpack.c.l.b16 %v280
    %v1577 = vunpack.c.h.b16 %v280
    %v1578 = vunpack.c.l.b16 %v281
    %v1579 = vunpack.c.h.b16 %v281
    %v1580 = vunpack.c.l.b16 %v282
    %v1581 = vunpack.c.h.b16 %v282
    %v1582 = vunpack.c.l.b16 %v283
    %v1583 = vunpack.c.h.b16 %v283
    %v1584 = vunpack.c.l.b16 %v284
    %v1585 = vunpack.c.h.b16 %v284
    %v1586 = vunpack.c.l.b16 %v285
    %v1587 = vunpack.c.h.b16 %v285
    %v1588 = vunpack.c.l.b16 %v286
    %v1589 = vunpack.c.h.b16 %v286
    %v1590 = vunpack.c.l.b16 %v287
    %v1591 = vunpack.c.h.b16 %v287
    %v1592 = vunpack.c.l.b16 %v288
    %v1593 = vunpack.c.h.b16 %v288
    %v1594 = vunpack.c.l.b16 %v289
    %v1595 = vunpack.c.h.b16 %v289
    %v1596 = vunpack.c.l.b16 %v290
    %v1597 = vunpack.c.h.b16 %v290
    %v1598 = vunpack.c.l.b16 %v291
    %v1599 = vunpack.c.h.b16 %v291
    %v1600 = vunpack.c.l.b16 %v292
    %v1601 = vunpack.c.h.b16 %v292
    %v1602 = vunpack.c.l.b16 %v293
    %v1603 = vunpack.c.h.b16 %v293
    %v1604 = vunpack.c.l.b16 %v294
    %v1605 = vunpack.c.h.b16 %v294
    %v1606 = vunpack.c.l.b16 %v295
    %v1607 = vunpack.c.h.b16 %v295
    %v1608 = vunpack.c.l.b16 %v296
    %v1609 = vunpack.c.h.b16 %v296
    %v1610 = vunpack.c.l.b16 %v297
    %v1611 = vunpack.c.h.b16 %v297
    %v1612 = vunpack.c.l.b16 %v298
    %v1613 = vunpack.c.h.b16 %v298
    %v1614 = vunpack.c.l.b16 %v299
    %v1615 = vunpack.c.h.b16 %v299
    %v1616 = vunpack.c.l.b16 %v300
    %v1617 = vunpack.c.h.b16 %v300
    %v1618 = vunpack.c.l.b16 %v301
    %v1619 = vunpack.c.h.b16 %v301
    %v1620 = vunpack.c.l.b16 %v302
    %v1621 = vunpack.c.h.b16 %v302
    %v1622 = vunpack.c.l.b16 %v303
    %v1623 = vunpack.c.h.b16 %v303
    %v1624 = vunpack.c.l.b16 %v304
    %v1625 = vunpack.c.h.b16 %v304
    %v1626 = vunpack.c.l.b16 %v305
    %v1627 = vunpack.c.h.b16 %v305
    %v1628 = vunpack.c.l.b16 %v306
    %v1629 = vunpack.c.h.b16 %v306
    %v1630 = vunpack.c.l.b16 %v307
    %v1631 = vunpack.c.h.b16 %v307
    %v1632 = vunpack.c.l.b16 %v308
    %v1633 = vunpack.c.h.b16 %v308
    %v1634 = vunpack.c.l.b16 %v309
    %v1635 = vunpack.c.h.b16 %v309
    %v1636 = vunpack.c.l.b16 %v310
    %v1637 = vunpack.c.h.b16 %v310
    %v1638 = vunpack.c.l.b16 %v311
    %v1639 = vunpack.c.h.b16 %v311
    %v1640 = vunpack.c.l.b16 %v312
    %v1641 = vunpack.c.h.b16 %v312
    %v1642 = vunpack.c.l.b16 %v313
    %v1643 = vunpack.c.h.b16 %v313
    %v1644 = vunpack.c.l.b16 %v314
    %v1645 = vunpack.c.h.b16 %v314
    %v1646 = vunpack.c.l.b16 %v315
    %v1647 = vunpack.c.h.b16 %v315
    %v1648 = vunpack.c.l.b16 %v316
    %v1649 = vunpack.c.h.b16 %v316
    %v1650 = vunpack.c.l.b16 %v317
    %v1651 = vunpack.c.h.b16 %v317
    %v1652 = vunpack.c.l.b16 %v318
    %v1653 = vunpack.c.h.b16 %v318
    %v1654 = vunpack.c.l.b16 %v319
    %v1655 = vunpack.c.h.b16 %v319
    %v1656 = vunpack.c.l.b16 %v320
    %v1657 = vunpack.c.h.b16 %v320
    %v1658 = vunpack.c.l.b16 %v321
    %v1659 = vunpack.c.h.b16 %v321
    %v1660 = vunpack.c.l.b16 %v322
    %v1661 = vunpack.c.h.b16 %v322
    %v1662 = vunpack.c.l.b16 %v323
    %v1663 = vunpack.c.h.b16 %v323
    %v1664 = vunpack.c.l.b16 %v324
    %v1665 = vunpack.c.h.b16 %v324
    %v1666 = vunpack.c.l.b16 %v325
    %v1667 = vunpack.c.h.b16 %v325
    %v1668 = vunpack.c.l.b16 %v326
    %v1669 = vunpack.c.h.b16 %v326
    %v1670 = vunpack.c.l.b16 %v327
    %v1671 = vunpack.c.h.b16 %v327
    %v1672 = vunpack.c.l.b16 %v328
    %v1673 = vunpack.c.h.b16 %v328
    %v1674 = vunpack.c.l.b16 %v329
    %v1675 = vunpack.c.h.b16 %v329
    %v1676 = vunpack.c.l.b16 %v330
    %v1677 = vunpack.c.h.b16 %v330
    %v1678 = vunpack.c.l.b16 %v331
    %v1679 = vunpack.c.h.b16 %v331
    %v1680 = vunpack.c.l.b16 %v332
    %v1681 = vunpack.c.h.b16 %v332
    %v1682 = vunpack.c.l.b16 %v333
    %v1683 = vunpack.c.h.b16 %v333
    %v1684 = vunpack.c.l.b16 %v334
    %v1685 = vunpack.c.h.b16 %v334
    %v1686 = vunpack.c.l.b16 %v335
    %v1687 = vunpack.c.h.b16 %v335
    %v1688 = vunpack.c.l.b16 %v336
    %v1689 = vunpack.c.h.b16 %v336
    %v1690 = vunpack.c.l.b16 %v337
    %v1691 = vunpack.c.h.b16 %v337
    %v1692 = vunpack.c.l.b16 %v338
    %v1693 = vunpack.c.h.b16 %v338
    %v1694 = vunpack.c.l.b16 %v339
    %v1695 = vunpack.c.h.b16 %v339
    %v1696 = vunpack.c.l.b16 %v340
    %v1697 = vunpack.c.h.b16 %v340
    %v1698 = vunpack.c.l.b16 %v341
    %v1699 = vunpack.c.h.b16 %v341
    %v1700 = vunpack.c.l.b16 %v342
    %v1701 = vunpack.c.h.b16 %v342
    %v1702 = vunpack.c.l.b16 %v343
    %v1703 = vunpack.c.h.b16 %v343
    %v1704 = vunpack.c.l.b16 %v344
    %v1705 = vunpack.c.h.b16 %v344
    %v1706 = vunpack.c.l.b16 %v345
    %v1707 = vunpack.c.h.b16 %v345
    %v1708 = vunpack.c.l.b16 %v346
    %v1709 = vunpack.c.h.b16 %v346
    %v1710 = vunpack.c.l.b16 %v347
    %v1711 = vunpack.c.h.b16 %v347
    %v1712 = vunpack.c.l.b16 %v348
    %v1713 = vunpack.c.h.b16 %v348
    %v1714 = vunpack.c.l.b16 %v349
    %v1715 = vunpack.c.h.b16 %v349
    %v1716 = vunpack.c.l.b16 %v350
    %v1717 = vunpack.c.h.b16 %v350
    %v1718 = vunpack.c.l.b16 %v351
    %v1719 = vunpack.c.h.b16 %v351
    %v1720 = vunpack.c.l.b16 %v352
    %v1721 = vunpack.c.h.b16 %v352
    %v1722 = vunpack.c.l.b16 %v353
    %v1723 = vunpack.c.h.b16 %v353
    %v1724 = vunpack.c.l.b16 %v354
    %v1725 = vunpack.c.h.b16 %v354
    %v1726 = vunpack.c.l.b16 %v355
    %v1727 = vunpack.c.h.b16 %v355
    %v1728 = vunpack.c.l.b16 %v356
    %v1729 = vunpack.c.h.b16 %v356
    %v1730 = vunpack.c.l.b16 %v357
    %v1731 = vunpack.c.h.b16 %v357
    %v1732 = vunpack.c.l.b16 %v358
    %v1733 = vunpack.c.h.b16 %v358
    %v1734 = vunpack.c.l.b16 %v359
    %v1735 = vunpack.c.h.b16 %v359
    %v1736 = vunpack.c.l.b16 %v360
    %v1737 = vunpack.c.h.b16 %v360
    %v1738 = vunpack.c.l.b16 %v361
    %v1739 = vunpack.c.h.b16 %v361
    %v1740 = vunpack.c.l.b16 %v362
    %v1741 = vunpack.c.h.b16 %v362
    %v1742 = vunpack.c.l.b16 %v363
    %v1743 = vunpack.c.h.b16 %v363
    %v1744 = vunpack.c.l.b16 %v364
    %v1745 = vunpack.c.h.b16 %v364
    %v1746 = vunpack.c.l.b16 %v365
    %v1747 = vunpack.c.h.b16 %v365
    %v1748 = vunpack.c.l.b16 %v366
    %v1749 = vunpack.c.h.b16 %v366
    %v1750 = vunpack.c.l.b16 %v367
    %v1751 = vunpack.c.h.b16 %v367
    %v1752 = vunpack.c.l.b16 %v368
    %v1753 = vunpack.c.h.b16 %v368
    %v1754 = vunpack.c.l.b16 %v369
    %v1755 = vunpack.c.h.b16 %v369
    %v1756 = vunpack.c.l.b16 %v370
    %v1757 = vunpack.c.h.b16 %v370
    %v1758 = vunpack.c.l.b16 %v371
    %v1759 = vunpack.c.h.b16 %v371
    %v1760 = vunpack.c.l.b16 %v372
    %v1761 = vunpack.c.h.b16 %v372
    %v1762 = vunpack.c.l.b16 %v373
    %v1763 = vunpack.c.h.b16 %v373
    %v1764 = vunpack.c.l.b16 %v374
    %v1765 = vunpack.c.h.b16 %v374
    %v1766 = vunpack.c.l.b16 %v375
    %v1767 = vunpack.c.h.b16 %v375
    %v1768 = vunpack.c.l.b16 %v376
    %v1769 = vunpack.c.h.b16 %v376
    %v1770 = vunpack.c.l.b16 %v377
    %v1771 = vunpack.c.h.b16 %v377
    %v1772 = vunpack.c.l.b16 %v378
    %v1773 = vunpack.c.h.b16 %v378
    %v1774 = vunpack.c.l.b16 %v379
    %v1775 = vunpack.c.h.b16 %v379
    %v1776 = vunpack.c.l.b16 %v380
    %v1777 = vunpack.c.h.b16 %v380
    %v1778 = vunpack.c.l.b16 %v381
    %v1779 = vunpack.c.h.b16 %v381
    %v1780 = vunpack.c.l.b16 %v382
    %v1781 = vunpack.c.h.b16 %v382
    %v1782 = vunpack.c.l.b16 %v383
    %v1783 = vunpack.c.h.b16 %v383
    %v1784 = vunpack.c.l.b16 %v384
    %v1785 = vunpack.c.h.b16 %v384
    %v1786 = vunpack.c.l.b16 %v385
    %v1787 = vunpack.c.h.b16 %v385
    %v1788 = vunpack.c.l.b16 %v386
    %v1789 = vunpack.c.h.b16 %v386
    %v1790 = vunpack.c.l.b16 %v387
    %v1791 = vunpack.c.h.b16 %v387
    %v1792 = vunpack.c.l.b16 %v388
    %v1793 = vunpack.c.h.b16 %v388
    %v1794 = vunpack.c.l.b16 %v389
    %v1795 = vunpack.c.h.b16 %v389
    %v1796 = vunpack.c.l.b16 %v390
    %v1797 = vunpack.c.h.b16 %v390
    %v1798 = vunpack.c.l.b16 %v391
    %v1799 = vunpack.c.h.b16 %v391
    %v1800 = vunpack.c.l.b16 %v392
    %v1801 = vunpack.c.h.b16 %v392
    %v1802 = vunpack.c.l.b16 %v393
    %v1803 = vunpack.c.h.b16 %v393
    %v1804 = vunpack.c.l.b16 %v394
    %v1805 = vunpack.c.h.b16 %v394
    %v1806 = vunpack.c.l.b16 %v395
    %v1807 = vunpack.c.h.b16 %v395
    %v1808 = vunpack.c.l.b16 %v396
    %v1809 = vunpack.c.h.b16 %v396
    %v1810 = vunpack.c.l.b16 %v397
    %v1811 = vunpack.c.h.b16 %v397
    %v1812 = vunpack.c.l.b16 %v398
    %v1813 = vunpack.c.h.b16 %v398
    %v1814 = vunpack.c.l.b16 %v399
    %v1815 = vunpack.c.h.b16 %v399
    %v1816 = vunpack.c.l.b16 %v400
    %v1817 = vunpack.c.h.b16 %v400
    %v1818 = vunpack.c.l.b16 %v401
    %v1819 = vunpack.c.h.b16 %v401
    %v1820 = vunpack.c.l.b16 %v402
    %v1821 = vunpack.c.h.b16 %v402
    %v1822 = vunpack.c.l.b16 %v403
    %v1823 = vunpack.c.h.b16 %v403
    %v1824 = vunpack.c.l.b16 %v404
    %v1825 = vunpack.c.h.b16 %v404
    %v1826 = vunpack.c.l.b16 %v405
    %v1827 = vunpack.c.h.b16 %v405
    %v1828 = vunpack.c.l.b16 %v406
    %v1829 = vunpack.c.h.b16 %v406
    %v1830 = vunpack.c.l.b16 %v407
    %v1831 = vunpack.c.h.b16 %v407
    %v1832 = vunpack.c.l.b16 %v408
    %v1833 = vunpack.c.h.b16 %v408
    %v1834 = vunpack.c.l.b16 %v409
    %v1835 = vunpack.c.h.b16 %v409
    %v1836 = vunpack.c.l.b16 %v410
    %v1837 = vunpack.c.h.b16 %v410
    %v1838 = vunpack.c.l.b16 %v411
    %v1839 = vunpack.c.h.b16 %v411
    %v1840 = vunpack.c.l.b16 %v412
    %v1841 = vunpack.c.h.b16 %v412
    %v1842 = vunpack.c.l.b16 %v413
    %v1843 = vunpack.c.h.b16 %v413
    %v1844 = vunpack.c.l.b16 %v414
    %v1845 = vunpack.c.h.b16 %v414
    %v1846 = vunpack.c.l.b16 %v415
    %v1847 = vunpack.c.h.b16 %v415
    %v1848 = vunpack.c.l.b16 %v416
    %v1849 = vunpack.c.h.b16 %v416
    %v1850 = vunpack.c.l.b16 %v417
    %v1851 = vunpack.c.h.b16 %v417
    %v1852 = vunpack.c.l.b16 %v418
    %v1853 = vunpack.c.h.b16 %v418
    %v1854 = vunpack.c.l.b16 %v419
    %v1855 = vunpack.c.h.b16 %v419
    %v1856 = vunpack.c.l.b16 %v420
    %v1857 = vunpack.c.h.b16 %v420
    %v1858 = vunpack.c.l.b16 %v421
    %v1859 = vunpack.c.h.b16 %v421
    %v1860 = vunpack.c.l.b16 %v422
    %v1861 = vunpack.c.h.b16 %v422
    %v1862 = vunpack.c.l.b16 %v423
    %v1863 = vunpack.c.h.b16 %v423
    %v1864 = vunpack.c.l.b16 %v424
    %v1865 = vunpack.c.h.b16 %v424
    %v1866 = vunpack.c.l.b16 %v425
    %v1867 = vunpack.c.h.b16 %v425
    %v1868 = vunpack.c.l.b16 %v426
    %v1869 = vunpack.c.h.b16 %v426
    %v1870 = vunpack.c.l.b16 %v427
    %v1871 = vunpack.c.h.b16 %v427
    %v1872 = vunpack.c.l.b16 %v428
    %v1873 = vunpack.c.h.b16 %v428
    %v1874 = vunpack.c.l.b16 %v429
    %v1875 = vunpack.c.h.b16 %v429
    %v1876 = vunpack.c.l.b16 %v430
    %v1877 = vunpack.c.h.b16 %v430
    %v1878 = vunpack.c.l.b16 %v431
    %v1879 = vunpack.c.h.b16 %v431
    %v1880 = vunpack.c.l.b16 %v432
    %v1881 = vunpack.c.h.b16 %v432
    %v1882 = vunpack.c.l.b16 %v433
    %v1883 = vunpack.c.h.b16 %v433
    %v1884 = vunpack.c.l.b16 %v434
    %v1885 = vunpack.c.h.b16 %v434
    %v1886 = vunpack.c.l.b16 %v435
    %v1887 = vunpack.c.h.b16 %v435
    %v1888 = vunpack.c.l.b16 %v436
    %v1889 = vunpack.c.h.b16 %v436
    %v1890 = vunpack.c.l.b16 %v437
    %v1891 = vunpack.c.h.b16 %v437
    %v1892 = vunpack.c.l.b16 %v438
    %v1893 = vunpack.c.h.b16 %v438
    %v1894 = vunpack.c.l.b16 %v439
    %v1895 = vunpack.c.h.b16 %v439
    %v1896 = vunpack.c.l.b16 %v440
    %v1897 = vunpack.c.h.b16 %v440
    %v1898 = vunpack.c.l.b16 %v441
    %v1899 = vunpack.c.h.b16 %v441
    %v1900 = vunpack.c.l.b16 %v442
    %v1901 = vunpack.c.h.b16 %v442
    %v1902 = vunpack.c.l.b16 %v443
    %v1903 = vunpack.c.h.b16 %v443
    %v1904 = vunpack.c.l.b16 %v444
    %v1905 = vunpack.c.h.b16 %v444
    %v1906 = vunpack.c.l.b16 %v445
    %v1907 = vunpack.c.h.b16 %v445
    %v1908 = vunpack.c.l.b16 %v446
    %v1909 = vunpack.c.h.b16 %v446
    %v1910 = vunpack.c.l.b16 %v447
    %v1911 = vunpack.c.h.b16 %v447
    %v1912 = vunpack.c.l.b16 %v448
    %v1913 = vunpack.c.h.b16 %v448
    %v1914 = vunpack.c.l.b16 %v449
    %v1915 = vunpack.c.h.b16 %v449
    %v1916 = vunpack.c.l.b16 %v450
    %v1917 = vunpack.c.h.b16 %v450
    %v1918 = vunpack.c.l.b16 %v451
    %v1919 = vunpack.c.h.b16 %v451
    %v1920 = vunpack.c.l.b16 %v452
    %v1921 = vunpack.c.h.b16 %v452
    %v1922 = vunpack.c.l.b16 %v453
    %v1923 = vunpack.c.h.b16 %v453
    %v1924 = vunpack.c.l.b16 %v454
    %v1925 = vunpack.c.h.b16 %v454
    %v1926 = vunpack.c.l.b16 %v455
    %v1927 = vunpack.c.h.b16 %v455
    %v1928 = vunpack.c.l.b16 %v456
    %v1929 = vunpack.c.h.b16 %v456
    %v1930 = vunpack.c.l.b16 %v457
    %v1931 = vunpack.c.h.b16 %v457
    %v1932 = vunpack.c.l.b16 %v458
    %v1933 = vunpack.c.h.b16 %v458
    %v1934 = vunpack.c.l.b16 %v459
    %v1935 = vunpack.c.h.b16 %v459
    %v1936 = vunpack.c.l.b16 %v460
    %v1937 = vunpack.c.h.b16 %v460
    %v1938 = vunpack.c.l.b16 %v461
    %v1939 = vunpack.c.h.b16 %v461
    %v1940 = vunpack.c.l.b16 %v462
    %v1941 = vunpack.c.h.b16 %v462
    %v1942 = vunpack.c.l.b16 %v463
    %v1943 = vunpack.c.h.b16 %v463
    %v1944 = vunpack.c.l.b16 %v464
    %v1945 = vunpack.c.h.b16 %v464
    %v1946 = vunpack.c.l.b16 %v465
    %v1947 = vunpack.c.h.b16 %v465
    %v1948 = vunpack.c.l.b16 %v466
    %v1949 = vunpack.c.h.b16 %v466
    %v1950 = vunpack.c.l.b16 %v467
    %v1951 = vunpack.c.h.b16 %v467
    %v1952 = vunpack.c.l.b16 %v468
    %v1953 = vunpack.c.h.b16 %v468
    %v1954 = vunpack.c.l.b16 %v469
    %v1955 = vunpack.c.h.b16 %v469
    %v1956 = vunpack.c.l.b16 %v470
    %v1957 = vunpack.c.h.b16 %v470
    %v1958 = vunpack.c.l.b16 %v471
    %v1959 = vunpack.c.h.b16 %v471
    %v1960 = vunpack.c.l.b16 %v472
    %v1961 = vunpack.c.h.b16 %v472
    %v1962 = vunpack.c.l.b16 %v473
    %v1963 = vunpack.c.h.b16 %v473
    %v1964 = vunpack.c.l.b16 %v474
    %v1965 = vunpack.c.h.b16 %v474
    %v1966 = vunpack.c.l.b16 %v475
    %v1967 = vunpack.c.h.b16 %v475
    %v1968 = vunpack.c.l.b16 %v476
    %v1969 = vunpack.c.h.b16 %v476
    %v1970 = vunpack.c.l.b16 %v477
    %v1971 = vunpack.c.h.b16 %v477
    %v1972 = vunpack.c.l.b16 %v478
    %v1973 = vunpack.c.h.b16 %v478
    %v1974 = vunpack.c.l.b16 %v479
    %v1975 = vunpack.c.h.b16 %v479
    %v1976 = vunpack.c.l.b16 %v480
    %v1977 = vunpack.c.h.b16 %v480
    %v1978 = vunpack.c.l.b16 %v481
    %v1979 = vunpack.c.h.b16 %v481
    %v1980 = vunpack.c.l.b16 %v482
    %v1981 = vunpack.c.h.b16 %v482
    %v1982 = vunpack.c.l.b16 %v483
    %v1983 = vunpack.c.h.b16 %v483
    %v1984 = vunpack.c.l.b16 %v484
    %v1985 = vunpack.c.h.b16 %v484
    %v1986 = vunpack.c.l.b16 %v485
    %v1987 = vunpack.c.h.b16 %v485
    %v1988 = vunpack.c.l.b16 %v486
    %v1989 = vunpack.c.h.b16 %v486
    %v1990 = vunpack.c.l.b16 %v487
    %v1991 = vunpack.c.h.b16 %v487
    %v1992 = vunpack.c.l.b16 %v488
    %v1993 = vunpack.c.h.b16 %v488
    %v1994 = vunpack.c.l.b16 %v489
    %v1995 = vunpack.c.h.b16 %v489
    %v1996 = vunpack.c.l.b16 %v490
    %v1997 = vunpack.c.h.b16 %v490
    %v1998 = vunpack.c.l.b16 %v491
    %v1999 = vunpack.c.h.b16 %v491
    %v2000 = vunpack.c.l.b16 %v492
    %v2001 = vunpack.c.h.b16 %v492
    %v2002 = vunpack.c.l.b16 %v493
    %v2003 = vunpack.c.h.b16 %v493
    %v2004 = vunpack.c.l.b16 %v494
    %v2005 = vunpack.c.h.b16 %v494
    %v2006 = vunpack.c.l.b16 %v495
    %v2007 = vunpack.c.h.b16 %v495
    %v2008 = vunpack.c.l.b16 %v496
    %v2009 = vunpack.c.h.b16 %v496
    %v2010 = vunpack.c.l.b16 %v497
    %v2011 = vunpack.c.h.b16 %v497
    %v2012 = vunpack.c.l.b16 %v498
    %v2013 = vunpack.c.h.b16 %v498
    %v2014 = vunpack.c.l.b16 %v499
    %v2015 = vunpack.c.h.b16 %v499
    %v2016 = vunpack.c.l.b16 %v500
    %v2017 = vunpack.c.h.b16 %v500
    %v2018 = vunpack.c.l.b16 %v501
    %v2019 = vunpack.c.h.b16 %v501
    %v2020 = vunpack.c.l.b16 %v502
    %v2021 = vunpack.c.h.b16 %v502
    %v2022 = vunpack.c.l.b16 %v503
    %v2023 = vunpack.c.h.b16 %v503
    %v2024 = vunpack.c.l.b16 %v504
    %v2025 = vunpack.c.h.b16 %v504
    %v2026 = vunpack.c.l.b16 %v505
    %v2027 = vunpack.c.h.b16 %v505
    %v2028 = vunpack.c.l.b16 %v506
    %v2029 = vunpack.c.h.b16 %v506
    %v2030 = vunpack.c.l.b16 %v507
    %v2031 = vunpack.c.h.b16 %v507
    %v2032 = vunpack.c.l.b16 %v508
    %v2033 = vunpack.c.h.b16 %v508
    %v2034 = vunpack.c.l.b16 %v509
    %v2035 = vunpack.c.h.b16 %v509
    %v2036 = vunpack.c.l.b16 %v510
    %v2037 = vunpack.c.h.b16 %v510
    %v2038 = vunpack.c.l.b16 %v511
    %v2039 = vunpack.c.h.b16 %v511
    %v2040 = vunpack.c.l.b16 %v512
    %v2041 = vunpack.c.h.b16 %v512
    %v2042 = vunpack.c.l.b16 %v513
    %v2043 = vunpack.c.h.b16 %v513
    %v2044 = vunpack.c.l.b16 %v514
    %v2045 = vunpack.c.h.b16 %v514
    %v2046 = vunpack.c.l.b16 %v515
    %v2047 = vunpack.c.h.b16 %v515
    %v2048 = vunpack.c.l.b16 %v516
    %v2049 = vunpack.c.h.b16 %v516
    %v2050 = vunpack.c.l.b16 %v517
    %v2051 = vunpack.c.h.b16 %v517
    %v2052 = vunpack.c.l.b16 %v518
    %v2053 = vunpack.c.h.b16 %v518
    %v2054 = vunpack.c.l.b16 %v519
    %v2055 = vunpack.c.h.b16 %v519
    %v2056 = vunpack.c.l.b16 %v520
    %v2057 = vunpack.c.h.b16 %v520
    %v2058 = vunpack.c.l.b16 %v521
    %v2059 = vunpack.c.h.b16 %v521
    %v2060 = vunpack.c.l.b16 %v522
    %v2061 = vunpack.c.h.b16 %v522
    %v2062 = vunpack.c.l.b16 %v523
    %v2063 = vunpack.c.h.b16 %v523
    %v2064 = vunpack.c.l.b16 %v524
    %v2065 = vunpack.c.h.b16 %v524
    %v2066 = vunpack.c.l.b16 %v525
    %v2067 = vunpack.c.h.b16 %v525
    %v2068 = vunpack.c.l.b16 %v526
    %v2069 = vunpack.c.h.b16 %v526
    %v2070 = vunpack.c.l.b16 %v527
    %v2071 = vunpack.c.h.b16 %v527
    %v2072 = vunpack.c.l.b16 %v528
    %v2073 = vunpack.c.h.b16 %v528
    %v2074 = vunpack.c.l.b16 %v529
    %v2075 = vunpack.c.h.b16 %v529
    %v2076 = vunpack.c.l.b16 %v530
    %v2077 = vunpack.c.h.b16 %v530
    %v2078 = vunpack.c.l.b16 %v531
    %v2079 = vunpack.c.h.b16 %v531
    %v2080 = vunpack.c.l.b16 %v532
    %v2081 = vunpack.c.h.b16 %v532
    %v2082 = vunpack.c.l.b16 %v533
    %v2083 = vunpack.c.h.b16 %v533
    %v2084 = vunpack.c.l.b16 %v534
    %v2085 = vunpack.c.h.b16 %v534
    %v2086 = vunpack.c.l.b16 %v535
    %v2087 = vunpack.c.h.b16 %v535
    %v2088 = vunpack.c.l.b16 %v536
    %v2089 = vunpack.c.h.b16 %v536
    %v2090 = vunpack.c.l.b16 %v537
    %v2091 = vunpack.c.h.b16 %v537
    %v2092 = vunpack.c.l.b16 %v538
    %v2093 = vunpack.c.h.b16 %v538
    %v2094 = vunpack.c.l.b16 %v539
    %v2095 = vunpack.c.h.b16 %v539
    %v2096 = vunpack.c.l.b16 %v540
    %v2097 = vunpack.c.h.b16 %v540
    %v2098 = vunpack.c.l.b16 %v541
    %v2099 = vunpack.c.h.b16 %v541
    %v2100 = vunpack.c.l.b16 %v542
    %v2101 = vunpack.c.h.b16 %v542
    %v2102 = vunpack.c.l.b16 %v543
    %v2103 = vunpack.c.h.b16 %v543
    %v2104 = vunpack.c.l.b16 %v544
    %v2105 = vunpack.c.h.b16 %v544
    %v2106 = vunpack.c.l.b16 %v545
    %v2107 = vunpack.c.h.b16 %v545
    %v2108 = vunpack.c.l.b16 %v546
    %v2109 = vunpack.c.h.b16 %v546
    %v2110 = vunpack.c.l.b16 %v547
    %v2111 = vunpack.c.h.b16 %v547
    %v2112 = vunpack.c.l.b16 %v548
    %v2113 = vunpack.c.h.b16 %v548
    %v2114 = vunpack.c.l.b16 %v549
    %v2115 = vunpack.c.h.b16 %v549
    %v2116 = vunpack.c.l.b16 %v550
    %v2117 = vunpack.c.h.b16 %v550
    %v2118 = vunpack.c.l.b16 %v551
    %v2119 = vunpack.c.h.b16 %v551
    %v2120 = vunpack.c.l.b16 %v552
    %v2121 = vunpack.c.h.b16 %v552
    %v2122 = vunpack.c.l.b16 %v553
    %v2123 = vunpack.c.h.b16 %v553
    %v2124 = vunpack.c.l.b16 %v554
    %v2125 = vunpack.c.h.b16 %v554
    %v2126 = vunpack.c.l.b16 %v555
    %v2127 = vunpack.c.h.b16 %v555
    %v2128 = vunpack.c.l.b16 %v556
    %v2129 = vunpack.c.h.b16 %v556
    %v2130 = vunpack.c.l.b16 %v557
    %v2131 = vunpack.c.h.b16 %v557
    %v2132 = vunpack.c.l.b16 %v558
    %v2133 = vunpack.c.h.b16 %v558
    %v2134 = vunpack.c.l.b16 %v559
    %v2135 = vunpack.c.h.b16 %v559
    %v2136 = vunpack.c.l.b16 %v560
    %v2137 = vunpack.c.h.b16 %v560
    %v2138 = vunpack.c.l.b16 %v561
    %v2139 = vunpack.c.h.b16 %v561
    %v2140 = vpack.c.b16 %v1124, %v1116
    %v2141 = vpack.c.b16 %v1125, %v1117
    %v2142 = vpack.c.b16 %v1126, %v1118
    %v2143 = vpack.c.b16 %v1127, %v1119
    %v2144 = vpack.c.b16 %v1128, %v1120
    %v2145 = vpack.c.b16 %v1129, %v1121
    %v2146 = vpack.c.b16 %v1130, %v1122
    %v2147 = vpack.c.b16 %v1131, %v1123
    %v2148 = vpack.c.b16 %v1140, %v1132
    %v2149 = vpack.c.b16 %v1141, %v1133
    %v2150 = vpack.c.b16 %v1142, %v1134
    %v2151 = vpack.c.b16 %v1143, %v1135
    %v2152 = vpack.c.b16 %v1144, %v1136
    %v2153 = vpack.c.b16 %v1145, %v1137
    %v2154 = vpack.c.b16 %v1146, %v1138
    %v2155 = vpack.c.b16 %v1147, %v1139
    %v2156 = vpack.c.b16 %v1156, %v1148
    %v2157 = vpack.c.b16 %v1157, %v1149
    %v2158 = vpack.c.b16 %v1158, %v1150
    %v2159 = vpack.c.b16 %v1159, %v1151
    %v2160 = vpack.c.b16 %v1160, %v1152
    %v2161 = vpack.c.b16 %v1161, %v1153
    %v2162 = vpack.c.b16 %v1162, %v1154
    %v2163 = vpack.c.b16 %v1163, %v1155
    %v2164 = vpack.c.b16 %v1172, %v1164
    %v2165 = vpack.c.b16 %v1173, %v1165
    %v2166 = vpack.c.b16 %v1174, %v1166
    %v2167 = vpack.c.b16 %v1175, %v1167
    %v2168 = vpack.c.b16 %v1176, %v1168
    %v2169 = vpack.c.b16 %v1177, %v1169
    %v2170 = vpack.c.b16 %v1178, %v1170
    %v2171 = vpack.c.b16 %v1179, %v1171
    %v2172 = vpack.c.b16 %v1188, %v1180
    %v2173 = vpack.c.b16 %v1189, %v1181
    %v2174 = vpack.c.b16 %v1190, %v1182
    %v2175 = vpack.c.b16 %v1191, %v1183
    %v2176 = vpack.c.b16 %v1192, %v1184
    %v2177 = vpack.c.b16 %v1193, %v1185
    %v2178 = vpack.c.b16 %v1194, %v1186
    %v2179 = vpack.c.b16 %v1195, %v1187
    %v2180 = vpack.c.b16 %v1204, %v1196
    %v2181 = vpack.c.b16 %v1205, %v1197
    %v2182 = vpack.c.b16 %v1206, %v1198
    %v2183 = vpack.c.b16 %v1207, %v1199
    %v2184 = vpack.c.b16 %v1208, %v1200
    %v2185 = vpack.c.b16 %v1209, %v1201
    %v2186 = vpack.c.b16 %v1210, %v1202
    %v2187 = vpack.c.b16 %v1211, %v1203
    %v2188 = vpack.c.b16 %v1220, %v1212
    %v2189 = vpack.c.b16 %v1221, %v1213
    %v2190 = vpack.c.b16 %v1222, %v1214
    %v2191 = vpack.c.b16 %v1223, %v1215
    %v2192 = vpack.c.b16 %v1224, %v1216
    %v2193 = vpack.c.b16 %v1225, %v1217
    %v2194 = vpack.c.b16 %v1226, %v1218
    %v2195 = vpack.c.b16 %v1227, %v1219
    %v2196 = vpack.c.b16 %v1236, %v1228
    %v2197 = vpack.c.b16 %v1237, %v1229
    %v2198 = vpack.c.b16 %v1238, %v1230
    %v2199 = vpack.c.b16 %v1239, %v1231
    %v2200 = vpack.c.b16 %v1240, %v1232
    %v2201 = vpack.c.b16 %v1241, %v1233
    %v2202 = vpack.c.b16 %v1242, %v1234
    %v2203 = vpack.c.b16 %v1243, %v1235
    %v2204 = vpack.c.b16 %v1252, %v1244
    %v2205 = vpack.c.b16 %v1253, %v1245
    %v2206 = vpack.c.b16 %v1254, %v1246
    %v2207 = vpack.c.b16 %v1255, %v1247
    %v2208 = vpack.c.b16 %v1256, %v1248
    %v2209 = vpack.c.b16 %v1257, %v1249
    %v2210 = vpack.c.b16 %v1258, %v1250
    %v2211 = vpack.c.b16 %v1259, %v1251
    %v2212 = vpack.c.b16 %v1268, %v1260
    %v2213 = vpack.c.b16 %v1269, %v1261
    %v2214 = vpack.c.b16 %v1270, %v1262
    %v2215 = vpack.c.b16 %v1271, %v1263
    %v2216 = vpack.c.b16 %v1272, %v1264
    %v2217 = vpack.c.b16 %v1273, %v1265
    %v2218 = vpack.c.b16 %v1274, %v1266
    %v2219 = vpack.c.b16 %v1275, %v1267
    %v2220 = vpack.c.b16 %v1284, %v1276
    %v2221 = vpack.c.b16 %v1285, %v1277
    %v2222 = vpack.c.b16 %v1286, %v1278
    %v2223 = vpack.c.b16 %v1287, %v1279
    %v2224 = vpack.c.b16 %v1288, %v1280
    %v2225 = vpack.c.b16 %v1289, %v1281
    %v2226 = vpack.c.b16 %v1290, %v1282
    %v2227 = vpack.c.b16 %v1291, %v1283
    %v2228 = vpack.c.b16 %v1300, %v1292
    %v2229 = vpack.c.b16 %v1301, %v1293
    %v2230 = vpack.c.b16 %v1302, %v1294
    %v2231 = vpack.c.b16 %v1303, %v1295
    %v2232 = vpack.c.b16 %v1304, %v1296
    %v2233 = vpack.c.b16 %v1305, %v1297
    %v2234 = vpack.c.b16 %v1306, %v1298
    %v2235 = vpack.c.b16 %v1307, %v1299
    %v2236 = vpack.c.b16 %v1316, %v1308
    %v2237 = vpack.c.b16 %v1317, %v1309
    %v2238 = vpack.c.b16 %v1318, %v1310
    %v2239 = vpack.c.b16 %v1319, %v1311
    %v2240 = vpack.c.b16 %v1320, %v1312
    %v2241 = vpack.c.b16 %v1321, %v1313
    %v2242 = vpack.c.b16 %v1322, %v1314
    %v2243 = vpack.c.b16 %v1323, %v1315
    %v2244 = vpack.c.b16 %v1332, %v1324
    %v2245 = vpack.c.b16 %v1333, %v1325
    %v2246 = vpack.c.b16 %v1334, %v1326
    %v2247 = vpack.c.b16 %v1335, %v1327
    %v2248 = vpack.c.b16 %v1336, %v1328
    %v2249 = vpack.c.b16 %v1337, %v1329
    %v2250 = vpack.c.b16 %v1338, %v1330
    %v2251 = vpack.c.b16 %v1339, %v1331
    %v2252 = vpack.c.b16 %v1348, %v1340
    %v2253 = vpack.c.b16 %v1349, %v1341
    %v2254 = vpack.c.b16 %v1350, %v1342
    %v2255 = vpack.c.b16 %v1351, %v1343
    %v2256 = vpack.c.b16 %v1352, %v1344
    %v2257 = vpack.c.b16 %v1353, %v1345
    %v2258 = vpack.c.b16 %v1354, %v1346
    %v2259 = vpack.c.b16 %v1355, %v1347
    %v2260 = vpack.c.b16 %v1364, %v1356
    %v2261 = vpack.c.b16 %v1365, %v1357
    %v2262 = vpack.c.b16 %v1366, %v1358
    %v2263 = vpack.c.b16 %v1367, %v1359
    %v2264 = vpack.c.b16 %v1368, %v1360
    %v2265 = vpack.c.b16 %v1369, %v1361
    %v2266 = vpack.c.b16 %v1370, %v1362
    %v2267 = vpack.c.b16 %v1371, %v1363
    %v2268 = vpack.c.b16 %v1380, %v1372
    %v2269 = vpack.c.b16 %v1381, %v1373
    %v2270 = vpack.c.b16 %v1382, %v1374
    %v2271 = vpack.c.b16 %v1383, %v1375
    %v2272 = vpack.c.b16 %v1384, %v1376
    %v2273 = vpack.c.b16 %v1385, %v1377
    %v2274 = vpack.c.b16 %v1386, %v1378
    %v2275 = vpack.c.b16 %v1387, %v1379
    %v2276 = vpack.c.b16 %v1396, %v1388
    %v2277 = vpack.c.b16 %v1397, %v1389
    %v2278 = vpack.c.b16 %v1398, %v1390
    %v2279 = vpack.c.b16 %v1399, %v1391
    %v2280 = vpack.c.b16 %v1400, %v1392
    %v2281 = vpack.c.b16 %v1401, %v1393
    %v2282 = vpack.c.b16 %v1402, %v1394
    %v2283 = vpack.c.b16 %v1403, %v1395
    %v2284 = vpack.c.b16 %v1412, %v1404
    %v2285 = vpack.c.b16 %v1413, %v1405
    %v2286 = vpack.c.b16 %v1414, %v1406
    %v2287 = vpack.c.b16 %v1415, %v1407
    %v2288 = vpack.c.b16 %v1416, %v1408
    %v2289 = vpack.c.b16 %v1417, %v1409
    %v2290 = vpack.c.b16 %v1418, %v1410
    %v2291 = vpack.c.b16 %v1419, %v1411
    %v2292 = vpack.c.b16 %v1428, %v1420
    %v2293 = vpack.c.b16 %v1429, %v1421
    %v2294 = vpack.c.b16 %v1430, %v1422
    %v2295 = vpack.c.b16 %v1431, %v1423
    %v2296 = vpack.c.b16 %v1432, %v1424
    %v2297 = vpack.c.b16 %v1433, %v1425
    %v2298 = vpack.c.b16 %v1434, %v1426
    %v2299 = vpack.c.b16 %v1435, %v1427
    %v2300 = vpack.c.b16 %v1444, %v1436
    %v2301 = vpack.c.b16 %v1445, %v1437
    %v2302 = vpack.c.b16 %v1446, %v1438
    %v2303 = vpack.c.b16 %v1447, %v1439
    %v2304 = vpack.c.b16 %v1448, %v1440
    %v2305 = vpack.c.b16 %v1449, %v1441
    %v2306 = vpack.c.b16 %v1450, %v1442
    %v2307 = vpack.c.b16 %v1451, %v1443
    %v2308 = vpack.c.b16 %v1460, %v1452
    %v2309 = vpack.c.b16 %v1461, %v1453
    %v2310 = vpack.c.b16 %v1462, %v1454
    %v2311 = vpack.c.b16 %v1463, %v1455
    %v2312 = vpack.c.b16 %v1464, %v1456
    %v2313 = vpack.c.b16 %v1465, %v1457
    %v2314 = vpack.c.b16 %v1466, %v1458
    %v2315 = vpack.c.b16 %v1467, %v1459
    %v2316 = vpack.c.b16 %v1476, %v1468
    %v2317 = vpack.c.b16 %v1477, %v1469
    %v2318 = vpack.c.b16 %v1478, %v1470
    %v2319 = vpack.c.b16 %v1479, %v1471
    %v2320 = vpack.c.b16 %v1480, %v1472
    %v2321 = vpack.c.b16 %v1481, %v1473
    %v2322 = vpack.c.b16 %v1482, %v1474
    %v2323 = vpack.c.b16 %v1483, %v1475
    %v2324 = vpack.c.b16 %v1492, %v1484
    %v2325 = vpack.c.b16 %v1493, %v1485
    %v2326 = vpack.c.b16 %v1494, %v1486
    %v2327 = vpack.c.b16 %v1495, %v1487
    %v2328 = vpack.c.b16 %v1496, %v1488
    %v2329 = vpack.c.b16 %v1497, %v1489
    %v2330 = vpack.c.b16 %v1498, %v1490
    %v2331 = vpack.c.b16 %v1499, %v1491
    %v2332 = vpack.c.b16 %v1508, %v1500
    %v2333 = vpack.c.b16 %v1509, %v1501
    %v2334 = vpack.c.b16 %v1510, %v1502
    %v2335 = vpack.c.b16 %v1511, %v1503
    %v2336 = vpack.c.b16 %v1512, %v1504
    %v2337 = vpack.c.b16 %v1513, %v1505
    %v2338 = vpack.c.b16 %v1514, %v1506
    %v2339 = vpack.c.b16 %v1515, %v1507
    %v2340 = vpack.c.b16 %v1524, %v1516
    %v2341 = vpack.c.b16 %v1525, %v1517
    %v2342 = vpack.c.b16 %v1526, %v1518
    %v2343 = vpack.c.b16 %v1527, %v1519
    %v2344 = vpack.c.b16 %v1528, %v1520
    %v2345 = vpack.c.b16 %v1529, %v1521
    %v2346 = vpack.c.b16 %v1530, %v1522
    %v2347 = vpack.c.b16 %v1531, %v1523
    %v2348 = vpack.c.b16 %v1540, %v1532
    %v2349 = vpack.c.b16 %v1541, %v1533
    %v2350 = vpack.c.b16 %v1542, %v1534
    %v2351 = vpack.c.b16 %v1543, %v1535
    %v2352 = vpack.c.b16 %v1544, %v1536
    %v2353 = vpack.c.b16 %v1545, %v1537
    %v2354 = vpack.c.b16 %v1546, %v1538
    %v2355 = vpack.c.b16 %v1547, %v1539
    %v2356 = vpack.c.b16 %v1556, %v1548
    %v2357 = vpack.c.b16 %v1557, %v1549
    %v2358 = vpack.c.b16 %v1558, %v1550
    %v2359 = vpack.c.b16 %v1559, %v1551
    %v2360 = vpack.c.b16 %v1560, %v1552
    %v2361 = vpack.c.b16 %v1561, %v1553
    %v2362 = vpack.c.b16 %v1562, %v1554
    %v2363 = vpack.c.b16 %v1563, %v1555
    %v2364 = vpack.c.b16 %v1572, %v1564
    %v2365 = vpack.c.b16 %v1573, %v1565
    %v2366 = vpack.c.b16 %v1574, %v1566
    %v2367 = vpack.c.b16 %v1575, %v1567
    %v2368 = vpack.c.b16 %v1576, %v1568
    %v2369 = vpack.c.b16 %v1577, %v1569
    %v2370 = vpack.c.b16 %v1578, %v1570
    %v2371 = vpack.c.b16 %v1579, %v1571
    %v2372 = vpack.c.b16 %v1588, %v1580
    %v2373 = vpack.c.b16 %v1589, %v1581
    %v2374 = vpack.c.b16 %v1590, %v1582
    %v2375 = vpack.c.b16 %v1591, %v1583
    %v2376 = vpack.c.b16 %v1592, %v1584
    %v2377 = vpack.c.b16 %v1593, %v1585
    %v2378 = vpack.c.b16 %v1594, %v1586
    %v2379 = vpack.c.b16 %v1595, %v1587
    %v2380 = vpack.c.b16 %v1604, %v1596
    %v2381 = vpack.c.b16 %v1605, %v1597
    %v2382 = vpack.c.b16 %v1606, %v1598
    %v2383 = vpack.c.b16 %v1607, %v1599
    %v2384 = vpack.c.b16 %v1608, %v1600
    %v2385 = vpack.c.b16 %v1609, %v1601
    %v2386 = vpack.c.b16 %v1610, %v1602
    %v2387 = vpack.c.b16 %v1611, %v1603
    %v2388 = vpack.c.b16 %v1620, %v1612
    %v2389 = vpack.c.b16 %v1621, %v1613
    %v2390 = vpack.c.b16 %v1622, %v1614
    %v2391 = vpack.c.b16 %v1623, %v1615
    %v2392 = vpack.c.b16 %v1624, %v1616
    %v2393 = vpack.c.b16 %v1625, %v1617
    %v2394 = vpack.c.b16 %v1626, %v1618
    %v2395 = vpack.c.b16 %v1627, %v1619
    %v2396 = vpack.c.b16 %v1636, %v1628
    %v2397 = vpack.c.b16 %v1637, %v1629
    %v2398 = vpack.c.b16 %v1638, %v1630
    %v2399 = vpack.c.b16 %v1639, %v1631
    %v2400 = vpack.c.b16 %v1640, %v1632
    %v2401 = vpack.c.b16 %v1641, %v1633
    %v2402 = vpack.c.b16 %v1642, %v1634
    %v2403 = vpack.c.b16 %v1643, %v1635
    %v2404 = vpack.c.b16 %v1652, %v1644
    %v2405 = vpack.c.b16 %v1653, %v1645
    %v2406 = vpack.c.b16 %v1654, %v1646
    %v2407 = vpack.c.b16 %v1655, %v1647
    %v2408 = vpack.c.b16 %v1656, %v1648
    %v2409 = vpack.c.b16 %v1657, %v1649
    %v2410 = vpack.c.b16 %v1658, %v1650
    %v2411 = vpack.c.b16 %v1659, %v1651
    %v2412 = vpack.c.b16 %v1668, %v1660
    %v2413 = vpack.c.b16 %v1669, %v1661
    %v2414 = vpack.c.b16 %v1670, %v1662
    %v2415 = vpack.c.b16 %v1671, %v1663
    %v2416 = vpack.c.b16 %v1672, %v1664
    %v2417 = vpack.c.b16 %v1673, %v1665
    %v2418 = vpack.c.b16 %v1674, %v1666
    %v2419 = vpack.c.b16 %v1675, %v1667
    %v2420 = vpack.c.b16 %v1684, %v1676
    %v2421 = vpack.c.b16 %v1685, %v1677
    %v2422 = vpack.c.b16 %v1686, %v1678
    %v2423 = vpack.c.b16 %v1687, %v1679
    %v2424 = vpack.c.b16 %v1688, %v1680
    %v2425 = vpack.c.b16 %v1689, %v1681
    %v2426 = vpack.c.b16 %v1690, %v1682
    %v2427 = vpack.c.b16 %v1691, %v1683
    %v2428 = vpack.c.b16 %v1700, %v1692
    %v2429 = vpack.c.b16 %v1701, %v1693
    %v2430 = vpack.c.b16 %v1702, %v1694
    %v2431 = vpack.c.b16 %v1703, %v1695
    %v2432 = vpack.c.b16 %v1704, %v1696
    %v2433 = vpack.c.b16 %v1705, %v1697
    %v2434 = vpack.c.b16 %v1706, %v1698
    %v2435 = vpack.c.b16 %v1707, %v1699
    %v2436 = vpack.c.b16 %v1716, %v1708
    %v2437 = vpack.c.b16 %v1717, %v1709
    %v2438 = vpack.c.b16 %v1718, %v1710
    %v2439 = vpack.c.b16 %v1719, %v1711
    %v2440 = vpack.c.b16 %v1720, %v1712
    %v2441 = vpack.c.b16 %v1721, %v1713
    %v2442 = vpack.c.b16 %v1722, %v1714
    %v2443 = vpack.c.b16 %v1723, %v1715
    %v2444 = vpack.c.b16 %v1732, %v1724
    %v2445 = vpack.c.b16 %v1733, %v1725
    %v2446 = vpack.c.b16 %v1734, %v1726
    %v2447 = vpack.c.b16 %v1735, %v1727
    %v2448 = vpack.c.b16 %v1736, %v1728
    %v2449 = vpack.c.b16 %v1737, %v1729
    %v2450 = vpack.c.b16 %v1738, %v1730
    %v2451 = vpack.c.b16 %v1739, %v1731
    %v2452 = vpack.c.b16 %v1748, %v1740
    %v2453 = vpack.c.b16 %v1749, %v1741
    %v2454 = vpack.c.b16 %v1750, %v1742
    %v2455 = vpack.c.b16 %v1751, %v1743
    %v2456 = vpack.c.b16 %v1752, %v1744
    %v2457 = vpack.c.b16 %v1753, %v1745
    %v2458 = vpack.c.b16 %v1754, %v1746
    %v2459 = vpack.c.b16 %v1755, %v1747
    %v2460 = vpack.c.b16 %v1764, %v1756
    %v2461 = vpack.c.b16 %v1765, %v1757
    %v2462 = vpack.c.b16 %v1766, %v1758
    %v2463 = vpack.c.b16 %v1767, %v1759
    %v2464 = vpack.c.b16 %v1768, %v1760
    %v2465 = vpack.c.b16 %v1769, %v1761
    %v2466 = vpack.c.b16 %v1770, %v1762
    %v2467 = vpack.c.b16 %v1771, %v1763
    %v2468 = vpack.c.b16 %v1780, %v1772
    %v2469 = vpack.c.b16 %v1781, %v1773
    %v2470 = vpack.c.b16 %v1782, %v1774
    %v2471 = vpack.c.b16 %v1783, %v1775
    %v2472 = vpack.c.b16 %v1784, %v1776
    %v2473 = vpack.c.b16 %v1785, %v1777
    %v2474 = vpack.c.b16 %v1786, %v1778
    %v2475 = vpack.c.b16 %v1787, %v1779
    %v2476 = vpack.c.b16 %v1796, %v1788
    %v2477 = vpack.c.b16 %v1797, %v1789
    %v2478 = vpack.c.b16 %v1798, %v1790
    %v2479 = vpack.c.b16 %v1799, %v1791
    %v2480 = vpack.c.b16 %v1800, %v1792
    %v2481 = vpack.c.b16 %v1801, %v1793
    %v2482 = vpack.c.b16 %v1802, %v1794
    %v2483 = vpack.c.b16 %v1803, %v1795
    %v2484 = vpack.c.b16 %v1812, %v1804
    %v2485 = vpack.c.b16 %v1813, %v1805
    %v2486 = vpack.c.b16 %v1814, %v1806
    %v2487 = vpack.c.b16 %v1815, %v1807
    %v2488 = vpack.c.b16 %v1816, %v1808
    %v2489 = vpack.c.b16 %v1817, %v1809
    %v2490 = vpack.c.b16 %v1818, %v1810
    %v2491 = vpack.c.b16 %v1819, %v1811
    %v2492 = vpack.c.b16 %v1828, %v1820
    %v2493 = vpack.c.b16 %v1829, %v1821
    %v2494 = vpack.c.b16 %v1830, %v1822
    %v2495 = vpack.c.b16 %v1831, %v1823
    %v2496 = vpack.c.b16 %v1832, %v1824
    %v2497 = vpack.c.b16 %v1833, %v1825
    %v2498 = vpack.c.b16 %v1834, %v1826
    %v2499 = vpack.c.b16 %v1835, %v1827
    %v2500 = vpack.c.b16 %v1844, %v1836
    %v2501 = vpack.c.b16 %v1845, %v1837
    %v2502 = vpack.c.b16 %v1846, %v1838
    %v2503 = vpack.c.b16 %v1847, %v1839
    %v2504 = vpack.c.b16 %v1848, %v1840
    %v2505 = vpack.c.b16 %v1849, %v1841
    %v2506 = vpack.c.b16 %v1850, %v1842
    %v2507 = vpack.c.b16 %v1851, %v1843
    %v2508 = vpack.c.b16 %v1860, %v1852
    %v2509 = vpack.c.b16 %v1861, %v1853
    %v2510 = vpack.c.b16 %v1862, %v1854
    %v2511 = vpack.c.b16 %v1863, %v1855
    %v2512 = vpack.c.b16 %v1864, %v1856
    %v2513 = vpack.c.b16 %v1865, %v1857
    %v2514 = vpack.c.b16 %v1866, %v1858
    %v2515 = vpack.c.b16 %v1867, %v1859
    %v2516 = vpack.c.b16 %v1876, %v1868
    %v2517 = vpack.c.b16 %v1877, %v1869
    %v2518 = vpack.c.b16 %v1878, %v1870
    %v2519 = vpack.c.b16 %v1879, %v1871
    %v2520 = vpack.c.b16 %v1880, %v1872
    %v2521 = vpack.c.b16 %v1881, %v1873
    %v2522 = vpack.c.b16 %v1882, %v1874
    %v2523 = vpack.c.b16 %v1883, %v1875
    %v2524 = vpack.c.b16 %v1892, %v1884
    %v2525 = vpack.c.b16 %v1893, %v1885
    %v2526 = vpack.c.b16 %v1894, %v1886
    %v2527 = vpack.c.b16 %v1895, %v1887
    %v2528 = vpack.c.b16 %v1896, %v1888
    %v2529 = vpack.c.b16 %v1897, %v1889
    %v2530 = vpack.c.b16 %v1898, %v1890
    %v2531 = vpack.c.b16 %v1899, %v1891
    %v2532 = vpack.c.b16 %v1908, %v1900
    %v2533 = vpack.c.b16 %v1909, %v1901
    %v2534 = vpack.c.b16 %v1910, %v1902
    %v2535 = vpack.c.b16 %v1911, %v1903
    %v2536 = vpack.c.b16 %v1912, %v1904
    %v2537 = vpack.c.b16 %v1913, %v1905
    %v2538 = vpack.c.b16 %v1914, %v1906
    %v2539 = vpack.c.b16 %v1915, %v1907
    %v2540 = vpack.c.b16 %v1924, %v1916
    %v2541 = vpack.c.b16 %v1925, %v1917
    %v2542 = vpack.c.b16 %v1926, %v1918
    %v2543 = vpack.c.b16 %v1927, %v1919
    %v2544 = vpack.c.b16 %v1928, %v1920
    %v2545 = vpack.c.b16 %v1929, %v1921
    %v2546 = vpack.c.b16 %v1930, %v1922
    %v2547 = vpack.c.b16 %v1931, %v1923
    %v2548 = vpack.c.b16 %v1940, %v1932
    %v2549 = vpack.c.b16 %v1941, %v1933
    %v2550 = vpack.c.b16 %v1942, %v1934
    %v2551 = vpack.c.b16 %v1943, %v1935
    %v2552 = vpack.c.b16 %v1944, %v1936
    %v2553 = vpack.c.b16 %v1945, %v1937
    %v2554 = vpack.c.b16 %v1946, %v1938
    %v2555 = vpack.c.b16 %v1947, %v1939
    %v2556 = vpack.c.b16 %v1956, %v1948
    %v2557 = vpack.c.b16 %v1957, %v1949
    %v2558 = vpack.c.b16 %v1958, %v1950
    %v2559 = vpack.c.b16 %v1959, %v1951
    %v2560 = vpack.c.b16 %v1960, %v1952
    %v2561 = vpack.c.b16 %v1961, %v1953
    %v2562 = vpack.c.b16 %v1962, %v1954
    %v2563 = vpack.c.b16 %v1963, %v1955
    %v2564 = vpack.c.b16 %v1972, %v1964
    %v2565 = vpack.c.b16 %v1973, %v1965
    %v2566 = vpack.c.b16 %v1974, %v1966
    %v2567 = vpack.c.b16 %v1975, %v1967
    %v2568 = vpack.c.b16 %v1976, %v1968
    %v2569 = vpack.c.b16 %v1977, %v1969
    %v2570 = vpack.c.b16 %v1978, %v1970
    %v2571 = vpack.c.b16 %v1979, %v1971
    %v2572 = vpack.c.b16 %v1988, %v1980
    %v2573 = vpack.c.b16 %v1989, %v1981
    %v2574 = vpack.c.b16 %v1990, %v1982
    %v2575 = vpack.c.b16 %v1991, %v1983
    %v2576 = vpack.c.b16 %v1992, %v1984
    %v2577 = vpack.c.b16 %v1993, %v1985
    %v2578 = vpack.c.b16 %v1994, %v1986
    %v2579 = vpack.c.b16 %v1995, %v1987
    %v2580 = vpack.c.b16 %v2004, %v1996
    %v2581 = vpack.c.b16 %v2005, %v1997
    %v2582 = vpack.c.b16 %v2006, %v1998
    %v2583 = vpack.c.b16 %v2007, %v1999
    %v2584 = vpack.c.b16 %v2008, %v2000
    %v2585 = vpack.c.b16 %v2009, %v2001
    %v2586 = vpack.c.b16 %v2010, %v2002
    %v2587 = vpack.c.b16 %v2011, %v2003
    %v2588 = vpack.c.b16 %v2020, %v2012
    %v2589 = vpack.c.b16 %v2021, %v2013
    %v2590 = vpack.c.b16 %v2022, %v2014
    %v2591 = vpack.c.b16 %v2023, %v2015
    %v2592 = vpack.c.b16 %v2024, %v2016
    %v2593 = vpack.c.b16 %v2025, %v2017
    %v2594 = vpack.c.b16 %v2026, %v2018
    %v2595 = vpack.c.b16 %v2027, %v2019
    %v2596 = vpack.c.b16 %v2036, %v2028
    %v2597 = vpack.c.b16 %v2037, %v2029
    %v2598 = vpack.c.b16 %v2038, %v2030
    %v2599 = vpack.c.b16 %v2039, %v2031
    %v2600 = vpack.c.b16 %v2040, %v2032
    %v2601 = vpack.c.b16 %v2041, %v2033
    %v2602 = vpack.c.b16 %v2042, %v2034
    %v2603 = vpack.c.b16 %v2043, %v2035
    %v2604 = vpack.c.b16 %v2052, %v2044
    %v2605 = vpack.c.b16 %v2053, %v2045
    %v2606 = vpack.c.b16 %v2054, %v2046
    %v2607 = vpack.c.b16 %v2055, %v2047
    %v2608 = vpack.c.b16 %v2056, %v2048
    %v2609 = vpack.c.b16 %v2057, %v2049
    %v2610 = vpack.c.b16 %v2058, %v2050
    %v2611 = vpack.c.b16 %v2059, %v2051
    %v2612 = vpack.c.b16 %v2068, %v2060
    %v2613 = vpack.c.b16 %v2069, %v2061
    %v2614 = vpack.c.b16 %v2070, %v2062
    %v2615 = vpack.c.b16 %v2071, %v2063
    %v2616 = vpack.c.b16 %v2072, %v2064
    %v2617 = vpack.c.b16 %v2073, %v2065
    %v2618 = vpack.c.b16 %v2074, %v2066
    %v2619 = vpack.c.b16 %v2075, %v2067
    %v2620 = vpack.c.b16 %v2084, %v2076
    %v2621 = vpack.c.b16 %v2085, %v2077
    %v2622 = vpack.c.b16 %v2086, %v2078
    %v2623 = vpack.c.b16 %v2087, %v2079
    %v2624 = vpack.c.b16 %v2088, %v2080
    %v2625 = vpack.c.b16 %v2089, %v2081
    %v2626 = vpack.c.b16 %v2090, %v2082
    %v2627 = vpack.c.b16 %v2091, %v2083
    %v2628 = vpack.c.b16 %v2100, %v2092
    %v2629 = vpack.c.b16 %v2101, %v2093
    %v2630 = vpack.c.b16 %v2102, %v2094
    %v2631 = vpack.c.b16 %v2103, %v2095
    %v2632 = vpack.c.b16 %v2104, %v2096
    %v2633 = vpack.c.b16 %v2105, %v2097
    %v2634 = vpack.c.b16 %v2106, %v2098
    %v2635 = vpack.c.b16 %v2107, %v2099
    %v2636 = vpack.c.b16 %v2116, %v2108
    %v2637 = vpack.c.b16 %v2117, %v2109
    %v2638 = vpack.c.b16 %v2118, %v2110
    %v2639 = vpack.c.b16 %v2119, %v2111
    %v2640 = vpack.c.b16 %v2120, %v2112
    %v2641 = vpack.c.b16 %v2121, %v2113
    %v2642 = vpack.c.b16 %v2122, %v2114
    %v2643 = vpack.c.b16 %v2123, %v2115
    %v2644 = vpack.c.b16 %v2132, %v2124
    %v2645 = vpack.c.b16 %v2133, %v2125
    %v2646 = vpack.c.b16 %v2134, %v2126
    %v2647 = vpack.c.b16 %v2135, %v2127
    %v2648 = vpack.c.b16 %v2136, %v2128
    %v2649 = vpack.c.b16 %v2137, %v2129
    %v2650 = vpack.c.b16 %v2138, %v2130
    %v2651 = vpack.c.b16 %v2139, %v2131
    %3164 = vmatprep.subr.bf16.mxu0 %v2141
    %3165 = vmatpush1.bf16.msra.mxu0 %v2140
    %3166 = vmatprep.subr.bf16.mxu0 %v2149
    %3167 = vmatpush1.bf16.msra.mxu0 %v2148
    %3168 = vmatprep.subr.bf16.mxu0 %v2157
    %3169 = vmatpush1.bf16.msra.mxu0 %v2156
    %3170 = vmatprep.subr.bf16.mxu0 %v2165
    %3171 = vmatpush1.bf16.msra.mxu0 %v2164
    %3172 = vmatprep.subr.bf16.mxu0 %v2173
    %3173 = vmatpush1.bf16.msra.mxu0 %v2172
    %3174 = vmatprep.subr.bf16.mxu0 %v2181
    %3175 = vmatpush1.bf16.msra.mxu0 %v2180
    %3176 = vmatprep.subr.bf16.mxu0 %v2189
    %3177 = vmatpush1.bf16.msra.mxu0 %v2188
    %3178 = vmatprep.subr.bf16.mxu0 %v2197
    %3179 = vmatpush1.bf16.msra.mxu0 %v2196
    %3180 = vmatprep.subr.bf16.mxu0 %v2205
    %3181 = vmatpush1.bf16.msra.mxu0 %v2204
    %3182 = vmatprep.subr.bf16.mxu0 %v2213
    %3183 = vmatpush1.bf16.msra.mxu0 %v2212
    %3184 = vmatprep.subr.bf16.mxu0 %v2221
    %3185 = vmatpush1.bf16.msra.mxu0 %v2220
    %3186 = vmatprep.subr.bf16.mxu0 %v2229
    %3187 = vmatpush1.bf16.msra.mxu0 %v2228
    %3188 = vmatprep.subr.bf16.mxu0 %v2237
    %3189 = vmatpush1.bf16.msra.mxu0 %v2236
    %3190 = vmatprep.subr.bf16.mxu0 %v2245
    %3191 = vmatpush1.bf16.msra.mxu0 %v2244
    %3192 = vmatprep.subr.bf16.mxu0 %v2253
    %3193 = vmatpush1.bf16.msra.mxu0 %v2252
    %3194 = vmatprep.subr.bf16.mxu0 %v2261
    %3195 = vmatpush1.bf16.msra.mxu0 %v2260
    %3196 = vmatprep.mubr.bf16.mxu0 %v43
    %3197 = vmatmul.mubr.bf16.gmra.mrb[0].mxu0 %v42
    %v3198 = vpop.f32.mrb[0].mxu0
    %v3199 = vadd.f32 %v567, %v3198
    %v3200 = vpop.f32.mrb[0].mxu0
    %v3201 = vadd.f32 %v571, %v3200
    %v3202 = vpop.f32.mrb[0].mxu0
    %v3203 = vpop.f32.mrb[0].mxu0
    %3204 = vdwg.mxu0
    %3205 = vmatprep.subr.bf16.mxu0 %v2269
    %3206 = vmatpush1.bf16.msra.mxu0 %v2268
    %3207 = vmatprep.subr.bf16.mxu0 %v2277
    %3208 = vmatpush1.bf16.msra.mxu0 %v2276
    %3209 = vmatprep.subr.bf16.mxu0 %v2285
    %3210 = vmatpush1.bf16.msra.mxu0 %v2284
    %3211 = vmatprep.subr.bf16.mxu0 %v2293
    %3212 = vmatpush1.bf16.msra.mxu0 %v2292
    %3213 = vmatprep.subr.bf16.mxu0 %v2301
    %3214 = vmatpush1.bf16.msra.mxu0 %v2300
    %3215 = vmatprep.subr.bf16.mxu0 %v2309
    %3216 = vmatpush1.bf16.msra.mxu0 %v2308
    %3217 = vmatprep.subr.bf16.mxu0 %v2317
    %3218 = vmatpush1.bf16.msra.mxu0 %v2316
    %3219 = vmatprep.subr.bf16.mxu0 %v2325
    %3220 = vmatpush1.bf16.msra.mxu0 %v2324
    %3221 = vmatprep.subr.bf16.mxu0 %v2333
    %3222 = vmatpush1.bf16.msra.mxu0 %v2332
    %3223 = vmatprep.subr.bf16.mxu0 %v2341
    %3224 = vmatpush1.bf16.msra.mxu0 %v2340
    %3225 = vmatprep.subr.bf16.mxu0 %v2349
    %3226 = vmatpush1.bf16.msra.mxu0 %v2348
    %3227 = vmatprep.subr.bf16.mxu0 %v2357
    %3228 = vmatpush1.bf16.msra.mxu0 %v2356
    %3229 = vmatprep.subr.bf16.mxu0 %v2365
    %3230 = vmatpush1.bf16.msra.mxu0 %v2364
    %3231 = vmatprep.subr.bf16.mxu0 %v2373
    %3232 = vmatpush1.bf16.msra.mxu0 %v2372
    %3233 = vmatprep.subr.bf16.mxu0 %v2381
    %3234 = vmatpush1.bf16.msra.mxu0 %v2380
    %3235 = vmatprep.subr.bf16.mxu0 %v2389
    %3236 = vmatpush1.bf16.msra.mxu0 %v2388
    %3237 = vmatprep.mubr.bf16.mxu0 %v45
    %3238 = vmatmul.mubr.bf16.gmra.mrb[0].mxu0 %v44
    %v3239 = vpop.f32.mrb[0].mxu0
    %v3240 = vadd.f32 %v3199, %v3239
    %v3241 = vpop.f32.mrb[0].mxu0
    %v3242 = vadd.f32 %v3201, %v3241
    %v3243 = vpop.f32.mrb[0].mxu0
    %v3244 = vpop.f32.mrb[0].mxu0
    %3245 = vdwg.mxu0
    %3246 = vmatprep.subr.bf16.mxu0 %v2397
    %3247 = vmatpush1.bf16.msra.mxu0 %v2396
    %3248 = vmatprep.subr.bf16.mxu0 %v2405
    %3249 = vmatpush1.bf16.msra.mxu0 %v2404
    %3250 = vmatprep.subr.bf16.mxu0 %v2413
    %3251 = vmatpush1.bf16.msra.mxu0 %v2412
    %3252 = vmatprep.subr.bf16.mxu0 %v2421
    %3253 = vmatpush1.bf16.msra.mxu0 %v2420
    %3254 = vmatprep.subr.bf16.mxu0 %v2429
    %3255 = vmatpush1.bf16.msra.mxu0 %v2428
    %3256 = vmatprep.subr.bf16.mxu0 %v2437
    %3257 = vmatpush1.bf16.msra.mxu0 %v2436
    %3258 = vmatprep.subr.bf16.mxu0 %v2445
    %3259 = vmatpush1.bf16.msra.mxu0 %v2444
    %3260 = vmatprep.subr.bf16.mxu0 %v2453
    %3261 = vmatpush1.bf16.msra.mxu0 %v2452
    %3262 = vmatprep.subr.bf16.mxu0 %v2461
    %3263 = vmatpush1.bf16.msra.mxu0 %v2460
    %3264 = vmatprep.subr.bf16.mxu0 %v2469
    %3265 = vmatpush1.bf16.msra.mxu0 %v2468
    %3266 = vmatprep.subr.bf16.mxu0 %v2477
    %3267 = vmatpush1.bf16.msra.mxu0 %v2476
    %3268 = vmatprep.subr.bf16.mxu0 %v2485
    %3269 = vmatpush1.bf16.msra.mxu0 %v2484
    %3270 = vmatprep.subr.bf16.mxu0 %v2493
    %3271 = vmatpush1.bf16.msra.mxu0 %v2492
    %3272 = vmatprep.subr.bf16.mxu0 %v2501
    %3273 = vmatpush1.bf16.msra.mxu0 %v2500
    %3274 = vmatprep.subr.bf16.mxu0 %v2509
    %3275 = vmatpush1.bf16.msra.mxu0 %v2508
    %3276 = vmatprep.subr.bf16.mxu0 %v2517
    %3277 = vmatpush1.bf16.msra.mxu0 %v2516
    %3278 = vmatprep.mubr.bf16.mxu0 %v47
    %3279 = vmatmul.mubr.bf16.gmra.mrb[0].mxu0 %v46
    %v3280 = vpop.f32.mrb[0].mxu0
    %v3281 = vadd.f32 %v3240, %v3280
    %v3282 = vpop.f32.mrb[0].mxu0
    %v3283 = vadd.f32 %v3242, %v3282
    %v3284 = vpop.f32.mrb[0].mxu0
    %v3285 = vpop.f32.mrb[0].mxu0
    %3286 = vdwg.mxu0
    %3287 = vmatprep.subr.bf16.mxu0 %v2525
    %3288 = vmatpush1.bf16.msra.mxu0 %v2524
    %3289 = vmatprep.subr.bf16.mxu0 %v2533
    %3290 = vmatpush1.bf16.msra.mxu0 %v2532
    %3291 = vmatprep.subr.bf16.mxu0 %v2541
    %3292 = vmatpush1.bf16.msra.mxu0 %v2540
    %3293 = vmatprep.subr.bf16.mxu0 %v2549
    %3294 = vmatpush1.bf16.msra.mxu0 %v2548
    %3295 = vmatprep.subr.bf16.mxu0 %v2557
    %3296 = vmatpush1.bf16.msra.mxu0 %v2556
    %3297 = vmatprep.subr.bf16.mxu0 %v2565
    %3298 = vmatpush1.bf16.msra.mxu0 %v2564
    %3299 = vmatprep.subr.bf16.mxu0 %v2573
    %3300 = vmatpush1.bf16.msra.mxu0 %v2572
    %3301 = vmatprep.subr.bf16.mxu0 %v2581
    %3302 = vmatpush1.bf16.msra.mxu0 %v2580
    %3303 = vmatprep.subr.bf16.mxu0 %v2589
    %3304 = vmatpush1.bf16.msra.mxu0 %v2588
    %3305 = vmatprep.subr.bf16.mxu0 %v2597
    %3306 = vmatpush1.bf16.msra.mxu0 %v2596
    %3307 = vmatprep.subr.bf16.mxu0 %v2605
    %3308 = vmatpush1.bf16.msra.mxu0 %v2604
    %3309 = vmatprep.subr.bf16.mxu0 %v2613
    %3310 = vmatpush1.bf16.msra.mxu0 %v2612
    %3311 = vmatprep.subr.bf16.mxu0 %v2621
    %3312 = vmatpush1.bf16.msra.mxu0 %v2620
    %3313 = vmatprep.subr.bf16.mxu0 %v2629
    %3314 = vmatpush1.bf16.msra.mxu0 %v2628
    %3315 = vmatprep.subr.bf16.mxu0 %v2637
    %3316 = vmatpush1.bf16.msra.mxu0 %v2636
    %3317 = vmatprep.subr.bf16.mxu0 %v2645
    %3318 = vmatpush1.bf16.msra.mxu0 %v2644
    %3319 = vmatprep.mubr.bf16.mxu0 %v49
    %3320 = vmatmul.mubr.bf16.gmra.mrb[0].mxu0 %v48
    %v3321 = vpop.f32.mrb[0].mxu0
    %v3322 = vadd.f32 %v3281, %v3321
    %v3323 = vpop.f32.mrb[0].mxu0
    %v3324 = vadd.f32 %v3283, %v3323
    %v3325 = vpop.f32.mrb[0].mxu0
    %v3326 = vpop.f32.mrb[0].mxu0
    %3327 = vdwg.mxu0
    %3328 = vmatprep.subr.bf16.mxu0 %v2143
    %3329 = vmatpush1.bf16.msra.mxu0 %v2142
    %3330 = vmatprep.subr.bf16.mxu0 %v2151
    %3331 = vmatpush1.bf16.msra.mxu0 %v2150
    %3332 = vmatprep.subr.bf16.mxu0 %v2159
    %3333 = vmatpush1.bf16.msra.mxu0 %v2158
    %3334 = vmatprep.subr.bf16.mxu0 %v2167
    %3335 = vmatpush1.bf16.msra.mxu0 %v2166
    %3336 = vmatprep.subr.bf16.mxu0 %v2175
    %3337 = vmatpush1.bf16.msra.mxu0 %v2174
    %3338 = vmatprep.subr.bf16.mxu0 %v2183
    %3339 = vmatpush1.bf16.msra.mxu0 %v2182
    %3340 = vmatprep.subr.bf16.mxu0 %v2191
    %3341 = vmatpush1.bf16.msra.mxu0 %v2190
    %3342 = vmatprep.subr.bf16.mxu0 %v2199
    %3343 = vmatpush1.bf16.msra.mxu0 %v2198
    %3344 = vmatprep.subr.bf16.mxu0 %v2207
    %3345 = vmatpush1.bf16.msra.mxu0 %v2206
    %3346 = vmatprep.subr.bf16.mxu0 %v2215
    %3347 = vmatpush1.bf16.msra.mxu0 %v2214
    %3348 = vmatprep.subr.bf16.mxu0 %v2223
    %3349 = vmatpush1.bf16.msra.mxu0 %v2222
    %3350 = vmatprep.subr.bf16.mxu0 %v2231
    %3351 = vmatpush1.bf16.msra.mxu0 %v2230
    %3352 = vmatprep.subr.bf16.mxu0 %v2239
    %3353 = vmatpush1.bf16.msra.mxu0 %v2238
    %3354 = vmatprep.subr.bf16.mxu0 %v2247
    %3355 = vmatpush1.bf16.msra.mxu0 %v2246
    %3356 = vmatprep.subr.bf16.mxu0 %v2255
    %3357 = vmatpush1.bf16.msra.mxu0 %v2254
    %3358 = vmatprep.subr.bf16.mxu0 %v2263
    %3359 = vmatpush1.bf16.msra.mxu0 %v2262
    %3360 = vmatprep.mubr.bf16.mxu0 %v43
    %3361 = vmatmul.mubr.bf16.gmra.mrb[0].mxu0 %v42
    %v3362 = vpop.f32.mrb[0].mxu0
    %v3363 = vadd.f32 %v575, %v3362
    %v3364 = vpop.f32.mrb[0].mxu0
    %v3365 = vadd.f32 %v579, %v3364
    %v3366 = vpop.f32.mrb[0].mxu0
    %v3367 = vpop.f32.mrb[0].mxu0
    %3368 = vdwg.mxu0
    %3369 = vmatprep.subr.bf16.mxu0 %v2271
    %3370 = vmatpush1.bf16.msra.mxu0 %v2270
    %3371 = vmatprep.subr.bf16.mxu0 %v2279
    %3372 = vmatpush1.bf16.msra.mxu0 %v2278
    %3373 = vmatprep.subr.bf16.mxu0 %v2287
    %3374 = vmatpush1.bf16.msra.mxu0 %v2286
    %3375 = vmatprep.subr.bf16.mxu0 %v2295
    %3376 = vmatpush1.bf16.msra.mxu0 %v2294
    %3377 = vmatprep.subr.bf16.mxu0 %v2303
    %3378 = vmatpush1.bf16.msra.mxu0 %v2302
    %3379 = vmatprep.subr.bf16.mxu0 %v2311
    %3380 = vmatpush1.bf16.msra.mxu0 %v2310
    %3381 = vmatprep.subr.bf16.mxu0 %v2319
    %3382 = vmatpush1.bf16.msra.mxu0 %v2318
    %3383 = vmatprep.subr.bf16.mxu0 %v2327
    %3384 = vmatpush1.bf16.msra.mxu0 %v2326
    %3385 = vmatprep.subr.bf16.mxu0 %v2335
    %3386 = vmatpush1.bf16.msra.mxu0 %v2334
    %3387 = vmatprep.subr.bf16.mxu0 %v2343
    %3388 = vmatpush1.bf16.msra.mxu0 %v2342
    %3389 = vmatprep.subr.bf16.mxu0 %v2351
    %3390 = vmatpush1.bf16.msra.mxu0 %v2350
    %3391 = vmatprep.subr.bf16.mxu0 %v2359
    %3392 = vmatpush1.bf16.msra.mxu0 %v2358
    %3393 = vmatprep.subr.bf16.mxu0 %v2367
    %3394 = vmatpush1.bf16.msra.mxu0 %v2366
    %3395 = vmatprep.subr.bf16.mxu0 %v2375
    %3396 = vmatpush1.bf16.msra.mxu0 %v2374
    %3397 = vmatprep.subr.bf16.mxu0 %v2383
    %3398 = vmatpush1.bf16.msra.mxu0 %v2382
    %3399 = vmatprep.subr.bf16.mxu0 %v2391
    %3400 = vmatpush1.bf16.msra.mxu0 %v2390
    %3401 = vmatprep.mubr.bf16.mxu0 %v45
    %3402 = vmatmul.mubr.bf16.gmra.mrb[0].mxu0 %v44
    %v3403 = vpop.f32.mrb[0].mxu0
    %v3404 = vadd.f32 %v3363, %v3403
    %v3405 = vpop.f32.mrb[0].mxu0
    %v3406 = vadd.f32 %v3365, %v3405
    %v3407 = vpop.f32.mrb[0].mxu0
    %v3408 = vpop.f32.mrb[0].mxu0
    %3409 = vdwg.mxu0
    %3410 = vmatprep.subr.bf16.mxu0 %v2399
    %3411 = vmatpush1.bf16.msra.mxu0 %v2398
    %3412 = vmatprep.subr.bf16.mxu0 %v2407
    %3413 = vmatpush1.bf16.msra.mxu0 %v2406
    %3414 = vmatprep.subr.bf16.mxu0 %v2415
    %3415 = vmatpush1.bf16.msra.mxu0 %v2414
    %3416 = vmatprep.subr.bf16.mxu0 %v2423
    %3417 = vmatpush1.bf16.msra.mxu0 %v2422
    %3418 = vmatprep.subr.bf16.mxu0 %v2431
    %3419 = vmatpush1.bf16.msra.mxu0 %v2430
    %3420 = vmatprep.subr.bf16.mxu0 %v2439
    %3421 = vmatpush1.bf16.msra.mxu0 %v2438
    %3422 = vmatprep.subr.bf16.mxu0 %v2447
    %3423 = vmatpush1.bf16.msra.mxu0 %v2446
    %3424 = vmatprep.subr.bf16.mxu0 %v2455
    %3425 = vmatpush1.bf16.msra.mxu0 %v2454
    %3426 = vmatprep.subr.bf16.mxu0 %v2463
    %3427 = vmatpush1.bf16.msra.mxu0 %v2462
    %3428 = vmatprep.subr.bf16.mxu0 %v2471
    %3429 = vmatpush1.bf16.msra.mxu0 %v2470
    %3430 = vmatprep.subr.bf16.mxu0 %v2479
    %3431 = vmatpush1.bf16.msra.mxu0 %v2478
    %3432 = vmatprep.subr.bf16.mxu0 %v2487
    %3433 = vmatpush1.bf16.msra.mxu0 %v2486
    %3434 = vmatprep.subr.bf16.mxu0 %v2495
    %3435 = vmatpush1.bf16.msra.mxu0 %v2494
    %3436 = vmatprep.subr.bf16.mxu0 %v2503
    %3437 = vmatpush1.bf16.msra.mxu0 %v2502
    %3438 = vmatprep.subr.bf16.mxu0 %v2511
    %3439 = vmatpush1.bf16.msra.mxu0 %v2510
    %3440 = vmatprep.subr.bf16.mxu0 %v2519
    %3441 = vmatpush1.bf16.msra.mxu0 %v2518
    %3442 = vmatprep.mubr.bf16.mxu0 %v47
    %3443 = vmatmul.mubr.bf16.gmra.mrb[0].mxu0 %v46
    %v3444 = vpop.f32.mrb[0].mxu0
    %v3445 = vadd.f32 %v3404, %v3444
    %v3446 = vpop.f32.mrb[0].mxu0
    %v3447 = vadd.f32 %v3406, %v3446
    %v3448 = vpop.f32.mrb[0].mxu0
    %v3449 = vpop.f32.mrb[0].mxu0
    %3450 = vdwg.mxu0
    %3451 = vmatprep.subr.bf16.mxu0 %v2527
    %3452 = vmatpush1.bf16.msra.mxu0 %v2526
    %3453 = vmatprep.subr.bf16.mxu0 %v2535
    %3454 = vmatpush1.bf16.msra.mxu0 %v2534
    %3455 = vmatprep.subr.bf16.mxu0 %v2543
    %3456 = vmatpush1.bf16.msra.mxu0 %v2542
    %3457 = vmatprep.subr.bf16.mxu0 %v2551
    %3458 = vmatpush1.bf16.msra.mxu0 %v2550
    %3459 = vmatprep.subr.bf16.mxu0 %v2559
    %3460 = vmatpush1.bf16.msra.mxu0 %v2558
    %3461 = vmatprep.subr.bf16.mxu0 %v2567
    %3462 = vmatpush1.bf16.msra.mxu0 %v2566
    %3463 = vmatprep.subr.bf16.mxu0 %v2575
    %3464 = vmatpush1.bf16.msra.mxu0 %v2574
    %3465 = vmatprep.subr.bf16.mxu0 %v2583
    %3466 = vmatpush1.bf16.msra.mxu0 %v2582
    %3467 = vmatprep.subr.bf16.mxu0 %v2591
    %3468 = vmatpush1.bf16.msra.mxu0 %v2590
    %3469 = vmatprep.subr.bf16.mxu0 %v2599
    %3470 = vmatpush1.bf16.msra.mxu0 %v2598
    %3471 = vmatprep.subr.bf16.mxu0 %v2607
    %3472 = vmatpush1.bf16.msra.mxu0 %v2606
    %3473 = vmatprep.subr.bf16.mxu0 %v2615
    %3474 = vmatpush1.bf16.msra.mxu0 %v2614
    %3475 = vmatprep.subr.bf16.mxu0 %v2623
    %3476 = vmatpush1.bf16.msra.mxu0 %v2622
    %3477 = vmatprep.subr.bf16.mxu0 %v2631
    %3478 = vmatpush1.bf16.msra.mxu0 %v2630
    %3479 = vmatprep.subr.bf16.mxu0 %v2639
    %3480 = vmatpush1.bf16.msra.mxu0 %v2638
    %3481 = vmatprep.subr.bf16.mxu0 %v2647
    %3482 = vmatpush1.bf16.msra.mxu0 %v2646
    %3483 = vmatprep.mubr.bf16.mxu0 %v49
    %3484 = vmatmul.mubr.bf16.gmra.mrb[0].mxu0 %v48
    %v3485 = vpop.f32.mrb[0].mxu0
    %v3486 = vadd.f32 %v3445, %v3485
    %v3487 = vpop.f32.mrb[0].mxu0
    %v3488 = vadd.f32 %v3447, %v3487
    %v3489 = vpop.f32.mrb[0].mxu0
    %v3490 = vpop.f32.mrb[0].mxu0
    %3491 = vdwg.mxu0
    %3492 = vmatprep.subr.bf16.mxu0 %v2145
    %3493 = vmatpush1.bf16.msra.mxu0 %v2144
    %3494 = vmatprep.subr.bf16.mxu0 %v2153
    %3495 = vmatpush1.bf16.msra.mxu0 %v2152
    %3496 = vmatprep.subr.bf16.mxu0 %v2161
    %3497 = vmatpush1.bf16.msra.mxu0 %v2160
    %3498 = vmatprep.subr.bf16.mxu0 %v2169
    %3499 = vmatpush1.bf16.msra.mxu0 %v2168
    %3500 = vmatprep.subr.bf16.mxu0 %v2177
    %3501 = vmatpush1.bf16.msra.mxu0 %v2176
    %3502 = vmatprep.subr.bf16.mxu0 %v2185
    %3503 = vmatpush1.bf16.msra.mxu0 %v2184
    %3504 = vmatprep.subr.bf16.mxu0 %v2193
    %3505 = vmatpush1.bf16.msra.mxu0 %v2192
    %3506 = vmatprep.subr.bf16.mxu0 %v2201
    %3507 = vmatpush1.bf16.msra.mxu0 %v2200
    %3508 = vmatprep.subr.bf16.mxu0 %v2209
    %3509 = vmatpush1.bf16.msra.mxu0 %v2208
    %3510 = vmatprep.subr.bf16.mxu0 %v2217
    %3511 = vmatpush1.bf16.msra.mxu0 %v2216
    %3512 = vmatprep.subr.bf16.mxu0 %v2225
    %3513 = vmatpush1.bf16.msra.mxu0 %v2224
    %3514 = vmatprep.subr.bf16.mxu0 %v2233
    %3515 = vmatpush1.bf16.msra.mxu0 %v2232
    %3516 = vmatprep.subr.bf16.mxu0 %v2241
    %3517 = vmatpush1.bf16.msra.mxu0 %v2240
    %3518 = vmatprep.subr.bf16.mxu0 %v2249
    %3519 = vmatpush1.bf16.msra.mxu0 %v2248
    %3520 = vmatprep.subr.bf16.mxu0 %v2257
    %3521 = vmatpush1.bf16.msra.mxu0 %v2256
    %3522 = vmatprep.subr.bf16.mxu0 %v2265
    %3523 = vmatpush1.bf16.msra.mxu0 %v2264
    %3524 = vmatprep.mubr.bf16.mxu0 %v43
    %3525 = vmatmul.mubr.bf16.gmra.mrb[0].mxu0 %v42
    %v3526 = vpop.f32.mrb[0].mxu0
    %v3527 = vadd.f32 %v583, %v3526
    %v3528 = vpop.f32.mrb[0].mxu0
    %v3529 = vadd.f32 %v587, %v3528
    %v3530 = vpop.f32.mrb[0].mxu0
    %v3531 = vpop.f32.mrb[0].mxu0
    %3532 = vdwg.mxu0
    %3533 = vmatprep.subr.bf16.mxu0 %v2273
    %3534 = vmatpush1.bf16.msra.mxu0 %v2272
    %3535 = vmatprep.subr.bf16.mxu0 %v2281
    %3536 = vmatpush1.bf16.msra.mxu0 %v2280
    %3537 = vmatprep.subr.bf16.mxu0 %v2289
    %3538 = vmatpush1.bf16.msra.mxu0 %v2288
    %3539 = vmatprep.subr.bf16.mxu0 %v2297
    %3540 = vmatpush1.bf16.msra.mxu0 %v2296
    %3541 = vmatprep.subr.bf16.mxu0 %v2305
    %3542 = vmatpush1.bf16.msra.mxu0 %v2304
    %3543 = vmatprep.subr.bf16.mxu0 %v2313
    %3544 = vmatpush1.bf16.msra.mxu0 %v2312
    %3545 = vmatprep.subr.bf16.mxu0 %v2321
    %3546 = vmatpush1.bf16.msra.mxu0 %v2320
    %3547 = vmatprep.subr.bf16.mxu0 %v2329
    %3548 = vmatpush1.bf16.msra.mxu0 %v2328
    %3549 = vmatprep.subr.bf16.mxu0 %v2337
    %3550 = vmatpush1.bf16.msra.mxu0 %v2336
    %3551 = vmatprep.subr.bf16.mxu0 %v2345
    %3552 = vmatpush1.bf16.msra.mxu0 %v2344
    %3553 = vmatprep.subr.bf16.mxu0 %v2353
    %3554 = vmatpush1.bf16.msra.mxu0 %v2352
    %3555 = vmatprep.subr.bf16.mxu0 %v2361
    %3556 = vmatpush1.bf16.msra.mxu0 %v2360
    %3557 = vmatprep.subr.bf16.mxu0 %v2369
    %3558 = vmatpush1.bf16.msra.mxu0 %v2368
    %3559 = vmatprep.subr.bf16.mxu0 %v2377
    %3560 = vmatpush1.bf16.msra.mxu0 %v2376
    %3561 = vmatprep.subr.bf16.mxu0 %v2385
    %3562 = vmatpush1.bf16.msra.mxu0 %v2384
    %3563 = vmatprep.subr.bf16.mxu0 %v2393
    %3564 = vmatpush1.bf16.msra.mxu0 %v2392
    %3565 = vmatprep.mubr.bf16.mxu0 %v45
    %3566 = vmatmul.mubr.bf16.gmra.mrb[0].mxu0 %v44
    %v3567 = vpop.f32.mrb[0].mxu0
    %v3568 = vadd.f32 %v3527, %v3567
    %v3569 = vpop.f32.mrb[0].mxu0
    %v3570 = vadd.f32 %v3529, %v3569
    %v3571 = vpop.f32.mrb[0].mxu0
    %v3572 = vpop.f32.mrb[0].mxu0
    %3573 = vdwg.mxu0
    %3574 = vmatprep.subr.bf16.mxu0 %v2401
    %3575 = vmatpush1.bf16.msra.mxu0 %v2400
    %3576 = vmatprep.subr.bf16.mxu0 %v2409
    %3577 = vmatpush1.bf16.msra.mxu0 %v2408
    %3578 = vmatprep.subr.bf16.mxu0 %v2417
    %3579 = vmatpush1.bf16.msra.mxu0 %v2416
    %3580 = vmatprep.subr.bf16.mxu0 %v2425
    %3581 = vmatpush1.bf16.msra.mxu0 %v2424
    %3582 = vmatprep.subr.bf16.mxu0 %v2433
    %3583 = vmatpush1.bf16.msra.mxu0 %v2432
    %3584 = vmatprep.subr.bf16.mxu0 %v2441
    %3585 = vmatpush1.bf16.msra.mxu0 %v2440
    %3586 = vmatprep.subr.bf16.mxu0 %v2449
    %3587 = vmatpush1.bf16.msra.mxu0 %v2448
    %3588 = vmatprep.subr.bf16.mxu0 %v2457
    %3589 = vmatpush1.bf16.msra.mxu0 %v2456
    %3590 = vmatprep.subr.bf16.mxu0 %v2465
    %3591 = vmatpush1.bf16.msra.mxu0 %v2464
    %3592 = vmatprep.subr.bf16.mxu0 %v2473
    %3593 = vmatpush1.bf16.msra.mxu0 %v2472
    %3594 = vmatprep.subr.bf16.mxu0 %v2481
    %3595 = vmatpush1.bf16.msra.mxu0 %v2480
    %3596 = vmatprep.subr.bf16.mxu0 %v2489
    %3597 = vmatpush1.bf16.msra.mxu0 %v2488
    %3598 = vmatprep.subr.bf16.mxu0 %v2497
    %3599 = vmatpush1.bf16.msra.mxu0 %v2496
    %3600 = vmatprep.subr.bf16.mxu0 %v2505
    %3601 = vmatpush1.bf16.msra.mxu0 %v2504
    %3602 = vmatprep.subr.bf16.mxu0 %v2513
    %3603 = vmatpush1.bf16.msra.mxu0 %v2512
    %3604 = vmatprep.subr.bf16.mxu0 %v2521
    %3605 = vmatpush1.bf16.msra.mxu0 %v2520
    %3606 = vmatprep.mubr.bf16.mxu0 %v47
    %3607 = vmatmul.mubr.bf16.gmra.mrb[0].mxu0 %v46
    %v3608 = vpop.f32.mrb[0].mxu0
    %v3609 = vadd.f32 %v3568, %v3608
    %v3610 = vpop.f32.mrb[0].mxu0
    %v3611 = vadd.f32 %v3570, %v3610
    %v3612 = vpop.f32.mrb[0].mxu0
    %v3613 = vpop.f32.mrb[0].mxu0
    %3614 = vdwg.mxu0
    %3615 = vmatprep.subr.bf16.mxu0 %v2529
    %3616 = vmatpush1.bf16.msra.mxu0 %v2528
    %3617 = vmatprep.subr.bf16.mxu0 %v2537
    %3618 = vmatpush1.bf16.msra.mxu0 %v2536
    %3619 = vmatprep.subr.bf16.mxu0 %v2545
    %3620 = vmatpush1.bf16.msra.mxu0 %v2544
    %3621 = vmatprep.subr.bf16.mxu0 %v2553
    %3622 = vmatpush1.bf16.msra.mxu0 %v2552
    %3623 = vmatprep.subr.bf16.mxu0 %v2561
    %3624 = vmatpush1.bf16.msra.mxu0 %v2560
    %3625 = vmatprep.subr.bf16.mxu0 %v2569
    %3626 = vmatpush1.bf16.msra.mxu0 %v2568
    %3627 = vmatprep.subr.bf16.mxu0 %v2577
    %3628 = vmatpush1.bf16.msra.mxu0 %v2576
    %3629 = vmatprep.subr.bf16.mxu0 %v2585
    %3630 = vmatpush1.bf16.msra.mxu0 %v2584
    %3631 = vmatprep.subr.bf16.mxu0 %v2593
    %3632 = vmatpush1.bf16.msra.mxu0 %v2592
    %3633 = vmatprep.subr.bf16.mxu0 %v2601
    %3634 = vmatpush1.bf16.msra.mxu0 %v2600
    %3635 = vmatprep.subr.bf16.mxu0 %v2609
    %3636 = vmatpush1.bf16.msra.mxu0 %v2608
    %3637 = vmatprep.subr.bf16.mxu0 %v2617
    %3638 = vmatpush1.bf16.msra.mxu0 %v2616
    %3639 = vmatprep.subr.bf16.mxu0 %v2625
    %3640 = vmatpush1.bf16.msra.mxu0 %v2624
    %3641 = vmatprep.subr.bf16.mxu0 %v2633
    %3642 = vmatpush1.bf16.msra.mxu0 %v2632
    %3643 = vmatprep.subr.bf16.mxu0 %v2641
    %3644 = vmatpush1.bf16.msra.mxu0 %v2640
    %3645 = vmatprep.subr.bf16.mxu0 %v2649
    %3646 = vmatpush1.bf16.msra.mxu0 %v2648
    %3647 = vmatprep.mubr.bf16.mxu0 %v49
    %3648 = vmatmul.mubr.bf16.gmra.mrb[0].mxu0 %v48
    %v3649 = vpop.f32.mrb[0].mxu0
    %v3650 = vadd.f32 %v3609, %v3649
    %v3651 = vpop.f32.mrb[0].mxu0
    %v3652 = vadd.f32 %v3611, %v3651
    %v3653 = vpop.f32.mrb[0].mxu0
    %v3654 = vpop.f32.mrb[0].mxu0
    %3655 = vdwg.mxu0
    %3656 = vmatprep.subr.bf16.mxu0 %v2147
    %3657 = vmatpush1.bf16.msra.mxu0 %v2146
    %3658 = vmatprep.subr.bf16.mxu0 %v2155
    %3659 = vmatpush1.bf16.msra.mxu0 %v2154
    %3660 = vmatprep.subr.bf16.mxu0 %v2163
    %3661 = vmatpush1.bf16.msra.mxu0 %v2162
    %3662 = vmatprep.subr.bf16.mxu0 %v2171
    %3663 = vmatpush1.bf16.msra.mxu0 %v2170
    %3664 = vmatprep.subr.bf16.mxu0 %v2179
    %3665 = vmatpush1.bf16.msra.mxu0 %v2178
    %3666 = vmatprep.subr.bf16.mxu0 %v2187
    %3667 = vmatpush1.bf16.msra.mxu0 %v2186
    %3668 = vmatprep.subr.bf16.mxu0 %v2195
    %3669 = vmatpush1.bf16.msra.mxu0 %v2194
    %3670 = vmatprep.subr.bf16.mxu0 %v2203
    %3671 = vmatpush1.bf16.msra.mxu0 %v2202
    %3672 = vmatprep.subr.bf16.mxu0 %v2211
    %3673 = vmatpush1.bf16.msra.mxu0 %v2210
    %3674 = vmatprep.subr.bf16.mxu0 %v2219
    %3675 = vmatpush1.bf16.msra.mxu0 %v2218
    %3676 = vmatprep.subr.bf16.mxu0 %v2227
    %3677 = vmatpush1.bf16.msra.mxu0 %v2226
    %3678 = vmatprep.subr.bf16.mxu0 %v2235
    %3679 = vmatpush1.bf16.msra.mxu0 %v2234
    %3680 = vmatprep.subr.bf16.mxu0 %v2243
    %3681 = vmatpush1.bf16.msra.mxu0 %v2242
    %3682 = vmatprep.subr.bf16.mxu0 %v2251
    %3683 = vmatpush1.bf16.msra.mxu0 %v2250
    %3684 = vmatprep.subr.bf16.mxu0 %v2259
    %3685 = vmatpush1.bf16.msra.mxu0 %v2258
    %3686 = vmatprep.subr.bf16.mxu0 %v2267
    %3687 = vmatpush1.bf16.msra.mxu0 %v2266
    %3688 = vmatprep.mubr.bf16.mxu0 %v43
    %3689 = vmatmul.mubr.bf16.gmra.mrb[0].mxu0 %v42
    %v3690 = vpop.f32.mrb[0].mxu0
    %v3691 = vadd.f32 %v591, %v3690
    %v3692 = vpop.f32.mrb[0].mxu0
    %v3693 = vadd.f32 %v595, %v3692
    %v3694 = vpop.f32.mrb[0].mxu0
    %v3695 = vpop.f32.mrb[0].mxu0
    %3696 = vdwg.mxu0
    %3697 = vmatprep.subr.bf16.mxu0 %v2275
    %3698 = vmatpush1.bf16.msra.mxu0 %v2274
    %3699 = vmatprep.subr.bf16.mxu0 %v2283
    %3700 = vmatpush1.bf16.msra.mxu0 %v2282
    %3701 = vmatprep.subr.bf16.mxu0 %v2291
    %3702 = vmatpush1.bf16.msra.mxu0 %v2290
    %3703 = vmatprep.subr.bf16.mxu0 %v2299
    %3704 = vmatpush1.bf16.msra.mxu0 %v2298
    %3705 = vmatprep.subr.bf16.mxu0 %v2307
    %3706 = vmatpush1.bf16.msra.mxu0 %v2306
    %3707 = vmatprep.subr.bf16.mxu0 %v2315
    %3708 = vmatpush1.bf16.msra.mxu0 %v2314
    %3709 = vmatprep.subr.bf16.mxu0 %v2323
    %3710 = vmatpush1.bf16.msra.mxu0 %v2322
    %3711 = vmatprep.subr.bf16.mxu0 %v2331
    %3712 = vmatpush1.bf16.msra.mxu0 %v2330
    %3713 = vmatprep.subr.bf16.mxu0 %v2339
    %3714 = vmatpush1.bf16.msra.mxu0 %v2338
    %3715 = vmatprep.subr.bf16.mxu0 %v2347
    %3716 = vmatpush1.bf16.msra.mxu0 %v2346
    %3717 = vmatprep.subr.bf16.mxu0 %v2355
    %3718 = vmatpush1.bf16.msra.mxu0 %v2354
    %3719 = vmatprep.subr.bf16.mxu0 %v2363
    %3720 = vmatpush1.bf16.msra.mxu0 %v2362
    %3721 = vmatprep.subr.bf16.mxu0 %v2371
    %3722 = vmatpush1.bf16.msra.mxu0 %v2370
    %3723 = vmatprep.subr.bf16.mxu0 %v2379
    %3724 = vmatpush1.bf16.msra.mxu0 %v2378
    %3725 = vmatprep.subr.bf16.mxu0 %v2387
    %3726 = vmatpush1.bf16.msra.mxu0 %v2386
    %3727 = vmatprep.subr.bf16.mxu0 %v2395
    %3728 = vmatpush1.bf16.msra.mxu0 %v2394
    %3729 = vmatprep.mubr.bf16.mxu0 %v45
    %3730 = vmatmul.mubr.bf16.gmra.mrb[0].mxu0 %v44
    %v3731 = vpop.f32.mrb[0].mxu0
    %v3732 = vadd.f32 %v3691, %v3731
    %v3733 = vpop.f32.mrb[0].mxu0
    %v3734 = vadd.f32 %v3693, %v3733
    %v3735 = vpop.f32.mrb[0].mxu0
    %v3736 = vpop.f32.mrb[0].mxu0
    %3737 = vdwg.mxu0
    %3738 = vmatprep.subr.bf16.mxu0 %v2403
    %3739 = vmatpush1.bf16.msra.mxu0 %v2402
    %3740 = vmatprep.subr.bf16.mxu0 %v2411
    %3741 = vmatpush1.bf16.msra.mxu0 %v2410
    %3742 = vmatprep.subr.bf16.mxu0 %v2419
    %3743 = vmatpush1.bf16.msra.mxu0 %v2418
    %3744 = vmatprep.subr.bf16.mxu0 %v2427
    %3745 = vmatpush1.bf16.msra.mxu0 %v2426
    %3746 = vmatprep.subr.bf16.mxu0 %v2435
    %3747 = vmatpush1.bf16.msra.mxu0 %v2434
    %3748 = vmatprep.subr.bf16.mxu0 %v2443
    %3749 = vmatpush1.bf16.msra.mxu0 %v2442
    %3750 = vmatprep.subr.bf16.mxu0 %v2451
    %3751 = vmatpush1.bf16.msra.mxu0 %v2450
    %3752 = vmatprep.subr.bf16.mxu0 %v2459
    %3753 = vmatpush1.bf16.msra.mxu0 %v2458
    %3754 = vmatprep.subr.bf16.mxu0 %v2467
    %3755 = vmatpush1.bf16.msra.mxu0 %v2466
    %3756 = vmatprep.subr.bf16.mxu0 %v2475
    %3757 = vmatpush1.bf16.msra.mxu0 %v2474
    %3758 = vmatprep.subr.bf16.mxu0 %v2483
    %3759 = vmatpush1.bf16.msra.mxu0 %v2482
    %3760 = vmatprep.subr.bf16.mxu0 %v2491
    %3761 = vmatpush1.bf16.msra.mxu0 %v2490
    %3762 = vmatprep.subr.bf16.mxu0 %v2499
    %3763 = vmatpush1.bf16.msra.mxu0 %v2498
    %3764 = vmatprep.subr.bf16.mxu0 %v2507
    %3765 = vmatpush1.bf16.msra.mxu0 %v2506
    %3766 = vmatprep.subr.bf16.mxu0 %v2515
    %3767 = vmatpush1.bf16.msra.mxu0 %v2514
    %3768 = vmatprep.subr.bf16.mxu0 %v2523
    %3769 = vmatpush1.bf16.msra.mxu0 %v2522
    %3770 = vmatprep.mubr.bf16.mxu0 %v47
    %3771 = vmatmul.mubr.bf16.gmra.mrb[0].mxu0 %v46
    %v3772 = vpop.f32.mrb[0].mxu0
    %v3773 = vadd.f32 %v3732, %v3772
    %v3774 = vpop.f32.mrb[0].mxu0
    %v3775 = vadd.f32 %v3734, %v3774
    %v3776 = vpop.f32.mrb[0].mxu0
    %v3777 = vpop.f32.mrb[0].mxu0
    %3778 = vdwg.mxu0
    %3779 = vmatprep.subr.bf16.mxu0 %v2531
    %3780 = vmatpush1.bf16.msra.mxu0 %v2530
    %3781 = vmatprep.subr.bf16.mxu0 %v2539
    %3782 = vmatpush1.bf16.msra.mxu0 %v2538
    %3783 = vmatprep.subr.bf16.mxu0 %v2547
    %3784 = vmatpush1.bf16.msra.mxu0 %v2546
    %3785 = vmatprep.subr.bf16.mxu0 %v2555
    %3786 = vmatpush1.bf16.msra.mxu0 %v2554
    %3787 = vmatprep.subr.bf16.mxu0 %v2563
    %3788 = vmatpush1.bf16.msra.mxu0 %v2562
    %3789 = vmatprep.subr.bf16.mxu0 %v2571
    %3790 = vmatpush1.bf16.msra.mxu0 %v2570
    %3791 = vmatprep.subr.bf16.mxu0 %v2579
    %3792 = vmatpush1.bf16.msra.mxu0 %v2578
    %3793 = vmatprep.subr.bf16.mxu0 %v2587
    %3794 = vmatpush1.bf16.msra.mxu0 %v2586
    %3795 = vmatprep.subr.bf16.mxu0 %v2595
    %3796 = vmatpush1.bf16.msra.mxu0 %v2594
    %3797 = vmatprep.subr.bf16.mxu0 %v2603
    %3798 = vmatpush1.bf16.msra.mxu0 %v2602
    %3799 = vmatprep.subr.bf16.mxu0 %v2611
    %3800 = vmatpush1.bf16.msra.mxu0 %v2610
    %3801 = vmatprep.subr.bf16.mxu0 %v2619
    %3802 = vmatpush1.bf16.msra.mxu0 %v2618
    %3803 = vmatprep.subr.bf16.mxu0 %v2627
    %3804 = vmatpush1.bf16.msra.mxu0 %v2626
    %3805 = vmatprep.subr.bf16.mxu0 %v2635
    %3806 = vmatpush1.bf16.msra.mxu0 %v2634
    %3807 = vmatprep.subr.bf16.mxu0 %v2643
    %3808 = vmatpush1.bf16.msra.mxu0 %v2642
    %3809 = vmatprep.subr.bf16.mxu0 %v2651
    %3810 = vmatpush1.bf16.msra.mxu0 %v2650
    %3811 = vmatprep.mubr.bf16.mxu0 %v49
    %3812 = vmatmul.mubr.bf16.gmra.mrb[0].mxu0 %v48
    %v3813 = vpop.f32.mrb[0].mxu0
    %v3814 = vadd.f32 %v3773, %v3813
    %v3815 = vpop.f32.mrb[0].mxu0
    %v3816 = vadd.f32 %v3775, %v3815
    %v3817 = vpop.f32.mrb[0].mxu0
    %v3818 = vpop.f32.mrb[0].mxu0
    %3819 = vdwg.mxu0
    %v3820 = vmax.f32 %v3322, 0.0
    %v3821 = vmax.f32 %v3324, 0.0
    %v3822 = vmax.f32 %v3486, 0.0
    %v3823 = vmax.f32 %v3488, 0.0
    %v3824 = vmax.f32 %v3650, 0.0
    %v3825 = vmax.f32 %v3652, 0.0
    %v3826 = vmax.f32 %v3814, 0.0
    %v3827 = vmax.f32 %v3816, 0.0
    %v3828 = vpack.c.bf16 %v3820, %v3820
    %v3829 = vpack.c.bf16 %v3821, %v3821
    %v3830 = vpack.c.bf16 %v3822, %v3822
    %v3831 = vpack.c.bf16 %v3823, %v3823
    %v3832 = vpack.c.bf16 %v3824, %v3824
    %v3833 = vpack.c.bf16 %v3825, %v3825
    %v3834 = vpack.c.bf16 %v3826, %v3826
    %v3835 = vpack.c.bf16 %v3827, %v3827
    %v3836 = vld [vmem:[%s3] sm:$0xff]
    %v3837 = vld [vmem:[%s3 + $0x8] sm:$0xff]
    %v3838 = vld [vmem:[%s3 + $0x10] sm:$0xff]
    %v3839 = vld [vmem:[%s3 + $0x18] sm:$0xff]
    %v3840 = vld [vmem:[%s3 + $0x20] sm:$0xff]
    %v3841 = vld [vmem:[%s3 + $0x28] sm:$0xff]
    %v3842 = vld [vmem:[%s3 + $0x30] sm:$0xff]
    %v3843 = vld [vmem:[%s3 + $0x38] sm:$0xff]
    %v3844 = vld [vmem:[%s3 + $0x40] sm:$0xff]
    %v3845 = vld [vmem:[%s3 + $0x48] sm:$0xff]
    %v3846 = vld [vmem:[%s3 + $0x50] sm:$0xff]
    %v3847 = vld [vmem:[%s3 + $0x58] sm:$0xff]
    %v3848 = vld [vmem:[%s3 + $0x60] sm:$0xff]
    %v3849 = vld [vmem:[%s3 + $0x68] sm:$0xff]
    %v3850 = vld [vmem:[%s3 + $0x70] sm:$0xff]
    %v3851 = vld [vmem:[%s3 + $0x78] sm:$0xff]
    %v3852 = vld [vmem:[%s3 + $0x80] sm:$0xff]
    %v3853 = vld [vmem:[%s3 + $0x88] sm:$0xff]
    %v3854 = vld [vmem:[%s3 + $0x90] sm:$0xff]
    %v3855 = vld [vmem:[%s3 + $0x98] sm:$0xff]
    %v3856 = vld [vmem:[%s3 + $0xa0] sm:$0xff]
    %v3857 = vld [vmem:[%s3 + $0xa8] sm:$0xff]
    %v3858 = vld [vmem:[%s3 + $0xb0] sm:$0xff]
    %v3859 = vld [vmem:[%s3 + $0xb8] sm:$0xff]
    %v3860 = vld [vmem:[%s3 + $0xc0] sm:$0xff]
    %v3861 = vld [vmem:[%s3 + $0xc8] sm:$0xff]
    %v3862 = vld [vmem:[%s3 + $0xd0] sm:$0xff]
    %v3863 = vld [vmem:[%s3 + $0xd8] sm:$0xff]
    %v3864 = vld [vmem:[%s3 + $0xe0] sm:$0xff]
    %v3865 = vld [vmem:[%s3 + $0xe8] sm:$0xff]
    %v3866 = vld [vmem:[%s3 + $0xf0] sm:$0xff]
    %v3867 = vld [vmem:[%s3 + $0xf8] sm:$0xff]
    %v3868 = vld [vmem:[%s3 + $0x100] sm:$0xff]
    %v3869 = vld [vmem:[%s3 + $0x108] sm:$0xff]
    %v3870 = vld [vmem:[%s3 + $0x110] sm:$0xff]
    %v3871 = vld [vmem:[%s3 + $0x118] sm:$0xff]
    %v3872 = vld [vmem:[%s3 + $0x120] sm:$0xff]
    %v3873 = vld [vmem:[%s3 + $0x128] sm:$0xff]
    %v3874 = vld [vmem:[%s3 + $0x130] sm:$0xff]
    %v3875 = vld [vmem:[%s3 + $0x138] sm:$0xff]
    %v3876 = vld [vmem:[%s3 + $0x140] sm:$0xff]
    %v3877 = vld [vmem:[%s3 + $0x148] sm:$0xff]
    %v3878 = vld [vmem:[%s3 + $0x150] sm:$0xff]
    %v3879 = vld [vmem:[%s3 + $0x158] sm:$0xff]
    %v3880 = vld [vmem:[%s3 + $0x160] sm:$0xff]
    %v3881 = vld [vmem:[%s3 + $0x168] sm:$0xff]
    %v3882 = vld [vmem:[%s3 + $0x170] sm:$0xff]
    %v3883 = vld [vmem:[%s3 + $0x178] sm:$0xff]
    %v3884 = vld [vmem:[%s3 + $0x180] sm:$0xff]
    %v3885 = vld [vmem:[%s3 + $0x188] sm:$0xff]
    %v3886 = vld [vmem:[%s3 + $0x190] sm:$0xff]
    %v3887 = vld [vmem:[%s3 + $0x198] sm:$0xff]
    %v3888 = vld [vmem:[%s3 + $0x1a0] sm:$0xff]
    %v3889 = vld [vmem:[%s3 + $0x1a8] sm:$0xff]
    %v3890 = vld [vmem:[%s3 + $0x1b0] sm:$0xff]
    %v3891 = vld [vmem:[%s3 + $0x1b8] sm:$0xff]
    %v3892 = vld [vmem:[%s3 + $0x1c0] sm:$0xff]
    %v3893 = vld [vmem:[%s3 + $0x1c8] sm:$0xff]
    %v3894 = vld [vmem:[%s3 + $0x1d0] sm:$0xff]
    %v3895 = vld [vmem:[%s3 + $0x1d8] sm:$0xff]
    %v3896 = vld [vmem:[%s3 + $0x1e0] sm:$0xff]
    %v3897 = vld [vmem:[%s3 + $0x1e8] sm:$0xff]
    %v3898 = vld [vmem:[%s3 + $0x1f0] sm:$0xff]
    %v3899 = vld [vmem:[%s3 + $0x1f8] sm:$0xff]
    %v3900 = vld [vmem:[%s3 + $0x200] sm:$0xff]
    %v3901 = vld [vmem:[%s3 + $0x208] sm:$0xff]
    %v3902 = vld [vmem:[%s3 + $0x210] sm:$0xff]
    %v3903 = vld [vmem:[%s3 + $0x218] sm:$0xff]
    %v3904 = vld [vmem:[%s3 + $0x220] sm:$0xff]
    %v3905 = vld [vmem:[%s3 + $0x228] sm:$0xff]
    %v3906 = vld [vmem:[%s3 + $0x230] sm:$0xff]
    %v3907 = vld [vmem:[%s3 + $0x238] sm:$0xff]
    %v3908 = vld [vmem:[%s3 + $0x240] sm:$0xff]
    %v3909 = vld [vmem:[%s3 + $0x248] sm:$0xff]
    %v3910 = vld [vmem:[%s3 + $0x250] sm:$0xff]
    %v3911 = vld [vmem:[%s3 + $0x258] sm:$0xff]
    %v3912 = vld [vmem:[%s3 + $0x260] sm:$0xff]
    %v3913 = vld [vmem:[%s3 + $0x268] sm:$0xff]
    %v3914 = vld [vmem:[%s3 + $0x270] sm:$0xff]
    %v3915 = vld [vmem:[%s3 + $0x278] sm:$0xff]
    %v3916 = vld [vmem:[%s3 + $0x280] sm:$0xff]
    %v3917 = vld [vmem:[%s3 + $0x288] sm:$0xff]
    %v3918 = vld [vmem:[%s3 + $0x290] sm:$0xff]
    %v3919 = vld [vmem:[%s3 + $0x298] sm:$0xff]
    %v3920 = vld [vmem:[%s3 + $0x2a0] sm:$0xff]
    %v3921 = vld [vmem:[%s3 + $0x2a8] sm:$0xff]
    %v3922 = vld [vmem:[%s3 + $0x2b0] sm:$0xff]
    %v3923 = vld [vmem:[%s3 + $0x2b8] sm:$0xff]
    %v3924 = vld [vmem:[%s3 + $0x2c0] sm:$0xff]
    %v3925 = vld [vmem:[%s3 + $0x2c8] sm:$0xff]
    %v3926 = vld [vmem:[%s3 + $0x2d0] sm:$0xff]
    %v3927 = vld [vmem:[%s3 + $0x2d8] sm:$0xff]
    %v3928 = vld [vmem:[%s3 + $0x2e0] sm:$0xff]
    %v3929 = vld [vmem:[%s3 + $0x2e8] sm:$0xff]
    %v3930 = vld [vmem:[%s3 + $0x2f0] sm:$0xff]
    %v3931 = vld [vmem:[%s3 + $0x2f8] sm:$0xff]
    %v3932 = vld [vmem:[%s3 + $0x300] sm:$0xff]
    %v3933 = vld [vmem:[%s3 + $0x308] sm:$0xff]
    %v3934 = vld [vmem:[%s3 + $0x310] sm:$0xff]
    %v3935 = vld [vmem:[%s3 + $0x318] sm:$0xff]
    %v3936 = vld [vmem:[%s3 + $0x320] sm:$0xff]
    %v3937 = vld [vmem:[%s3 + $0x328] sm:$0xff]
    %v3938 = vld [vmem:[%s3 + $0x330] sm:$0xff]
    %v3939 = vld [vmem:[%s3 + $0x338] sm:$0xff]
    %v3940 = vld [vmem:[%s3 + $0x340] sm:$0xff]
    %v3941 = vld [vmem:[%s3 + $0x348] sm:$0xff]
    %v3942 = vld [vmem:[%s3 + $0x350] sm:$0xff]
    %v3943 = vld [vmem:[%s3 + $0x358] sm:$0xff]
    %v3944 = vld [vmem:[%s3 + $0x360] sm:$0xff]
    %v3945 = vld [vmem:[%s3 + $0x368] sm:$0xff]
    %v3946 = vld [vmem:[%s3 + $0x370] sm:$0xff]
    %v3947 = vld [vmem:[%s3 + $0x378] sm:$0xff]
    %v3948 = vld [vmem:[%s3 + $0x380] sm:$0xff]
    %v3949 = vld [vmem:[%s3 + $0x388] sm:$0xff]
    %v3950 = vld [vmem:[%s3 + $0x390] sm:$0xff]
    %v3951 = vld [vmem:[%s3 + $0x398] sm:$0xff]
    %v3952 = vld [vmem:[%s3 + $0x3a0] sm:$0xff]
    %v3953 = vld [vmem:[%s3 + $0x3a8] sm:$0xff]
    %v3954 = vld [vmem:[%s3 + $0x3b0] sm:$0xff]
    %v3955 = vld [vmem:[%s3 + $0x3b8] sm:$0xff]
    %v3956 = vld [vmem:[%s3 + $0x3c0] sm:$0xff]
    %v3957 = vld [vmem:[%s3 + $0x3c8] sm:$0xff]
    %v3958 = vld [vmem:[%s3 + $0x3d0] sm:$0xff]
    %v3959 = vld [vmem:[%s3 + $0x3d8] sm:$0xff]
    %v3960 = vld [vmem:[%s3 + $0x3e0] sm:$0xff]
    %v3961 = vld [vmem:[%s3 + $0x3e8] sm:$0xff]
    %v3962 = vld [vmem:[%s3 + $0x3f0] sm:$0xff]
    %v3963 = vld [vmem:[%s3 + $0x3f8] sm:$0xff]
    %v3964 = vld [vmem:[%s3 + $0x400] sm:$0xff]
    %v3965 = vld [vmem:[%s3 + $0x408] sm:$0xff]
    %v3966 = vld [vmem:[%s3 + $0x410] sm:$0xff]
    %v3967 = vld [vmem:[%s3 + $0x418] sm:$0xff]
    %v3968 = vld [vmem:[%s3 + $0x420] sm:$0xff]
    %v3969 = vld [vmem:[%s3 + $0x428] sm:$0xff]
    %v3970 = vld [vmem:[%s3 + $0x430] sm:$0xff]
    %v3971 = vld [vmem:[%s3 + $0x438] sm:$0xff]
    %v3972 = vld [vmem:[%s3 + $0x440] sm:$0xff]
    %v3973 = vld [vmem:[%s3 + $0x448] sm:$0xff]
    %v3974 = vld [vmem:[%s3 + $0x450] sm:$0xff]
    %v3975 = vld [vmem:[%s3 + $0x458] sm:$0xff]
    %v3976 = vld [vmem:[%s3 + $0x460] sm:$0xff]
    %v3977 = vld [vmem:[%s3 + $0x468] sm:$0xff]
    %v3978 = vld [vmem:[%s3 + $0x470] sm:$0xff]
    %v3979 = vld [vmem:[%s3 + $0x478] sm:$0xff]
    %v3980 = vld [vmem:[%s3 + $0x480] sm:$0xff]
    %v3981 = vld [vmem:[%s3 + $0x488] sm:$0xff]
    %v3982 = vld [vmem:[%s3 + $0x490] sm:$0xff]
    %v3983 = vld [vmem:[%s3 + $0x498] sm:$0xff]
    %v3984 = vld [vmem:[%s3 + $0x4a0] sm:$0xff]
    %v3985 = vld [vmem:[%s3 + $0x4a8] sm:$0xff]
    %v3986 = vld [vmem:[%s3 + $0x4b0] sm:$0xff]
    %v3987 = vld [vmem:[%s3 + $0x4b8] sm:$0xff]
    %v3988 = vld [vmem:[%s3 + $0x4c0] sm:$0xff]
    %v3989 = vld [vmem:[%s3 + $0x4c8] sm:$0xff]
    %v3990 = vld [vmem:[%s3 + $0x4d0] sm:$0xff]
    %v3991 = vld [vmem:[%s3 + $0x4d8] sm:$0xff]
    %v3992 = vld [vmem:[%s3 + $0x4e0] sm:$0xff]
    %v3993 = vld [vmem:[%s3 + $0x4e8] sm:$0xff]
    %v3994 = vld [vmem:[%s3 + $0x4f0] sm:$0xff]
    %v3995 = vld [vmem:[%s3 + $0x4f8] sm:$0xff]
    %v3996 = vld [vmem:[%s3 + $0x500] sm:$0xff]
    %v3997 = vld [vmem:[%s3 + $0x508] sm:$0xff]
    %v3998 = vld [vmem:[%s3 + $0x510] sm:$0xff]
    %v3999 = vld [vmem:[%s3 + $0x518] sm:$0xff]
    %v4000 = vld [vmem:[%s3 + $0x520] sm:$0xff]
    %v4001 = vld [vmem:[%s3 + $0x528] sm:$0xff]
    %v4002 = vld [vmem:[%s3 + $0x530] sm:$0xff]
    %v4003 = vld [vmem:[%s3 + $0x538] sm:$0xff]
    %v4004 = vld [vmem:[%s3 + $0x540] sm:$0xff]
    %v4005 = vld [vmem:[%s3 + $0x548] sm:$0xff]
    %v4006 = vld [vmem:[%s3 + $0x550] sm:$0xff]
    %v4007 = vld [vmem:[%s3 + $0x558] sm:$0xff]
    %v4008 = vld [vmem:[%s3 + $0x560] sm:$0xff]
    %v4009 = vld [vmem:[%s3 + $0x568] sm:$0xff]
    %v4010 = vld [vmem:[%s3 + $0x570] sm:$0xff]
    %v4011 = vld [vmem:[%s3 + $0x578] sm:$0xff]
    %v4012 = vld [vmem:[%s3 + $0x580] sm:$0xff]
    %v4013 = vld [vmem:[%s3 + $0x588] sm:$0xff]
    %v4014 = vld [vmem:[%s3 + $0x590] sm:$0xff]
    %v4015 = vld [vmem:[%s3 + $0x598] sm:$0xff]
    %v4016 = vld [vmem:[%s3 + $0x5a0] sm:$0xff]
    %v4017 = vld [vmem:[%s3 + $0x5a8] sm:$0xff]
    %v4018 = vld [vmem:[%s3 + $0x5b0] sm:$0xff]
    %v4019 = vld [vmem:[%s3 + $0x5b8] sm:$0xff]
    %v4020 = vld [vmem:[%s3 + $0x5c0] sm:$0xff]
    %v4021 = vld [vmem:[%s3 + $0x5c8] sm:$0xff]
    %v4022 = vld [vmem:[%s3 + $0x5d0] sm:$0xff]
    %v4023 = vld [vmem:[%s3 + $0x5d8] sm:$0xff]
    %v4024 = vld [vmem:[%s3 + $0x5e0] sm:$0xff]
    %v4025 = vld [vmem:[%s3 + $0x5e8] sm:$0xff]
    %v4026 = vld [vmem:[%s3 + $0x5f0] sm:$0xff]
    %v4027 = vld [vmem:[%s3 + $0x5f8] sm:$0xff]
    %v4028 = vld [vmem:[%s3 + $0x600] sm:$0xff]
    %v4029 = vld [vmem:[%s3 + $0x608] sm:$0xff]
    %v4030 = vld [vmem:[%s3 + $0x610] sm:$0xff]
    %v4031 = vld [vmem:[%s3 + $0x618] sm:$0xff]
    %v4032 = vld [vmem:[%s3 + $0x620] sm:$0xff]
    %v4033 = vld [vmem:[%s3 + $0x628] sm:$0xff]
    %v4034 = vld [vmem:[%s3 + $0x630] sm:$0xff]
    %v4035 = vld [vmem:[%s3 + $0x638] sm:$0xff]
    %v4036 = vld [vmem:[%s3 + $0x640] sm:$0xff]
    %v4037 = vld [vmem:[%s3 + $0x648] sm:$0xff]
    %v4038 = vld [vmem:[%s3 + $0x650] sm:$0xff]
    %v4039 = vld [vmem:[%s3 + $0x658] sm:$0xff]
    %v4040 = vld [vmem:[%s3 + $0x660] sm:$0xff]
    %v4041 = vld [vmem:[%s3 + $0x668] sm:$0xff]
    %v4042 = vld [vmem:[%s3 + $0x670] sm:$0xff]
    %v4043 = vld [vmem:[%s3 + $0x678] sm:$0xff]
    %v4044 = vld [vmem:[%s3 + $0x680] sm:$0xff]
    %v4045 = vld [vmem:[%s3 + $0x688] sm:$0xff]
    %v4046 = vld [vmem:[%s3 + $0x690] sm:$0xff]
    %v4047 = vld [vmem:[%s3 + $0x698] sm:$0xff]
    %v4048 = vld [vmem:[%s3 + $0x6a0] sm:$0xff]
    %v4049 = vld [vmem:[%s3 + $0x6a8] sm:$0xff]
    %v4050 = vld [vmem:[%s3 + $0x6b0] sm:$0xff]
    %v4051 = vld [vmem:[%s3 + $0x6b8] sm:$0xff]
    %v4052 = vld [vmem:[%s3 + $0x6c0] sm:$0xff]
    %v4053 = vld [vmem:[%s3 + $0x6c8] sm:$0xff]
    %v4054 = vld [vmem:[%s3 + $0x6d0] sm:$0xff]
    %v4055 = vld [vmem:[%s3 + $0x6d8] sm:$0xff]
    %v4056 = vld [vmem:[%s3 + $0x6e0] sm:$0xff]
    %v4057 = vld [vmem:[%s3 + $0x6e8] sm:$0xff]
    %v4058 = vld [vmem:[%s3 + $0x6f0] sm:$0xff]
    %v4059 = vld [vmem:[%s3 + $0x6f8] sm:$0xff]
    %v4060 = vld [vmem:[%s3 + $0x700] sm:$0xff]
    %v4061 = vld [vmem:[%s3 + $0x708] sm:$0xff]
    %v4062 = vld [vmem:[%s3 + $0x710] sm:$0xff]
    %v4063 = vld [vmem:[%s3 + $0x718] sm:$0xff]
    %v4064 = vld [vmem:[%s3 + $0x720] sm:$0xff]
    %v4065 = vld [vmem:[%s3 + $0x728] sm:$0xff]
    %v4066 = vld [vmem:[%s3 + $0x730] sm:$0xff]
    %v4067 = vld [vmem:[%s3 + $0x738] sm:$0xff]
    %v4068 = vld [vmem:[%s3 + $0x740] sm:$0xff]
    %v4069 = vld [vmem:[%s3 + $0x748] sm:$0xff]
    %v4070 = vld [vmem:[%s3 + $0x750] sm:$0xff]
    %v4071 = vld [vmem:[%s3 + $0x758] sm:$0xff]
    %v4072 = vld [vmem:[%s3 + $0x760] sm:$0xff]
    %v4073 = vld [vmem:[%s3 + $0x768] sm:$0xff]
    %v4074 = vld [vmem:[%s3 + $0x770] sm:$0xff]
    %v4075 = vld [vmem:[%s3 + $0x778] sm:$0xff]
    %v4076 = vld [vmem:[%s3 + $0x780] sm:$0xff]
    %v4077 = vld [vmem:[%s3 + $0x788] sm:$0xff]
    %v4078 = vld [vmem:[%s3 + $0x790] sm:$0xff]
    %v4079 = vld [vmem:[%s3 + $0x798] sm:$0xff]
    %v4080 = vld [vmem:[%s3 + $0x7a0] sm:$0xff]
    %v4081 = vld [vmem:[%s3 + $0x7a8] sm:$0xff]
    %v4082 = vld [vmem:[%s3 + $0x7b0] sm:$0xff]
    %v4083 = vld [vmem:[%s3 + $0x7b8] sm:$0xff]
    %v4084 = vld [vmem:[%s3 + $0x7c0] sm:$0xff]
    %v4085 = vld [vmem:[%s3 + $0x7c8] sm:$0xff]
    %v4086 = vld [vmem:[%s3 + $0x7d0] sm:$0xff]
    %v4087 = vld [vmem:[%s3 + $0x7d8] sm:$0xff]
    %v4088 = vld [vmem:[%s3 + $0x7e0] sm:$0xff]
    %v4089 = vld [vmem:[%s3 + $0x7e8] sm:$0xff]
    %v4090 = vld [vmem:[%s3 + $0x7f0] sm:$0xff]
    %v4091 = vld [vmem:[%s3 + $0x7f8] sm:$0xff]
    %v4092 = vld [vmem:[%s4] sm:$0xf]
    %v4094 = vlaneseq
    %v4095 = vshrl.u32 %v4094, 7
    %v4096 = vsub.s32 0, %v4095
    %v4097 = vrot.slane %v4092, %v4096
    %v4098 = vlaneseq
    %v4099 = vshrl.u32 %v4098, 7
    %v4100 = vsub.s32 1, %v4099
    %v4101 = vrot.slane %v4092, %v4100
    %v4102 = vlaneseq
    %v4103 = vshrl.u32 %v4102, 7
    %v4104 = vsub.s32 2, %v4103
    %v4105 = vrot.slane %v4092, %v4104
    %v4106 = vlaneseq
    %v4107 = vshrl.u32 %v4106, 7
    %v4108 = vsub.s32 3, %v4107
    %v4109 = vrot.slane %v4092, %v4108
    %v4370 = vunpack.c.l.b16 %v3836
    %v4371 = vunpack.c.h.b16 %v3836
    %v4372 = vunpack.c.l.b16 %v3837
    %v4373 = vunpack.c.h.b16 %v3837
    %v4374 = vunpack.c.l.b16 %v3838
    %v4375 = vunpack.c.h.b16 %v3838
    %v4376 = vunpack.c.l.b16 %v3839
    %v4377 = vunpack.c.h.b16 %v3839
    %v4378 = vunpack.c.l.b16 %v3840
    %v4379 = vunpack.c.h.b16 %v3840
    %v4380 = vunpack.c.l.b16 %v3841
    %v4381 = vunpack.c.h.b16 %v3841
    %v4382 = vunpack.c.l.b16 %v3842
    %v4383 = vunpack.c.h.b16 %v3842
    %v4384 = vunpack.c.l.b16 %v3843
    %v4385 = vunpack.c.h.b16 %v3843
    %v4386 = vunpack.c.l.b16 %v3844
    %v4387 = vunpack.c.h.b16 %v3844
    %v4388 = vunpack.c.l.b16 %v3845
    %v4389 = vunpack.c.h.b16 %v3845
    %v4390 = vunpack.c.l.b16 %v3846
    %v4391 = vunpack.c.h.b16 %v3846
    %v4392 = vunpack.c.l.b16 %v3847
    %v4393 = vunpack.c.h.b16 %v3847
    %v4394 = vunpack.c.l.b16 %v3848
    %v4395 = vunpack.c.h.b16 %v3848
    %v4396 = vunpack.c.l.b16 %v3849
    %v4397 = vunpack.c.h.b16 %v3849
    %v4398 = vunpack.c.l.b16 %v3850
    %v4399 = vunpack.c.h.b16 %v3850
    %v4400 = vunpack.c.l.b16 %v3851
    %v4401 = vunpack.c.h.b16 %v3851
    %v4402 = vunpack.c.l.b16 %v3852
    %v4403 = vunpack.c.h.b16 %v3852
    %v4404 = vunpack.c.l.b16 %v3853
    %v4405 = vunpack.c.h.b16 %v3853
    %v4406 = vunpack.c.l.b16 %v3854
    %v4407 = vunpack.c.h.b16 %v3854
    %v4408 = vunpack.c.l.b16 %v3855
    %v4409 = vunpack.c.h.b16 %v3855
    %v4410 = vunpack.c.l.b16 %v3856
    %v4411 = vunpack.c.h.b16 %v3856
    %v4412 = vunpack.c.l.b16 %v3857
    %v4413 = vunpack.c.h.b16 %v3857
    %v4414 = vunpack.c.l.b16 %v3858
    %v4415 = vunpack.c.h.b16 %v3858
    %v4416 = vunpack.c.l.b16 %v3859
    %v4417 = vunpack.c.h.b16 %v3859
    %v4418 = vunpack.c.l.b16 %v3860
    %v4419 = vunpack.c.h.b16 %v3860
    %v4420 = vunpack.c.l.b16 %v3861
    %v4421 = vunpack.c.h.b16 %v3861
    %v4422 = vunpack.c.l.b16 %v3862
    %v4423 = vunpack.c.h.b16 %v3862
    %v4424 = vunpack.c.l.b16 %v3863
    %v4425 = vunpack.c.h.b16 %v3863
    %v4426 = vunpack.c.l.b16 %v3864
    %v4427 = vunpack.c.h.b16 %v3864
    %v4428 = vunpack.c.l.b16 %v3865
    %v4429 = vunpack.c.h.b16 %v3865
    %v4430 = vunpack.c.l.b16 %v3866
    %v4431 = vunpack.c.h.b16 %v3866
    %v4432 = vunpack.c.l.b16 %v3867
    %v4433 = vunpack.c.h.b16 %v3867
    %v4434 = vunpack.c.l.b16 %v3868
    %v4435 = vunpack.c.h.b16 %v3868
    %v4436 = vunpack.c.l.b16 %v3869
    %v4437 = vunpack.c.h.b16 %v3869
    %v4438 = vunpack.c.l.b16 %v3870
    %v4439 = vunpack.c.h.b16 %v3870
    %v4440 = vunpack.c.l.b16 %v3871
    %v4441 = vunpack.c.h.b16 %v3871
    %v4442 = vunpack.c.l.b16 %v3872
    %v4443 = vunpack.c.h.b16 %v3872
    %v4444 = vunpack.c.l.b16 %v3873
    %v4445 = vunpack.c.h.b16 %v3873
    %v4446 = vunpack.c.l.b16 %v3874
    %v4447 = vunpack.c.h.b16 %v3874
    %v4448 = vunpack.c.l.b16 %v3875
    %v4449 = vunpack.c.h.b16 %v3875
    %v4450 = vunpack.c.l.b16 %v3876
    %v4451 = vunpack.c.h.b16 %v3876
    %v4452 = vunpack.c.l.b16 %v3877
    %v4453 = vunpack.c.h.b16 %v3877
    %v4454 = vunpack.c.l.b16 %v3878
    %v4455 = vunpack.c.h.b16 %v3878
    %v4456 = vunpack.c.l.b16 %v3879
    %v4457 = vunpack.c.h.b16 %v3879
    %v4458 = vunpack.c.l.b16 %v3880
    %v4459 = vunpack.c.h.b16 %v3880
    %v4460 = vunpack.c.l.b16 %v3881
    %v4461 = vunpack.c.h.b16 %v3881
    %v4462 = vunpack.c.l.b16 %v3882
    %v4463 = vunpack.c.h.b16 %v3882
    %v4464 = vunpack.c.l.b16 %v3883
    %v4465 = vunpack.c.h.b16 %v3883
    %v4466 = vunpack.c.l.b16 %v3884
    %v4467 = vunpack.c.h.b16 %v3884
    %v4468 = vunpack.c.l.b16 %v3885
    %v4469 = vunpack.c.h.b16 %v3885
    %v4470 = vunpack.c.l.b16 %v3886
    %v4471 = vunpack.c.h.b16 %v3886
    %v4472 = vunpack.c.l.b16 %v3887
    %v4473 = vunpack.c.h.b16 %v3887
    %v4474 = vunpack.c.l.b16 %v3888
    %v4475 = vunpack.c.h.b16 %v3888
    %v4476 = vunpack.c.l.b16 %v3889
    %v4477 = vunpack.c.h.b16 %v3889
    %v4478 = vunpack.c.l.b16 %v3890
    %v4479 = vunpack.c.h.b16 %v3890
    %v4480 = vunpack.c.l.b16 %v3891
    %v4481 = vunpack.c.h.b16 %v3891
    %v4482 = vunpack.c.l.b16 %v3892
    %v4483 = vunpack.c.h.b16 %v3892
    %v4484 = vunpack.c.l.b16 %v3893
    %v4485 = vunpack.c.h.b16 %v3893
    %v4486 = vunpack.c.l.b16 %v3894
    %v4487 = vunpack.c.h.b16 %v3894
    %v4488 = vunpack.c.l.b16 %v3895
    %v4489 = vunpack.c.h.b16 %v3895
    %v4490 = vunpack.c.l.b16 %v3896
    %v4491 = vunpack.c.h.b16 %v3896
    %v4492 = vunpack.c.l.b16 %v3897
    %v4493 = vunpack.c.h.b16 %v3897
    %v4494 = vunpack.c.l.b16 %v3898
    %v4495 = vunpack.c.h.b16 %v3898
    %v4496 = vunpack.c.l.b16 %v3899
    %v4497 = vunpack.c.h.b16 %v3899
    %v4498 = vunpack.c.l.b16 %v3900
    %v4499 = vunpack.c.h.b16 %v3900
    %v4500 = vunpack.c.l.b16 %v3901
    %v4501 = vunpack.c.h.b16 %v3901
    %v4502 = vunpack.c.l.b16 %v3902
    %v4503 = vunpack.c.h.b16 %v3902
    %v4504 = vunpack.c.l.b16 %v3903
    %v4505 = vunpack.c.h.b16 %v3903
    %v4506 = vunpack.c.l.b16 %v3904
    %v4507 = vunpack.c.h.b16 %v3904
    %v4508 = vunpack.c.l.b16 %v3905
    %v4509 = vunpack.c.h.b16 %v3905
    %v4510 = vunpack.c.l.b16 %v3906
    %v4511 = vunpack.c.h.b16 %v3906
    %v4512 = vunpack.c.l.b16 %v3907
    %v4513 = vunpack.c.h.b16 %v3907
    %v4514 = vunpack.c.l.b16 %v3908
    %v4515 = vunpack.c.h.b16 %v3908
    %v4516 = vunpack.c.l.b16 %v3909
    %v4517 = vunpack.c.h.b16 %v3909
    %v4518 = vunpack.c.l.b16 %v3910
    %v4519 = vunpack.c.h.b16 %v3910
    %v4520 = vunpack.c.l.b16 %v3911
    %v4521 = vunpack.c.h.b16 %v3911
    %v4522 = vunpack.c.l.b16 %v3912
    %v4523 = vunpack.c.h.b16 %v3912
    %v4524 = vunpack.c.l.b16 %v3913
    %v4525 = vunpack.c.h.b16 %v3913
    %v4526 = vunpack.c.l.b16 %v3914
    %v4527 = vunpack.c.h.b16 %v3914
    %v4528 = vunpack.c.l.b16 %v3915
    %v4529 = vunpack.c.h.b16 %v3915
    %v4530 = vunpack.c.l.b16 %v3916
    %v4531 = vunpack.c.h.b16 %v3916
    %v4532 = vunpack.c.l.b16 %v3917
    %v4533 = vunpack.c.h.b16 %v3917
    %v4534 = vunpack.c.l.b16 %v3918
    %v4535 = vunpack.c.h.b16 %v3918
    %v4536 = vunpack.c.l.b16 %v3919
    %v4537 = vunpack.c.h.b16 %v3919
    %v4538 = vunpack.c.l.b16 %v3920
    %v4539 = vunpack.c.h.b16 %v3920
    %v4540 = vunpack.c.l.b16 %v3921
    %v4541 = vunpack.c.h.b16 %v3921
    %v4542 = vunpack.c.l.b16 %v3922
    %v4543 = vunpack.c.h.b16 %v3922
    %v4544 = vunpack.c.l.b16 %v3923
    %v4545 = vunpack.c.h.b16 %v3923
    %v4546 = vunpack.c.l.b16 %v3924
    %v4547 = vunpack.c.h.b16 %v3924
    %v4548 = vunpack.c.l.b16 %v3925
    %v4549 = vunpack.c.h.b16 %v3925
    %v4550 = vunpack.c.l.b16 %v3926
    %v4551 = vunpack.c.h.b16 %v3926
    %v4552 = vunpack.c.l.b16 %v3927
    %v4553 = vunpack.c.h.b16 %v3927
    %v4554 = vunpack.c.l.b16 %v3928
    %v4555 = vunpack.c.h.b16 %v3928
    %v4556 = vunpack.c.l.b16 %v3929
    %v4557 = vunpack.c.h.b16 %v3929
    %v4558 = vunpack.c.l.b16 %v3930
    %v4559 = vunpack.c.h.b16 %v3930
    %v4560 = vunpack.c.l.b16 %v3931
    %v4561 = vunpack.c.h.b16 %v3931
    %v4562 = vunpack.c.l.b16 %v3932
    %v4563 = vunpack.c.h.b16 %v3932
    %v4564 = vunpack.c.l.b16 %v3933
    %v4565 = vunpack.c.h.b16 %v3933
    %v4566 = vunpack.c.l.b16 %v3934
    %v4567 = vunpack.c.h.b16 %v3934
    %v4568 = vunpack.c.l.b16 %v3935
    %v4569 = vunpack.c.h.b16 %v3935
    %v4570 = vunpack.c.l.b16 %v3936
    %v4571 = vunpack.c.h.b16 %v3936
    %v4572 = vunpack.c.l.b16 %v3937
    %v4573 = vunpack.c.h.b16 %v3937
    %v4574 = vunpack.c.l.b16 %v3938
    %v4575 = vunpack.c.h.b16 %v3938
    %v4576 = vunpack.c.l.b16 %v3939
    %v4577 = vunpack.c.h.b16 %v3939
    %v4578 = vunpack.c.l.b16 %v3940
    %v4579 = vunpack.c.h.b16 %v3940
    %v4580 = vunpack.c.l.b16 %v3941
    %v4581 = vunpack.c.h.b16 %v3941
    %v4582 = vunpack.c.l.b16 %v3942
    %v4583 = vunpack.c.h.b16 %v3942
    %v4584 = vunpack.c.l.b16 %v3943
    %v4585 = vunpack.c.h.b16 %v3943
    %v4586 = vunpack.c.l.b16 %v3944
    %v4587 = vunpack.c.h.b16 %v3944
    %v4588 = vunpack.c.l.b16 %v3945
    %v4589 = vunpack.c.h.b16 %v3945
    %v4590 = vunpack.c.l.b16 %v3946
    %v4591 = vunpack.c.h.b16 %v3946
    %v4592 = vunpack.c.l.b16 %v3947
    %v4593 = vunpack.c.h.b16 %v3947
    %v4594 = vunpack.c.l.b16 %v3948
    %v4595 = vunpack.c.h.b16 %v3948
    %v4596 = vunpack.c.l.b16 %v3949
    %v4597 = vunpack.c.h.b16 %v3949
    %v4598 = vunpack.c.l.b16 %v3950
    %v4599 = vunpack.c.h.b16 %v3950
    %v4600 = vunpack.c.l.b16 %v3951
    %v4601 = vunpack.c.h.b16 %v3951
    %v4602 = vunpack.c.l.b16 %v3952
    %v4603 = vunpack.c.h.b16 %v3952
    %v4604 = vunpack.c.l.b16 %v3953
    %v4605 = vunpack.c.h.b16 %v3953
    %v4606 = vunpack.c.l.b16 %v3954
    %v4607 = vunpack.c.h.b16 %v3954
    %v4608 = vunpack.c.l.b16 %v3955
    %v4609 = vunpack.c.h.b16 %v3955
    %v4610 = vunpack.c.l.b16 %v3956
    %v4611 = vunpack.c.h.b16 %v3956
    %v4612 = vunpack.c.l.b16 %v3957
    %v4613 = vunpack.c.h.b16 %v3957
    %v4614 = vunpack.c.l.b16 %v3958
    %v4615 = vunpack.c.h.b16 %v3958
    %v4616 = vunpack.c.l.b16 %v3959
    %v4617 = vunpack.c.h.b16 %v3959
    %v4618 = vunpack.c.l.b16 %v3960
    %v4619 = vunpack.c.h.b16 %v3960
    %v4620 = vunpack.c.l.b16 %v3961
    %v4621 = vunpack.c.h.b16 %v3961
    %v4622 = vunpack.c.l.b16 %v3962
    %v4623 = vunpack.c.h.b16 %v3962
    %v4624 = vunpack.c.l.b16 %v3963
    %v4625 = vunpack.c.h.b16 %v3963
    %v4626 = vunpack.c.l.b16 %v3964
    %v4627 = vunpack.c.h.b16 %v3964
    %v4628 = vunpack.c.l.b16 %v3965
    %v4629 = vunpack.c.h.b16 %v3965
    %v4630 = vunpack.c.l.b16 %v3966
    %v4631 = vunpack.c.h.b16 %v3966
    %v4632 = vunpack.c.l.b16 %v3967
    %v4633 = vunpack.c.h.b16 %v3967
    %v4634 = vunpack.c.l.b16 %v3968
    %v4635 = vunpack.c.h.b16 %v3968
    %v4636 = vunpack.c.l.b16 %v3969
    %v4637 = vunpack.c.h.b16 %v3969
    %v4638 = vunpack.c.l.b16 %v3970
    %v4639 = vunpack.c.h.b16 %v3970
    %v4640 = vunpack.c.l.b16 %v3971
    %v4641 = vunpack.c.h.b16 %v3971
    %v4642 = vunpack.c.l.b16 %v3972
    %v4643 = vunpack.c.h.b16 %v3972
    %v4644 = vunpack.c.l.b16 %v3973
    %v4645 = vunpack.c.h.b16 %v3973
    %v4646 = vunpack.c.l.b16 %v3974
    %v4647 = vunpack.c.h.b16 %v3974
    %v4648 = vunpack.c.l.b16 %v3975
    %v4649 = vunpack.c.h.b16 %v3975
    %v4650 = vunpack.c.l.b16 %v3976
    %v4651 = vunpack.c.h.b16 %v3976
    %v4652 = vunpack.c.l.b16 %v3977
    %v4653 = vunpack.c.h.b16 %v3977
    %v4654 = vunpack.c.l.b16 %v3978
    %v4655 = vunpack.c.h.b16 %v3978
    %v4656 = vunpack.c.l.b16 %v3979
    %v4657 = vunpack.c.h.b16 %v3979
    %v4658 = vunpack.c.l.b16 %v3980
    %v4659 = vunpack.c.h.b16 %v3980
    %v4660 = vunpack.c.l.b16 %v3981
    %v4661 = vunpack.c.h.b16 %v3981
    %v4662 = vunpack.c.l.b16 %v3982
    %v4663 = vunpack.c.h.b16 %v3982
    %v4664 = vunpack.c.l.b16 %v3983
    %v4665 = vunpack.c.h.b16 %v3983
    %v4666 = vunpack.c.l.b16 %v3984
    %v4667 = vunpack.c.h.b16 %v3984
    %v4668 = vunpack.c.l.b16 %v3985
    %v4669 = vunpack.c.h.b16 %v3985
    %v4670 = vunpack.c.l.b16 %v3986
    %v4671 = vunpack.c.h.b16 %v3986
    %v4672 = vunpack.c.l.b16 %v3987
    %v4673 = vunpack.c.h.b16 %v3987
    %v4674 = vunpack.c.l.b16 %v3988
    %v4675 = vunpack.c.h.b16 %v3988
    %v4676 = vunpack.c.l.b16 %v3989
    %v4677 = vunpack.c.h.b16 %v3989
    %v4678 = vunpack.c.l.b16 %v3990
    %v4679 = vunpack.c.h.b16 %v3990
    %v4680 = vunpack.c.l.b16 %v3991
    %v4681 = vunpack.c.h.b16 %v3991
    %v4682 = vunpack.c.l.b16 %v3992
    %v4683 = vunpack.c.h.b16 %v3992
    %v4684 = vunpack.c.l.b16 %v3993
    %v4685 = vunpack.c.h.b16 %v3993
    %v4686 = vunpack.c.l.b16 %v3994
    %v4687 = vunpack.c.h.b16 %v3994
    %v4688 = vunpack.c.l.b16 %v3995
    %v4689 = vunpack.c.h.b16 %v3995
    %v4690 = vunpack.c.l.b16 %v3996
    %v4691 = vunpack.c.h.b16 %v3996
    %v4692 = vunpack.c.l.b16 %v3997
    %v4693 = vunpack.c.h.b16 %v3997
    %v4694 = vunpack.c.l.b16 %v3998
    %v4695 = vunpack.c.h.b16 %v3998
    %v4696 = vunpack.c.l.b16 %v3999
    %v4697 = vunpack.c.h.b16 %v3999
    %v4698 = vunpack.c.l.b16 %v4000
    %v4699 = vunpack.c.h.b16 %v4000
    %v4700 = vunpack.c.l.b16 %v4001
    %v4701 = vunpack.c.h.b16 %v4001
    %v4702 = vunpack.c.l.b16 %v4002
    %v4703 = vunpack.c.h.b16 %v4002
    %v4704 = vunpack.c.l.b16 %v4003
    %v4705 = vunpack.c.h.b16 %v4003
    %v4706 = vunpack.c.l.b16 %v4004
    %v4707 = vunpack.c.h.b16 %v4004
    %v4708 = vunpack.c.l.b16 %v4005
    %v4709 = vunpack.c.h.b16 %v4005
    %v4710 = vunpack.c.l.b16 %v4006
    %v4711 = vunpack.c.h.b16 %v4006
    %v4712 = vunpack.c.l.b16 %v4007
    %v4713 = vunpack.c.h.b16 %v4007
    %v4714 = vunpack.c.l.b16 %v4008
    %v4715 = vunpack.c.h.b16 %v4008
    %v4716 = vunpack.c.l.b16 %v4009
    %v4717 = vunpack.c.h.b16 %v4009
    %v4718 = vunpack.c.l.b16 %v4010
    %v4719 = vunpack.c.h.b16 %v4010
    %v4720 = vunpack.c.l.b16 %v4011
    %v4721 = vunpack.c.h.b16 %v4011
    %v4722 = vunpack.c.l.b16 %v4012
    %v4723 = vunpack.c.h.b16 %v4012
    %v4724 = vunpack.c.l.b16 %v4013
    %v4725 = vunpack.c.h.b16 %v4013
    %v4726 = vunpack.c.l.b16 %v4014
    %v4727 = vunpack.c.h.b16 %v4014
    %v4728 = vunpack.c.l.b16 %v4015
    %v4729 = vunpack.c.h.b16 %v4015
    %v4730 = vunpack.c.l.b16 %v4016
    %v4731 = vunpack.c.h.b16 %v4016
    %v4732 = vunpack.c.l.b16 %v4017
    %v4733 = vunpack.c.h.b16 %v4017
    %v4734 = vunpack.c.l.b16 %v4018
    %v4735 = vunpack.c.h.b16 %v4018
    %v4736 = vunpack.c.l.b16 %v4019
    %v4737 = vunpack.c.h.b16 %v4019
    %v4738 = vunpack.c.l.b16 %v4020
    %v4739 = vunpack.c.h.b16 %v4020
    %v4740 = vunpack.c.l.b16 %v4021
    %v4741 = vunpack.c.h.b16 %v4021
    %v4742 = vunpack.c.l.b16 %v4022
    %v4743 = vunpack.c.h.b16 %v4022
    %v4744 = vunpack.c.l.b16 %v4023
    %v4745 = vunpack.c.h.b16 %v4023
    %v4746 = vunpack.c.l.b16 %v4024
    %v4747 = vunpack.c.h.b16 %v4024
    %v4748 = vunpack.c.l.b16 %v4025
    %v4749 = vunpack.c.h.b16 %v4025
    %v4750 = vunpack.c.l.b16 %v4026
    %v4751 = vunpack.c.h.b16 %v4026
    %v4752 = vunpack.c.l.b16 %v4027
    %v4753 = vunpack.c.h.b16 %v4027
    %v4754 = vunpack.c.l.b16 %v4028
    %v4755 = vunpack.c.h.b16 %v4028
    %v4756 = vunpack.c.l.b16 %v4029
    %v4757 = vunpack.c.h.b16 %v4029
    %v4758 = vunpack.c.l.b16 %v4030
    %v4759 = vunpack.c.h.b16 %v4030
    %v4760 = vunpack.c.l.b16 %v4031
    %v4761 = vunpack.c.h.b16 %v4031
    %v4762 = vunpack.c.l.b16 %v4032
    %v4763 = vunpack.c.h.b16 %v4032
    %v4764 = vunpack.c.l.b16 %v4033
    %v4765 = vunpack.c.h.b16 %v4033
    %v4766 = vunpack.c.l.b16 %v4034
    %v4767 = vunpack.c.h.b16 %v4034
    %v4768 = vunpack.c.l.b16 %v4035
    %v4769 = vunpack.c.h.b16 %v4035
    %v4770 = vunpack.c.l.b16 %v4036
    %v4771 = vunpack.c.h.b16 %v4036
    %v4772 = vunpack.c.l.b16 %v4037
    %v4773 = vunpack.c.h.b16 %v4037
    %v4774 = vunpack.c.l.b16 %v4038
    %v4775 = vunpack.c.h.b16 %v4038
    %v4776 = vunpack.c.l.b16 %v4039
    %v4777 = vunpack.c.h.b16 %v4039
    %v4778 = vunpack.c.l.b16 %v4040
    %v4779 = vunpack.c.h.b16 %v4040
    %v4780 = vunpack.c.l.b16 %v4041
    %v4781 = vunpack.c.h.b16 %v4041
    %v4782 = vunpack.c.l.b16 %v4042
    %v4783 = vunpack.c.h.b16 %v4042
    %v4784 = vunpack.c.l.b16 %v4043
    %v4785 = vunpack.c.h.b16 %v4043
    %v4786 = vunpack.c.l.b16 %v4044
    %v4787 = vunpack.c.h.b16 %v4044
    %v4788 = vunpack.c.l.b16 %v4045
    %v4789 = vunpack.c.h.b16 %v4045
    %v4790 = vunpack.c.l.b16 %v4046
    %v4791 = vunpack.c.h.b16 %v4046
    %v4792 = vunpack.c.l.b16 %v4047
    %v4793 = vunpack.c.h.b16 %v4047
    %v4794 = vunpack.c.l.b16 %v4048
    %v4795 = vunpack.c.h.b16 %v4048
    %v4796 = vunpack.c.l.b16 %v4049
    %v4797 = vunpack.c.h.b16 %v4049
    %v4798 = vunpack.c.l.b16 %v4050
    %v4799 = vunpack.c.h.b16 %v4050
    %v4800 = vunpack.c.l.b16 %v4051
    %v4801 = vunpack.c.h.b16 %v4051
    %v4802 = vunpack.c.l.b16 %v4052
    %v4803 = vunpack.c.h.b16 %v4052
    %v4804 = vunpack.c.l.b16 %v4053
    %v4805 = vunpack.c.h.b16 %v4053
    %v4806 = vunpack.c.l.b16 %v4054
    %v4807 = vunpack.c.h.b16 %v4054
    %v4808 = vunpack.c.l.b16 %v4055
    %v4809 = vunpack.c.h.b16 %v4055
    %v4810 = vunpack.c.l.b16 %v4056
    %v4811 = vunpack.c.h.b16 %v4056
    %v4812 = vunpack.c.l.b16 %v4057
    %v4813 = vunpack.c.h.b16 %v4057
    %v4814 = vunpack.c.l.b16 %v4058
    %v4815 = vunpack.c.h.b16 %v4058
    %v4816 = vunpack.c.l.b16 %v4059
    %v4817 = vunpack.c.h.b16 %v4059
    %v4818 = vunpack.c.l.b16 %v4060
    %v4819 = vunpack.c.h.b16 %v4060
    %v4820 = vunpack.c.l.b16 %v4061
    %v4821 = vunpack.c.h.b16 %v4061
    %v4822 = vunpack.c.l.b16 %v4062
    %v4823 = vunpack.c.h.b16 %v4062
    %v4824 = vunpack.c.l.b16 %v4063
    %v4825 = vunpack.c.h.b16 %v4063
    %v4826 = vunpack.c.l.b16 %v4064
    %v4827 = vunpack.c.h.b16 %v4064
    %v4828 = vunpack.c.l.b16 %v4065
    %v4829 = vunpack.c.h.b16 %v4065
    %v4830 = vunpack.c.l.b16 %v4066
    %v4831 = vunpack.c.h.b16 %v4066
    %v4832 = vunpack.c.l.b16 %v4067
    %v4833 = vunpack.c.h.b16 %v4067
    %v4834 = vunpack.c.l.b16 %v4068
    %v4835 = vunpack.c.h.b16 %v4068
    %v4836 = vunpack.c.l.b16 %v4069
    %v4837 = vunpack.c.h.b16 %v4069
    %v4838 = vunpack.c.l.b16 %v4070
    %v4839 = vunpack.c.h.b16 %v4070
    %v4840 = vunpack.c.l.b16 %v4071
    %v4841 = vunpack.c.h.b16 %v4071
    %v4842 = vunpack.c.l.b16 %v4072
    %v4843 = vunpack.c.h.b16 %v4072
    %v4844 = vunpack.c.l.b16 %v4073
    %v4845 = vunpack.c.h.b16 %v4073
    %v4846 = vunpack.c.l.b16 %v4074
    %v4847 = vunpack.c.h.b16 %v4074
    %v4848 = vunpack.c.l.b16 %v4075
    %v4849 = vunpack.c.h.b16 %v4075
    %v4850 = vunpack.c.l.b16 %v4076
    %v4851 = vunpack.c.h.b16 %v4076
    %v4852 = vunpack.c.l.b16 %v4077
    %v4853 = vunpack.c.h.b16 %v4077
    %v4854 = vunpack.c.l.b16 %v4078
    %v4855 = vunpack.c.h.b16 %v4078
    %v4856 = vunpack.c.l.b16 %v4079
    %v4857 = vunpack.c.h.b16 %v4079
    %v4858 = vunpack.c.l.b16 %v4080
    %v4859 = vunpack.c.h.b16 %v4080
    %v4860 = vunpack.c.l.b16 %v4081
    %v4861 = vunpack.c.h.b16 %v4081
    %v4862 = vunpack.c.l.b16 %v4082
    %v4863 = vunpack.c.h.b16 %v4082
    %v4864 = vunpack.c.l.b16 %v4083
    %v4865 = vunpack.c.h.b16 %v4083
    %v4866 = vunpack.c.l.b16 %v4084
    %v4867 = vunpack.c.h.b16 %v4084
    %v4868 = vunpack.c.l.b16 %v4085
    %v4869 = vunpack.c.h.b16 %v4085
    %v4870 = vunpack.c.l.b16 %v4086
    %v4871 = vunpack.c.h.b16 %v4086
    %v4872 = vunpack.c.l.b16 %v4087
    %v4873 = vunpack.c.h.b16 %v4087
    %v4874 = vunpack.c.l.b16 %v4088
    %v4875 = vunpack.c.h.b16 %v4088
    %v4876 = vunpack.c.l.b16 %v4089
    %v4877 = vunpack.c.h.b16 %v4089
    %v4878 = vunpack.c.l.b16 %v4090
    %v4879 = vunpack.c.h.b16 %v4090
    %v4880 = vunpack.c.l.b16 %v4091
    %v4881 = vunpack.c.h.b16 %v4091
    %v4882 = vpack.c.b16 %v4374, %v4370
    %v4883 = vpack.c.b16 %v4375, %v4371
    %v4884 = vpack.c.b16 %v4376, %v4372
    %v4885 = vpack.c.b16 %v4377, %v4373
    %v4886 = vpack.c.b16 %v4382, %v4378
    %v4887 = vpack.c.b16 %v4383, %v4379
    %v4888 = vpack.c.b16 %v4384, %v4380
    %v4889 = vpack.c.b16 %v4385, %v4381
    %v4890 = vpack.c.b16 %v4390, %v4386
    %v4891 = vpack.c.b16 %v4391, %v4387
    %v4892 = vpack.c.b16 %v4392, %v4388
    %v4893 = vpack.c.b16 %v4393, %v4389
    %v4894 = vpack.c.b16 %v4398, %v4394
    %v4895 = vpack.c.b16 %v4399, %v4395
    %v4896 = vpack.c.b16 %v4400, %v4396
    %v4897 = vpack.c.b16 %v4401, %v4397
    %v4898 = vpack.c.b16 %v4406, %v4402
    %v4899 = vpack.c.b16 %v4407, %v4403
    %v4900 = vpack.c.b16 %v4408, %v4404
    %v4901 = vpack.c.b16 %v4409, %v4405
    %v4902 = vpack.c.b16 %v4414, %v4410
    %v4903 = vpack.c.b16 %v4415, %v4411
    %v4904 = vpack.c.b16 %v4416, %v4412
    %v4905 = vpack.c.b16 %v4417, %v4413
    %v4906 = vpack.c.b16 %v4422, %v4418
    %v4907 = vpack.c.b16 %v4423, %v4419
    %v4908 = vpack.c.b16 %v4424, %v4420
    %v4909 = vpack.c.b16 %v4425, %v4421
    %v4910 = vpack.c.b16 %v4430, %v4426
    %v4911 = vpack.c.b16 %v4431, %v4427
    %v4912 = vpack.c.b16 %v4432, %v4428
    %v4913 = vpack.c.b16 %v4433, %v4429
    %v4914 = vpack.c.b16 %v4438, %v4434
    %v4915 = vpack.c.b16 %v4439, %v4435
    %v4916 = vpack.c.b16 %v4440, %v4436
    %v4917 = vpack.c.b16 %v4441, %v4437
    %v4918 = vpack.c.b16 %v4446, %v4442
    %v4919 = vpack.c.b16 %v4447, %v4443
    %v4920 = vpack.c.b16 %v4448, %v4444
    %v4921 = vpack.c.b16 %v4449, %v4445
    %v4922 = vpack.c.b16 %v4454, %v4450
    %v4923 = vpack.c.b16 %v4455, %v4451
    %v4924 = vpack.c.b16 %v4456, %v4452
    %v4925 = vpack.c.b16 %v4457, %v4453
    %v4926 = vpack.c.b16 %v4462, %v4458
    %v4927 = vpack.c.b16 %v4463, %v4459
    %v4928 = vpack.c.b16 %v4464, %v4460
    %v4929 = vpack.c.b16 %v4465, %v4461
    %v4930 = vpack.c.b16 %v4470, %v4466
    %v4931 = vpack.c.b16 %v4471, %v4467
    %v4932 = vpack.c.b16 %v4472, %v4468
    %v4933 = vpack.c.b16 %v4473, %v4469
    %v4934 = vpack.c.b16 %v4478, %v4474
    %v4935 = vpack.c.b16 %v4479, %v4475
    %v4936 = vpack.c.b16 %v4480, %v4476
    %v4937 = vpack.c.b16 %v4481, %v4477
    %v4938 = vpack.c.b16 %v4486, %v4482
    %v4939 = vpack.c.b16 %v4487, %v4483
    %v4940 = vpack.c.b16 %v4488, %v4484
    %v4941 = vpack.c.b16 %v4489, %v4485
    %v4942 = vpack.c.b16 %v4494, %v4490
    %v4943 = vpack.c.b16 %v4495, %v4491
    %v4944 = vpack.c.b16 %v4496, %v4492
    %v4945 = vpack.c.b16 %v4497, %v4493
    %v4946 = vpack.c.b16 %v4502, %v4498
    %v4947 = vpack.c.b16 %v4503, %v4499
    %v4948 = vpack.c.b16 %v4504, %v4500
    %v4949 = vpack.c.b16 %v4505, %v4501
    %v4950 = vpack.c.b16 %v4510, %v4506
    %v4951 = vpack.c.b16 %v4511, %v4507
    %v4952 = vpack.c.b16 %v4512, %v4508
    %v4953 = vpack.c.b16 %v4513, %v4509
    %v4954 = vpack.c.b16 %v4518, %v4514
    %v4955 = vpack.c.b16 %v4519, %v4515
    %v4956 = vpack.c.b16 %v4520, %v4516
    %v4957 = vpack.c.b16 %v4521, %v4517
    %v4958 = vpack.c.b16 %v4526, %v4522
    %v4959 = vpack.c.b16 %v4527, %v4523
    %v4960 = vpack.c.b16 %v4528, %v4524
    %v4961 = vpack.c.b16 %v4529, %v4525
    %v4962 = vpack.c.b16 %v4534, %v4530
    %v4963 = vpack.c.b16 %v4535, %v4531
    %v4964 = vpack.c.b16 %v4536, %v4532
    %v4965 = vpack.c.b16 %v4537, %v4533
    %v4966 = vpack.c.b16 %v4542, %v4538
    %v4967 = vpack.c.b16 %v4543, %v4539
    %v4968 = vpack.c.b16 %v4544, %v4540
    %v4969 = vpack.c.b16 %v4545, %v4541
    %v4970 = vpack.c.b16 %v4550, %v4546
    %v4971 = vpack.c.b16 %v4551, %v4547
    %v4972 = vpack.c.b16 %v4552, %v4548
    %v4973 = vpack.c.b16 %v4553, %v4549
    %v4974 = vpack.c.b16 %v4558, %v4554
    %v4975 = vpack.c.b16 %v4559, %v4555
    %v4976 = vpack.c.b16 %v4560, %v4556
    %v4977 = vpack.c.b16 %v4561, %v4557
    %v4978 = vpack.c.b16 %v4566, %v4562
    %v4979 = vpack.c.b16 %v4567, %v4563
    %v4980 = vpack.c.b16 %v4568, %v4564
    %v4981 = vpack.c.b16 %v4569, %v4565
    %v4982 = vpack.c.b16 %v4574, %v4570
    %v4983 = vpack.c.b16 %v4575, %v4571
    %v4984 = vpack.c.b16 %v4576, %v4572
    %v4985 = vpack.c.b16 %v4577, %v4573
    %v4986 = vpack.c.b16 %v4582, %v4578
    %v4987 = vpack.c.b16 %v4583, %v4579
    %v4988 = vpack.c.b16 %v4584, %v4580
    %v4989 = vpack.c.b16 %v4585, %v4581
    %v4990 = vpack.c.b16 %v4590, %v4586
    %v4991 = vpack.c.b16 %v4591, %v4587
    %v4992 = vpack.c.b16 %v4592, %v4588
    %v4993 = vpack.c.b16 %v4593, %v4589
    %v4994 = vpack.c.b16 %v4598, %v4594
    %v4995 = vpack.c.b16 %v4599, %v4595
    %v4996 = vpack.c.b16 %v4600, %v4596
    %v4997 = vpack.c.b16 %v4601, %v4597
    %v4998 = vpack.c.b16 %v4606, %v4602
    %v4999 = vpack.c.b16 %v4607, %v4603
    %v5000 = vpack.c.b16 %v4608, %v4604
    %v5001 = vpack.c.b16 %v4609, %v4605
    %v5002 = vpack.c.b16 %v4614, %v4610
    %v5003 = vpack.c.b16 %v4615, %v4611
    %v5004 = vpack.c.b16 %v4616, %v4612
    %v5005 = vpack.c.b16 %v4617, %v4613
    %v5006 = vpack.c.b16 %v4622, %v4618
    %v5007 = vpack.c.b16 %v4623, %v4619
    %v5008 = vpack.c.b16 %v4624, %v4620
    %v5009 = vpack.c.b16 %v4625, %v4621
    %v5010 = vpack.c.b16 %v4630, %v4626
    %v5011 = vpack.c.b16 %v4631, %v4627
    %v5012 = vpack.c.b16 %v4632, %v4628
    %v5013 = vpack.c.b16 %v4633, %v4629
    %v5014 = vpack.c.b16 %v4638, %v4634
    %v5015 = vpack.c.b16 %v4639, %v4635
    %v5016 = vpack.c.b16 %v4640, %v4636
    %v5017 = vpack.c.b16 %v4641, %v4637
    %v5018 = vpack.c.b16 %v4646, %v4642
    %v5019 = vpack.c.b16 %v4647, %v4643
    %v5020 = vpack.c.b16 %v4648, %v4644
    %v5021 = vpack.c.b16 %v4649, %v4645
    %v5022 = vpack.c.b16 %v4654, %v4650
    %v5023 = vpack.c.b16 %v4655, %v4651
    %v5024 = vpack.c.b16 %v4656, %v4652
    %v5025 = vpack.c.b16 %v4657, %v4653
    %v5026 = vpack.c.b16 %v4662, %v4658
    %v5027 = vpack.c.b16 %v4663, %v4659
    %v5028 = vpack.c.b16 %v4664, %v4660
    %v5029 = vpack.c.b16 %v4665, %v4661
    %v5030 = vpack.c.b16 %v4670, %v4666
    %v5031 = vpack.c.b16 %v4671, %v4667
    %v5032 = vpack.c.b16 %v4672, %v4668
    %v5033 = vpack.c.b16 %v4673, %v4669
    %v5034 = vpack.c.b16 %v4678, %v4674
    %v5035 = vpack.c.b16 %v4679, %v4675
    %v5036 = vpack.c.b16 %v4680, %v4676
    %v5037 = vpack.c.b16 %v4681, %v4677
    %v5038 = vpack.c.b16 %v4686, %v4682
    %v5039 = vpack.c.b16 %v4687, %v4683
    %v5040 = vpack.c.b16 %v4688, %v4684
    %v5041 = vpack.c.b16 %v4689, %v4685
    %v5042 = vpack.c.b16 %v4694, %v4690
    %v5043 = vpack.c.b16 %v4695, %v4691
    %v5044 = vpack.c.b16 %v4696, %v4692
    %v5045 = vpack.c.b16 %v4697, %v4693
    %v5046 = vpack.c.b16 %v4702, %v4698
    %v5047 = vpack.c.b16 %v4703, %v4699
    %v5048 = vpack.c.b16 %v4704, %v4700
    %v5049 = vpack.c.b16 %v4705, %v4701
    %v5050 = vpack.c.b16 %v4710, %v4706
    %v5051 = vpack.c.b16 %v4711, %v4707
    %v5052 = vpack.c.b16 %v4712, %v4708
    %v5053 = vpack.c.b16 %v4713, %v4709
    %v5054 = vpack.c.b16 %v4718, %v4714
    %v5055 = vpack.c.b16 %v4719, %v4715
    %v5056 = vpack.c.b16 %v4720, %v4716
    %v5057 = vpack.c.b16 %v4721, %v4717
    %v5058 = vpack.c.b16 %v4726, %v4722
    %v5059 = vpack.c.b16 %v4727, %v4723
    %v5060 = vpack.c.b16 %v4728, %v4724
    %v5061 = vpack.c.b16 %v4729, %v4725
    %v5062 = vpack.c.b16 %v4734, %v4730
    %v5063 = vpack.c.b16 %v4735, %v4731
    %v5064 = vpack.c.b16 %v4736, %v4732
    %v5065 = vpack.c.b16 %v4737, %v4733
    %v5066 = vpack.c.b16 %v4742, %v4738
    %v5067 = vpack.c.b16 %v4743, %v4739
    %v5068 = vpack.c.b16 %v4744, %v4740
    %v5069 = vpack.c.b16 %v4745, %v4741
    %v5070 = vpack.c.b16 %v4750, %v4746
    %v5071 = vpack.c.b16 %v4751, %v4747
    %v5072 = vpack.c.b16 %v4752, %v4748
    %v5073 = vpack.c.b16 %v4753, %v4749
    %v5074 = vpack.c.b16 %v4758, %v4754
    %v5075 = vpack.c.b16 %v4759, %v4755
    %v5076 = vpack.c.b16 %v4760, %v4756
    %v5077 = vpack.c.b16 %v4761, %v4757
    %v5078 = vpack.c.b16 %v4766, %v4762
    %v5079 = vpack.c.b16 %v4767, %v4763
    %v5080 = vpack.c.b16 %v4768, %v4764
    %v5081 = vpack.c.b16 %v4769, %v4765
    %v5082 = vpack.c.b16 %v4774, %v4770
    %v5083 = vpack.c.b16 %v4775, %v4771
    %v5084 = vpack.c.b16 %v4776, %v4772
    %v5085 = vpack.c.b16 %v4777, %v4773
    %v5086 = vpack.c.b16 %v4782, %v4778
    %v5087 = vpack.c.b16 %v4783, %v4779
    %v5088 = vpack.c.b16 %v4784, %v4780
    %v5089 = vpack.c.b16 %v4785, %v4781
    %v5090 = vpack.c.b16 %v4790, %v4786
    %v5091 = vpack.c.b16 %v4791, %v4787
    %v5092 = vpack.c.b16 %v4792, %v4788
    %v5093 = vpack.c.b16 %v4793, %v4789
    %v5094 = vpack.c.b16 %v4798, %v4794
    %v5095 = vpack.c.b16 %v4799, %v4795
    %v5096 = vpack.c.b16 %v4800, %v4796
    %v5097 = vpack.c.b16 %v4801, %v4797
    %v5098 = vpack.c.b16 %v4806, %v4802
    %v5099 = vpack.c.b16 %v4807, %v4803
    %v5100 = vpack.c.b16 %v4808, %v4804
    %v5101 = vpack.c.b16 %v4809, %v4805
    %v5102 = vpack.c.b16 %v4814, %v4810
    %v5103 = vpack.c.b16 %v4815, %v4811
    %v5104 = vpack.c.b16 %v4816, %v4812
    %v5105 = vpack.c.b16 %v4817, %v4813
    %v5106 = vpack.c.b16 %v4822, %v4818
    %v5107 = vpack.c.b16 %v4823, %v4819
    %v5108 = vpack.c.b16 %v4824, %v4820
    %v5109 = vpack.c.b16 %v4825, %v4821
    %v5110 = vpack.c.b16 %v4830, %v4826
    %v5111 = vpack.c.b16 %v4831, %v4827
    %v5112 = vpack.c.b16 %v4832, %v4828
    %v5113 = vpack.c.b16 %v4833, %v4829
    %v5114 = vpack.c.b16 %v4838, %v4834
    %v5115 = vpack.c.b16 %v4839, %v4835
    %v5116 = vpack.c.b16 %v4840, %v4836
    %v5117 = vpack.c.b16 %v4841, %v4837
    %v5118 = vpack.c.b16 %v4846, %v4842
    %v5119 = vpack.c.b16 %v4847, %v4843
    %v5120 = vpack.c.b16 %v4848, %v4844
    %v5121 = vpack.c.b16 %v4849, %v4845
    %v5122 = vpack.c.b16 %v4854, %v4850
    %v5123 = vpack.c.b16 %v4855, %v4851
    %v5124 = vpack.c.b16 %v4856, %v4852
    %v5125 = vpack.c.b16 %v4857, %v4853
    %v5126 = vpack.c.b16 %v4862, %v4858
    %v5127 = vpack.c.b16 %v4863, %v4859
    %v5128 = vpack.c.b16 %v4864, %v4860
    %v5129 = vpack.c.b16 %v4865, %v4861
    %v5130 = vpack.c.b16 %v4870, %v4866
    %v5131 = vpack.c.b16 %v4871, %v4867
    %v5132 = vpack.c.b16 %v4872, %v4868
    %v5133 = vpack.c.b16 %v4873, %v4869
    %v5134 = vpack.c.b16 %v4878, %v4874
    %v5135 = vpack.c.b16 %v4879, %v4875
    %v5136 = vpack.c.b16 %v4880, %v4876
    %v5137 = vpack.c.b16 %v4881, %v4877
    %5394 = vmatprep.subr.bf16.mxu0 %v4883
    %5395 = vmatpush1.bf16.msra.mxu0 %v4882
    %5396 = vmatprep.subr.bf16.mxu0 %v4887
    %5397 = vmatpush1.bf16.msra.mxu0 %v4886
    %5398 = vmatprep.subr.bf16.mxu0 %v4891
    %5399 = vmatpush1.bf16.msra.mxu0 %v4890
    %5400 = vmatprep.subr.bf16.mxu0 %v4895
    %5401 = vmatpush1.bf16.msra.mxu0 %v4894
    %5402 = vmatprep.subr.bf16.mxu0 %v4899
    %5403 = vmatpush1.bf16.msra.mxu0 %v4898
    %5404 = vmatprep.subr.bf16.mxu0 %v4903
    %5405 = vmatpush1.bf16.msra.mxu0 %v4902
    %5406 = vmatprep.subr.bf16.mxu0 %v4907
    %5407 = vmatpush1.bf16.msra.mxu0 %v4906
    %5408 = vmatprep.subr.bf16.mxu0 %v4911
    %5409 = vmatpush1.bf16.msra.mxu0 %v4910
    %5410 = vmatprep.subr.bf16.mxu0 %v4915
    %5411 = vmatpush1.bf16.msra.mxu0 %v4914
    %5412 = vmatprep.subr.bf16.mxu0 %v4919
    %5413 = vmatpush1.bf16.msra.mxu0 %v4918
    %5414 = vmatprep.subr.bf16.mxu0 %v4923
    %5415 = vmatpush1.bf16.msra.mxu0 %v4922
    %5416 = vmatprep.subr.bf16.mxu0 %v4927
    %5417 = vmatpush1.bf16.msra.mxu0 %v4926
    %5418 = vmatprep.subr.bf16.mxu0 %v4931
    %5419 = vmatpush1.bf16.msra.mxu0 %v4930
    %5420 = vmatprep.subr.bf16.mxu0 %v4935
    %5421 = vmatpush1.bf16.msra.mxu0 %v4934
    %5422 = vmatprep.subr.bf16.mxu0 %v4939
    %5423 = vmatpush1.bf16.msra.mxu0 %v4938
    %5424 = vmatprep.subr.bf16.mxu0 %v4943
    %5425 = vmatpush1.bf16.msra.mxu0 %v4942
    %5426 = vmatprep.mubr.bf16.mxu0 %v3829
    %5427 = vmatmul.mubr.bf16.gmra.mrb[0].mxu0 %v3828
    %v5428 = vpop.f32.mrb[0].mxu0
    %v5429 = vadd.f32 %v4097, %v5428
    %v5430 = vpop.f32.mrb[0].mxu0
    %v5431 = vadd.f32 %v4101, %v5430
    %v5432 = vpop.f32.mrb[0].mxu0
    %v5433 = vpop.f32.mrb[0].mxu0
    %5434 = vdwg.mxu0
    %5435 = vmatprep.subr.bf16.mxu0 %v4947
    %5436 = vmatpush1.bf16.msra.mxu0 %v4946
    %5437 = vmatprep.subr.bf16.mxu0 %v4951
    %5438 = vmatpush1.bf16.msra.mxu0 %v4950
    %5439 = vmatprep.subr.bf16.mxu0 %v4955
    %5440 = vmatpush1.bf16.msra.mxu0 %v4954
    %5441 = vmatprep.subr.bf16.mxu0 %v4959
    %5442 = vmatpush1.bf16.msra.mxu0 %v4958
    %5443 = vmatprep.subr.bf16.mxu0 %v4963
    %5444 = vmatpush1.bf16.msra.mxu0 %v4962
    %5445 = vmatprep.subr.bf16.mxu0 %v4967
    %5446 = vmatpush1.bf16.msra.mxu0 %v4966
    %5447 = vmatprep.subr.bf16.mxu0 %v4971
    %5448 = vmatpush1.bf16.msra.mxu0 %v4970
    %5449 = vmatprep.subr.bf16.mxu0 %v4975
    %5450 = vmatpush1.bf16.msra.mxu0 %v4974
    %5451 = vmatprep.subr.bf16.mxu0 %v4979
    %5452 = vmatpush1.bf16.msra.mxu0 %v4978
    %5453 = vmatprep.subr.bf16.mxu0 %v4983
    %5454 = vmatpush1.bf16.msra.mxu0 %v4982
    %5455 = vmatprep.subr.bf16.mxu0 %v4987
    %5456 = vmatpush1.bf16.msra.mxu0 %v4986
    %5457 = vmatprep.subr.bf16.mxu0 %v4991
    %5458 = vmatpush1.bf16.msra.mxu0 %v4990
    %5459 = vmatprep.subr.bf16.mxu0 %v4995
    %5460 = vmatpush1.bf16.msra.mxu0 %v4994
    %5461 = vmatprep.subr.bf16.mxu0 %v4999
    %5462 = vmatpush1.bf16.msra.mxu0 %v4998
    %5463 = vmatprep.subr.bf16.mxu0 %v5003
    %5464 = vmatpush1.bf16.msra.mxu0 %v5002
    %5465 = vmatprep.subr.bf16.mxu0 %v5007
    %5466 = vmatpush1.bf16.msra.mxu0 %v5006
    %5467 = vmatprep.mubr.bf16.mxu0 %v3831
    %5468 = vmatmul.mubr.bf16.gmra.mrb[0].mxu0 %v3830
    %v5469 = vpop.f32.mrb[0].mxu0
    %v5470 = vadd.f32 %v5429, %v5469
    %v5471 = vpop.f32.mrb[0].mxu0
    %v5472 = vadd.f32 %v5431, %v5471
    %v5473 = vpop.f32.mrb[0].mxu0
    %v5474 = vpop.f32.mrb[0].mxu0
    %5475 = vdwg.mxu0
    %5476 = vmatprep.subr.bf16.mxu0 %v5011
    %5477 = vmatpush1.bf16.msra.mxu0 %v5010
    %5478 = vmatprep.subr.bf16.mxu0 %v5015
    %5479 = vmatpush1.bf16.msra.mxu0 %v5014
    %5480 = vmatprep.subr.bf16.mxu0 %v5019
    %5481 = vmatpush1.bf16.msra.mxu0 %v5018
    %5482 = vmatprep.subr.bf16.mxu0 %v5023
    %5483 = vmatpush1.bf16.msra.mxu0 %v5022
    %5484 = vmatprep.subr.bf16.mxu0 %v5027
    %5485 = vmatpush1.bf16.msra.mxu0 %v5026
    %5486 = vmatprep.subr.bf16.mxu0 %v5031
    %5487 = vmatpush1.bf16.msra.mxu0 %v5030
    %5488 = vmatprep.subr.bf16.mxu0 %v5035
    %5489 = vmatpush1.bf16.msra.mxu0 %v5034
    %5490 = vmatprep.subr.bf16.mxu0 %v5039
    %5491 = vmatpush1.bf16.msra.mxu0 %v5038
    %5492 = vmatprep.subr.bf16.mxu0 %v5043
    %5493 = vmatpush1.bf16.msra.mxu0 %v5042
    %5494 = vmatprep.subr.bf16.mxu0 %v5047
    %5495 = vmatpush1.bf16.msra.mxu0 %v5046
    %5496 = vmatprep.subr.bf16.mxu0 %v5051
    %5497 = vmatpush1.bf16.msra.mxu0 %v5050
    %5498 = vmatprep.subr.bf16.mxu0 %v5055
    %5499 = vmatpush1.bf16.msra.mxu0 %v5054
    %5500 = vmatprep.subr.bf16.mxu0 %v5059
    %5501 = vmatpush1.bf16.msra.mxu0 %v5058
    %5502 = vmatprep.subr.bf16.mxu0 %v5063
    %5503 = vmatpush1.bf16.msra.mxu0 %v5062
    %5504 = vmatprep.subr.bf16.mxu0 %v5067
    %5505 = vmatpush1.bf16.msra.mxu0 %v5066
    %5506 = vmatprep.subr.bf16.mxu0 %v5071
    %5507 = vmatpush1.bf16.msra.mxu0 %v5070
    %5508 = vmatprep.mubr.bf16.mxu0 %v3833
    %5509 = vmatmul.mubr.bf16.gmra.mrb[0].mxu0 %v3832
    %v5510 = vpop.f32.mrb[0].mxu0
    %v5511 = vadd.f32 %v5470, %v5510
    %v5512 = vpop.f32.mrb[0].mxu0
    %v5513 = vadd.f32 %v5472, %v5512
    %v5514 = vpop.f32.mrb[0].mxu0
    %v5515 = vpop.f32.mrb[0].mxu0
    %5516 = vdwg.mxu0
    %5517 = vmatprep.subr.bf16.mxu0 %v5075
    %5518 = vmatpush1.bf16.msra.mxu0 %v5074
    %5519 = vmatprep.subr.bf16.mxu0 %v5079
    %5520 = vmatpush1.bf16.msra.mxu0 %v5078
    %5521 = vmatprep.subr.bf16.mxu0 %v5083
    %5522 = vmatpush1.bf16.msra.mxu0 %v5082
    %5523 = vmatprep.subr.bf16.mxu0 %v5087
    %5524 = vmatpush1.bf16.msra.mxu0 %v5086
    %5525 = vmatprep.subr.bf16.mxu0 %v5091
    %5526 = vmatpush1.bf16.msra.mxu0 %v5090
    %5527 = vmatprep.subr.bf16.mxu0 %v5095
    %5528 = vmatpush1.bf16.msra.mxu0 %v5094
    %5529 = vmatprep.subr.bf16.mxu0 %v5099
    %5530 = vmatpush1.bf16.msra.mxu0 %v5098
    %5531 = vmatprep.subr.bf16.mxu0 %v5103
    %5532 = vmatpush1.bf16.msra.mxu0 %v5102
    %5533 = vmatprep.subr.bf16.mxu0 %v5107
    %5534 = vmatpush1.bf16.msra.mxu0 %v5106
    %5535 = vmatprep.subr.bf16.mxu0 %v5111
    %5536 = vmatpush1.bf16.msra.mxu0 %v5110
    %5537 = vmatprep.subr.bf16.mxu0 %v5115
    %5538 = vmatpush1.bf16.msra.mxu0 %v5114
    %5539 = vmatprep.subr.bf16.mxu0 %v5119
    %5540 = vmatpush1.bf16.msra.mxu0 %v5118
    %5541 = vmatprep.subr.bf16.mxu0 %v5123
    %5542 = vmatpush1.bf16.msra.mxu0 %v5122
    %5543 = vmatprep.subr.bf16.mxu0 %v5127
    %5544 = vmatpush1.bf16.msra.mxu0 %v5126
    %5545 = vmatprep.subr.bf16.mxu0 %v5131
    %5546 = vmatpush1.bf16.msra.mxu0 %v5130
    %5547 = vmatprep.subr.bf16.mxu0 %v5135
    %5548 = vmatpush1.bf16.msra.mxu0 %v5134
    %5549 = vmatprep.mubr.bf16.mxu0 %v3835
    %5550 = vmatmul.mubr.bf16.gmra.mrb[0].mxu0 %v3834
    %v5551 = vpop.f32.mrb[0].mxu0
    %v5552 = vadd.f32 %v5511, %v5551
    %v5553 = vpop.f32.mrb[0].mxu0
    %v5554 = vadd.f32 %v5513, %v5553
    %v5555 = vpop.f32.mrb[0].mxu0
    %v5556 = vpop.f32.mrb[0].mxu0
    %5557 = vdwg.mxu0
    %5558 = vmatprep.subr.bf16.mxu0 %v4885
    %5559 = vmatpush1.bf16.msra.mxu0 %v4884
    %5560 = vmatprep.subr.bf16.mxu0 %v4889
    %5561 = vmatpush1.bf16.msra.mxu0 %v4888
    %5562 = vmatprep.subr.bf16.mxu0 %v4893
    %5563 = vmatpush1.bf16.msra.mxu0 %v4892
    %5564 = vmatprep.subr.bf16.mxu0 %v4897
    %5565 = vmatpush1.bf16.msra.mxu0 %v4896
    %5566 = vmatprep.subr.bf16.mxu0 %v4901
    %5567 = vmatpush1.bf16.msra.mxu0 %v4900
    %5568 = vmatprep.subr.bf16.mxu0 %v4905
    %5569 = vmatpush1.bf16.msra.mxu0 %v4904
    %5570 = vmatprep.subr.bf16.mxu0 %v4909
    %5571 = vmatpush1.bf16.msra.mxu0 %v4908
    %5572 = vmatprep.subr.bf16.mxu0 %v4913
    %5573 = vmatpush1.bf16.msra.mxu0 %v4912
    %5574 = vmatprep.subr.bf16.mxu0 %v4917
    %5575 = vmatpush1.bf16.msra.mxu0 %v4916
    %5576 = vmatprep.subr.bf16.mxu0 %v4921
    %5577 = vmatpush1.bf16.msra.mxu0 %v4920
    %5578 = vmatprep.subr.bf16.mxu0 %v4925
    %5579 = vmatpush1.bf16.msra.mxu0 %v4924
    %5580 = vmatprep.subr.bf16.mxu0 %v4929
    %5581 = vmatpush1.bf16.msra.mxu0 %v4928
    %5582 = vmatprep.subr.bf16.mxu0 %v4933
    %5583 = vmatpush1.bf16.msra.mxu0 %v4932
    %5584 = vmatprep.subr.bf16.mxu0 %v4937
    %5585 = vmatpush1.bf16.msra.mxu0 %v4936
    %5586 = vmatprep.subr.bf16.mxu0 %v4941
    %5587 = vmatpush1.bf16.msra.mxu0 %v4940
    %5588 = vmatprep.subr.bf16.mxu0 %v4945
    %5589 = vmatpush1.bf16.msra.mxu0 %v4944
    %5590 = vmatprep.mubr.bf16.mxu0 %v3829
    %5591 = vmatmul.mubr.bf16.gmra.mrb[0].mxu0 %v3828
    %v5592 = vpop.f32.mrb[0].mxu0
    %v5593 = vadd.f32 %v4105, %v5592
    %v5594 = vpop.f32.mrb[0].mxu0
    %v5595 = vadd.f32 %v4109, %v5594
    %v5596 = vpop.f32.mrb[0].mxu0
    %v5597 = vpop.f32.mrb[0].mxu0
    %5598 = vdwg.mxu0
    %5599 = vmatprep.subr.bf16.mxu0 %v4949
    %5600 = vmatpush1.bf16.msra.mxu0 %v4948
    %5601 = vmatprep.subr.bf16.mxu0 %v4953
    %5602 = vmatpush1.bf16.msra.mxu0 %v4952
    %5603 = vmatprep.subr.bf16.mxu0 %v4957
    %5604 = vmatpush1.bf16.msra.mxu0 %v4956
    %5605 = vmatprep.subr.bf16.mxu0 %v4961
    %5606 = vmatpush1.bf16.msra.mxu0 %v4960
    %5607 = vmatprep.subr.bf16.mxu0 %v4965
    %5608 = vmatpush1.bf16.msra.mxu0 %v4964
    %5609 = vmatprep.subr.bf16.mxu0 %v4969
    %5610 = vmatpush1.bf16.msra.mxu0 %v4968
    %5611 = vmatprep.subr.bf16.mxu0 %v4973
    %5612 = vmatpush1.bf16.msra.mxu0 %v4972
    %5613 = vmatprep.subr.bf16.mxu0 %v4977
    %5614 = vmatpush1.bf16.msra.mxu0 %v4976
    %5615 = vmatprep.subr.bf16.mxu0 %v4981
    %5616 = vmatpush1.bf16.msra.mxu0 %v4980
    %5617 = vmatprep.subr.bf16.mxu0 %v4985
    %5618 = vmatpush1.bf16.msra.mxu0 %v4984
    %5619 = vmatprep.subr.bf16.mxu0 %v4989
    %5620 = vmatpush1.bf16.msra.mxu0 %v4988
    %5621 = vmatprep.subr.bf16.mxu0 %v4993
    %5622 = vmatpush1.bf16.msra.mxu0 %v4992
    %5623 = vmatprep.subr.bf16.mxu0 %v4997
    %5624 = vmatpush1.bf16.msra.mxu0 %v4996
    %5625 = vmatprep.subr.bf16.mxu0 %v5001
    %5626 = vmatpush1.bf16.msra.mxu0 %v5000
    %5627 = vmatprep.subr.bf16.mxu0 %v5005
    %5628 = vmatpush1.bf16.msra.mxu0 %v5004
    %5629 = vmatprep.subr.bf16.mxu0 %v5009
    %5630 = vmatpush1.bf16.msra.mxu0 %v5008
    %5631 = vmatprep.mubr.bf16.mxu0 %v3831
    %5632 = vmatmul.mubr.bf16.gmra.mrb[0].mxu0 %v3830
    %v5633 = vpop.f32.mrb[0].mxu0
    %v5634 = vadd.f32 %v5593, %v5633
    %v5635 = vpop.f32.mrb[0].mxu0
    %v5636 = vadd.f32 %v5595, %v5635
    %v5637 = vpop.f32.mrb[0].mxu0
    %v5638 = vpop.f32.mrb[0].mxu0
    %5639 = vdwg.mxu0
    %5640 = vmatprep.subr.bf16.mxu0 %v5013
    %5641 = vmatpush1.bf16.msra.mxu0 %v5012
    %5642 = vmatprep.subr.bf16.mxu0 %v5017
    %5643 = vmatpush1.bf16.msra.mxu0 %v5016
    %5644 = vmatprep.subr.bf16.mxu0 %v5021
    %5645 = vmatpush1.bf16.msra.mxu0 %v5020
    %5646 = vmatprep.subr.bf16.mxu0 %v5025
    %5647 = vmatpush1.bf16.msra.mxu0 %v5024
    %5648 = vmatprep.subr.bf16.mxu0 %v5029
    %5649 = vmatpush1.bf16.msra.mxu0 %v5028
    %5650 = vmatprep.subr.bf16.mxu0 %v5033
    %5651 = vmatpush1.bf16.msra.mxu0 %v5032
    %5652 = vmatprep.subr.bf16.mxu0 %v5037
    %5653 = vmatpush1.bf16.msra.mxu0 %v5036
    %5654 = vmatprep.subr.bf16.mxu0 %v5041
    %5655 = vmatpush1.bf16.msra.mxu0 %v5040
    %5656 = vmatprep.subr.bf16.mxu0 %v5045
    %5657 = vmatpush1.bf16.msra.mxu0 %v5044
    %5658 = vmatprep.subr.bf16.mxu0 %v5049
    %5659 = vmatpush1.bf16.msra.mxu0 %v5048
    %5660 = vmatprep.subr.bf16.mxu0 %v5053
    %5661 = vmatpush1.bf16.msra.mxu0 %v5052
    %5662 = vmatprep.subr.bf16.mxu0 %v5057
    %5663 = vmatpush1.bf16.msra.mxu0 %v5056
    %5664 = vmatprep.subr.bf16.mxu0 %v5061
    %5665 = vmatpush1.bf16.msra.mxu0 %v5060
    %5666 = vmatprep.subr.bf16.mxu0 %v5065
    %5667 = vmatpush1.bf16.msra.mxu0 %v5064
    %5668 = vmatprep.subr.bf16.mxu0 %v5069
    %5669 = vmatpush1.bf16.msra.mxu0 %v5068
    %5670 = vmatprep.subr.bf16.mxu0 %v5073
    %5671 = vmatpush1.bf16.msra.mxu0 %v5072
    %5672 = vmatprep.mubr.bf16.mxu0 %v3833
    %5673 = vmatmul.mubr.bf16.gmra.mrb[0].mxu0 %v3832
    %v5674 = vpop.f32.mrb[0].mxu0
    %v5675 = vadd.f32 %v5634, %v5674
    %v5676 = vpop.f32.mrb[0].mxu0
    %v5677 = vadd.f32 %v5636, %v5676
    %v5678 = vpop.f32.mrb[0].mxu0
    %v5679 = vpop.f32.mrb[0].mxu0
    %5680 = vdwg.mxu0
    %5681 = vmatprep.subr.bf16.mxu0 %v5077
    %5682 = vmatpush1.bf16.msra.mxu0 %v5076
    %5683 = vmatprep.subr.bf16.mxu0 %v5081
    %5684 = vmatpush1.bf16.msra.mxu0 %v5080
    %5685 = vmatprep.subr.bf16.mxu0 %v5085
    %5686 = vmatpush1.bf16.msra.mxu0 %v5084
    %5687 = vmatprep.subr.bf16.mxu0 %v5089
    %5688 = vmatpush1.bf16.msra.mxu0 %v5088
    %5689 = vmatprep.subr.bf16.mxu0 %v5093
    %5690 = vmatpush1.bf16.msra.mxu0 %v5092
    %5691 = vmatprep.subr.bf16.mxu0 %v5097
    %5692 = vmatpush1.bf16.msra.mxu0 %v5096
    %5693 = vmatprep.subr.bf16.mxu0 %v5101
    %5694 = vmatpush1.bf16.msra.mxu0 %v5100
    %5695 = vmatprep.subr.bf16.mxu0 %v5105
    %5696 = vmatpush1.bf16.msra.mxu0 %v5104
    %5697 = vmatprep.subr.bf16.mxu0 %v5109
    %5698 = vmatpush1.bf16.msra.mxu0 %v5108
    %5699 = vmatprep.subr.bf16.mxu0 %v5113
    %5700 = vmatpush1.bf16.msra.mxu0 %v5112
    %5701 = vmatprep.subr.bf16.mxu0 %v5117
    %5702 = vmatpush1.bf16.msra.mxu0 %v5116
    %5703 = vmatprep.subr.bf16.mxu0 %v5121
    %5704 = vmatpush1.bf16.msra.mxu0 %v5120
    %5705 = vmatprep.subr.bf16.mxu0 %v5125
    %5706 = vmatpush1.bf16.msra.mxu0 %v5124
    %5707 = vmatprep.subr.bf16.mxu0 %v5129
    %5708 = vmatpush1.bf16.msra.mxu0 %v5128
    %5709 = vmatprep.subr.bf16.mxu0 %v5133
    %5710 = vmatpush1.bf16.msra.mxu0 %v5132
    %5711 = vmatprep.subr.bf16.mxu0 %v5137
    %5712 = vmatpush1.bf16.msra.mxu0 %v5136
    %5713 = vmatprep.mubr.bf16.mxu0 %v3835
    %5714 = vmatmul.mubr.bf16.gmra.mrb[0].mxu0 %v3834
    %v5715 = vpop.f32.mrb[0].mxu0
    %v5716 = vadd.f32 %v5675, %v5715
    %v5717 = vpop.f32.mrb[0].mxu0
    %v5718 = vadd.f32 %v5677, %v5717
    %v5719 = vpop.f32.mrb[0].mxu0
    %v5720 = vpop.f32.mrb[0].mxu0
    %5721 = vdwg.mxu0
    %v5722 = vmax.f32 %v5552, 0.0
    %v5723 = vmax.f32 %v5554, 0.0
    %v5724 = vmax.f32 %v5716, 0.0
    %v5725 = vmax.f32 %v5718, 0.0
    %v5726 = vpack.c.bf16 %v5722, %v5722
    %v5727 = vpack.c.bf16 %v5723, %v5723
    %v5728 = vpack.c.bf16 %v5724, %v5724
    %v5729 = vpack.c.bf16 %v5725, %v5725
    %v5730 = vld [vmem:[%s5] sm:$0xff]
    %v5731 = vld [vmem:[%s5 + $0x8] sm:$0xff]
    %v5732 = vld [vmem:[%s5 + $0x10] sm:$0xff]
    %v5733 = vld [vmem:[%s5 + $0x18] sm:$0xf]
    %v5734 = vld [vmem:[%s5 + $0x1c] sm:$0xff]
    %v5735 = vld [vmem:[%s5 + $0x24] sm:$0xff]
    %v5736 = vld [vmem:[%s5 + $0x2c] sm:$0xff]
    %v5737 = vld [vmem:[%s5 + $0x34] sm:$0xf]
    %v5738 = vld [vmem:[%s5 + $0x38] sm:$0xff]
    %v5739 = vld [vmem:[%s5 + $0x40] sm:$0xff]
    %v5740 = vld [vmem:[%s5 + $0x48] sm:$0xff]
    %v5741 = vld [vmem:[%s5 + $0x50] sm:$0xf]
    %v5742 = vld [vmem:[%s5 + $0x54] sm:$0xff]
    %v5743 = vld [vmem:[%s5 + $0x5c] sm:$0xff]
    %v5744 = vld [vmem:[%s5 + $0x64] sm:$0xff]
    %v5745 = vld [vmem:[%s5 + $0x6c] sm:$0xf]
    %v5746 = vld [vmem:[%s5 + $0x70] sm:$0xff]
    %v5747 = vld [vmem:[%s5 + $0x78] sm:$0xff]
    %v5748 = vld [vmem:[%s5 + $0x80] sm:$0xff]
    %v5749 = vld [vmem:[%s5 + $0x88] sm:$0xf]
    %v5750 = vld [vmem:[%s5 + $0x8c] sm:$0xff]
    %v5751 = vld [vmem:[%s5 + $0x94] sm:$0xff]
    %v5752 = vld [vmem:[%s5 + $0x9c] sm:$0xff]
    %v5753 = vld [vmem:[%s5 + $0xa4] sm:$0xf]
    %v5754 = vld [vmem:[%s5 + $0xa8] sm:$0xff]
    %v5755 = vld [vmem:[%s5 + $0xb0] sm:$0xff]
    %v5756 = vld [vmem:[%s5 + $0xb8] sm:$0xff]
    %v5757 = vld [vmem:[%s5 + $0xc0] sm:$0xf]
    %v5758 = vld [vmem:[%s5 + $0xc4] sm:$0xff]
    %v5759 = vld [vmem:[%s5 + $0xcc] sm:$0xff]
    %v5760 = vld [vmem:[%s5 + $0xd4] sm:$0xff]
    %v5761 = vld [vmem:[%s5 + $0xdc] sm:$0xf]
    %v5762 = vld [vmem:[%s5 + $0xe0] sm:$0xff]
    %v5763 = vld [vmem:[%s5 + $0xe8] sm:$0xff]
    %v5764 = vld [vmem:[%s5 + $0xf0] sm:$0xff]
    %v5765 = vld [vmem:[%s5 + $0xf8] sm:$0xf]
    %v5766 = vld [vmem:[%s5 + $0xfc] sm:$0xff]
    %v5767 = vld [vmem:[%s5 + $0x104] sm:$0xff]
    %v5768 = vld [vmem:[%s5 + $0x10c] sm:$0xff]
    %v5769 = vld [vmem:[%s5 + $0x114] sm:$0xf]
    %v5770 = vld [vmem:[%s5 + $0x118] sm:$0xff]
    %v5771 = vld [vmem:[%s5 + $0x120] sm:$0xff]
    %v5772 = vld [vmem:[%s5 + $0x128] sm:$0xff]
    %v5773 = vld [vmem:[%s5 + $0x130] sm:$0xf]
    %v5774 = vld [vmem:[%s5 + $0x134] sm:$0xff]
    %v5775 = vld [vmem:[%s5 + $0x13c] sm:$0xff]
    %v5776 = vld [vmem:[%s5 + $0x144] sm:$0xff]
    %v5777 = vld [vmem:[%s5 + $0x14c] sm:$0xf]
    %v5778 = vld [vmem:[%s5 + $0x150] sm:$0xff]
    %v5779 = vld [vmem:[%s5 + $0x158] sm:$0xff]
    %v5780 = vld [vmem:[%s5 + $0x160] sm:$0xff]
    %v5781 = vld [vmem:[%s5 + $0x168] sm:$0xf]
    %v5782 = vld [vmem:[%s5 + $0x16c] sm:$0xff]
    %v5783 = vld [vmem:[%s5 + $0x174] sm:$0xff]
    %v5784 = vld [vmem:[%s5 + $0x17c] sm:$0xff]
    %v5785 = vld [vmem:[%s5 + $0x184] sm:$0xf]
    %v5786 = vld [vmem:[%s5 + $0x188] sm:$0xff]
    %v5787 = vld [vmem:[%s5 + $0x190] sm:$0xff]
    %v5788 = vld [vmem:[%s5 + $0x198] sm:$0xff]
    %v5789 = vld [vmem:[%s5 + $0x1a0] sm:$0xf]
    %v5790 = vld [vmem:[%s5 + $0x1a4] sm:$0xff]
    %v5791 = vld [vmem:[%s5 + $0x1ac] sm:$0xff]
    %v5792 = vld [vmem:[%s5 + $0x1b4] sm:$0xff]
    %v5793 = vld [vmem:[%s5 + $0x1bc] sm:$0xf]
    %v5794 = vld [vmem:[%s5 + $0x1c0] sm:$0xff]
    %v5795 = vld [vmem:[%s5 + $0x1c8] sm:$0xff]
    %v5796 = vld [vmem:[%s5 + $0x1d0] sm:$0xff]
    %v5797 = vld [vmem:[%s5 + $0x1d8] sm:$0xf]
    %v5798 = vld [vmem:[%s5 + $0x1dc] sm:$0xff]
    %v5799 = vld [vmem:[%s5 + $0x1e4] sm:$0xff]
    %v5800 = vld [vmem:[%s5 + $0x1ec] sm:$0xff]
    %v5801 = vld [vmem:[%s5 + $0x1f4] sm:$0xf]
    %v5802 = vld [vmem:[%s5 + $0x1f8] sm:$0xff]
    %v5803 = vld [vmem:[%s5 + $0x200] sm:$0xff]
    %v5804 = vld [vmem:[%s5 + $0x208] sm:$0xff]
    %v5805 = vld [vmem:[%s5 + $0x210] sm:$0xf]
    %v5806 = vld [vmem:[%s5 + $0x214] sm:$0xff]
    %v5807 = vld [vmem:[%s5 + $0x21c] sm:$0xff]
    %v5808 = vld [vmem:[%s5 + $0x224] sm:$0xff]
    %v5809 = vld [vmem:[%s5 + $0x22c] sm:$0xf]
    %v5810 = vld [vmem:[%s5 + $0x230] sm:$0xff]
    %v5811 = vld [vmem:[%s5 + $0x238] sm:$0xff]
    %v5812 = vld [vmem:[%s5 + $0x240] sm:$0xff]
    %v5813 = vld [vmem:[%s5 + $0x248] sm:$0xf]
    %v5814 = vld [vmem:[%s5 + $0x24c] sm:$0xff]
    %v5815 = vld [vmem:[%s5 + $0x254] sm:$0xff]
    %v5816 = vld [vmem:[%s5 + $0x25c] sm:$0xff]
    %v5817 = vld [vmem:[%s5 + $0x264] sm:$0xf]
    %v5818 = vld [vmem:[%s5 + $0x268] sm:$0xff]
    %v5819 = vld [vmem:[%s5 + $0x270] sm:$0xff]
    %v5820 = vld [vmem:[%s5 + $0x278] sm:$0xff]
    %v5821 = vld [vmem:[%s5 + $0x280] sm:$0xf]
    %v5822 = vld [vmem:[%s5 + $0x284] sm:$0xff]
    %v5823 = vld [vmem:[%s5 + $0x28c] sm:$0xff]
    %v5824 = vld [vmem:[%s5 + $0x294] sm:$0xff]
    %v5825 = vld [vmem:[%s5 + $0x29c] sm:$0xf]
    %v5826 = vld [vmem:[%s5 + $0x2a0] sm:$0xff]
    %v5827 = vld [vmem:[%s5 + $0x2a8] sm:$0xff]
    %v5828 = vld [vmem:[%s5 + $0x2b0] sm:$0xff]
    %v5829 = vld [vmem:[%s5 + $0x2b8] sm:$0xf]
    %v5830 = vld [vmem:[%s5 + $0x2bc] sm:$0xff]
    %v5831 = vld [vmem:[%s5 + $0x2c4] sm:$0xff]
    %v5832 = vld [vmem:[%s5 + $0x2cc] sm:$0xff]
    %v5833 = vld [vmem:[%s5 + $0x2d4] sm:$0xf]
    %v5834 = vld [vmem:[%s5 + $0x2d8] sm:$0xff]
    %v5835 = vld [vmem:[%s5 + $0x2e0] sm:$0xff]
    %v5836 = vld [vmem:[%s5 + $0x2e8] sm:$0xff]
    %v5837 = vld [vmem:[%s5 + $0x2f0] sm:$0xf]
    %v5838 = vld [vmem:[%s5 + $0x2f4] sm:$0xff]
    %v5839 = vld [vmem:[%s5 + $0x2fc] sm:$0xff]
    %v5840 = vld [vmem:[%s5 + $0x304] sm:$0xff]
    %v5841 = vld [vmem:[%s5 + $0x30c] sm:$0xf]
    %v5842 = vld [vmem:[%s5 + $0x310] sm:$0xff]
    %v5843 = vld [vmem:[%s5 + $0x318] sm:$0xff]
    %v5844 = vld [vmem:[%s5 + $0x320] sm:$0xff]
    %v5845 = vld [vmem:[%s5 + $0x328] sm:$0xf]
    %v5846 = vld [vmem:[%s5 + $0x32c] sm:$0xff]
    %v5847 = vld [vmem:[%s5 + $0x334] sm:$0xff]
    %v5848 = vld [vmem:[%s5 + $0x33c] sm:$0xff]
    %v5849 = vld [vmem:[%s5 + $0x344] sm:$0xf]
    %v5850 = vld [vmem:[%s5 + $0x348] sm:$0xff]
    %v5851 = vld [vmem:[%s5 + $0x350] sm:$0xff]
    %v5852 = vld [vmem:[%s5 + $0x358] sm:$0xff]
    %v5853 = vld [vmem:[%s5 + $0x360] sm:$0xf]
    %v5854 = vld [vmem:[%s5 + $0x364] sm:$0xff]
    %v5855 = vld [vmem:[%s5 + $0x36c] sm:$0xff]
    %v5856 = vld [vmem:[%s5 + $0x374] sm:$0xff]
    %v5857 = vld [vmem:[%s5 + $0x37c] sm:$0xf]
    %v5858 = vld [vmem:[%s5 + $0x380] sm:$0xff]
    %v5859 = vld [vmem:[%s5 + $0x388] sm:$0xff]
    %v5860 = vld [vmem:[%s5 + $0x390] sm:$0xff]
    %v5861 = vld [vmem:[%s5 + $0x398] sm:$0xf]
    %v5862 = vld [vmem:[%s5 + $0x39c] sm:$0xff]
    %v5863 = vld [vmem:[%s5 + $0x3a4] sm:$0xff]
    %v5864 = vld [vmem:[%s5 + $0x3ac] sm:$0xff]
    %v5865 = vld [vmem:[%s5 + $0x3b4] sm:$0xf]
    %v5866 = vld [vmem:[%s5 + $0x3b8] sm:$0xff]
    %v5867 = vld [vmem:[%s5 + $0x3c0] sm:$0xff]
    %v5868 = vld [vmem:[%s5 + $0x3c8] sm:$0xff]
    %v5869 = vld [vmem:[%s5 + $0x3d0] sm:$0xf]
    %v5870 = vld [vmem:[%s5 + $0x3d4] sm:$0xff]
    %v5871 = vld [vmem:[%s5 + $0x3dc] sm:$0xff]
    %v5872 = vld [vmem:[%s5 + $0x3e4] sm:$0xff]
    %v5873 = vld [vmem:[%s5 + $0x3ec] sm:$0xf]
    %v5874 = vld [vmem:[%s5 + $0x3f0] sm:$0xff]
    %v5875 = vld [vmem:[%s5 + $0x3f8] sm:$0xff]
    %v5876 = vld [vmem:[%s5 + $0x400] sm:$0xff]
    %v5877 = vld [vmem:[%s5 + $0x408] sm:$0xf]
    %v5878 = vld [vmem:[%s5 + $0x40c] sm:$0xff]
    %v5879 = vld [vmem:[%s5 + $0x414] sm:$0xff]
    %v5880 = vld [vmem:[%s5 + $0x41c] sm:$0xff]
    %v5881 = vld [vmem:[%s5 + $0x424] sm:$0xf]
    %v5882 = vld [vmem:[%s5 + $0x428] sm:$0xff]
    %v5883 = vld [vmem:[%s5 + $0x430] sm:$0xff]
    %v5884 = vld [vmem:[%s5 + $0x438] sm:$0xff]
    %v5885 = vld [vmem:[%s5 + $0x440] sm:$0xf]
    %v5886 = vld [vmem:[%s5 + $0x444] sm:$0xff]
    %v5887 = vld [vmem:[%s5 + $0x44c] sm:$0xff]
    %v5888 = vld [vmem:[%s5 + $0x454] sm:$0xff]
    %v5889 = vld [vmem:[%s5 + $0x45c] sm:$0xf]
    %v5890 = vld [vmem:[%s5 + $0x460] sm:$0xff]
    %v5891 = vld [vmem:[%s5 + $0x468] sm:$0xff]
    %v5892 = vld [vmem:[%s5 + $0x470] sm:$0xff]
    %v5893 = vld [vmem:[%s5 + $0x478] sm:$0xf]
    %v5894 = vld [vmem:[%s5 + $0x47c] sm:$0xff]
    %v5895 = vld [vmem:[%s5 + $0x484] sm:$0xff]
    %v5896 = vld [vmem:[%s5 + $0x48c] sm:$0xff]
    %v5897 = vld [vmem:[%s5 + $0x494] sm:$0xf]
    %v5898 = vld [vmem:[%s5 + $0x498] sm:$0xff]
    %v5899 = vld [vmem:[%s5 + $0x4a0] sm:$0xff]
    %v5900 = vld [vmem:[%s5 + $0x4a8] sm:$0xff]
    %v5901 = vld [vmem:[%s5 + $0x4b0] sm:$0xf]
    %v5902 = vld [vmem:[%s5 + $0x4b4] sm:$0xff]
    %v5903 = vld [vmem:[%s5 + $0x4bc] sm:$0xff]
    %v5904 = vld [vmem:[%s5 + $0x4c4] sm:$0xff]
    %v5905 = vld [vmem:[%s5 + $0x4cc] sm:$0xf]
    %v5906 = vld [vmem:[%s5 + $0x4d0] sm:$0xff]
    %v5907 = vld [vmem:[%s5 + $0x4d8] sm:$0xff]
    %v5908 = vld [vmem:[%s5 + $0x4e0] sm:$0xff]
    %v5909 = vld [vmem:[%s5 + $0x4e8] sm:$0xf]
    %v5910 = vld [vmem:[%s5 + $0x4ec] sm:$0xff]
    %v5911 = vld [vmem:[%s5 + $0x4f4] sm:$0xff]
    %v5912 = vld [vmem:[%s5 + $0x4fc] sm:$0xff]
    %v5913 = vld [vmem:[%s5 + $0x504] sm:$0xf]
    %v5914 = vld [vmem:[%s5 + $0x508] sm:$0xff]
    %v5915 = vld [vmem:[%s5 + $0x510] sm:$0xff]
    %v5916 = vld [vmem:[%s5 + $0x518] sm:$0xff]
    %v5917 = vld [vmem:[%s5 + $0x520] sm:$0xf]
    %v5918 = vld [vmem:[%s5 + $0x524] sm:$0xff]
    %v5919 = vld [vmem:[%s5 + $0x52c] sm:$0xff]
    %v5920 = vld [vmem:[%s5 + $0x534] sm:$0xff]
    %v5921 = vld [vmem:[%s5 + $0x53c] sm:$0xf]
    %v5922 = vld [vmem:[%s5 + $0x540] sm:$0xff]
    %v5923 = vld [vmem:[%s5 + $0x548] sm:$0xff]
    %v5924 = vld [vmem:[%s5 + $0x550] sm:$0xff]
    %v5925 = vld [vmem:[%s5 + $0x558] sm:$0xf]
    %v5926 = vld [vmem:[%s5 + $0x55c] sm:$0xff]
    %v5927 = vld [vmem:[%s5 + $0x564] sm:$0xff]
    %v5928 = vld [vmem:[%s5 + $0x56c] sm:$0xff]
    %v5929 = vld [vmem:[%s5 + $0x574] sm:$0xf]
    %v5930 = vld [vmem:[%s5 + $0x578] sm:$0xff]
    %v5931 = vld [vmem:[%s5 + $0x580] sm:$0xff]
    %v5932 = vld [vmem:[%s5 + $0x588] sm:$0xff]
    %v5933 = vld [vmem:[%s5 + $0x590] sm:$0xf]
    %v5934 = vld [vmem:[%s5 + $0x594] sm:$0xff]
    %v5935 = vld [vmem:[%s5 + $0x59c] sm:$0xff]
    %v5936 = vld [vmem:[%s5 + $0x5a4] sm:$0xff]
    %v5937 = vld [vmem:[%s5 + $0x5ac] sm:$0xf]
    %v5938 = vld [vmem:[%s5 + $0x5b0] sm:$0xff]
    %v5939 = vld [vmem:[%s5 + $0x5b8] sm:$0xff]
    %v5940 = vld [vmem:[%s5 + $0x5c0] sm:$0xff]
    %v5941 = vld [vmem:[%s5 + $0x5c8] sm:$0xf]
    %v5942 = vld [vmem:[%s5 + $0x5cc] sm:$0xff]
    %v5943 = vld [vmem:[%s5 + $0x5d4] sm:$0xff]
    %v5944 = vld [vmem:[%s5 + $0x5dc] sm:$0xff]
    %v5945 = vld [vmem:[%s5 + $0x5e4] sm:$0xf]
    %v5946 = vld [vmem:[%s5 + $0x5e8] sm:$0xff]
    %v5947 = vld [vmem:[%s5 + $0x5f0] sm:$0xff]
    %v5948 = vld [vmem:[%s5 + $0x5f8] sm:$0xff]
    %v5949 = vld [vmem:[%s5 + $0x600] sm:$0xf]
    %v5950 = vld [vmem:[%s5 + $0x604] sm:$0xff]
    %v5951 = vld [vmem:[%s5 + $0x60c] sm:$0xff]
    %v5952 = vld [vmem:[%s5 + $0x614] sm:$0xff]
    %v5953 = vld [vmem:[%s5 + $0x61c] sm:$0xf]
    %v5954 = vld [vmem:[%s5 + $0x620] sm:$0xff]
    %v5955 = vld [vmem:[%s5 + $0x628] sm:$0xff]
    %v5956 = vld [vmem:[%s5 + $0x630] sm:$0xff]
    %v5957 = vld [vmem:[%s5 + $0x638] sm:$0xf]
    %v5958 = vld [vmem:[%s5 + $0x63c] sm:$0xff]
    %v5959 = vld [vmem:[%s5 + $0x644] sm:$0xff]
    %v5960 = vld [vmem:[%s5 + $0x64c] sm:$0xff]
    %v5961 = vld [vmem:[%s5 + $0x654] sm:$0xf]
    %v5962 = vld [vmem:[%s5 + $0x658] sm:$0xff]
    %v5963 = vld [vmem:[%s5 + $0x660] sm:$0xff]
    %v5964 = vld [vmem:[%s5 + $0x668] sm:$0xff]
    %v5965 = vld [vmem:[%s5 + $0x670] sm:$0xf]
    %v5966 = vld [vmem:[%s5 + $0x674] sm:$0xff]
    %v5967 = vld [vmem:[%s5 + $0x67c] sm:$0xff]
    %v5968 = vld [vmem:[%s5 + $0x684] sm:$0xff]
    %v5969 = vld [vmem:[%s5 + $0x68c] sm:$0xf]
    %v5970 = vld [vmem:[%s5 + $0x690] sm:$0xff]
    %v5971 = vld [vmem:[%s5 + $0x698] sm:$0xff]
    %v5972 = vld [vmem:[%s5 + $0x6a0] sm:$0xff]
    %v5973 = vld [vmem:[%s5 + $0x6a8] sm:$0xf]
    %v5974 = vld [vmem:[%s5 + $0x6ac] sm:$0xff]
    %v5975 = vld [vmem:[%s5 + $0x6b4] sm:$0xff]
    %v5976 = vld [vmem:[%s5 + $0x6bc] sm:$0xff]
    %v5977 = vld [vmem:[%s5 + $0x6c4] sm:$0xf]
    %v5978 = vld [vmem:[%s5 + $0x6c8] sm:$0xff]
    %v5979 = vld [vmem:[%s5 + $0x6d0] sm:$0xff]
    %v5980 = vld [vmem:[%s5 + $0x6d8] sm:$0xff]
    %v5981 = vld [vmem:[%s5 + $0x6e0] sm:$0xf]
    %v5982 = vld [vmem:[%s5 + $0x6e4] sm:$0xff]
    %v5983 = vld [vmem:[%s5 + $0x6ec] sm:$0xff]
    %v5984 = vld [vmem:[%s5 + $0x6f4] sm:$0xff]
    %v5985 = vld [vmem:[%s5 + $0x6fc] sm:$0xf]
    %v5986 = vld [vmem:[%s6] sm:$0x7f]
    %v5988 = vlaneseq
    %v5989 = vshrl.u32 %v5988, 7
    %v5990 = vsub.s32 0, %v5989
    %v5991 = vrot.slane %v5986, %v5990
    %v5992 = vlaneseq
    %v5993 = vshrl.u32 %v5992, 7
    %v5994 = vsub.s32 1, %v5993
    %v5995 = vrot.slane %v5986, %v5994
    %v5996 = vlaneseq
    %v5997 = vshrl.u32 %v5996, 7
    %v5998 = vsub.s32 2, %v5997
    %v5999 = vrot.slane %v5986, %v5998
    %v6000 = vlaneseq
    %v6001 = vshrl.u32 %v6000, 7
    %v6002 = vsub.s32 3, %v6001
    %v6003 = vrot.slane %v5986, %v6002
    %v6004 = vlaneseq
    %v6005 = vshrl.u32 %v6004, 7
    %v6006 = vsub.s32 4, %v6005
    %v6007 = vrot.slane %v5986, %v6006
    %v6008 = vlaneseq
    %v6009 = vshrl.u32 %v6008, 7
    %v6010 = vsub.s32 5, %v6009
    %v6011 = vrot.slane %v5986, %v6010
    %v6012 = vlaneseq
    %v6013 = vshrl.u32 %v6012, 7
    %v6014 = vsub.s32 6, %v6013
    %v6015 = vrot.slane %v5986, %v6014
    %v6279 = vunpack.c.l.b16 %v5730
    %v6280 = vunpack.c.h.b16 %v5730
    %v6281 = vunpack.c.l.b16 %v5731
    %v6282 = vunpack.c.h.b16 %v5731
    %v6283 = vunpack.c.l.b16 %v5732
    %v6284 = vunpack.c.h.b16 %v5732
    %v6285 = vunpack.c.l.b16 %v5733
    %v6286 = vunpack.c.l.b16 %v5734
    %v6287 = vunpack.c.h.b16 %v5734
    %v6288 = vunpack.c.l.b16 %v5735
    %v6289 = vunpack.c.h.b16 %v5735
    %v6290 = vunpack.c.l.b16 %v5736
    %v6291 = vunpack.c.h.b16 %v5736
    %v6292 = vunpack.c.l.b16 %v5737
    %v6293 = vunpack.c.l.b16 %v5738
    %v6294 = vunpack.c.h.b16 %v5738
    %v6295 = vunpack.c.l.b16 %v5739
    %v6296 = vunpack.c.h.b16 %v5739
    %v6297 = vunpack.c.l.b16 %v5740
    %v6298 = vunpack.c.h.b16 %v5740
    %v6299 = vunpack.c.l.b16 %v5741
    %v6300 = vunpack.c.l.b16 %v5742
    %v6301 = vunpack.c.h.b16 %v5742
    %v6302 = vunpack.c.l.b16 %v5743
    %v6303 = vunpack.c.h.b16 %v5743
    %v6304 = vunpack.c.l.b16 %v5744
    %v6305 = vunpack.c.h.b16 %v5744
    %v6306 = vunpack.c.l.b16 %v5745
    %v6307 = vunpack.c.l.b16 %v5746
    %v6308 = vunpack.c.h.b16 %v5746
    %v6309 = vunpack.c.l.b16 %v5747
    %v6310 = vunpack.c.h.b16 %v5747
    %v6311 = vunpack.c.l.b16 %v5748
    %v6312 = vunpack.c.h.b16 %v5748
    %v6313 = vunpack.c.l.b16 %v5749
    %v6314 = vunpack.c.l.b16 %v5750
    %v6315 = vunpack.c.h.b16 %v5750
    %v6316 = vunpack.c.l.b16 %v5751
    %v6317 = vunpack.c.h.b16 %v5751
    %v6318 = vunpack.c.l.b16 %v5752
    %v6319 = vunpack.c.h.b16 %v5752
    %v6320 = vunpack.c.l.b16 %v5753
    %v6321 = vunpack.c.l.b16 %v5754
    %v6322 = vunpack.c.h.b16 %v5754
    %v6323 = vunpack.c.l.b16 %v5755
    %v6324 = vunpack.c.h.b16 %v5755
    %v6325 = vunpack.c.l.b16 %v5756
    %v6326 = vunpack.c.h.b16 %v5756
    %v6327 = vunpack.c.l.b16 %v5757
    %v6328 = vunpack.c.l.b16 %v5758
    %v6329 = vunpack.c.h.b16 %v5758
    %v6330 = vunpack.c.l.b16 %v5759
    %v6331 = vunpack.c.h.b16 %v5759
    %v6332 = vunpack.c.l.b16 %v5760
    %v6333 = vunpack.c.h.b16 %v5760
    %v6334 = vunpack.c.l.b16 %v5761
    %v6335 = vunpack.c.l.b16 %v5762
    %v6336 = vunpack.c.h.b16 %v5762
    %v6337 = vunpack.c.l.b16 %v5763
    %v6338 = vunpack.c.h.b16 %v5763
    %v6339 = vunpack.c.l.b16 %v5764
    %v6340 = vunpack.c.h.b16 %v5764
    %v6341 = vunpack.c.l.b16 %v5765
    %v6342 = vunpack.c.l.b16 %v5766
    %v6343 = vunpack.c.h.b16 %v5766
    %v6344 = vunpack.c.l.b16 %v5767
    %v6345 = vunpack.c.h.b16 %v5767
    %v6346 = vunpack.c.l.b16 %v5768
    %v6347 = vunpack.c.h.b16 %v5768
    %v6348 = vunpack.c.l.b16 %v5769
    %v6349 = vunpack.c.l.b16 %v5770
    %v6350 = vunpack.c.h.b16 %v5770
    %v6351 = vunpack.c.l.b16 %v5771
    %v6352 = vunpack.c.h.b16 %v5771
    %v6353 = vunpack.c.l.b16 %v5772
    %v6354 = vunpack.c.h.b16 %v5772
    %v6355 = vunpack.c.l.b16 %v5773
    %v6356 = vunpack.c.l.b16 %v5774
    %v6357 = vunpack.c.h.b16 %v5774
    %v6358 = vunpack.c.l.b16 %v5775
    %v6359 = vunpack.c.h.b16 %v5775
    %v6360 = vunpack.c.l.b16 %v5776
    %v6361 = vunpack.c.h.b16 %v5776
    %v6362 = vunpack.c.l.b16 %v5777
    %v6363 = vunpack.c.l.b16 %v5778
    %v6364 = vunpack.c.h.b16 %v5778
    %v6365 = vunpack.c.l.b16 %v5779
    %v6366 = vunpack.c.h.b16 %v5779
    %v6367 = vunpack.c.l.b16 %v5780
    %v6368 = vunpack.c.h.b16 %v5780
    %v6369 = vunpack.c.l.b16 %v5781
    %v6370 = vunpack.c.l.b16 %v5782
    %v6371 = vunpack.c.h.b16 %v5782
    %v6372 = vunpack.c.l.b16 %v5783
    %v6373 = vunpack.c.h.b16 %v5783
    %v6374 = vunpack.c.l.b16 %v5784
    %v6375 = vunpack.c.h.b16 %v5784
    %v6376 = vunpack.c.l.b16 %v5785
    %v6377 = vunpack.c.l.b16 %v5786
    %v6378 = vunpack.c.h.b16 %v5786
    %v6379 = vunpack.c.l.b16 %v5787
    %v6380 = vunpack.c.h.b16 %v5787
    %v6381 = vunpack.c.l.b16 %v5788
    %v6382 = vunpack.c.h.b16 %v5788
    %v6383 = vunpack.c.l.b16 %v5789
    %v6384 = vunpack.c.l.b16 %v5790
    %v6385 = vunpack.c.h.b16 %v5790
    %v6386 = vunpack.c.l.b16 %v5791
    %v6387 = vunpack.c.h.b16 %v5791
    %v6388 = vunpack.c.l.b16 %v5792
    %v6389 = vunpack.c.h.b16 %v5792
    %v6390 = vunpack.c.l.b16 %v5793
    %v6391 = vunpack.c.l.b16 %v5794
    %v6392 = vunpack.c.h.b16 %v5794
    %v6393 = vunpack.c.l.b16 %v5795
    %v6394 = vunpack.c.h.b16 %v5795
    %v6395 = vunpack.c.l.b16 %v5796
    %v6396 = vunpack.c.h.b16 %v5796
    %v6397 = vunpack.c.l.b16 %v5797
    %v6398 = vunpack.c.l.b16 %v5798
    %v6399 = vunpack.c.h.b16 %v5798
    %v6400 = vunpack.c.l.b16 %v5799
    %v6401 = vunpack.c.h.b16 %v5799
    %v6402 = vunpack.c.l.b16 %v5800
    %v6403 = vunpack.c.h.b16 %v5800
    %v6404 = vunpack.c.l.b16 %v5801
    %v6405 = vunpack.c.l.b16 %v5802
    %v6406 = vunpack.c.h.b16 %v5802
    %v6407 = vunpack.c.l.b16 %v5803
    %v6408 = vunpack.c.h.b16 %v5803
    %v6409 = vunpack.c.l.b16 %v5804
    %v6410 = vunpack.c.h.b16 %v5804
    %v6411 = vunpack.c.l.b16 %v5805
    %v6412 = vunpack.c.l.b16 %v5806
    %v6413 = vunpack.c.h.b16 %v5806
    %v6414 = vunpack.c.l.b16 %v5807
    %v6415 = vunpack.c.h.b16 %v5807
    %v6416 = vunpack.c.l.b16 %v5808
    %v6417 = vunpack.c.h.b16 %v5808
    %v6418 = vunpack.c.l.b16 %v5809
    %v6419 = vunpack.c.l.b16 %v5810
    %v6420 = vunpack.c.h.b16 %v5810
    %v6421 = vunpack.c.l.b16 %v5811
    %v6422 = vunpack.c.h.b16 %v5811
    %v6423 = vunpack.c.l.b16 %v5812
    %v6424 = vunpack.c.h.b16 %v5812
    %v6425 = vunpack.c.l.b16 %v5813
    %v6426 = vunpack.c.l.b16 %v5814
    %v6427 = vunpack.c.h.b16 %v5814
    %v6428 = vunpack.c.l.b16 %v5815
    %v6429 = vunpack.c.h.b16 %v5815
    %v6430 = vunpack.c.l.b16 %v5816
    %v6431 = vunpack.c.h.b16 %v5816
    %v6432 = vunpack.c.l.b16 %v5817
    %v6433 = vunpack.c.l.b16 %v5818
    %v6434 = vunpack.c.h.b16 %v5818
    %v6435 = vunpack.c.l.b16 %v5819
    %v6436 = vunpack.c.h.b16 %v5819
    %v6437 = vunpack.c.l.b16 %v5820
    %v6438 = vunpack.c.h.b16 %v5820
    %v6439 = vunpack.c.l.b16 %v5821
    %v6440 = vunpack.c.l.b16 %v5822
    %v6441 = vunpack.c.h.b16 %v5822
    %v6442 = vunpack.c.l.b16 %v5823
    %v6443 = vunpack.c.h.b16 %v5823
    %v6444 = vunpack.c.l.b16 %v5824
    %v6445 = vunpack.c.h.b16 %v5824
    %v6446 = vunpack.c.l.b16 %v5825
    %v6447 = vunpack.c.l.b16 %v5826
    %v6448 = vunpack.c.h.b16 %v5826
    %v6449 = vunpack.c.l.b16 %v5827
    %v6450 = vunpack.c.h.b16 %v5827
    %v6451 = vunpack.c.l.b16 %v5828
    %v6452 = vunpack.c.h.b16 %v5828
    %v6453 = vunpack.c.l.b16 %v5829
    %v6454 = vunpack.c.l.b16 %v5830
    %v6455 = vunpack.c.h.b16 %v5830
    %v6456 = vunpack.c.l.b16 %v5831
    %v6457 = vunpack.c.h.b16 %v5831
    %v6458 = vunpack.c.l.b16 %v5832
    %v6459 = vunpack.c.h.b16 %v5832
    %v6460 = vunpack.c.l.b16 %v5833
    %v6461 = vunpack.c.l.b16 %v5834
    %v6462 = vunpack.c.h.b16 %v5834
    %v6463 = vunpack.c.l.b16 %v5835
    %v6464 = vunpack.c.h.b16 %v5835
    %v6465 = vunpack.c.l.b16 %v5836
    %v6466 = vunpack.c.h.b16 %v5836
    %v6467 = vunpack.c.l.b16 %v5837
    %v6468 = vunpack.c.l.b16 %v5838
    %v6469 = vunpack.c.h.b16 %v5838
    %v6470 = vunpack.c.l.b16 %v5839
    %v6471 = vunpack.c.h.b16 %v5839
    %v6472 = vunpack.c.l.b16 %v5840
    %v6473 = vunpack.c.h.b16 %v5840
    %v6474 = vunpack.c.l.b16 %v5841
    %v6475 = vunpack.c.l.b16 %v5842
    %v6476 = vunpack.c.h.b16 %v5842
    %v6477 = vunpack.c.l.b16 %v5843
    %v6478 = vunpack.c.h.b16 %v5843
    %v6479 = vunpack.c.l.b16 %v5844
    %v6480 = vunpack.c.h.b16 %v5844
    %v6481 = vunpack.c.l.b16 %v5845
    %v6482 = vunpack.c.l.b16 %v5846
    %v6483 = vunpack.c.h.b16 %v5846
    %v6484 = vunpack.c.l.b16 %v5847
    %v6485 = vunpack.c.h.b16 %v5847
    %v6486 = vunpack.c.l.b16 %v5848
    %v6487 = vunpack.c.h.b16 %v5848
    %v6488 = vunpack.c.l.b16 %v5849
    %v6489 = vunpack.c.l.b16 %v5850
    %v6490 = vunpack.c.h.b16 %v5850
    %v6491 = vunpack.c.l.b16 %v5851
    %v6492 = vunpack.c.h.b16 %v5851
    %v6493 = vunpack.c.l.b16 %v5852
    %v6494 = vunpack.c.h.b16 %v5852
    %v6495 = vunpack.c.l.b16 %v5853
    %v6496 = vunpack.c.l.b16 %v5854
    %v6497 = vunpack.c.h.b16 %v5854
    %v6498 = vunpack.c.l.b16 %v5855
    %v6499 = vunpack.c.h.b16 %v5855
    %v6500 = vunpack.c.l.b16 %v5856
    %v6501 = vunpack.c.h.b16 %v5856
    %v6502 = vunpack.c.l.b16 %v5857
    %v6503 = vunpack.c.l.b16 %v5858
    %v6504 = vunpack.c.h.b16 %v5858
    %v6505 = vunpack.c.l.b16 %v5859
    %v6506 = vunpack.c.h.b16 %v5859
    %v6507 = vunpack.c.l.b16 %v5860
    %v6508 = vunpack.c.h.b16 %v5860
    %v6509 = vunpack.c.l.b16 %v5861
    %v6510 = vunpack.c.l.b16 %v5862
    %v6511 = vunpack.c.h.b16 %v5862
    %v6512 = vunpack.c.l.b16 %v5863
    %v6513 = vunpack.c.h.b16 %v5863
    %v6514 = vunpack.c.l.b16 %v5864
    %v6515 = vunpack.c.h.b16 %v5864
    %v6516 = vunpack.c.l.b16 %v5865
    %v6517 = vunpack.c.l.b16 %v5866
    %v6518 = vunpack.c.h.b16 %v5866
    %v6519 = vunpack.c.l.b16 %v5867
    %v6520 = vunpack.c.h.b16 %v5867
    %v6521 = vunpack.c.l.b16 %v5868
    %v6522 = vunpack.c.h.b16 %v5868
    %v6523 = vunpack.c.l.b16 %v5869
    %v6524 = vunpack.c.l.b16 %v5870
    %v6525 = vunpack.c.h.b16 %v5870
    %v6526 = vunpack.c.l.b16 %v5871
    %v6527 = vunpack.c.h.b16 %v5871
    %v6528 = vunpack.c.l.b16 %v5872
    %v6529 = vunpack.c.h.b16 %v5872
    %v6530 = vunpack.c.l.b16 %v5873
    %v6531 = vunpack.c.l.b16 %v5874
    %v6532 = vunpack.c.h.b16 %v5874
    %v6533 = vunpack.c.l.b16 %v5875
    %v6534 = vunpack.c.h.b16 %v5875
    %v6535 = vunpack.c.l.b16 %v5876
    %v6536 = vunpack.c.h.b16 %v5876
    %v6537 = vunpack.c.l.b16 %v5877
    %v6538 = vunpack.c.l.b16 %v5878
    %v6539 = vunpack.c.h.b16 %v5878
    %v6540 = vunpack.c.l.b16 %v5879
    %v6541 = vunpack.c.h.b16 %v5879
    %v6542 = vunpack.c.l.b16 %v5880
    %v6543 = vunpack.c.h.b16 %v5880
    %v6544 = vunpack.c.l.b16 %v5881
    %v6545 = vunpack.c.l.b16 %v5882
    %v6546 = vunpack.c.h.b16 %v5882
    %v6547 = vunpack.c.l.b16 %v5883
    %v6548 = vunpack.c.h.b16 %v5883
    %v6549 = vunpack.c.l.b16 %v5884
    %v6550 = vunpack.c.h.b16 %v5884
    %v6551 = vunpack.c.l.b16 %v5885
    %v6552 = vunpack.c.l.b16 %v5886
    %v6553 = vunpack.c.h.b16 %v5886
    %v6554 = vunpack.c.l.b16 %v5887
    %v6555 = vunpack.c.h.b16 %v5887
    %v6556 = vunpack.c.l.b16 %v5888
    %v6557 = vunpack.c.h.b16 %v5888
    %v6558 = vunpack.c.l.b16 %v5889
    %v6559 = vunpack.c.l.b16 %v5890
    %v6560 = vunpack.c.h.b16 %v5890
    %v6561 = vunpack.c.l.b16 %v5891
    %v6562 = vunpack.c.h.b16 %v5891
    %v6563 = vunpack.c.l.b16 %v5892
    %v6564 = vunpack.c.h.b16 %v5892
    %v6565 = vunpack.c.l.b16 %v5893
    %v6566 = vunpack.c.l.b16 %v5894
    %v6567 = vunpack.c.h.b16 %v5894
    %v6568 = vunpack.c.l.b16 %v5895
    %v6569 = vunpack.c.h.b16 %v5895
    %v6570 = vunpack.c.l.b16 %v5896
    %v6571 = vunpack.c.h.b16 %v5896
    %v6572 = vunpack.c.l.b16 %v5897
    %v6573 = vunpack.c.l.b16 %v5898
    %v6574 = vunpack.c.h.b16 %v5898
    %v6575 = vunpack.c.l.b16 %v5899
    %v6576 = vunpack.c.h.b16 %v5899
    %v6577 = vunpack.c.l.b16 %v5900
    %v6578 = vunpack.c.h.b16 %v5900
    %v6579 = vunpack.c.l.b16 %v5901
    %v6580 = vunpack.c.l.b16 %v5902
    %v6581 = vunpack.c.h.b16 %v5902
    %v6582 = vunpack.c.l.b16 %v5903
    %v6583 = vunpack.c.h.b16 %v5903
    %v6584 = vunpack.c.l.b16 %v5904
    %v6585 = vunpack.c.h.b16 %v5904
    %v6586 = vunpack.c.l.b16 %v5905
    %v6587 = vunpack.c.l.b16 %v5906
    %v6588 = vunpack.c.h.b16 %v5906
    %v6589 = vunpack.c.l.b16 %v5907
    %v6590 = vunpack.c.h.b16 %v5907
    %v6591 = vunpack.c.l.b16 %v5908
    %v6592 = vunpack.c.h.b16 %v5908
    %v6593 = vunpack.c.l.b16 %v5909
    %v6594 = vunpack.c.l.b16 %v5910
    %v6595 = vunpack.c.h.b16 %v5910
    %v6596 = vunpack.c.l.b16 %v5911
    %v6597 = vunpack.c.h.b16 %v5911
    %v6598 = vunpack.c.l.b16 %v5912
    %v6599 = vunpack.c.h.b16 %v5912
    %v6600 = vunpack.c.l.b16 %v5913
    %v6601 = vunpack.c.l.b16 %v5914
    %v6602 = vunpack.c.h.b16 %v5914
    %v6603 = vunpack.c.l.b16 %v5915
    %v6604 = vunpack.c.h.b16 %v5915
    %v6605 = vunpack.c.l.b16 %v5916
    %v6606 = vunpack.c.h.b16 %v5916
    %v6607 = vunpack.c.l.b16 %v5917
    %v6608 = vunpack.c.l.b16 %v5918
    %v6609 = vunpack.c.h.b16 %v5918
    %v6610 = vunpack.c.l.b16 %v5919
    %v6611 = vunpack.c.h.b16 %v5919
    %v6612 = vunpack.c.l.b16 %v5920
    %v6613 = vunpack.c.h.b16 %v5920
    %v6614 = vunpack.c.l.b16 %v5921
    %v6615 = vunpack.c.l.b16 %v5922
    %v6616 = vunpack.c.h.b16 %v5922
    %v6617 = vunpack.c.l.b16 %v5923
    %v6618 = vunpack.c.h.b16 %v5923
    %v6619 = vunpack.c.l.b16 %v5924
    %v6620 = vunpack.c.h.b16 %v5924
    %v6621 = vunpack.c.l.b16 %v5925
    %v6622 = vunpack.c.l.b16 %v5926
    %v6623 = vunpack.c.h.b16 %v5926
    %v6624 = vunpack.c.l.b16 %v5927
    %v6625 = vunpack.c.h.b16 %v5927
    %v6626 = vunpack.c.l.b16 %v5928
    %v6627 = vunpack.c.h.b16 %v5928
    %v6628 = vunpack.c.l.b16 %v5929
    %v6629 = vunpack.c.l.b16 %v5930
    %v6630 = vunpack.c.h.b16 %v5930
    %v6631 = vunpack.c.l.b16 %v5931
    %v6632 = vunpack.c.h.b16 %v5931
    %v6633 = vunpack.c.l.b16 %v5932
    %v6634 = vunpack.c.h.b16 %v5932
    %v6635 = vunpack.c.l.b16 %v5933
    %v6636 = vunpack.c.l.b16 %v5934
    %v6637 = vunpack.c.h.b16 %v5934
    %v6638 = vunpack.c.l.b16 %v5935
    %v6639 = vunpack.c.h.b16 %v5935
    %v6640 = vunpack.c.l.b16 %v5936
    %v6641 = vunpack.c.h.b16 %v5936
    %v6642 = vunpack.c.l.b16 %v5937
    %v6643 = vunpack.c.l.b16 %v5938
    %v6644 = vunpack.c.h.b16 %v5938
    %v6645 = vunpack.c.l.b16 %v5939
    %v6646 = vunpack.c.h.b16 %v5939
    %v6647 = vunpack.c.l.b16 %v5940
    %v6648 = vunpack.c.h.b16 %v5940
    %v6649 = vunpack.c.l.b16 %v5941
    %v6650 = vunpack.c.l.b16 %v5942
    %v6651 = vunpack.c.h.b16 %v5942
    %v6652 = vunpack.c.l.b16 %v5943
    %v6653 = vunpack.c.h.b16 %v5943
    %v6654 = vunpack.c.l.b16 %v5944
    %v6655 = vunpack.c.h.b16 %v5944
    %v6656 = vunpack.c.l.b16 %v5945
    %v6657 = vunpack.c.l.b16 %v5946
    %v6658 = vunpack.c.h.b16 %v5946
    %v6659 = vunpack.c.l.b16 %v5947
    %v6660 = vunpack.c.h.b16 %v5947
    %v6661 = vunpack.c.l.b16 %v5948
    %v6662 = vunpack.c.h.b16 %v5948
    %v6663 = vunpack.c.l.b16 %v5949
    %v6664 = vunpack.c.l.b16 %v5950
    %v6665 = vunpack.c.h.b16 %v5950
    %v6666 = vunpack.c.l.b16 %v5951
    %v6667 = vunpack.c.h.b16 %v5951
    %v6668 = vunpack.c.l.b16 %v5952
    %v6669 = vunpack.c.h.b16 %v5952
    %v6670 = vunpack.c.l.b16 %v5953
    %v6671 = vunpack.c.l.b16 %v5954
    %v6672 = vunpack.c.h.b16 %v5954
    %v6673 = vunpack.c.l.b16 %v5955
    %v6674 = vunpack.c.h.b16 %v5955
    %v6675 = vunpack.c.l.b16 %v5956
    %v6676 = vunpack.c.h.b16 %v5956
    %v6677 = vunpack.c.l.b16 %v5957
    %v6678 = vunpack.c.l.b16 %v5958
    %v6679 = vunpack.c.h.b16 %v5958
    %v6680 = vunpack.c.l.b16 %v5959
    %v6681 = vunpack.c.h.b16 %v5959
    %v6682 = vunpack.c.l.b16 %v5960
    %v6683 = vunpack.c.h.b16 %v5960
    %v6684 = vunpack.c.l.b16 %v5961
    %v6685 = vunpack.c.l.b16 %v5962
    %v6686 = vunpack.c.h.b16 %v5962
    %v6687 = vunpack.c.l.b16 %v5963
    %v6688 = vunpack.c.h.b16 %v5963
    %v6689 = vunpack.c.l.b16 %v5964
    %v6690 = vunpack.c.h.b16 %v5964
    %v6691 = vunpack.c.l.b16 %v5965
    %v6692 = vunpack.c.l.b16 %v5966
    %v6693 = vunpack.c.h.b16 %v5966
    %v6694 = vunpack.c.l.b16 %v5967
    %v6695 = vunpack.c.h.b16 %v5967
    %v6696 = vunpack.c.l.b16 %v5968
    %v6697 = vunpack.c.h.b16 %v5968
    %v6698 = vunpack.c.l.b16 %v5969
    %v6699 = vunpack.c.l.b16 %v5970
    %v6700 = vunpack.c.h.b16 %v5970
    %v6701 = vunpack.c.l.b16 %v5971
    %v6702 = vunpack.c.h.b16 %v5971
    %v6703 = vunpack.c.l.b16 %v5972
    %v6704 = vunpack.c.h.b16 %v5972
    %v6705 = vunpack.c.l.b16 %v5973
    %v6706 = vunpack.c.l.b16 %v5974
    %v6707 = vunpack.c.h.b16 %v5974
    %v6708 = vunpack.c.l.b16 %v5975
    %v6709 = vunpack.c.h.b16 %v5975
    %v6710 = vunpack.c.l.b16 %v5976
    %v6711 = vunpack.c.h.b16 %v5976
    %v6712 = vunpack.c.l.b16 %v5977
    %v6713 = vunpack.c.l.b16 %v5978
    %v6714 = vunpack.c.h.b16 %v5978
    %v6715 = vunpack.c.l.b16 %v5979
    %v6716 = vunpack.c.h.b16 %v5979
    %v6717 = vunpack.c.l.b16 %v5980
    %v6718 = vunpack.c.h.b16 %v5980
    %v6719 = vunpack.c.l.b16 %v5981
    %v6720 = vunpack.c.l.b16 %v5982
    %v6721 = vunpack.c.h.b16 %v5982
    %v6722 = vunpack.c.l.b16 %v5983
    %v6723 = vunpack.c.h.b16 %v5983
    %v6724 = vunpack.c.l.b16 %v5984
    %v6725 = vunpack.c.h.b16 %v5984
    %v6726 = vunpack.c.l.b16 %v5985
    %v6727 = vpack.c.b16 %v6286, %v6279
    %v6728 = vpack.c.b16 %v6287, %v6280
    %v6729 = vpack.c.b16 %v6288, %v6281
    %v6730 = vpack.c.b16 %v6289, %v6282
    %v6731 = vpack.c.b16 %v6290, %v6283
    %v6732 = vpack.c.b16 %v6291, %v6284
    %v6733 = vpack.c.b16 %v6292, %v6285
    %v6734 = vpack.c.b16 %v6300, %v6293
    %v6735 = vpack.c.b16 %v6301, %v6294
    %v6736 = vpack.c.b16 %v6302, %v6295
    %v6737 = vpack.c.b16 %v6303, %v6296
    %v6738 = vpack.c.b16 %v6304, %v6297
    %v6739 = vpack.c.b16 %v6305, %v6298
    %v6740 = vpack.c.b16 %v6306, %v6299
    %v6741 = vpack.c.b16 %v6314, %v6307
    %v6742 = vpack.c.b16 %v6315, %v6308
    %v6743 = vpack.c.b16 %v6316, %v6309
    %v6744 = vpack.c.b16 %v6317, %v6310
    %v6745 = vpack.c.b16 %v6318, %v6311
    %v6746 = vpack.c.b16 %v6319, %v6312
    %v6747 = vpack.c.b16 %v6320, %v6313
    %v6748 = vpack.c.b16 %v6328, %v6321
    %v6749 = vpack.c.b16 %v6329, %v6322
    %v6750 = vpack.c.b16 %v6330, %v6323
    %v6751 = vpack.c.b16 %v6331, %v6324
    %v6752 = vpack.c.b16 %v6332, %v6325
    %v6753 = vpack.c.b16 %v6333, %v6326
    %v6754 = vpack.c.b16 %v6334, %v6327
    %v6755 = vpack.c.b16 %v6342, %v6335
    %v6756 = vpack.c.b16 %v6343, %v6336
    %v6757 = vpack.c.b16 %v6344, %v6337
    %v6758 = vpack.c.b16 %v6345, %v6338
    %v6759 = vpack.c.b16 %v6346, %v6339
    %v6760 = vpack.c.b16 %v6347, %v6340
    %v6761 = vpack.c.b16 %v6348, %v6341
    %v6762 = vpack.c.b16 %v6356, %v6349
    %v6763 = vpack.c.b16 %v6357, %v6350
    %v6764 = vpack.c.b16 %v6358, %v6351
    %v6765 = vpack.c.b16 %v6359, %v6352
    %v6766 = vpack.c.b16 %v6360, %v6353
    %v6767 = vpack.c.b16 %v6361, %v6354
    %v6768 = vpack.c.b16 %v6362, %v6355
    %v6769 = vpack.c.b16 %v6370, %v6363
    %v6770 = vpack.c.b16 %v6371, %v6364
    %v6771 = vpack.c.b16 %v6372, %v6365
    %v6772 = vpack.c.b16 %v6373, %v6366
    %v6773 = vpack.c.b16 %v6374, %v6367
    %v6774 = vpack.c.b16 %v6375, %v6368
    %v6775 = vpack.c.b16 %v6376, %v6369
    %v6776 = vpack.c.b16 %v6384, %v6377
    %v6777 = vpack.c.b16 %v6385, %v6378
    %v6778 = vpack.c.b16 %v6386, %v6379
    %v6779 = vpack.c.b16 %v6387, %v6380
    %v6780 = vpack.c.b16 %v6388, %v6381
    %v6781 = vpack.c.b16 %v6389, %v6382
    %v6782 = vpack.c.b16 %v6390, %v6383
    %v6783 = vpack.c.b16 %v6398, %v6391
    %v6784 = vpack.c.b16 %v6399, %v6392
    %v6785 = vpack.c.b16 %v6400, %v6393
    %v6786 = vpack.c.b16 %v6401, %v6394
    %v6787 = vpack.c.b16 %v6402, %v6395
    %v6788 = vpack.c.b16 %v6403, %v6396
    %v6789 = vpack.c.b16 %v6404, %v6397
    %v6790 = vpack.c.b16 %v6412, %v6405
    %v6791 = vpack.c.b16 %v6413, %v6406
    %v6792 = vpack.c.b16 %v6414, %v6407
    %v6793 = vpack.c.b16 %v6415, %v6408
    %v6794 = vpack.c.b16 %v6416, %v6409
    %v6795 = vpack.c.b16 %v6417, %v6410
    %v6796 = vpack.c.b16 %v6418, %v6411
    %v6797 = vpack.c.b16 %v6426, %v6419
    %v6798 = vpack.c.b16 %v6427, %v6420
    %v6799 = vpack.c.b16 %v6428, %v6421
    %v6800 = vpack.c.b16 %v6429, %v6422
    %v6801 = vpack.c.b16 %v6430, %v6423
    %v6802 = vpack.c.b16 %v6431, %v6424
    %v6803 = vpack.c.b16 %v6432, %v6425
    %v6804 = vpack.c.b16 %v6440, %v6433
    %v6805 = vpack.c.b16 %v6441, %v6434
    %v6806 = vpack.c.b16 %v6442, %v6435
    %v6807 = vpack.c.b16 %v6443, %v6436
    %v6808 = vpack.c.b16 %v6444, %v6437
    %v6809 = vpack.c.b16 %v6445, %v6438
    %v6810 = vpack.c.b16 %v6446, %v6439
    %v6811 = vpack.c.b16 %v6454, %v6447
    %v6812 = vpack.c.b16 %v6455, %v6448
    %v6813 = vpack.c.b16 %v6456, %v6449
    %v6814 = vpack.c.b16 %v6457, %v6450
    %v6815 = vpack.c.b16 %v6458, %v6451
    %v6816 = vpack.c.b16 %v6459, %v6452
    %v6817 = vpack.c.b16 %v6460, %v6453
    %v6818 = vpack.c.b16 %v6468, %v6461
    %v6819 = vpack.c.b16 %v6469, %v6462
    %v6820 = vpack.c.b16 %v6470, %v6463
    %v6821 = vpack.c.b16 %v6471, %v6464
    %v6822 = vpack.c.b16 %v6472, %v6465
    %v6823 = vpack.c.b16 %v6473, %v6466
    %v6824 = vpack.c.b16 %v6474, %v6467
    %v6825 = vpack.c.b16 %v6482, %v6475
    %v6826 = vpack.c.b16 %v6483, %v6476
    %v6827 = vpack.c.b16 %v6484, %v6477
    %v6828 = vpack.c.b16 %v6485, %v6478
    %v6829 = vpack.c.b16 %v6486, %v6479
    %v6830 = vpack.c.b16 %v6487, %v6480
    %v6831 = vpack.c.b16 %v6488, %v6481
    %v6832 = vpack.c.b16 %v6496, %v6489
    %v6833 = vpack.c.b16 %v6497, %v6490
    %v6834 = vpack.c.b16 %v6498, %v6491
    %v6835 = vpack.c.b16 %v6499, %v6492
    %v6836 = vpack.c.b16 %v6500, %v6493
    %v6837 = vpack.c.b16 %v6501, %v6494
    %v6838 = vpack.c.b16 %v6502, %v6495
    %v6839 = vpack.c.b16 %v6510, %v6503
    %v6840 = vpack.c.b16 %v6511, %v6504
    %v6841 = vpack.c.b16 %v6512, %v6505
    %v6842 = vpack.c.b16 %v6513, %v6506
    %v6843 = vpack.c.b16 %v6514, %v6507
    %v6844 = vpack.c.b16 %v6515, %v6508
    %v6845 = vpack.c.b16 %v6516, %v6509
    %v6846 = vpack.c.b16 %v6524, %v6517
    %v6847 = vpack.c.b16 %v6525, %v6518
    %v6848 = vpack.c.b16 %v6526, %v6519
    %v6849 = vpack.c.b16 %v6527, %v6520
    %v6850 = vpack.c.b16 %v6528, %v6521
    %v6851 = vpack.c.b16 %v6529, %v6522
    %v6852 = vpack.c.b16 %v6530, %v6523
    %v6853 = vpack.c.b16 %v6538, %v6531
    %v6854 = vpack.c.b16 %v6539, %v6532
    %v6855 = vpack.c.b16 %v6540, %v6533
    %v6856 = vpack.c.b16 %v6541, %v6534
    %v6857 = vpack.c.b16 %v6542, %v6535
    %v6858 = vpack.c.b16 %v6543, %v6536
    %v6859 = vpack.c.b16 %v6544, %v6537
    %v6860 = vpack.c.b16 %v6552, %v6545
    %v6861 = vpack.c.b16 %v6553, %v6546
    %v6862 = vpack.c.b16 %v6554, %v6547
    %v6863 = vpack.c.b16 %v6555, %v6548
    %v6864 = vpack.c.b16 %v6556, %v6549
    %v6865 = vpack.c.b16 %v6557, %v6550
    %v6866 = vpack.c.b16 %v6558, %v6551
    %v6867 = vpack.c.b16 %v6566, %v6559
    %v6868 = vpack.c.b16 %v6567, %v6560
    %v6869 = vpack.c.b16 %v6568, %v6561
    %v6870 = vpack.c.b16 %v6569, %v6562
    %v6871 = vpack.c.b16 %v6570, %v6563
    %v6872 = vpack.c.b16 %v6571, %v6564
    %v6873 = vpack.c.b16 %v6572, %v6565
    %v6874 = vpack.c.b16 %v6580, %v6573
    %v6875 = vpack.c.b16 %v6581, %v6574
    %v6876 = vpack.c.b16 %v6582, %v6575
    %v6877 = vpack.c.b16 %v6583, %v6576
    %v6878 = vpack.c.b16 %v6584, %v6577
    %v6879 = vpack.c.b16 %v6585, %v6578
    %v6880 = vpack.c.b16 %v6586, %v6579
    %v6881 = vpack.c.b16 %v6594, %v6587
    %v6882 = vpack.c.b16 %v6595, %v6588
    %v6883 = vpack.c.b16 %v6596, %v6589
    %v6884 = vpack.c.b16 %v6597, %v6590
    %v6885 = vpack.c.b16 %v6598, %v6591
    %v6886 = vpack.c.b16 %v6599, %v6592
    %v6887 = vpack.c.b16 %v6600, %v6593
    %v6888 = vpack.c.b16 %v6608, %v6601
    %v6889 = vpack.c.b16 %v6609, %v6602
    %v6890 = vpack.c.b16 %v6610, %v6603
    %v6891 = vpack.c.b16 %v6611, %v6604
    %v6892 = vpack.c.b16 %v6612, %v6605
    %v6893 = vpack.c.b16 %v6613, %v6606
    %v6894 = vpack.c.b16 %v6614, %v6607
    %v6895 = vpack.c.b16 %v6622, %v6615
    %v6896 = vpack.c.b16 %v6623, %v6616
    %v6897 = vpack.c.b16 %v6624, %v6617
    %v6898 = vpack.c.b16 %v6625, %v6618
    %v6899 = vpack.c.b16 %v6626, %v6619
    %v6900 = vpack.c.b16 %v6627, %v6620
    %v6901 = vpack.c.b16 %v6628, %v6621
    %v6902 = vpack.c.b16 %v6636, %v6629
    %v6903 = vpack.c.b16 %v6637, %v6630
    %v6904 = vpack.c.b16 %v6638, %v6631
    %v6905 = vpack.c.b16 %v6639, %v6632
    %v6906 = vpack.c.b16 %v6640, %v6633
    %v6907 = vpack.c.b16 %v6641, %v6634
    %v6908 = vpack.c.b16 %v6642, %v6635
    %v6909 = vpack.c.b16 %v6650, %v6643
    %v6910 = vpack.c.b16 %v6651, %v6644
    %v6911 = vpack.c.b16 %v6652, %v6645
    %v6912 = vpack.c.b16 %v6653, %v6646
    %v6913 = vpack.c.b16 %v6654, %v6647
    %v6914 = vpack.c.b16 %v6655, %v6648
    %v6915 = vpack.c.b16 %v6656, %v6649
    %v6916 = vpack.c.b16 %v6664, %v6657
    %v6917 = vpack.c.b16 %v6665, %v6658
    %v6918 = vpack.c.b16 %v6666, %v6659
    %v6919 = vpack.c.b16 %v6667, %v6660
    %v6920 = vpack.c.b16 %v6668, %v6661
    %v6921 = vpack.c.b16 %v6669, %v6662
    %v6922 = vpack.c.b16 %v6670, %v6663
    %v6923 = vpack.c.b16 %v6678, %v6671
    %v6924 = vpack.c.b16 %v6679, %v6672
    %v6925 = vpack.c.b16 %v6680, %v6673
    %v6926 = vpack.c.b16 %v6681, %v6674
    %v6927 = vpack.c.b16 %v6682, %v6675
    %v6928 = vpack.c.b16 %v6683, %v6676
    %v6929 = vpack.c.b16 %v6684, %v6677
    %v6930 = vpack.c.b16 %v6692, %v6685
    %v6931 = vpack.c.b16 %v6693, %v6686
    %v6932 = vpack.c.b16 %v6694, %v6687
    %v6933 = vpack.c.b16 %v6695, %v6688
    %v6934 = vpack.c.b16 %v6696, %v6689
    %v6935 = vpack.c.b16 %v6697, %v6690
    %v6936 = vpack.c.b16 %v6698, %v6691
    %v6937 = vpack.c.b16 %v6706, %v6699
    %v6938 = vpack.c.b16 %v6707, %v6700
    %v6939 = vpack.c.b16 %v6708, %v6701
    %v6940 = vpack.c.b16 %v6709, %v6702
    %v6941 = vpack.c.b16 %v6710, %v6703
    %v6942 = vpack.c.b16 %v6711, %v6704
    %v6943 = vpack.c.b16 %v6712, %v6705
    %v6944 = vpack.c.b16 %v6720, %v6713
    %v6945 = vpack.c.b16 %v6721, %v6714
    %v6946 = vpack.c.b16 %v6722, %v6715
    %v6947 = vpack.c.b16 %v6723, %v6716
    %v6948 = vpack.c.b16 %v6724, %v6717
    %v6949 = vpack.c.b16 %v6725, %v6718
    %v6950 = vpack.c.b16 %v6726, %v6719
    %7175 = vmatprep.subr.bf16.mxu0 %v6728
    %7176 = vmatpush1.bf16.msra.mxu0 %v6727
    %7177 = vmatprep.subr.bf16.mxu0 %v6735
    %7178 = vmatpush1.bf16.msra.mxu0 %v6734
    %7179 = vmatprep.subr.bf16.mxu0 %v6742
    %7180 = vmatpush1.bf16.msra.mxu0 %v6741
    %7181 = vmatprep.subr.bf16.mxu0 %v6749
    %7182 = vmatpush1.bf16.msra.mxu0 %v6748
    %7183 = vmatprep.subr.bf16.mxu0 %v6756
    %7184 = vmatpush1.bf16.msra.mxu0 %v6755
    %7185 = vmatprep.subr.bf16.mxu0 %v6763
    %7186 = vmatpush1.bf16.msra.mxu0 %v6762
    %7187 = vmatprep.subr.bf16.mxu0 %v6770
    %7188 = vmatpush1.bf16.msra.mxu0 %v6769
    %7189 = vmatprep.subr.bf16.mxu0 %v6777
    %7190 = vmatpush1.bf16.msra.mxu0 %v6776
    %7191 = vmatprep.subr.bf16.mxu0 %v6784
    %7192 = vmatpush1.bf16.msra.mxu0 %v6783
    %7193 = vmatprep.subr.bf16.mxu0 %v6791
    %7194 = vmatpush1.bf16.msra.mxu0 %v6790
    %7195 = vmatprep.subr.bf16.mxu0 %v6798
    %7196 = vmatpush1.bf16.msra.mxu0 %v6797
    %7197 = vmatprep.subr.bf16.mxu0 %v6805
    %7198 = vmatpush1.bf16.msra.mxu0 %v6804
    %7199 = vmatprep.subr.bf16.mxu0 %v6812
    %7200 = vmatpush1.bf16.msra.mxu0 %v6811
    %7201 = vmatprep.subr.bf16.mxu0 %v6819
    %7202 = vmatpush1.bf16.msra.mxu0 %v6818
    %7203 = vmatprep.subr.bf16.mxu0 %v6826
    %7204 = vmatpush1.bf16.msra.mxu0 %v6825
    %7205 = vmatprep.subr.bf16.mxu0 %v6833
    %7206 = vmatpush1.bf16.msra.mxu0 %v6832
    %7207 = vmatprep.mubr.bf16.mxu0 %v5727
    %7208 = vmatmul.mubr.bf16.gmra.mrb[0].mxu0 %v5726
    %v7209 = vpop.f32.mrb[0].mxu0
    %v7210 = vadd.f32 %v5991, %v7209
    %v7211 = vpop.f32.mrb[0].mxu0
    %v7212 = vadd.f32 %v5995, %v7211
    %v7213 = vpop.f32.mrb[0].mxu0
    %v7214 = vpop.f32.mrb[0].mxu0
    %7215 = vdwg.mxu0
    %7216 = vmatprep.subr.bf16.mxu0 %v6840
    %7217 = vmatpush1.bf16.msra.mxu0 %v6839
    %7218 = vmatprep.subr.bf16.mxu0 %v6847
    %7219 = vmatpush1.bf16.msra.mxu0 %v6846
    %7220 = vmatprep.subr.bf16.mxu0 %v6854
    %7221 = vmatpush1.bf16.msra.mxu0 %v6853
    %7222 = vmatprep.subr.bf16.mxu0 %v6861
    %7223 = vmatpush1.bf16.msra.mxu0 %v6860
    %7224 = vmatprep.subr.bf16.mxu0 %v6868
    %7225 = vmatpush1.bf16.msra.mxu0 %v6867
    %7226 = vmatprep.subr.bf16.mxu0 %v6875
    %7227 = vmatpush1.bf16.msra.mxu0 %v6874
    %7228 = vmatprep.subr.bf16.mxu0 %v6882
    %7229 = vmatpush1.bf16.msra.mxu0 %v6881
    %7230 = vmatprep.subr.bf16.mxu0 %v6889
    %7231 = vmatpush1.bf16.msra.mxu0 %v6888
    %7232 = vmatprep.subr.bf16.mxu0 %v6896
    %7233 = vmatpush1.bf16.msra.mxu0 %v6895
    %7234 = vmatprep.subr.bf16.mxu0 %v6903
    %7235 = vmatpush1.bf16.msra.mxu0 %v6902
    %7236 = vmatprep.subr.bf16.mxu0 %v6910
    %7237 = vmatpush1.bf16.msra.mxu0 %v6909
    %7238 = vmatprep.subr.bf16.mxu0 %v6917
    %7239 = vmatpush1.bf16.msra.mxu0 %v6916
    %7240 = vmatprep.subr.bf16.mxu0 %v6924
    %7241 = vmatpush1.bf16.msra.mxu0 %v6923
    %7242 = vmatprep.subr.bf16.mxu0 %v6931
    %7243 = vmatpush1.bf16.msra.mxu0 %v6930
    %7244 = vmatprep.subr.bf16.mxu0 %v6938
    %7245 = vmatpush1.bf16.msra.mxu0 %v6937
    %7246 = vmatprep.subr.bf16.mxu0 %v6945
    %7247 = vmatpush1.bf16.msra.mxu0 %v6944
    %7248 = vmatprep.mubr.bf16.mxu0 %v5729
    %7249 = vmatmul.mubr.bf16.gmra.mrb[0].mxu0 %v5728
    %v7250 = vpop.f32.mrb[0].mxu0
    %v7251 = vadd.f32 %v7210, %v7250
    %v7252 = vpop.f32.mrb[0].mxu0
    %v7253 = vadd.f32 %v7212, %v7252
    %v7254 = vpop.f32.mrb[0].mxu0
    %v7255 = vpop.f32.mrb[0].mxu0
    %7256 = vdwg.mxu0
    %7257 = vmatprep.subr.bf16.mxu0 %v6730
    %7258 = vmatpush1.bf16.msra.mxu0 %v6729
    %7259 = vmatprep.subr.bf16.mxu0 %v6737
    %7260 = vmatpush1.bf16.msra.mxu0 %v6736
    %7261 = vmatprep.subr.bf16.mxu0 %v6744
    %7262 = vmatpush1.bf16.msra.mxu0 %v6743
    %7263 = vmatprep.subr.bf16.mxu0 %v6751
    %7264 = vmatpush1.bf16.msra.mxu0 %v6750
    %7265 = vmatprep.subr.bf16.mxu0 %v6758
    %7266 = vmatpush1.bf16.msra.mxu0 %v6757
    %7267 = vmatprep.subr.bf16.mxu0 %v6765
    %7268 = vmatpush1.bf16.msra.mxu0 %v6764
    %7269 = vmatprep.subr.bf16.mxu0 %v6772
    %7270 = vmatpush1.bf16.msra.mxu0 %v6771
    %7271 = vmatprep.subr.bf16.mxu0 %v6779
    %7272 = vmatpush1.bf16.msra.mxu0 %v6778
    %7273 = vmatprep.subr.bf16.mxu0 %v6786
    %7274 = vmatpush1.bf16.msra.mxu0 %v6785
    %7275 = vmatprep.subr.bf16.mxu0 %v6793
    %7276 = vmatpush1.bf16.msra.mxu0 %v6792
    %7277 = vmatprep.subr.bf16.mxu0 %v6800
    %7278 = vmatpush1.bf16.msra.mxu0 %v6799
    %7279 = vmatprep.subr.bf16.mxu0 %v6807
    %7280 = vmatpush1.bf16.msra.mxu0 %v6806
    %7281 = vmatprep.subr.bf16.mxu0 %v6814
    %7282 = vmatpush1.bf16.msra.mxu0 %v6813
    %7283 = vmatprep.subr.bf16.mxu0 %v6821
    %7284 = vmatpush1.bf16.msra.mxu0 %v6820
    %7285 = vmatprep.subr.bf16.mxu0 %v6828
    %7286 = vmatpush1.bf16.msra.mxu0 %v6827
    %7287 = vmatprep.subr.bf16.mxu0 %v6835
    %7288 = vmatpush1.bf16.msra.mxu0 %v6834
    %7289 = vmatprep.mubr.bf16.mxu0 %v5727
    %7290 = vmatmul.mubr.bf16.gmra.mrb[0].mxu0 %v5726
    %v7291 = vpop.f32.mrb[0].mxu0
    %v7292 = vadd.f32 %v5999, %v7291
    %v7293 = vpop.f32.mrb[0].mxu0
    %v7294 = vadd.f32 %v6003, %v7293
    %v7295 = vpop.f32.mrb[0].mxu0
    %v7296 = vpop.f32.mrb[0].mxu0
    %7297 = vdwg.mxu0
    %7298 = vmatprep.subr.bf16.mxu0 %v6842
    %7299 = vmatpush1.bf16.msra.mxu0 %v6841
    %7300 = vmatprep.subr.bf16.mxu0 %v6849
    %7301 = vmatpush1.bf16.msra.mxu0 %v6848
    %7302 = vmatprep.subr.bf16.mxu0 %v6856
    %7303 = vmatpush1.bf16.msra.mxu0 %v6855
    %7304 = vmatprep.subr.bf16.mxu0 %v6863
    %7305 = vmatpush1.bf16.msra.mxu0 %v6862
    %7306 = vmatprep.subr.bf16.mxu0 %v6870
    %7307 = vmatpush1.bf16.msra.mxu0 %v6869
    %7308 = vmatprep.subr.bf16.mxu0 %v6877
    %7309 = vmatpush1.bf16.msra.mxu0 %v6876
    %7310 = vmatprep.subr.bf16.mxu0 %v6884
    %7311 = vmatpush1.bf16.msra.mxu0 %v6883
    %7312 = vmatprep.subr.bf16.mxu0 %v6891
    %7313 = vmatpush1.bf16.msra.mxu0 %v6890
    %7314 = vmatprep.subr.bf16.mxu0 %v6898
    %7315 = vmatpush1.bf16.msra.mxu0 %v6897
    %7316 = vmatprep.subr.bf16.mxu0 %v6905
    %7317 = vmatpush1.bf16.msra.mxu0 %v6904
    %7318 = vmatprep.subr.bf16.mxu0 %v6912
    %7319 = vmatpush1.bf16.msra.mxu0 %v6911
    %7320 = vmatprep.subr.bf16.mxu0 %v6919
    %7321 = vmatpush1.bf16.msra.mxu0 %v6918
    %7322 = vmatprep.subr.bf16.mxu0 %v6926
    %7323 = vmatpush1.bf16.msra.mxu0 %v6925
    %7324 = vmatprep.subr.bf16.mxu0 %v6933
    %7325 = vmatpush1.bf16.msra.mxu0 %v6932
    %7326 = vmatprep.subr.bf16.mxu0 %v6940
    %7327 = vmatpush1.bf16.msra.mxu0 %v6939
    %7328 = vmatprep.subr.bf16.mxu0 %v6947
    %7329 = vmatpush1.bf16.msra.mxu0 %v6946
    %7330 = vmatprep.mubr.bf16.mxu0 %v5729
    %7331 = vmatmul.mubr.bf16.gmra.mrb[0].mxu0 %v5728
    %v7332 = vpop.f32.mrb[0].mxu0
    %v7333 = vadd.f32 %v7292, %v7332
    %v7334 = vpop.f32.mrb[0].mxu0
    %v7335 = vadd.f32 %v7294, %v7334
    %v7336 = vpop.f32.mrb[0].mxu0
    %v7337 = vpop.f32.mrb[0].mxu0
    %7338 = vdwg.mxu0
    %7339 = vmatprep.subr.bf16.mxu0 %v6732
    %7340 = vmatpush1.bf16.msra.mxu0 %v6731
    %7341 = vmatprep.subr.bf16.mxu0 %v6739
    %7342 = vmatpush1.bf16.msra.mxu0 %v6738
    %7343 = vmatprep.subr.bf16.mxu0 %v6746
    %7344 = vmatpush1.bf16.msra.mxu0 %v6745
    %7345 = vmatprep.subr.bf16.mxu0 %v6753
    %7346 = vmatpush1.bf16.msra.mxu0 %v6752
    %7347 = vmatprep.subr.bf16.mxu0 %v6760
    %7348 = vmatpush1.bf16.msra.mxu0 %v6759
    %7349 = vmatprep.subr.bf16.mxu0 %v6767
    %7350 = vmatpush1.bf16.msra.mxu0 %v6766
    %7351 = vmatprep.subr.bf16.mxu0 %v6774
    %7352 = vmatpush1.bf16.msra.mxu0 %v6773
    %7353 = vmatprep.subr.bf16.mxu0 %v6781
    %7354 = vmatpush1.bf16.msra.mxu0 %v6780
    %7355 = vmatprep.subr.bf16.mxu0 %v6788
    %7356 = vmatpush1.bf16.msra.mxu0 %v6787
    %7357 = vmatprep.subr.bf16.mxu0 %v6795
    %7358 = vmatpush1.bf16.msra.mxu0 %v6794
    %7359 = vmatprep.subr.bf16.mxu0 %v6802
    %7360 = vmatpush1.bf16.msra.mxu0 %v6801
    %7361 = vmatprep.subr.bf16.mxu0 %v6809
    %7362 = vmatpush1.bf16.msra.mxu0 %v6808
    %7363 = vmatprep.subr.bf16.mxu0 %v6816
    %7364 = vmatpush1.bf16.msra.mxu0 %v6815
    %7365 = vmatprep.subr.bf16.mxu0 %v6823
    %7366 = vmatpush1.bf16.msra.mxu0 %v6822
    %7367 = vmatprep.subr.bf16.mxu0 %v6830
    %7368 = vmatpush1.bf16.msra.mxu0 %v6829
    %7369 = vmatprep.subr.bf16.mxu0 %v6837
    %7370 = vmatpush1.bf16.msra.mxu0 %v6836
    %7371 = vmatprep.mubr.bf16.mxu0 %v5727
    %7372 = vmatmul.mubr.bf16.gmra.mrb[0].mxu0 %v5726
    %v7373 = vpop.f32.mrb[0].mxu0
    %v7374 = vadd.f32 %v6007, %v7373
    %v7375 = vpop.f32.mrb[0].mxu0
    %v7376 = vadd.f32 %v6011, %v7375
    %v7377 = vpop.f32.mrb[0].mxu0
    %v7378 = vpop.f32.mrb[0].mxu0
    %7379 = vdwg.mxu0
    %7380 = vmatprep.subr.bf16.mxu0 %v6844
    %7381 = vmatpush1.bf16.msra.mxu0 %v6843
    %7382 = vmatprep.subr.bf16.mxu0 %v6851
    %7383 = vmatpush1.bf16.msra.mxu0 %v6850
    %7384 = vmatprep.subr.bf16.mxu0 %v6858
    %7385 = vmatpush1.bf16.msra.mxu0 %v6857
    %7386 = vmatprep.subr.bf16.mxu0 %v6865
    %7387 = vmatpush1.bf16.msra.mxu0 %v6864
    %7388 = vmatprep.subr.bf16.mxu0 %v6872
    %7389 = vmatpush1.bf16.msra.mxu0 %v6871
    %7390 = vmatprep.subr.bf16.mxu0 %v6879
    %7391 = vmatpush1.bf16.msra.mxu0 %v6878
    %7392 = vmatprep.subr.bf16.mxu0 %v6886
    %7393 = vmatpush1.bf16.msra.mxu0 %v6885
    %7394 = vmatprep.subr.bf16.mxu0 %v6893
    %7395 = vmatpush1.bf16.msra.mxu0 %v6892
    %7396 = vmatprep.subr.bf16.mxu0 %v6900
    %7397 = vmatpush1.bf16.msra.mxu0 %v6899
    %7398 = vmatprep.subr.bf16.mxu0 %v6907
    %7399 = vmatpush1.bf16.msra.mxu0 %v6906
    %7400 = vmatprep.subr.bf16.mxu0 %v6914
    %7401 = vmatpush1.bf16.msra.mxu0 %v6913
    %7402 = vmatprep.subr.bf16.mxu0 %v6921
    %7403 = vmatpush1.bf16.msra.mxu0 %v6920
    %7404 = vmatprep.subr.bf16.mxu0 %v6928
    %7405 = vmatpush1.bf16.msra.mxu0 %v6927
    %7406 = vmatprep.subr.bf16.mxu0 %v6935
    %7407 = vmatpush1.bf16.msra.mxu0 %v6934
    %7408 = vmatprep.subr.bf16.mxu0 %v6942
    %7409 = vmatpush1.bf16.msra.mxu0 %v6941
    %7410 = vmatprep.subr.bf16.mxu0 %v6949
    %7411 = vmatpush1.bf16.msra.mxu0 %v6948
    %7412 = vmatprep.mubr.bf16.mxu0 %v5729
    %7413 = vmatmul.mubr.bf16.gmra.mrb[0].mxu0 %v5728
    %v7414 = vpop.f32.mrb[0].mxu0
    %v7415 = vadd.f32 %v7374, %v7414
    %v7416 = vpop.f32.mrb[0].mxu0
    %v7417 = vadd.f32 %v7376, %v7416
    %v7418 = vpop.f32.mrb[0].mxu0
    %v7419 = vpop.f32.mrb[0].mxu0
    %7420 = vdwg.mxu0
    %7421 = vmatprep.subr.bf16.mxu0 0
    %7422 = vmatpush1.bf16.msra.mxu0 %v6733
    %7423 = vmatprep.subr.bf16.mxu0 0
    %7424 = vmatpush1.bf16.msra.mxu0 %v6740
    %7425 = vmatprep.subr.bf16.mxu0 0
    %7426 = vmatpush1.bf16.msra.mxu0 %v6747
    %7427 = vmatprep.subr.bf16.mxu0 0
    %7428 = vmatpush1.bf16.msra.mxu0 %v6754
    %7429 = vmatprep.subr.bf16.mxu0 0
    %7430 = vmatpush1.bf16.msra.mxu0 %v6761
    %7431 = vmatprep.subr.bf16.mxu0 0
    %7432 = vmatpush1.bf16.msra.mxu0 %v6768
    %7433 = vmatprep.subr.bf16.mxu0 0
    %7434 = vmatpush1.bf16.msra.mxu0 %v6775
    %7435 = vmatprep.subr.bf16.mxu0 0
    %7436 = vmatpush1.bf16.msra.mxu0 %v6782
    %7437 = vmatprep.subr.bf16.mxu0 0
    %7438 = vmatpush1.bf16.msra.mxu0 %v6789
    %7439 = vmatprep.subr.bf16.mxu0 0
    %7440 = vmatpush1.bf16.msra.mxu0 %v6796
    %7441 = vmatprep.subr.bf16.mxu0 0
    %7442 = vmatpush1.bf16.msra.mxu0 %v6803
    %7443 = vmatprep.subr.bf16.mxu0 0
    %7444 = vmatpush1.bf16.msra.mxu0 %v6810
    %7445 = vmatprep.subr.bf16.mxu0 0
    %7446 = vmatpush1.bf16.msra.mxu0 %v6817
    %7447 = vmatprep.subr.bf16.mxu0 0
    %7448 = vmatpush1.bf16.msra.mxu0 %v6824
    %7449 = vmatprep.subr.bf16.mxu0 0
    %7450 = vmatpush1.bf16.msra.mxu0 %v6831
    %7451 = vmatprep.subr.bf16.mxu0 0
    %7452 = vmatpush1.bf16.msra.mxu0 %v6838
    %7453 = vmatprep.mubr.bf16.mxu0 %v5727
    %7454 = vmatmul.mubr.bf16.gmra.mrb[0].mxu0 %v5726
    %v7455 = vpop.f32.mrb[0].mxu0
    %v7456 = vadd.f32 %v6015, %v7455
    %v7457 = vpop.f32.mrb[0].mxu0
    %v7458 = vpop.f32.mrb[0].mxu0
    %v7459 = vpop.f32.mrb[0].mxu0
    %7460 = vdwg.mxu0
    %7461 = vmatprep.subr.bf16.mxu0 0
    %7462 = vmatpush1.bf16.msra.mxu0 %v6845
    %7463 = vmatprep.subr.bf16.mxu0 0
    %7464 = vmatpush1.bf16.msra.mxu0 %v6852
    %7465 = vmatprep.subr.bf16.mxu0 0
    %7466 = vmatpush1.bf16.msra.mxu0 %v6859
    %7467 = vmatprep.subr.bf16.mxu0 0
    %7468 = vmatpush1.bf16.msra.mxu0 %v6866
    %7469 = vmatprep.subr.bf16.mxu0 0
    %7470 = vmatpush1.bf16.msra.mxu0 %v6873
    %7471 = vmatprep.subr.bf16.mxu0 0
    %7472 = vmatpush1.bf16.msra.mxu0 %v6880
    %7473 = vmatprep.subr.bf16.mxu0 0
    %7474 = vmatpush1.bf16.msra.mxu0 %v6887
    %7475 = vmatprep.subr.bf16.mxu0 0
    %7476 = vmatpush1.bf16.msra.mxu0 %v6894
    %7477 = vmatprep.subr.bf16.mxu0 0
    %7478 = vmatpush1.bf16.msra.mxu0 %v6901
    %7479 = vmatprep.subr.bf16.mxu0 0
    %7480 = vmatpush1.bf16.msra.mxu0 %v6908
    %7481 = vmatprep.subr.bf16.mxu0 0
    %7482 = vmatpush1.bf16.msra.mxu0 %v6915
    %7483 = vmatprep.subr.bf16.mxu0 0
    %7484 = vmatpush1.bf16.msra.mxu0 %v6922
    %7485 = vmatprep.subr.bf16.mxu0 0
    %7486 = vmatpush1.bf16.msra.mxu0 %v6929
    %7487 = vmatprep.subr.bf16.mxu0 0
    %7488 = vmatpush1.bf16.msra.mxu0 %v6936
    %7489 = vmatprep.subr.bf16.mxu0 0
    %7490 = vmatpush1.bf16.msra.mxu0 %v6943
    %7491 = vmatprep.subr.bf16.mxu0 0
    %7492 = vmatpush1.bf16.msra.mxu0 %v6950
    %7493 = vmatprep.mubr.bf16.mxu0 %v5729
    %7494 = vmatmul.mubr.bf16.gmra.mrb[0].mxu0 %v5728
    %v7495 = vpop.f32.mrb[0].mxu0
    %v7496 = vadd.f32 %v7456, %v7495
    %v7497 = vpop.f32.mrb[0].mxu0
    %v7498 = vpop.f32.mrb[0].mxu0
    %v7499 = vpop.f32.mrb[0].mxu0
    %7500 = vdwg.mxu0
    %v7501 = vmax.f32 %v7251, 0.0
    %v7502 = vmax.f32 %v7253, 0.0
    %v7503 = vmax.f32 %v7333, 0.0
    %v7504 = vmax.f32 %v7335, 0.0
    %v7505 = vmax.f32 %v7415, 0.0
    %v7506 = vmax.f32 %v7417, 0.0
    %v7507 = vmax.f32 %v7496, 0.0
    %v7508 = vld [vmem:[%s7] sm:$0xff]
    %v7509 = vld [vmem:[%s7 + $0x8] sm:$0xff]
    %v7510 = vld [vmem:[%s7 + $0x10] sm:$0xff]
    %v7511 = vld [vmem:[%s7 + $0x18] sm:$0xf]
    %v7512 = vld [vmem:[%s7 + $0x1c] sm:$0xff]
    %v7513 = vld [vmem:[%s7 + $0x24] sm:$0xff]
    %v7514 = vld [vmem:[%s7 + $0x2c] sm:$0xff]
    %v7515 = vld [vmem:[%s7 + $0x34] sm:$0xf]
    %v7516 = vld [vmem:[%s7 + $0x38] sm:$0xff]
    %v7517 = vld [vmem:[%s7 + $0x40] sm:$0xff]
    %v7518 = vld [vmem:[%s7 + $0x48] sm:$0xff]
    %v7519 = vld [vmem:[%s7 + $0x50] sm:$0xf]
    %v7520 = vld [vmem:[%s7 + $0x54] sm:$0xff]
    %v7521 = vld [vmem:[%s7 + $0x5c] sm:$0xff]
    %v7522 = vld [vmem:[%s7 + $0x64] sm:$0xff]
    %v7523 = vld [vmem:[%s7 + $0x6c] sm:$0xf]
    %v7524 = vld [vmem:[%s7 + $0x70] sm:$0xff]
    %v7525 = vld [vmem:[%s7 + $0x78] sm:$0xff]
    %v7526 = vld [vmem:[%s7 + $0x80] sm:$0xff]
    %v7527 = vld [vmem:[%s7 + $0x88] sm:$0xf]
    %v7528 = vld [vmem:[%s7 + $0x8c] sm:$0xff]
    %v7529 = vld [vmem:[%s7 + $0x94] sm:$0xff]
    %v7530 = vld [vmem:[%s7 + $0x9c] sm:$0xff]
    %v7531 = vld [vmem:[%s7 + $0xa4] sm:$0xf]
    %v7532 = vld [vmem:[%s7 + $0xa8] sm:$0xff]
    %v7533 = vld [vmem:[%s7 + $0xb0] sm:$0xff]
    %v7534 = vld [vmem:[%s7 + $0xb8] sm:$0xff]
    %v7535 = vld [vmem:[%s7 + $0xc0] sm:$0xf]
    %v7536 = vld [vmem:[%s7 + $0xc4] sm:$0xff]
    %v7537 = vld [vmem:[%s7 + $0xcc] sm:$0xff]
    %v7538 = vld [vmem:[%s7 + $0xd4] sm:$0xff]
    %v7539 = vld [vmem:[%s7 + $0xdc] sm:$0xf]
    %v7540 = vld [vmem:[%s7 + $0xe0] sm:$0xff]
    %v7541 = vld [vmem:[%s7 + $0xe8] sm:$0xff]
    %v7542 = vld [vmem:[%s7 + $0xf0] sm:$0xff]
    %v7543 = vld [vmem:[%s7 + $0xf8] sm:$0xf]
    %v7544 = vld [vmem:[%s7 + $0xfc] sm:$0xff]
    %v7545 = vld [vmem:[%s7 + $0x104] sm:$0xff]
    %v7546 = vld [vmem:[%s7 + $0x10c] sm:$0xff]
    %v7547 = vld [vmem:[%s7 + $0x114] sm:$0xf]
    %v7548 = vld [vmem:[%s7 + $0x118] sm:$0xff]
    %v7549 = vld [vmem:[%s7 + $0x120] sm:$0xff]
    %v7550 = vld [vmem:[%s7 + $0x128] sm:$0xff]
    %v7551 = vld [vmem:[%s7 + $0x130] sm:$0xf]
    %v7552 = vld [vmem:[%s7 + $0x134] sm:$0xff]
    %v7553 = vld [vmem:[%s7 + $0x13c] sm:$0xff]
    %v7554 = vld [vmem:[%s7 + $0x144] sm:$0xff]
    %v7555 = vld [vmem:[%s7 + $0x14c] sm:$0xf]
    %v7556 = vld [vmem:[%s7 + $0x150] sm:$0xff]
    %v7557 = vld [vmem:[%s7 + $0x158] sm:$0xff]
    %v7558 = vld [vmem:[%s7 + $0x160] sm:$0xff]
    %v7559 = vld [vmem:[%s7 + $0x168] sm:$0xf]
    %v7560 = vld [vmem:[%s7 + $0x16c] sm:$0xff]
    %v7561 = vld [vmem:[%s7 + $0x174] sm:$0xff]
    %v7562 = vld [vmem:[%s7 + $0x17c] sm:$0xff]
    %v7563 = vld [vmem:[%s7 + $0x184] sm:$0xf]
    %v7564 = vld [vmem:[%s7 + $0x188] sm:$0xff]
    %v7565 = vld [vmem:[%s7 + $0x190] sm:$0xff]
    %v7566 = vld [vmem:[%s7 + $0x198] sm:$0xff]
    %v7567 = vld [vmem:[%s7 + $0x1a0] sm:$0xf]
    %v7568 = vld [vmem:[%s7 + $0x1a4] sm:$0xff]
    %v7569 = vld [vmem:[%s7 + $0x1ac] sm:$0xff]
    %v7570 = vld [vmem:[%s7 + $0x1b4] sm:$0xff]
    %v7571 = vld [vmem:[%s7 + $0x1bc] sm:$0xf]
    %v7572 = vld [vmem:[%s7 + $0x1c0] sm:$0xff]
    %v7573 = vld [vmem:[%s7 + $0x1c8] sm:$0xff]
    %v7574 = vld [vmem:[%s7 + $0x1d0] sm:$0xff]
    %v7575 = vld [vmem:[%s7 + $0x1d8] sm:$0xf]
    %v7576 = vld [vmem:[%s7 + $0x1dc] sm:$0xff]
    %v7577 = vld [vmem:[%s7 + $0x1e4] sm:$0xff]
    %v7578 = vld [vmem:[%s7 + $0x1ec] sm:$0xff]
    %v7579 = vld [vmem:[%s7 + $0x1f4] sm:$0xf]
    %v7580 = vld [vmem:[%s7 + $0x1f8] sm:$0xff]
    %v7581 = vld [vmem:[%s7 + $0x200] sm:$0xff]
    %v7582 = vld [vmem:[%s7 + $0x208] sm:$0xff]
    %v7583 = vld [vmem:[%s7 + $0x210] sm:$0xf]
    %v7584 = vld [vmem:[%s7 + $0x214] sm:$0xff]
    %v7585 = vld [vmem:[%s7 + $0x21c] sm:$0xff]
    %v7586 = vld [vmem:[%s7 + $0x224] sm:$0xff]
    %v7587 = vld [vmem:[%s7 + $0x22c] sm:$0xf]
    %v7588 = vld [vmem:[%s7 + $0x230] sm:$0xff]
    %v7589 = vld [vmem:[%s7 + $0x238] sm:$0xff]
    %v7590 = vld [vmem:[%s7 + $0x240] sm:$0xff]
    %v7591 = vld [vmem:[%s7 + $0x248] sm:$0xf]
    %v7592 = vld [vmem:[%s7 + $0x24c] sm:$0xff]
    %v7593 = vld [vmem:[%s7 + $0x254] sm:$0xff]
    %v7594 = vld [vmem:[%s7 + $0x25c] sm:$0xff]
    %v7595 = vld [vmem:[%s7 + $0x264] sm:$0xf]
    %v7596 = vld [vmem:[%s7 + $0x268] sm:$0xff]
    %v7597 = vld [vmem:[%s7 + $0x270] sm:$0xff]
    %v7598 = vld [vmem:[%s7 + $0x278] sm:$0xff]
    %v7599 = vld [vmem:[%s7 + $0x280] sm:$0xf]
    %v7600 = vld [vmem:[%s7 + $0x284] sm:$0xff]
    %v7601 = vld [vmem:[%s7 + $0x28c] sm:$0xff]
    %v7602 = vld [vmem:[%s7 + $0x294] sm:$0xff]
    %v7603 = vld [vmem:[%s7 + $0x29c] sm:$0xf]
    %v7604 = vld [vmem:[%s7 + $0x2a0] sm:$0xff]
    %v7605 = vld [vmem:[%s7 + $0x2a8] sm:$0xff]
    %v7606 = vld [vmem:[%s7 + $0x2b0] sm:$0xff]
    %v7607 = vld [vmem:[%s7 + $0x2b8] sm:$0xf]
    %v7608 = vld [vmem:[%s7 + $0x2bc] sm:$0xff]
    %v7609 = vld [vmem:[%s7 + $0x2c4] sm:$0xff]
    %v7610 = vld [vmem:[%s7 + $0x2cc] sm:$0xff]
    %v7611 = vld [vmem:[%s7 + $0x2d4] sm:$0xf]
    %v7612 = vld [vmem:[%s7 + $0x2d8] sm:$0xff]
    %v7613 = vld [vmem:[%s7 + $0x2e0] sm:$0xff]
    %v7614 = vld [vmem:[%s7 + $0x2e8] sm:$0xff]
    %v7615 = vld [vmem:[%s7 + $0x2f0] sm:$0xf]
    %v7616 = vld [vmem:[%s7 + $0x2f4] sm:$0xff]
    %v7617 = vld [vmem:[%s7 + $0x2fc] sm:$0xff]
    %v7618 = vld [vmem:[%s7 + $0x304] sm:$0xff]
    %v7619 = vld [vmem:[%s7 + $0x30c] sm:$0xf]
    %v7620 = vld [vmem:[%s7 + $0x310] sm:$0xff]
    %v7621 = vld [vmem:[%s7 + $0x318] sm:$0xff]
    %v7622 = vld [vmem:[%s7 + $0x320] sm:$0xff]
    %v7623 = vld [vmem:[%s7 + $0x328] sm:$0xf]
    %v7624 = vld [vmem:[%s7 + $0x32c] sm:$0xff]
    %v7625 = vld [vmem:[%s7 + $0x334] sm:$0xff]
    %v7626 = vld [vmem:[%s7 + $0x33c] sm:$0xff]
    %v7627 = vld [vmem:[%s7 + $0x344] sm:$0xf]
    %v7628 = vld [vmem:[%s7 + $0x348] sm:$0xff]
    %v7629 = vld [vmem:[%s7 + $0x350] sm:$0xff]
    %v7630 = vld [vmem:[%s7 + $0x358] sm:$0xff]
    %v7631 = vld [vmem:[%s7 + $0x360] sm:$0xf]
    %v7632 = vld [vmem:[%s7 + $0x364] sm:$0xff]
    %v7633 = vld [vmem:[%s7 + $0x36c] sm:$0xff]
    %v7634 = vld [vmem:[%s7 + $0x374] sm:$0xff]
    %v7635 = vld [vmem:[%s7 + $0x37c] sm:$0xf]
    %v7636 = vld [vmem:[%s7 + $0x380] sm:$0xff]
    %v7637 = vld [vmem:[%s7 + $0x388] sm:$0xff]
    %v7638 = vld [vmem:[%s7 + $0x390] sm:$0xff]
    %v7639 = vld [vmem:[%s7 + $0x398] sm:$0xf]
    %v7640 = vld [vmem:[%s7 + $0x39c] sm:$0xff]
    %v7641 = vld [vmem:[%s7 + $0x3a4] sm:$0xff]
    %v7642 = vld [vmem:[%s7 + $0x3ac] sm:$0xff]
    %v7643 = vld [vmem:[%s7 + $0x3b4] sm:$0xf]
    %v7644 = vld [vmem:[%s7 + $0x3b8] sm:$0xff]
    %v7645 = vld [vmem:[%s7 + $0x3c0] sm:$0xff]
    %v7646 = vld [vmem:[%s7 + $0x3c8] sm:$0xff]
    %v7647 = vld [vmem:[%s7 + $0x3d0] sm:$0xf]
    %v7648 = vld [vmem:[%s7 + $0x3d4] sm:$0xff]
    %v7649 = vld [vmem:[%s7 + $0x3dc] sm:$0xff]
    %v7650 = vld [vmem:[%s7 + $0x3e4] sm:$0xff]
    %v7651 = vld [vmem:[%s7 + $0x3ec] sm:$0xf]
    %v7652 = vld [vmem:[%s7 + $0x3f0] sm:$0xff]
    %v7653 = vld [vmem:[%s7 + $0x3f8] sm:$0xff]
    %v7654 = vld [vmem:[%s7 + $0x400] sm:$0xff]
    %v7655 = vld [vmem:[%s7 + $0x408] sm:$0xf]
    %v7656 = vld [vmem:[%s7 + $0x40c] sm:$0xff]
    %v7657 = vld [vmem:[%s7 + $0x414] sm:$0xff]
    %v7658 = vld [vmem:[%s7 + $0x41c] sm:$0xff]
    %v7659 = vld [vmem:[%s7 + $0x424] sm:$0xf]
    %v7660 = vld [vmem:[%s7 + $0x428] sm:$0xff]
    %v7661 = vld [vmem:[%s7 + $0x430] sm:$0xff]
    %v7662 = vld [vmem:[%s7 + $0x438] sm:$0xff]
    %v7663 = vld [vmem:[%s7 + $0x440] sm:$0xf]
    %v7664 = vld [vmem:[%s7 + $0x444] sm:$0xff]
    %v7665 = vld [vmem:[%s7 + $0x44c] sm:$0xff]
    %v7666 = vld [vmem:[%s7 + $0x454] sm:$0xff]
    %v7667 = vld [vmem:[%s7 + $0x45c] sm:$0xf]
    %v7668 = vld [vmem:[%s7 + $0x460] sm:$0xff]
    %v7669 = vld [vmem:[%s7 + $0x468] sm:$0xff]
    %v7670 = vld [vmem:[%s7 + $0x470] sm:$0xff]
    %v7671 = vld [vmem:[%s7 + $0x478] sm:$0xf]
    %v7672 = vld [vmem:[%s7 + $0x47c] sm:$0xff]
    %v7673 = vld [vmem:[%s7 + $0x484] sm:$0xff]
    %v7674 = vld [vmem:[%s7 + $0x48c] sm:$0xff]
    %v7675 = vld [vmem:[%s7 + $0x494] sm:$0xf]
    %v7676 = vld [vmem:[%s7 + $0x498] sm:$0xff]
    %v7677 = vld [vmem:[%s7 + $0x4a0] sm:$0xff]
    %v7678 = vld [vmem:[%s7 + $0x4a8] sm:$0xff]
    %v7679 = vld [vmem:[%s7 + $0x4b0] sm:$0xf]
    %v7680 = vld [vmem:[%s7 + $0x4b4] sm:$0xff]
    %v7681 = vld [vmem:[%s7 + $0x4bc] sm:$0xff]
    %v7682 = vld [vmem:[%s7 + $0x4c4] sm:$0xff]
    %v7683 = vld [vmem:[%s7 + $0x4cc] sm:$0xf]
    %v7684 = vld [vmem:[%s7 + $0x4d0] sm:$0xff]
    %v7685 = vld [vmem:[%s7 + $0x4d8] sm:$0xff]
    %v7686 = vld [vmem:[%s7 + $0x4e0] sm:$0xff]
    %v7687 = vld [vmem:[%s7 + $0x4e8] sm:$0xf]
    %v7688 = vld [vmem:[%s7 + $0x4ec] sm:$0xff]
    %v7689 = vld [vmem:[%s7 + $0x4f4] sm:$0xff]
    %v7690 = vld [vmem:[%s7 + $0x4fc] sm:$0xff]
    %v7691 = vld [vmem:[%s7 + $0x504] sm:$0xf]
    %v7692 = vld [vmem:[%s7 + $0x508] sm:$0xff]
    %v7693 = vld [vmem:[%s7 + $0x510] sm:$0xff]
    %v7694 = vld [vmem:[%s7 + $0x518] sm:$0xff]
    %v7695 = vld [vmem:[%s7 + $0x520] sm:$0xf]
    %v7696 = vld [vmem:[%s7 + $0x524] sm:$0xff]
    %v7697 = vld [vmem:[%s7 + $0x52c] sm:$0xff]
    %v7698 = vld [vmem:[%s7 + $0x534] sm:$0xff]
    %v7699 = vld [vmem:[%s7 + $0x53c] sm:$0xf]
    %v7700 = vld [vmem:[%s7 + $0x540] sm:$0xff]
    %v7701 = vld [vmem:[%s7 + $0x548] sm:$0xff]
    %v7702 = vld [vmem:[%s7 + $0x550] sm:$0xff]
    %v7703 = vld [vmem:[%s7 + $0x558] sm:$0xf]
    %v7704 = vld [vmem:[%s7 + $0x55c] sm:$0xff]
    %v7705 = vld [vmem:[%s7 + $0x564] sm:$0xff]
    %v7706 = vld [vmem:[%s7 + $0x56c] sm:$0xff]
    %v7707 = vld [vmem:[%s7 + $0x574] sm:$0xf]
    %v7708 = vld [vmem:[%s7 + $0x578] sm:$0xff]
    %v7709 = vld [vmem:[%s7 + $0x580] sm:$0xff]
    %v7710 = vld [vmem:[%s7 + $0x588] sm:$0xff]
    %v7711 = vld [vmem:[%s7 + $0x590] sm:$0xf]
    %v7712 = vld [vmem:[%s7 + $0x594] sm:$0xff]
    %v7713 = vld [vmem:[%s7 + $0x59c] sm:$0xff]
    %v7714 = vld [vmem:[%s7 + $0x5a4] sm:$0xff]
    %v7715 = vld [vmem:[%s7 + $0x5ac] sm:$0xf]
    %v7716 = vld [vmem:[%s7 + $0x5b0] sm:$0xff]
    %v7717 = vld [vmem:[%s7 + $0x5b8] sm:$0xff]
    %v7718 = vld [vmem:[%s7 + $0x5c0] sm:$0xff]
    %v7719 = vld [vmem:[%s7 + $0x5c8] sm:$0xf]
    %v7720 = vld [vmem:[%s7 + $0x5cc] sm:$0xff]
    %v7721 = vld [vmem:[%s7 + $0x5d4] sm:$0xff]
    %v7722 = vld [vmem:[%s7 + $0x5dc] sm:$0xff]
    %v7723 = vld [vmem:[%s7 + $0x5e4] sm:$0xf]
    %v7724 = vld [vmem:[%s7 + $0x5e8] sm:$0xff]
    %v7725 = vld [vmem:[%s7 + $0x5f0] sm:$0xff]
    %v7726 = vld [vmem:[%s7 + $0x5f8] sm:$0xff]
    %v7727 = vld [vmem:[%s7 + $0x600] sm:$0xf]
    %v7728 = vld [vmem:[%s7 + $0x604] sm:$0xff]
    %v7729 = vld [vmem:[%s7 + $0x60c] sm:$0xff]
    %v7730 = vld [vmem:[%s7 + $0x614] sm:$0xff]
    %v7731 = vld [vmem:[%s7 + $0x61c] sm:$0xf]
    %v7732 = vld [vmem:[%s7 + $0x620] sm:$0xff]
    %v7733 = vld [vmem:[%s7 + $0x628] sm:$0xff]
    %v7734 = vld [vmem:[%s7 + $0x630] sm:$0xff]
    %v7735 = vld [vmem:[%s7 + $0x638] sm:$0xf]
    %v7736 = vld [vmem:[%s7 + $0x63c] sm:$0xff]
    %v7737 = vld [vmem:[%s7 + $0x644] sm:$0xff]
    %v7738 = vld [vmem:[%s7 + $0x64c] sm:$0xff]
    %v7739 = vld [vmem:[%s7 + $0x654] sm:$0xf]
    %v7740 = vld [vmem:[%s7 + $0x658] sm:$0xff]
    %v7741 = vld [vmem:[%s7 + $0x660] sm:$0xff]
    %v7742 = vld [vmem:[%s7 + $0x668] sm:$0xff]
    %v7743 = vld [vmem:[%s7 + $0x670] sm:$0xf]
    %v7744 = vld [vmem:[%s7 + $0x674] sm:$0xff]
    %v7745 = vld [vmem:[%s7 + $0x67c] sm:$0xff]
    %v7746 = vld [vmem:[%s7 + $0x684] sm:$0xff]
    %v7747 = vld [vmem:[%s7 + $0x68c] sm:$0xf]
    %v7748 = vld [vmem:[%s7 + $0x690] sm:$0xff]
    %v7749 = vld [vmem:[%s7 + $0x698] sm:$0xff]
    %v7750 = vld [vmem:[%s7 + $0x6a0] sm:$0xff]
    %v7751 = vld [vmem:[%s7 + $0x6a8] sm:$0xf]
    %v7752 = vld [vmem:[%s7 + $0x6ac] sm:$0xff]
    %v7753 = vld [vmem:[%s7 + $0x6b4] sm:$0xff]
    %v7754 = vld [vmem:[%s7 + $0x6bc] sm:$0xff]
    %v7755 = vld [vmem:[%s7 + $0x6c4] sm:$0xf]
    %v7756 = vld [vmem:[%s7 + $0x6c8] sm:$0xff]
    %v7757 = vld [vmem:[%s7 + $0x6d0] sm:$0xff]
    %v7758 = vld [vmem:[%s7 + $0x6d8] sm:$0xff]
    %v7759 = vld [vmem:[%s7 + $0x6e0] sm:$0xf]
    %v7760 = vld [vmem:[%s7 + $0x6e4] sm:$0xff]
    %v7761 = vld [vmem:[%s7 + $0x6ec] sm:$0xff]
    %v7762 = vld [vmem:[%s7 + $0x6f4] sm:$0xff]
    %v7763 = vld [vmem:[%s7 + $0x6fc] sm:$0xf]
    %v7764 = vld [vmem:[%s8] sm:$0x7f]
    %v7766 = vlaneseq
    %v7767 = vshrl.u32 %v7766, 7
    %v7768 = vsub.s32 0, %v7767
    %v7769 = vrot.slane %v7764, %v7768
    %v7770 = vlaneseq
    %v7771 = vshrl.u32 %v7770, 7
    %v7772 = vsub.s32 1, %v7771
    %v7773 = vrot.slane %v7764, %v7772
    %v7774 = vlaneseq
    %v7775 = vshrl.u32 %v7774, 7
    %v7776 = vsub.s32 2, %v7775
    %v7777 = vrot.slane %v7764, %v7776
    %v7778 = vlaneseq
    %v7779 = vshrl.u32 %v7778, 7
    %v7780 = vsub.s32 3, %v7779
    %v7781 = vrot.slane %v7764, %v7780
    %v7782 = vlaneseq
    %v7783 = vshrl.u32 %v7782, 7
    %v7784 = vsub.s32 4, %v7783
    %v7785 = vrot.slane %v7764, %v7784
    %v7786 = vlaneseq
    %v7787 = vshrl.u32 %v7786, 7
    %v7788 = vsub.s32 5, %v7787
    %v7789 = vrot.slane %v7764, %v7788
    %v7790 = vlaneseq
    %v7791 = vshrl.u32 %v7790, 7
    %v7792 = vsub.s32 6, %v7791
    %v7793 = vrot.slane %v7764, %v7792
    %v8057 = vunpack.c.l.b16 %v7508
    %v8058 = vunpack.c.h.b16 %v7508
    %v8059 = vunpack.c.l.b16 %v7509
    %v8060 = vunpack.c.h.b16 %v7509
    %v8061 = vunpack.c.l.b16 %v7510
    %v8062 = vunpack.c.h.b16 %v7510
    %v8063 = vunpack.c.l.b16 %v7511
    %v8064 = vunpack.c.l.b16 %v7512
    %v8065 = vunpack.c.h.b16 %v7512
    %v8066 = vunpack.c.l.b16 %v7513
    %v8067 = vunpack.c.h.b16 %v7513
    %v8068 = vunpack.c.l.b16 %v7514
    %v8069 = vunpack.c.h.b16 %v7514
    %v8070 = vunpack.c.l.b16 %v7515
    %v8071 = vunpack.c.l.b16 %v7516
    %v8072 = vunpack.c.h.b16 %v7516
    %v8073 = vunpack.c.l.b16 %v7517
    %v8074 = vunpack.c.h.b16 %v7517
    %v8075 = vunpack.c.l.b16 %v7518
    %v8076 = vunpack.c.h.b16 %v7518
    %v8077 = vunpack.c.l.b16 %v7519
    %v8078 = vunpack.c.l.b16 %v7520
    %v8079 = vunpack.c.h.b16 %v7520
    %v8080 = vunpack.c.l.b16 %v7521
    %v8081 = vunpack.c.h.b16 %v7521
    %v8082 = vunpack.c.l.b16 %v7522
    %v8083 = vunpack.c.h.b16 %v7522
    %v8084 = vunpack.c.l.b16 %v7523
    %v8085 = vunpack.c.l.b16 %v7524
    %v8086 = vunpack.c.h.b16 %v7524
    %v8087 = vunpack.c.l.b16 %v7525
    %v8088 = vunpack.c.h.b16 %v7525
    %v8089 = vunpack.c.l.b16 %v7526
    %v8090 = vunpack.c.h.b16 %v7526
    %v8091 = vunpack.c.l.b16 %v7527
    %v8092 = vunpack.c.l.b16 %v7528
    %v8093 = vunpack.c.h.b16 %v7528
    %v8094 = vunpack.c.l.b16 %v7529
    %v8095 = vunpack.c.h.b16 %v7529
    %v8096 = vunpack.c.l.b16 %v7530
    %v8097 = vunpack.c.h.b16 %v7530
    %v8098 = vunpack.c.l.b16 %v7531
    %v8099 = vunpack.c.l.b16 %v7532
    %v8100 = vunpack.c.h.b16 %v7532
    %v8101 = vunpack.c.l.b16 %v7533
    %v8102 = vunpack.c.h.b16 %v7533
    %v8103 = vunpack.c.l.b16 %v7534
    %v8104 = vunpack.c.h.b16 %v7534
    %v8105 = vunpack.c.l.b16 %v7535
    %v8106 = vunpack.c.l.b16 %v7536
    %v8107 = vunpack.c.h.b16 %v7536
    %v8108 = vunpack.c.l.b16 %v7537
    %v8109 = vunpack.c.h.b16 %v7537
    %v8110 = vunpack.c.l.b16 %v7538
    %v8111 = vunpack.c.h.b16 %v7538
    %v8112 = vunpack.c.l.b16 %v7539
    %v8113 = vunpack.c.l.b16 %v7540
    %v8114 = vunpack.c.h.b16 %v7540
    %v8115 = vunpack.c.l.b16 %v7541
    %v8116 = vunpack.c.h.b16 %v7541
    %v8117 = vunpack.c.l.b16 %v7542
    %v8118 = vunpack.c.h.b16 %v7542
    %v8119 = vunpack.c.l.b16 %v7543
    %v8120 = vunpack.c.l.b16 %v7544
    %v8121 = vunpack.c.h.b16 %v7544
    %v8122 = vunpack.c.l.b16 %v7545
    %v8123 = vunpack.c.h.b16 %v7545
    %v8124 = vunpack.c.l.b16 %v7546
    %v8125 = vunpack.c.h.b16 %v7546
    %v8126 = vunpack.c.l.b16 %v7547
    %v8127 = vunpack.c.l.b16 %v7548
    %v8128 = vunpack.c.h.b16 %v7548
    %v8129 = vunpack.c.l.b16 %v7549
    %v8130 = vunpack.c.h.b16 %v7549
    %v8131 = vunpack.c.l.b16 %v7550
    %v8132 = vunpack.c.h.b16 %v7550
    %v8133 = vunpack.c.l.b16 %v7551
    %v8134 = vunpack.c.l.b16 %v7552
    %v8135 = vunpack.c.h.b16 %v7552
    %v8136 = vunpack.c.l.b16 %v7553
    %v8137 = vunpack.c.h.b16 %v7553
    %v8138 = vunpack.c.l.b16 %v7554
    %v8139 = vunpack.c.h.b16 %v7554
    %v8140 = vunpack.c.l.b16 %v7555
    %v8141 = vunpack.c.l.b16 %v7556
    %v8142 = vunpack.c.h.b16 %v7556
    %v8143 = vunpack.c.l.b16 %v7557
    %v8144 = vunpack.c.h.b16 %v7557
    %v8145 = vunpack.c.l.b16 %v7558
    %v8146 = vunpack.c.h.b16 %v7558
    %v8147 = vunpack.c.l.b16 %v7559
    %v8148 = vunpack.c.l.b16 %v7560
    %v8149 = vunpack.c.h.b16 %v7560
    %v8150 = vunpack.c.l.b16 %v7561
    %v8151 = vunpack.c.h.b16 %v7561
    %v8152 = vunpack.c.l.b16 %v7562
    %v8153 = vunpack.c.h.b16 %v7562
    %v8154 = vunpack.c.l.b16 %v7563
    %v8155 = vunpack.c.l.b16 %v7564
    %v8156 = vunpack.c.h.b16 %v7564
    %v8157 = vunpack.c.l.b16 %v7565
    %v8158 = vunpack.c.h.b16 %v7565
    %v8159 = vunpack.c.l.b16 %v7566
    %v8160 = vunpack.c.h.b16 %v7566
    %v8161 = vunpack.c.l.b16 %v7567
    %v8162 = vunpack.c.l.b16 %v7568
    %v8163 = vunpack.c.h.b16 %v7568
    %v8164 = vunpack.c.l.b16 %v7569
    %v8165 = vunpack.c.h.b16 %v7569
    %v8166 = vunpack.c.l.b16 %v7570
    %v8167 = vunpack.c.h.b16 %v7570
    %v8168 = vunpack.c.l.b16 %v7571
    %v8169 = vunpack.c.l.b16 %v7572
    %v8170 = vunpack.c.h.b16 %v7572
    %v8171 = vunpack.c.l.b16 %v7573
    %v8172 = vunpack.c.h.b16 %v7573
    %v8173 = vunpack.c.l.b16 %v7574
    %v8174 = vunpack.c.h.b16 %v7574
    %v8175 = vunpack.c.l.b16 %v7575
    %v8176 = vunpack.c.l.b16 %v7576
    %v8177 = vunpack.c.h.b16 %v7576
    %v8178 = vunpack.c.l.b16 %v7577
    %v8179 = vunpack.c.h.b16 %v7577
    %v8180 = vunpack.c.l.b16 %v7578
    %v8181 = vunpack.c.h.b16 %v7578
    %v8182 = vunpack.c.l.b16 %v7579
    %v8183 = vunpack.c.l.b16 %v7580
    %v8184 = vunpack.c.h.b16 %v7580
    %v8185 = vunpack.c.l.b16 %v7581
    %v8186 = vunpack.c.h.b16 %v7581
    %v8187 = vunpack.c.l.b16 %v7582
    %v8188 = vunpack.c.h.b16 %v7582
    %v8189 = vunpack.c.l.b16 %v7583
    %v8190 = vunpack.c.l.b16 %v7584
    %v8191 = vunpack.c.h.b16 %v7584
    %v8192 = vunpack.c.l.b16 %v7585
    %v8193 = vunpack.c.h.b16 %v7585
    %v8194 = vunpack.c.l.b16 %v7586
    %v8195 = vunpack.c.h.b16 %v7586
    %v8196 = vunpack.c.l.b16 %v7587
    %v8197 = vunpack.c.l.b16 %v7588
    %v8198 = vunpack.c.h.b16 %v7588
    %v8199 = vunpack.c.l.b16 %v7589
    %v8200 = vunpack.c.h.b16 %v7589
    %v8201 = vunpack.c.l.b16 %v7590
    %v8202 = vunpack.c.h.b16 %v7590
    %v8203 = vunpack.c.l.b16 %v7591
    %v8204 = vunpack.c.l.b16 %v7592
    %v8205 = vunpack.c.h.b16 %v7592
    %v8206 = vunpack.c.l.b16 %v7593
    %v8207 = vunpack.c.h.b16 %v7593
    %v8208 = vunpack.c.l.b16 %v7594
    %v8209 = vunpack.c.h.b16 %v7594
    %v8210 = vunpack.c.l.b16 %v7595
    %v8211 = vunpack.c.l.b16 %v7596
    %v8212 = vunpack.c.h.b16 %v7596
    %v8213 = vunpack.c.l.b16 %v7597
    %v8214 = vunpack.c.h.b16 %v7597
    %v8215 = vunpack.c.l.b16 %v7598
    %v8216 = vunpack.c.h.b16 %v7598
    %v8217 = vunpack.c.l.b16 %v7599
    %v8218 = vunpack.c.l.b16 %v7600
    %v8219 = vunpack.c.h.b16 %v7600
    %v8220 = vunpack.c.l.b16 %v7601
    %v8221 = vunpack.c.h.b16 %v7601
    %v8222 = vunpack.c.l.b16 %v7602
    %v8223 = vunpack.c.h.b16 %v7602
    %v8224 = vunpack.c.l.b16 %v7603
    %v8225 = vunpack.c.l.b16 %v7604
    %v8226 = vunpack.c.h.b16 %v7604
    %v8227 = vunpack.c.l.b16 %v7605
    %v8228 = vunpack.c.h.b16 %v7605
    %v8229 = vunpack.c.l.b16 %v7606
    %v8230 = vunpack.c.h.b16 %v7606
    %v8231 = vunpack.c.l.b16 %v7607
    %v8232 = vunpack.c.l.b16 %v7608
    %v8233 = vunpack.c.h.b16 %v7608
    %v8234 = vunpack.c.l.b16 %v7609
    %v8235 = vunpack.c.h.b16 %v7609
    %v8236 = vunpack.c.l.b16 %v7610
    %v8237 = vunpack.c.h.b16 %v7610
    %v8238 = vunpack.c.l.b16 %v7611
    %v8239 = vunpack.c.l.b16 %v7612
    %v8240 = vunpack.c.h.b16 %v7612
    %v8241 = vunpack.c.l.b16 %v7613
    %v8242 = vunpack.c.h.b16 %v7613
    %v8243 = vunpack.c.l.b16 %v7614
    %v8244 = vunpack.c.h.b16 %v7614
    %v8245 = vunpack.c.l.b16 %v7615
    %v8246 = vunpack.c.l.b16 %v7616
    %v8247 = vunpack.c.h.b16 %v7616
    %v8248 = vunpack.c.l.b16 %v7617
    %v8249 = vunpack.c.h.b16 %v7617
    %v8250 = vunpack.c.l.b16 %v7618
    %v8251 = vunpack.c.h.b16 %v7618
    %v8252 = vunpack.c.l.b16 %v7619
    %v8253 = vunpack.c.l.b16 %v7620
    %v8254 = vunpack.c.h.b16 %v7620
    %v8255 = vunpack.c.l.b16 %v7621
    %v8256 = vunpack.c.h.b16 %v7621
    %v8257 = vunpack.c.l.b16 %v7622
    %v8258 = vunpack.c.h.b16 %v7622
    %v8259 = vunpack.c.l.b16 %v7623
    %v8260 = vunpack.c.l.b16 %v7624
    %v8261 = vunpack.c.h.b16 %v7624
    %v8262 = vunpack.c.l.b16 %v7625
    %v8263 = vunpack.c.h.b16 %v7625
    %v8264 = vunpack.c.l.b16 %v7626
    %v8265 = vunpack.c.h.b16 %v7626
    %v8266 = vunpack.c.l.b16 %v7627
    %v8267 = vunpack.c.l.b16 %v7628
    %v8268 = vunpack.c.h.b16 %v7628
    %v8269 = vunpack.c.l.b16 %v7629
    %v8270 = vunpack.c.h.b16 %v7629
    %v8271 = vunpack.c.l.b16 %v7630
    %v8272 = vunpack.c.h.b16 %v7630
    %v8273 = vunpack.c.l.b16 %v7631
    %v8274 = vunpack.c.l.b16 %v7632
    %v8275 = vunpack.c.h.b16 %v7632
    %v8276 = vunpack.c.l.b16 %v7633
    %v8277 = vunpack.c.h.b16 %v7633
    %v8278 = vunpack.c.l.b16 %v7634
    %v8279 = vunpack.c.h.b16 %v7634
    %v8280 = vunpack.c.l.b16 %v7635
    %v8281 = vunpack.c.l.b16 %v7636
    %v8282 = vunpack.c.h.b16 %v7636
    %v8283 = vunpack.c.l.b16 %v7637
    %v8284 = vunpack.c.h.b16 %v7637
    %v8285 = vunpack.c.l.b16 %v7638
    %v8286 = vunpack.c.h.b16 %v7638
    %v8287 = vunpack.c.l.b16 %v7639
    %v8288 = vunpack.c.l.b16 %v7640
    %v8289 = vunpack.c.h.b16 %v7640
    %v8290 = vunpack.c.l.b16 %v7641
    %v8291 = vunpack.c.h.b16 %v7641
    %v8292 = vunpack.c.l.b16 %v7642
    %v8293 = vunpack.c.h.b16 %v7642
    %v8294 = vunpack.c.l.b16 %v7643
    %v8295 = vunpack.c.l.b16 %v7644
    %v8296 = vunpack.c.h.b16 %v7644
    %v8297 = vunpack.c.l.b16 %v7645
    %v8298 = vunpack.c.h.b16 %v7645
    %v8299 = vunpack.c.l.b16 %v7646
    %v8300 = vunpack.c.h.b16 %v7646
    %v8301 = vunpack.c.l.b16 %v7647
    %v8302 = vunpack.c.l.b16 %v7648
    %v8303 = vunpack.c.h.b16 %v7648
    %v8304 = vunpack.c.l.b16 %v7649
    %v8305 = vunpack.c.h.b16 %v7649
    %v8306 = vunpack.c.l.b16 %v7650
    %v8307 = vunpack.c.h.b16 %v7650
    %v8308 = vunpack.c.l.b16 %v7651
    %v8309 = vunpack.c.l.b16 %v7652
    %v8310 = vunpack.c.h.b16 %v7652
    %v8311 = vunpack.c.l.b16 %v7653
    %v8312 = vunpack.c.h.b16 %v7653
    %v8313 = vunpack.c.l.b16 %v7654
    %v8314 = vunpack.c.h.b16 %v7654
    %v8315 = vunpack.c.l.b16 %v7655
    %v8316 = vunpack.c.l.b16 %v7656
    %v8317 = vunpack.c.h.b16 %v7656
    %v8318 = vunpack.c.l.b16 %v7657
    %v8319 = vunpack.c.h.b16 %v7657
    %v8320 = vunpack.c.l.b16 %v7658
    %v8321 = vunpack.c.h.b16 %v7658
    %v8322 = vunpack.c.l.b16 %v7659
    %v8323 = vunpack.c.l.b16 %v7660
    %v8324 = vunpack.c.h.b16 %v7660
    %v8325 = vunpack.c.l.b16 %v7661
    %v8326 = vunpack.c.h.b16 %v7661
    %v8327 = vunpack.c.l.b16 %v7662
    %v8328 = vunpack.c.h.b16 %v7662
    %v8329 = vunpack.c.l.b16 %v7663
    %v8330 = vunpack.c.l.b16 %v7664
    %v8331 = vunpack.c.h.b16 %v7664
    %v8332 = vunpack.c.l.b16 %v7665
    %v8333 = vunpack.c.h.b16 %v7665
    %v8334 = vunpack.c.l.b16 %v7666
    %v8335 = vunpack.c.h.b16 %v7666
    %v8336 = vunpack.c.l.b16 %v7667
    %v8337 = vunpack.c.l.b16 %v7668
    %v8338 = vunpack.c.h.b16 %v7668
    %v8339 = vunpack.c.l.b16 %v7669
    %v8340 = vunpack.c.h.b16 %v7669
    %v8341 = vunpack.c.l.b16 %v7670
    %v8342 = vunpack.c.h.b16 %v7670
    %v8343 = vunpack.c.l.b16 %v7671
    %v8344 = vunpack.c.l.b16 %v7672
    %v8345 = vunpack.c.h.b16 %v7672
    %v8346 = vunpack.c.l.b16 %v7673
    %v8347 = vunpack.c.h.b16 %v7673
    %v8348 = vunpack.c.l.b16 %v7674
    %v8349 = vunpack.c.h.b16 %v7674
    %v8350 = vunpack.c.l.b16 %v7675
    %v8351 = vunpack.c.l.b16 %v7676
    %v8352 = vunpack.c.h.b16 %v7676
    %v8353 = vunpack.c.l.b16 %v7677
    %v8354 = vunpack.c.h.b16 %v7677
    %v8355 = vunpack.c.l.b16 %v7678
    %v8356 = vunpack.c.h.b16 %v7678
    %v8357 = vunpack.c.l.b16 %v7679
    %v8358 = vunpack.c.l.b16 %v7680
    %v8359 = vunpack.c.h.b16 %v7680
    %v8360 = vunpack.c.l.b16 %v7681
    %v8361 = vunpack.c.h.b16 %v7681
    %v8362 = vunpack.c.l.b16 %v7682
    %v8363 = vunpack.c.h.b16 %v7682
    %v8364 = vunpack.c.l.b16 %v7683
    %v8365 = vunpack.c.l.b16 %v7684
    %v8366 = vunpack.c.h.b16 %v7684
    %v8367 = vunpack.c.l.b16 %v7685
    %v8368 = vunpack.c.h.b16 %v7685
    %v8369 = vunpack.c.l.b16 %v7686
    %v8370 = vunpack.c.h.b16 %v7686
    %v8371 = vunpack.c.l.b16 %v7687
    %v8372 = vunpack.c.l.b16 %v7688
    %v8373 = vunpack.c.h.b16 %v7688
    %v8374 = vunpack.c.l.b16 %v7689
    %v8375 = vunpack.c.h.b16 %v7689
    %v8376 = vunpack.c.l.b16 %v7690
    %v8377 = vunpack.c.h.b16 %v7690
    %v8378 = vunpack.c.l.b16 %v7691
    %v8379 = vunpack.c.l.b16 %v7692
    %v8380 = vunpack.c.h.b16 %v7692
    %v8381 = vunpack.c.l.b16 %v7693
    %v8382 = vunpack.c.h.b16 %v7693
    %v8383 = vunpack.c.l.b16 %v7694
    %v8384 = vunpack.c.h.b16 %v7694
    %v8385 = vunpack.c.l.b16 %v7695
    %v8386 = vunpack.c.l.b16 %v7696
    %v8387 = vunpack.c.h.b16 %v7696
    %v8388 = vunpack.c.l.b16 %v7697
    %v8389 = vunpack.c.h.b16 %v7697
    %v8390 = vunpack.c.l.b16 %v7698
    %v8391 = vunpack.c.h.b16 %v7698
    %v8392 = vunpack.c.l.b16 %v7699
    %v8393 = vunpack.c.l.b16 %v7700
    %v8394 = vunpack.c.h.b16 %v7700
    %v8395 = vunpack.c.l.b16 %v7701
    %v8396 = vunpack.c.h.b16 %v7701
    %v8397 = vunpack.c.l.b16 %v7702
    %v8398 = vunpack.c.h.b16 %v7702
    %v8399 = vunpack.c.l.b16 %v7703
    %v8400 = vunpack.c.l.b16 %v7704
    %v8401 = vunpack.c.h.b16 %v7704
    %v8402 = vunpack.c.l.b16 %v7705
    %v8403 = vunpack.c.h.b16 %v7705
    %v8404 = vunpack.c.l.b16 %v7706
    %v8405 = vunpack.c.h.b16 %v7706
    %v8406 = vunpack.c.l.b16 %v7707
    %v8407 = vunpack.c.l.b16 %v7708
    %v8408 = vunpack.c.h.b16 %v7708
    %v8409 = vunpack.c.l.b16 %v7709
    %v8410 = vunpack.c.h.b16 %v7709
    %v8411 = vunpack.c.l.b16 %v7710
    %v8412 = vunpack.c.h.b16 %v7710
    %v8413 = vunpack.c.l.b16 %v7711
    %v8414 = vunpack.c.l.b16 %v7712
    %v8415 = vunpack.c.h.b16 %v7712
    %v8416 = vunpack.c.l.b16 %v7713
    %v8417 = vunpack.c.h.b16 %v7713
    %v8418 = vunpack.c.l.b16 %v7714
    %v8419 = vunpack.c.h.b16 %v7714
    %v8420 = vunpack.c.l.b16 %v7715
    %v8421 = vunpack.c.l.b16 %v7716
    %v8422 = vunpack.c.h.b16 %v7716
    %v8423 = vunpack.c.l.b16 %v7717
    %v8424 = vunpack.c.h.b16 %v7717
    %v8425 = vunpack.c.l.b16 %v7718
    %v8426 = vunpack.c.h.b16 %v7718
    %v8427 = vunpack.c.l.b16 %v7719
    %v8428 = vunpack.c.l.b16 %v7720
    %v8429 = vunpack.c.h.b16 %v7720
    %v8430 = vunpack.c.l.b16 %v7721
    %v8431 = vunpack.c.h.b16 %v7721
    %v8432 = vunpack.c.l.b16 %v7722
    %v8433 = vunpack.c.h.b16 %v7722
    %v8434 = vunpack.c.l.b16 %v7723
    %v8435 = vunpack.c.l.b16 %v7724
    %v8436 = vunpack.c.h.b16 %v7724
    %v8437 = vunpack.c.l.b16 %v7725
    %v8438 = vunpack.c.h.b16 %v7725
    %v8439 = vunpack.c.l.b16 %v7726
    %v8440 = vunpack.c.h.b16 %v7726
    %v8441 = vunpack.c.l.b16 %v7727
    %v8442 = vunpack.c.l.b16 %v7728
    %v8443 = vunpack.c.h.b16 %v7728
    %v8444 = vunpack.c.l.b16 %v7729
    %v8445 = vunpack.c.h.b16 %v7729
    %v8446 = vunpack.c.l.b16 %v7730
    %v8447 = vunpack.c.h.b16 %v7730
    %v8448 = vunpack.c.l.b16 %v7731
    %v8449 = vunpack.c.l.b16 %v7732
    %v8450 = vunpack.c.h.b16 %v7732
    %v8451 = vunpack.c.l.b16 %v7733
    %v8452 = vunpack.c.h.b16 %v7733
    %v8453 = vunpack.c.l.b16 %v7734
    %v8454 = vunpack.c.h.b16 %v7734
    %v8455 = vunpack.c.l.b16 %v7735
    %v8456 = vunpack.c.l.b16 %v7736
    %v8457 = vunpack.c.h.b16 %v7736
    %v8458 = vunpack.c.l.b16 %v7737
    %v8459 = vunpack.c.h.b16 %v7737
    %v8460 = vunpack.c.l.b16 %v7738
    %v8461 = vunpack.c.h.b16 %v7738
    %v8462 = vunpack.c.l.b16 %v7739
    %v8463 = vunpack.c.l.b16 %v7740
    %v8464 = vunpack.c.h.b16 %v7740
    %v8465 = vunpack.c.l.b16 %v7741
    %v8466 = vunpack.c.h.b16 %v7741
    %v8467 = vunpack.c.l.b16 %v7742
    %v8468 = vunpack.c.h.b16 %v7742
    %v8469 = vunpack.c.l.b16 %v7743
    %v8470 = vunpack.c.l.b16 %v7744
    %v8471 = vunpack.c.h.b16 %v7744
    %v8472 = vunpack.c.l.b16 %v7745
    %v8473 = vunpack.c.h.b16 %v7745
    %v8474 = vunpack.c.l.b16 %v7746
    %v8475 = vunpack.c.h.b16 %v7746
    %v8476 = vunpack.c.l.b16 %v7747
    %v8477 = vunpack.c.l.b16 %v7748
    %v8478 = vunpack.c.h.b16 %v7748
    %v8479 = vunpack.c.l.b16 %v7749
    %v8480 = vunpack.c.h.b16 %v7749
    %v8481 = vunpack.c.l.b16 %v7750
    %v8482 = vunpack.c.h.b16 %v7750
    %v8483 = vunpack.c.l.b16 %v7751
    %v8484 = vunpack.c.l.b16 %v7752
    %v8485 = vunpack.c.h.b16 %v7752
    %v8486 = vunpack.c.l.b16 %v7753
    %v8487 = vunpack.c.h.b16 %v7753
    %v8488 = vunpack.c.l.b16 %v7754
    %v8489 = vunpack.c.h.b16 %v7754
    %v8490 = vunpack.c.l.b16 %v7755
    %v8491 = vunpack.c.l.b16 %v7756
    %v8492 = vunpack.c.h.b16 %v7756
    %v8493 = vunpack.c.l.b16 %v7757
    %v8494 = vunpack.c.h.b16 %v7757
    %v8495 = vunpack.c.l.b16 %v7758
    %v8496 = vunpack.c.h.b16 %v7758
    %v8497 = vunpack.c.l.b16 %v7759
    %v8498 = vunpack.c.l.b16 %v7760
    %v8499 = vunpack.c.h.b16 %v7760
    %v8500 = vunpack.c.l.b16 %v7761
    %v8501 = vunpack.c.h.b16 %v7761
    %v8502 = vunpack.c.l.b16 %v7762
    %v8503 = vunpack.c.h.b16 %v7762
    %v8504 = vunpack.c.l.b16 %v7763
    %v8505 = vpack.c.b16 %v8064, %v8057
    %v8506 = vpack.c.b16 %v8065, %v8058
    %v8507 = vpack.c.b16 %v8066, %v8059
    %v8508 = vpack.c.b16 %v8067, %v8060
    %v8509 = vpack.c.b16 %v8068, %v8061
    %v8510 = vpack.c.b16 %v8069, %v8062
    %v8511 = vpack.c.b16 %v8070, %v8063
    %v8512 = vpack.c.b16 %v8078, %v8071
    %v8513 = vpack.c.b16 %v8079, %v8072
    %v8514 = vpack.c.b16 %v8080, %v8073
    %v8515 = vpack.c.b16 %v8081, %v8074
    %v8516 = vpack.c.b16 %v8082, %v8075
    %v8517 = vpack.c.b16 %v8083, %v8076
    %v8518 = vpack.c.b16 %v8084, %v8077
    %v8519 = vpack.c.b16 %v8092, %v8085
    %v8520 = vpack.c.b16 %v8093, %v8086
    %v8521 = vpack.c.b16 %v8094, %v8087
    %v8522 = vpack.c.b16 %v8095, %v8088
    %v8523 = vpack.c.b16 %v8096, %v8089
    %v8524 = vpack.c.b16 %v8097, %v8090
    %v8525 = vpack.c.b16 %v8098, %v8091
    %v8526 = vpack.c.b16 %v8106, %v8099
    %v8527 = vpack.c.b16 %v8107, %v8100
    %v8528 = vpack.c.b16 %v8108, %v8101
    %v8529 = vpack.c.b16 %v8109, %v8102
    %v8530 = vpack.c.b16 %v8110, %v8103
    %v8531 = vpack.c.b16 %v8111, %v8104
    %v8532 = vpack.c.b16 %v8112, %v8105
    %v8533 = vpack.c.b16 %v8120, %v8113
    %v8534 = vpack.c.b16 %v8121, %v8114
    %v8535 = vpack.c.b16 %v8122, %v8115
    %v8536 = vpack.c.b16 %v8123, %v8116
    %v8537 = vpack.c.b16 %v8124, %v8117
    %v8538 = vpack.c.b16 %v8125, %v8118
    %v8539 = vpack.c.b16 %v8126, %v8119
    %v8540 = vpack.c.b16 %v8134, %v8127
    %v8541 = vpack.c.b16 %v8135, %v8128
    %v8542 = vpack.c.b16 %v8136, %v8129
    %v8543 = vpack.c.b16 %v8137, %v8130
    %v8544 = vpack.c.b16 %v8138, %v8131
    %v8545 = vpack.c.b16 %v8139, %v8132
    %v8546 = vpack.c.b16 %v8140, %v8133
    %v8547 = vpack.c.b16 %v8148, %v8141
    %v8548 = vpack.c.b16 %v8149, %v8142
    %v8549 = vpack.c.b16 %v8150, %v8143
    %v8550 = vpack.c.b16 %v8151, %v8144
    %v8551 = vpack.c.b16 %v8152, %v8145
    %v8552 = vpack.c.b16 %v8153, %v8146
    %v8553 = vpack.c.b16 %v8154, %v8147
    %v8554 = vpack.c.b16 %v8162, %v8155
    %v8555 = vpack.c.b16 %v8163, %v8156
    %v8556 = vpack.c.b16 %v8164, %v8157
    %v8557 = vpack.c.b16 %v8165, %v8158
    %v8558 = vpack.c.b16 %v8166, %v8159
    %v8559 = vpack.c.b16 %v8167, %v8160
    %v8560 = vpack.c.b16 %v8168, %v8161
    %v8561 = vpack.c.b16 %v8176, %v8169
    %v8562 = vpack.c.b16 %v8177, %v8170
    %v8563 = vpack.c.b16 %v8178, %v8171
    %v8564 = vpack.c.b16 %v8179, %v8172
    %v8565 = vpack.c.b16 %v8180, %v8173
    %v8566 = vpack.c.b16 %v8181, %v8174
    %v8567 = vpack.c.b16 %v8182, %v8175
    %v8568 = vpack.c.b16 %v8190, %v8183
    %v8569 = vpack.c.b16 %v8191, %v8184
    %v8570 = vpack.c.b16 %v8192, %v8185
    %v8571 = vpack.c.b16 %v8193, %v8186
    %v8572 = vpack.c.b16 %v8194, %v8187
    %v8573 = vpack.c.b16 %v8195, %v8188
    %v8574 = vpack.c.b16 %v8196, %v8189
    %v8575 = vpack.c.b16 %v8204, %v8197
    %v8576 = vpack.c.b16 %v8205, %v8198
    %v8577 = vpack.c.b16 %v8206, %v8199
    %v8578 = vpack.c.b16 %v8207, %v8200
    %v8579 = vpack.c.b16 %v8208, %v8201
    %v8580 = vpack.c.b16 %v8209, %v8202
    %v8581 = vpack.c.b16 %v8210, %v8203
    %v8582 = vpack.c.b16 %v8218, %v8211
    %v8583 = vpack.c.b16 %v8219, %v8212
    %v8584 = vpack.c.b16 %v8220, %v8213
    %v8585 = vpack.c.b16 %v8221, %v8214
    %v8586 = vpack.c.b16 %v8222, %v8215
    %v8587 = vpack.c.b16 %v8223, %v8216
    %v8588 = vpack.c.b16 %v8224, %v8217
    %v8589 = vpack.c.b16 %v8232, %v8225
    %v8590 = vpack.c.b16 %v8233, %v8226
    %v8591 = vpack.c.b16 %v8234, %v8227
    %v8592 = vpack.c.b16 %v8235, %v8228
    %v8593 = vpack.c.b16 %v8236, %v8229
    %v8594 = vpack.c.b16 %v8237, %v8230
    %v8595 = vpack.c.b16 %v8238, %v8231
    %v8596 = vpack.c.b16 %v8246, %v8239
    %v8597 = vpack.c.b16 %v8247, %v8240
    %v8598 = vpack.c.b16 %v8248, %v8241
    %v8599 = vpack.c.b16 %v8249, %v8242
    %v8600 = vpack.c.b16 %v8250, %v8243
    %v8601 = vpack.c.b16 %v8251, %v8244
    %v8602 = vpack.c.b16 %v8252, %v8245
    %v8603 = vpack.c.b16 %v8260, %v8253
    %v8604 = vpack.c.b16 %v8261, %v8254
    %v8605 = vpack.c.b16 %v8262, %v8255
    %v8606 = vpack.c.b16 %v8263, %v8256
    %v8607 = vpack.c.b16 %v8264, %v8257
    %v8608 = vpack.c.b16 %v8265, %v8258
    %v8609 = vpack.c.b16 %v8266, %v8259
    %v8610 = vpack.c.b16 %v8274, %v8267
    %v8611 = vpack.c.b16 %v8275, %v8268
    %v8612 = vpack.c.b16 %v8276, %v8269
    %v8613 = vpack.c.b16 %v8277, %v8270
    %v8614 = vpack.c.b16 %v8278, %v8271
    %v8615 = vpack.c.b16 %v8279, %v8272
    %v8616 = vpack.c.b16 %v8280, %v8273
    %v8617 = vpack.c.b16 %v8288, %v8281
    %v8618 = vpack.c.b16 %v8289, %v8282
    %v8619 = vpack.c.b16 %v8290, %v8283
    %v8620 = vpack.c.b16 %v8291, %v8284
    %v8621 = vpack.c.b16 %v8292, %v8285
    %v8622 = vpack.c.b16 %v8293, %v8286
    %v8623 = vpack.c.b16 %v8294, %v8287
    %v8624 = vpack.c.b16 %v8302, %v8295
    %v8625 = vpack.c.b16 %v8303, %v8296
    %v8626 = vpack.c.b16 %v8304, %v8297
    %v8627 = vpack.c.b16 %v8305, %v8298
    %v8628 = vpack.c.b16 %v8306, %v8299
    %v8629 = vpack.c.b16 %v8307, %v8300
    %v8630 = vpack.c.b16 %v8308, %v8301
    %v8631 = vpack.c.b16 %v8316, %v8309
    %v8632 = vpack.c.b16 %v8317, %v8310
    %v8633 = vpack.c.b16 %v8318, %v8311
    %v8634 = vpack.c.b16 %v8319, %v8312
    %v8635 = vpack.c.b16 %v8320, %v8313
    %v8636 = vpack.c.b16 %v8321, %v8314
    %v8637 = vpack.c.b16 %v8322, %v8315
    %v8638 = vpack.c.b16 %v8330, %v8323
    %v8639 = vpack.c.b16 %v8331, %v8324
    %v8640 = vpack.c.b16 %v8332, %v8325
    %v8641 = vpack.c.b16 %v8333, %v8326
    %v8642 = vpack.c.b16 %v8334, %v8327
    %v8643 = vpack.c.b16 %v8335, %v8328
    %v8644 = vpack.c.b16 %v8336, %v8329
    %v8645 = vpack.c.b16 %v8344, %v8337
    %v8646 = vpack.c.b16 %v8345, %v8338
    %v8647 = vpack.c.b16 %v8346, %v8339
    %v8648 = vpack.c.b16 %v8347, %v8340
    %v8649 = vpack.c.b16 %v8348, %v8341
    %v8650 = vpack.c.b16 %v8349, %v8342
    %v8651 = vpack.c.b16 %v8350, %v8343
    %v8652 = vpack.c.b16 %v8358, %v8351
    %v8653 = vpack.c.b16 %v8359, %v8352
    %v8654 = vpack.c.b16 %v8360, %v8353
    %v8655 = vpack.c.b16 %v8361, %v8354
    %v8656 = vpack.c.b16 %v8362, %v8355
    %v8657 = vpack.c.b16 %v8363, %v8356
    %v8658 = vpack.c.b16 %v8364, %v8357
    %v8659 = vpack.c.b16 %v8372, %v8365
    %v8660 = vpack.c.b16 %v8373, %v8366
    %v8661 = vpack.c.b16 %v8374, %v8367
    %v8662 = vpack.c.b16 %v8375, %v8368
    %v8663 = vpack.c.b16 %v8376, %v8369
    %v8664 = vpack.c.b16 %v8377, %v8370
    %v8665 = vpack.c.b16 %v8378, %v8371
    %v8666 = vpack.c.b16 %v8386, %v8379
    %v8667 = vpack.c.b16 %v8387, %v8380
    %v8668 = vpack.c.b16 %v8388, %v8381
    %v8669 = vpack.c.b16 %v8389, %v8382
    %v8670 = vpack.c.b16 %v8390, %v8383
    %v8671 = vpack.c.b16 %v8391, %v8384
    %v8672 = vpack.c.b16 %v8392, %v8385
    %v8673 = vpack.c.b16 %v8400, %v8393
    %v8674 = vpack.c.b16 %v8401, %v8394
    %v8675 = vpack.c.b16 %v8402, %v8395
    %v8676 = vpack.c.b16 %v8403, %v8396
    %v8677 = vpack.c.b16 %v8404, %v8397
    %v8678 = vpack.c.b16 %v8405, %v8398
    %v8679 = vpack.c.b16 %v8406, %v8399
    %v8680 = vpack.c.b16 %v8414, %v8407
    %v8681 = vpack.c.b16 %v8415, %v8408
    %v8682 = vpack.c.b16 %v8416, %v8409
    %v8683 = vpack.c.b16 %v8417, %v8410
    %v8684 = vpack.c.b16 %v8418, %v8411
    %v8685 = vpack.c.b16 %v8419, %v8412
    %v8686 = vpack.c.b16 %v8420, %v8413
    %v8687 = vpack.c.b16 %v8428, %v8421
    %v8688 = vpack.c.b16 %v8429, %v8422
    %v8689 = vpack.c.b16 %v8430, %v8423
    %v8690 = vpack.c.b16 %v8431, %v8424
    %v8691 = vpack.c.b16 %v8432, %v8425
    %v8692 = vpack.c.b16 %v8433, %v8426
    %v8693 = vpack.c.b16 %v8434, %v8427
    %v8694 = vpack.c.b16 %v8442, %v8435
    %v8695 = vpack.c.b16 %v8443, %v8436
    %v8696 = vpack.c.b16 %v8444, %v8437
    %v8697 = vpack.c.b16 %v8445, %v8438
    %v8698 = vpack.c.b16 %v8446, %v8439
    %v8699 = vpack.c.b16 %v8447, %v8440
    %v8700 = vpack.c.b16 %v8448, %v8441
    %v8701 = vpack.c.b16 %v8456, %v8449
    %v8702 = vpack.c.b16 %v8457, %v8450
    %v8703 = vpack.c.b16 %v8458, %v8451
    %v8704 = vpack.c.b16 %v8459, %v8452
    %v8705 = vpack.c.b16 %v8460, %v8453
    %v8706 = vpack.c.b16 %v8461, %v8454
    %v8707 = vpack.c.b16 %v8462, %v8455
    %v8708 = vpack.c.b16 %v8470, %v8463
    %v8709 = vpack.c.b16 %v8471, %v8464
    %v8710 = vpack.c.b16 %v8472, %v8465
    %v8711 = vpack.c.b16 %v8473, %v8466
    %v8712 = vpack.c.b16 %v8474, %v8467
    %v8713 = vpack.c.b16 %v8475, %v8468
    %v8714 = vpack.c.b16 %v8476, %v8469
    %v8715 = vpack.c.b16 %v8484, %v8477
    %v8716 = vpack.c.b16 %v8485, %v8478
    %v8717 = vpack.c.b16 %v8486, %v8479
    %v8718 = vpack.c.b16 %v8487, %v8480
    %v8719 = vpack.c.b16 %v8488, %v8481
    %v8720 = vpack.c.b16 %v8489, %v8482
    %v8721 = vpack.c.b16 %v8490, %v8483
    %v8722 = vpack.c.b16 %v8498, %v8491
    %v8723 = vpack.c.b16 %v8499, %v8492
    %v8724 = vpack.c.b16 %v8500, %v8493
    %v8725 = vpack.c.b16 %v8501, %v8494
    %v8726 = vpack.c.b16 %v8502, %v8495
    %v8727 = vpack.c.b16 %v8503, %v8496
    %v8728 = vpack.c.b16 %v8504, %v8497
    %8953 = vmatprep.subr.bf16.mxu0 %v8506
    %8954 = vmatpush1.bf16.msra.mxu0 %v8505
    %8955 = vmatprep.subr.bf16.mxu0 %v8513
    %8956 = vmatpush1.bf16.msra.mxu0 %v8512
    %8957 = vmatprep.subr.bf16.mxu0 %v8520
    %8958 = vmatpush1.bf16.msra.mxu0 %v8519
    %8959 = vmatprep.subr.bf16.mxu0 %v8527
    %8960 = vmatpush1.bf16.msra.mxu0 %v8526
    %8961 = vmatprep.subr.bf16.mxu0 %v8534
    %8962 = vmatpush1.bf16.msra.mxu0 %v8533
    %8963 = vmatprep.subr.bf16.mxu0 %v8541
    %8964 = vmatpush1.bf16.msra.mxu0 %v8540
    %8965 = vmatprep.subr.bf16.mxu0 %v8548
    %8966 = vmatpush1.bf16.msra.mxu0 %v8547
    %8967 = vmatprep.subr.bf16.mxu0 %v8555
    %8968 = vmatpush1.bf16.msra.mxu0 %v8554
    %8969 = vmatprep.subr.bf16.mxu0 %v8562
    %8970 = vmatpush1.bf16.msra.mxu0 %v8561
    %8971 = vmatprep.subr.bf16.mxu0 %v8569
    %8972 = vmatpush1.bf16.msra.mxu0 %v8568
    %8973 = vmatprep.subr.bf16.mxu0 %v8576
    %8974 = vmatpush1.bf16.msra.mxu0 %v8575
    %8975 = vmatprep.subr.bf16.mxu0 %v8583
    %8976 = vmatpush1.bf16.msra.mxu0 %v8582
    %8977 = vmatprep.subr.bf16.mxu0 %v8590
    %8978 = vmatpush1.bf16.msra.mxu0 %v8589
    %8979 = vmatprep.subr.bf16.mxu0 %v8597
    %8980 = vmatpush1.bf16.msra.mxu0 %v8596
    %8981 = vmatprep.subr.bf16.mxu0 %v8604
    %8982 = vmatpush1.bf16.msra.mxu0 %v8603
    %8983 = vmatprep.subr.bf16.mxu0 %v8611
    %8984 = vmatpush1.bf16.msra.mxu0 %v8610
    %8985 = vmatprep.mubr.bf16.mxu0 %v5727
    %8986 = vmatmul.mubr.bf16.gmra.mrb[0].mxu0 %v5726
    %v8987 = vpop.f32.mrb[0].mxu0
    %v8988 = vadd.f32 %v7769, %v8987
    %v8989 = vpop.f32.mrb[0].mxu0
    %v8990 = vadd.f32 %v7773, %v8989
    %v8991 = vpop.f32.mrb[0].mxu0
    %v8992 = vpop.f32.mrb[0].mxu0
    %8993 = vdwg.mxu0
    %8994 = vmatprep.subr.bf16.mxu0 %v8618
    %8995 = vmatpush1.bf16.msra.mxu0 %v8617
    %8996 = vmatprep.subr.bf16.mxu0 %v8625
    %8997 = vmatpush1.bf16.msra.mxu0 %v8624
    %8998 = vmatprep.subr.bf16.mxu0 %v8632
    %8999 = vmatpush1.bf16.msra.mxu0 %v8631
    %9000 = vmatprep.subr.bf16.mxu0 %v8639
    %9001 = vmatpush1.bf16.msra.mxu0 %v8638
    %9002 = vmatprep.subr.bf16.mxu0 %v8646
    %9003 = vmatpush1.bf16.msra.mxu0 %v8645
    %9004 = vmatprep.subr.bf16.mxu0 %v8653
    %9005 = vmatpush1.bf16.msra.mxu0 %v8652
    %9006 = vmatprep.subr.bf16.mxu0 %v8660
    %9007 = vmatpush1.bf16.msra.mxu0 %v8659
    %9008 = vmatprep.subr.bf16.mxu0 %v8667
    %9009 = vmatpush1.bf16.msra.mxu0 %v8666
    %9010 = vmatprep.subr.bf16.mxu0 %v8674
    %9011 = vmatpush1.bf16.msra.mxu0 %v8673
    %9012 = vmatprep.subr.bf16.mxu0 %v8681
    %9013 = vmatpush1.bf16.msra.mxu0 %v8680
    %9014 = vmatprep.subr.bf16.mxu0 %v8688
    %9015 = vmatpush1.bf16.msra.mxu0 %v8687
    %9016 = vmatprep.subr.bf16.mxu0 %v8695
    %9017 = vmatpush1.bf16.msra.mxu0 %v8694
    %9018 = vmatprep.subr.bf16.mxu0 %v8702
    %9019 = vmatpush1.bf16.msra.mxu0 %v8701
    %9020 = vmatprep.subr.bf16.mxu0 %v8709
    %9021 = vmatpush1.bf16.msra.mxu0 %v8708
    %9022 = vmatprep.subr.bf16.mxu0 %v8716
    %9023 = vmatpush1.bf16.msra.mxu0 %v8715
    %9024 = vmatprep.subr.bf16.mxu0 %v8723
    %9025 = vmatpush1.bf16.msra.mxu0 %v8722
    %9026 = vmatprep.mubr.bf16.mxu0 %v5729
    %9027 = vmatmul.mubr.bf16.gmra.mrb[0].mxu0 %v5728
    %v9028 = vpop.f32.mrb[0].mxu0
    %v9029 = vadd.f32 %v8988, %v9028
    %v9030 = vpop.f32.mrb[0].mxu0
    %v9031 = vadd.f32 %v8990, %v9030
    %v9032 = vpop.f32.mrb[0].mxu0
    %v9033 = vpop.f32.mrb[0].mxu0
    %9034 = vdwg.mxu0
    %9035 = vmatprep.subr.bf16.mxu0 %v8508
    %9036 = vmatpush1.bf16.msra.mxu0 %v8507
    %9037 = vmatprep.subr.bf16.mxu0 %v8515
    %9038 = vmatpush1.bf16.msra.mxu0 %v8514
    %9039 = vmatprep.subr.bf16.mxu0 %v8522
    %9040 = vmatpush1.bf16.msra.mxu0 %v8521
    %9041 = vmatprep.subr.bf16.mxu0 %v8529
    %9042 = vmatpush1.bf16.msra.mxu0 %v8528
    %9043 = vmatprep.subr.bf16.mxu0 %v8536
    %9044 = vmatpush1.bf16.msra.mxu0 %v8535
    %9045 = vmatprep.subr.bf16.mxu0 %v8543
    %9046 = vmatpush1.bf16.msra.mxu0 %v8542
    %9047 = vmatprep.subr.bf16.mxu0 %v8550
    %9048 = vmatpush1.bf16.msra.mxu0 %v8549
    %9049 = vmatprep.subr.bf16.mxu0 %v8557
    %9050 = vmatpush1.bf16.msra.mxu0 %v8556
    %9051 = vmatprep.subr.bf16.mxu0 %v8564
    %9052 = vmatpush1.bf16.msra.mxu0 %v8563
    %9053 = vmatprep.subr.bf16.mxu0 %v8571
    %9054 = vmatpush1.bf16.msra.mxu0 %v8570
    %9055 = vmatprep.subr.bf16.mxu0 %v8578
    %9056 = vmatpush1.bf16.msra.mxu0 %v8577
    %9057 = vmatprep.subr.bf16.mxu0 %v8585
    %9058 = vmatpush1.bf16.msra.mxu0 %v8584
    %9059 = vmatprep.subr.bf16.mxu0 %v8592
    %9060 = vmatpush1.bf16.msra.mxu0 %v8591
    %9061 = vmatprep.subr.bf16.mxu0 %v8599
    %9062 = vmatpush1.bf16.msra.mxu0 %v8598
    %9063 = vmatprep.subr.bf16.mxu0 %v8606
    %9064 = vmatpush1.bf16.msra.mxu0 %v8605
    %9065 = vmatprep.subr.bf16.mxu0 %v8613
    %9066 = vmatpush1.bf16.msra.mxu0 %v8612
    %9067 = vmatprep.mubr.bf16.mxu0 %v5727
    %9068 = vmatmul.mubr.bf16.gmra.mrb[0].mxu0 %v5726
    %v9069 = vpop.f32.mrb[0].mxu0
    %v9070 = vadd.f32 %v7777, %v9069
    %v9071 = vpop.f32.mrb[0].mxu0
    %v9072 = vadd.f32 %v7781, %v9071
    %v9073 = vpop.f32.mrb[0].mxu0
    %v9074 = vpop.f32.mrb[0].mxu0
    %9075 = vdwg.mxu0
    %9076 = vmatprep.subr.bf16.mxu0 %v8620
    %9077 = vmatpush1.bf16.msra.mxu0 %v8619
    %9078 = vmatprep.subr.bf16.mxu0 %v8627
    %9079 = vmatpush1.bf16.msra.mxu0 %v8626
    %9080 = vmatprep.subr.bf16.mxu0 %v8634
    %9081 = vmatpush1.bf16.msra.mxu0 %v8633
    %9082 = vmatprep.subr.bf16.mxu0 %v8641
    %9083 = vmatpush1.bf16.msra.mxu0 %v8640
    %9084 = vmatprep.subr.bf16.mxu0 %v8648
    %9085 = vmatpush1.bf16.msra.mxu0 %v8647
    %9086 = vmatprep.subr.bf16.mxu0 %v8655
    %9087 = vmatpush1.bf16.msra.mxu0 %v8654
    %9088 = vmatprep.subr.bf16.mxu0 %v8662
    %9089 = vmatpush1.bf16.msra.mxu0 %v8661
    %9090 = vmatprep.subr.bf16.mxu0 %v8669
    %9091 = vmatpush1.bf16.msra.mxu0 %v8668
    %9092 = vmatprep.subr.bf16.mxu0 %v8676
    %9093 = vmatpush1.bf16.msra.mxu0 %v8675
    %9094 = vmatprep.subr.bf16.mxu0 %v8683
    %9095 = vmatpush1.bf16.msra.mxu0 %v8682
    %9096 = vmatprep.subr.bf16.mxu0 %v8690
    %9097 = vmatpush1.bf16.msra.mxu0 %v8689
    %9098 = vmatprep.subr.bf16.mxu0 %v8697
    %9099 = vmatpush1.bf16.msra.mxu0 %v8696
    %9100 = vmatprep.subr.bf16.mxu0 %v8704
    %9101 = vmatpush1.bf16.msra.mxu0 %v8703
    %9102 = vmatprep.subr.bf16.mxu0 %v8711
    %9103 = vmatpush1.bf16.msra.mxu0 %v8710
    %9104 = vmatprep.subr.bf16.mxu0 %v8718
    %9105 = vmatpush1.bf16.msra.mxu0 %v8717
    %9106 = vmatprep.subr.bf16.mxu0 %v8725
    %9107 = vmatpush1.bf16.msra.mxu0 %v8724
    %9108 = vmatprep.mubr.bf16.mxu0 %v5729
    %9109 = vmatmul.mubr.bf16.gmra.mrb[0].mxu0 %v5728
    %v9110 = vpop.f32.mrb[0].mxu0
    %v9111 = vadd.f32 %v9070, %v9110
    %v9112 = vpop.f32.mrb[0].mxu0
    %v9113 = vadd.f32 %v9072, %v9112
    %v9114 = vpop.f32.mrb[0].mxu0
    %v9115 = vpop.f32.mrb[0].mxu0
    %9116 = vdwg.mxu0
    %9117 = vmatprep.subr.bf16.mxu0 %v8510
    %9118 = vmatpush1.bf16.msra.mxu0 %v8509
    %9119 = vmatprep.subr.bf16.mxu0 %v8517
    %9120 = vmatpush1.bf16.msra.mxu0 %v8516
    %9121 = vmatprep.subr.bf16.mxu0 %v8524
    %9122 = vmatpush1.bf16.msra.mxu0 %v8523
    %9123 = vmatprep.subr.bf16.mxu0 %v8531
    %9124 = vmatpush1.bf16.msra.mxu0 %v8530
    %9125 = vmatprep.subr.bf16.mxu0 %v8538
    %9126 = vmatpush1.bf16.msra.mxu0 %v8537
    %9127 = vmatprep.subr.bf16.mxu0 %v8545
    %9128 = vmatpush1.bf16.msra.mxu0 %v8544
    %9129 = vmatprep.subr.bf16.mxu0 %v8552
    %9130 = vmatpush1.bf16.msra.mxu0 %v8551
    %9131 = vmatprep.subr.bf16.mxu0 %v8559
    %9132 = vmatpush1.bf16.msra.mxu0 %v8558
    %9133 = vmatprep.subr.bf16.mxu0 %v8566
    %9134 = vmatpush1.bf16.msra.mxu0 %v8565
    %9135 = vmatprep.subr.bf16.mxu0 %v8573
    %9136 = vmatpush1.bf16.msra.mxu0 %v8572
    %9137 = vmatprep.subr.bf16.mxu0 %v8580
    %9138 = vmatpush1.bf16.msra.mxu0 %v8579
    %9139 = vmatprep.subr.bf16.mxu0 %v8587
    %9140 = vmatpush1.bf16.msra.mxu0 %v8586
    %9141 = vmatprep.subr.bf16.mxu0 %v8594
    %9142 = vmatpush1.bf16.msra.mxu0 %v8593
    %9143 = vmatprep.subr.bf16.mxu0 %v8601
    %9144 = vmatpush1.bf16.msra.mxu0 %v8600
    %9145 = vmatprep.subr.bf16.mxu0 %v8608
    %9146 = vmatpush1.bf16.msra.mxu0 %v8607
    %9147 = vmatprep.subr.bf16.mxu0 %v8615
    %9148 = vmatpush1.bf16.msra.mxu0 %v8614
    %9149 = vmatprep.mubr.bf16.mxu0 %v5727
    %9150 = vmatmul.mubr.bf16.gmra.mrb[0].mxu0 %v5726
    %v9151 = vpop.f32.mrb[0].mxu0
    %v9152 = vadd.f32 %v7785, %v9151
    %v9153 = vpop.f32.mrb[0].mxu0
    %v9154 = vadd.f32 %v7789, %v9153
    %v9155 = vpop.f32.mrb[0].mxu0
    %v9156 = vpop.f32.mrb[0].mxu0
    %9157 = vdwg.mxu0
    %9158 = vmatprep.subr.bf16.mxu0 %v8622
    %9159 = vmatpush1.bf16.msra.mxu0 %v8621
    %9160 = vmatprep.subr.bf16.mxu0 %v8629
    %9161 = vmatpush1.bf16.msra.mxu0 %v8628
    %9162 = vmatprep.subr.bf16.mxu0 %v8636
    %9163 = vmatpush1.bf16.msra.mxu0 %v8635
    %9164 = vmatprep.subr.bf16.mxu0 %v8643
    %9165 = vmatpush1.bf16.msra.mxu0 %v8642
    %9166 = vmatprep.subr.bf16.mxu0 %v8650
    %9167 = vmatpush1.bf16.msra.mxu0 %v8649
    %9168 = vmatprep.subr.bf16.mxu0 %v8657
    %9169 = vmatpush1.bf16.msra.mxu0 %v8656
    %9170 = vmatprep.subr.bf16.mxu0 %v8664
    %9171 = vmatpush1.bf16.msra.mxu0 %v8663
    %9172 = vmatprep.subr.bf16.mxu0 %v8671
    %9173 = vmatpush1.bf16.msra.mxu0 %v8670
    %9174 = vmatprep.subr.bf16.mxu0 %v8678
    %9175 = vmatpush1.bf16.msra.mxu0 %v8677
    %9176 = vmatprep.subr.bf16.mxu0 %v8685
    %9177 = vmatpush1.bf16.msra.mxu0 %v8684
    %9178 = vmatprep.subr.bf16.mxu0 %v8692
    %9179 = vmatpush1.bf16.msra.mxu0 %v8691
    %9180 = vmatprep.subr.bf16.mxu0 %v8699
    %9181 = vmatpush1.bf16.msra.mxu0 %v8698
    %9182 = vmatprep.subr.bf16.mxu0 %v8706
    %9183 = vmatpush1.bf16.msra.mxu0 %v8705
    %9184 = vmatprep.subr.bf16.mxu0 %v8713
    %9185 = vmatpush1.bf16.msra.mxu0 %v8712
    %9186 = vmatprep.subr.bf16.mxu0 %v8720
    %9187 = vmatpush1.bf16.msra.mxu0 %v8719
    %9188 = vmatprep.subr.bf16.mxu0 %v8727
    %9189 = vmatpush1.bf16.msra.mxu0 %v8726
    %9190 = vmatprep.mubr.bf16.mxu0 %v5729
    %9191 = vmatmul.mubr.bf16.gmra.mrb[0].mxu0 %v5728
    %v9192 = vpop.f32.mrb[0].mxu0
    %v9193 = vadd.f32 %v9152, %v9192
    %v9194 = vpop.f32.mrb[0].mxu0
    %v9195 = vadd.f32 %v9154, %v9194
    %v9196 = vpop.f32.mrb[0].mxu0
    %v9197 = vpop.f32.mrb[0].mxu0
    %9198 = vdwg.mxu0
    %9199 = vmatprep.subr.bf16.mxu0 0
    %9200 = vmatpush1.bf16.msra.mxu0 %v8511
    %9201 = vmatprep.subr.bf16.mxu0 0
    %9202 = vmatpush1.bf16.msra.mxu0 %v8518
    %9203 = vmatprep.subr.bf16.mxu0 0
    %9204 = vmatpush1.bf16.msra.mxu0 %v8525
    %9205 = vmatprep.subr.bf16.mxu0 0
    %9206 = vmatpush1.bf16.msra.mxu0 %v8532
    %9207 = vmatprep.subr.bf16.mxu0 0
    %9208 = vmatpush1.bf16.msra.mxu0 %v8539
    %9209 = vmatprep.subr.bf16.mxu0 0
    %9210 = vmatpush1.bf16.msra.mxu0 %v8546
    %9211 = vmatprep.subr.bf16.mxu0 0
    %9212 = vmatpush1.bf16.msra.mxu0 %v8553
    %9213 = vmatprep.subr.bf16.mxu0 0
    %9214 = vmatpush1.bf16.msra.mxu0 %v8560
    %9215 = vmatprep.subr.bf16.mxu0 0
    %9216 = vmatpush1.bf16.msra.mxu0 %v8567
    %9217 = vmatprep.subr.bf16.mxu0 0
    %9218 = vmatpush1.bf16.msra.mxu0 %v8574
    %9219 = vmatprep.subr.bf16.mxu0 0
    %9220 = vmatpush1.bf16.msra.mxu0 %v8581
    %9221 = vmatprep.subr.bf16.mxu0 0
    %9222 = vmatpush1.bf16.msra.mxu0 %v8588
    %9223 = vmatprep.subr.bf16.mxu0 0
    %9224 = vmatpush1.bf16.msra.mxu0 %v8595
    %9225 = vmatprep.subr.bf16.mxu0 0
    %9226 = vmatpush1.bf16.msra.mxu0 %v8602
    %9227 = vmatprep.subr.bf16.mxu0 0
    %9228 = vmatpush1.bf16.msra.mxu0 %v8609
    %9229 = vmatprep.subr.bf16.mxu0 0
    %9230 = vmatpush1.bf16.msra.mxu0 %v8616
    %9231 = vmatprep.mubr.bf16.mxu0 %v5727
    %9232 = vmatmul.mubr.bf16.gmra.mrb[0].mxu0 %v5726
    %v9233 = vpop.f32.mrb[0].mxu0
    %v9234 = vadd.f32 %v7793, %v9233
    %v9235 = vpop.f32.mrb[0].mxu0
    %v9236 = vpop.f32.mrb[0].mxu0
    %v9237 = vpop.f32.mrb[0].mxu0
    %9238 = vdwg.mxu0
    %9239 = vmatprep.subr.bf16.mxu0 0
    %9240 = vmatpush1.bf16.msra.mxu0 %v8623
    %9241 = vmatprep.subr.bf16.mxu0 0
    %9242 = vmatpush1.bf16.msra.mxu0 %v8630
    %9243 = vmatprep.subr.bf16.mxu0 0
    %9244 = vmatpush1.bf16.msra.mxu0 %v8637
    %9245 = vmatprep.subr.bf16.mxu0 0
    %9246 = vmatpush1.bf16.msra.mxu0 %v8644
    %9247 = vmatprep.subr.bf16.mxu0 0
    %9248 = vmatpush1.bf16.msra.mxu0 %v8651
    %9249 = vmatprep.subr.bf16.mxu0 0
    %9250 = vmatpush1.bf16.msra.mxu0 %v8658
    %9251 = vmatprep.subr.bf16.mxu0 0
    %9252 = vmatpush1.bf16.msra.mxu0 %v8665
    %9253 = vmatprep.subr.bf16.mxu0 0
    %9254 = vmatpush1.bf16.msra.mxu0 %v8672
    %9255 = vmatprep.subr.bf16.mxu0 0
    %9256 = vmatpush1.bf16.msra.mxu0 %v8679
    %9257 = vmatprep.subr.bf16.mxu0 0
    %9258 = vmatpush1.bf16.msra.mxu0 %v8686
    %9259 = vmatprep.subr.bf16.mxu0 0
    %9260 = vmatpush1.bf16.msra.mxu0 %v8693
    %9261 = vmatprep.subr.bf16.mxu0 0
    %9262 = vmatpush1.bf16.msra.mxu0 %v8700
    %9263 = vmatprep.subr.bf16.mxu0 0
    %9264 = vmatpush1.bf16.msra.mxu0 %v8707
    %9265 = vmatprep.subr.bf16.mxu0 0
    %9266 = vmatpush1.bf16.msra.mxu0 %v8714
    %9267 = vmatprep.subr.bf16.mxu0 0
    %9268 = vmatpush1.bf16.msra.mxu0 %v8721
    %9269 = vmatprep.subr.bf16.mxu0 0
    %9270 = vmatpush1.bf16.msra.mxu0 %v8728
    %9271 = vmatprep.mubr.bf16.mxu0 %v5729
    %9272 = vmatmul.mubr.bf16.gmra.mrb[0].mxu0 %v5728
    %v9273 = vpop.f32.mrb[0].mxu0
    %v9274 = vadd.f32 %v9234, %v9273
    %v9275 = vpop.f32.mrb[0].mxu0
    %v9276 = vpop.f32.mrb[0].mxu0
    %v9277 = vpop.f32.mrb[0].mxu0
    %9278 = vdwg.mxu0
    %v9279 = vmax.f32 %v9029, 0.0
    %v9280 = vmax.f32 %v9031, 0.0
    %v9281 = vmax.f32 %v9111, 0.0
    %v9282 = vmax.f32 %v9113, 0.0
    %v9283 = vmax.f32 %v9193, 0.0
    %v9284 = vmax.f32 %v9195, 0.0
    %v9285 = vmax.f32 %v9274, 0.0
    %v9286 = vsub.f32 %v9279, %v7501
    %v9287 = vsub.f32 %v9280, %v7502
    %v9288 = vsub.f32 %v9281, %v7503
    %v9289 = vsub.f32 %v9282, %v7504
    %v9290 = vsub.f32 %v9283, %v7505
    %v9291 = vsub.f32 %v9284, %v7506
    %v9292 = vsub.f32 %v9285, %v7507
    %v9293 = vmul.f32 %v9286, 1.442695
    %v9294 = vpow.pop %v9293
    %v9295 = vmul.f32 %v9287, 1.442695
    %v9296 = vpow.pop %v9295
    %v9297 = vmul.f32 %v9288, 1.442695
    %v9298 = vpow.pop %v9297
    %v9299 = vmul.f32 %v9289, 1.442695
    %v9300 = vpow.pop %v9299
    %v9301 = vmul.f32 %v9290, 1.442695
    %v9302 = vpow.pop %v9301
    %v9303 = vmul.f32 %v9291, 1.442695
    %v9304 = vpow.pop %v9303
    %v9305 = vmul.f32 %v9292, 1.442695
    %v9306 = vpow.pop %v9305
    %v9307 = vadd.f32 %v9294, 1.0
    %v9308 = vadd.f32 %v9296, 1.0
    %v9309 = vadd.f32 %v9298, 1.0
    %v9310 = vadd.f32 %v9300, 1.0
    %v9311 = vadd.f32 %v9302, 1.0
    %v9312 = vadd.f32 %v9304, 1.0
    %v9313 = vadd.f32 %v9306, 1.0
    %v9314 = vrcp.pop %v9307
    %v9315 = vrcp.pop %v9308
    %v9316 = vrcp.pop %v9309
    %v9317 = vrcp.pop %v9310
    %v9318 = vrcp.pop %v9311
    %v9319 = vrcp.pop %v9312
    %v9320 = vrcp.pop %v9313
    %9321 = vst [vmem:[#allocation2] sm:$0xff] %v9314
    %9322 = vst [vmem:[#allocation2 + $0x8] sm:$0xff] %v9315
    %9323 = vst [vmem:[#allocation2 + $0x10] sm:$0xff] %v9316
    %9324 = vst [vmem:[#allocation2 + $0x18] sm:$0xff] %v9317
    %9325 = vst [vmem:[#allocation2 + $0x20] sm:$0xff] %v9318
    %9326 = vst [vmem:[#allocation2 + $0x28] sm:$0xff] %v9319
    %vm9327 = vcmask 113664
    %9328 = vst.msk [vmem:[#allocation2 + $0x30] sm:$0xff] %vm9327, %v9320
    // Predicated region
    $region38: #{tpu_custom_call.1} parent=1 // pred_check
      _
    $region39: #{tpu_custom_call.1} parent=1 // pred_check_branch
      %9330 = sbr.rel (0) target = $region41
    $region40: #{tpu_custom_call.1} parent=1 // pred_region
      %s9332 = ssub.s32 896, 896
      %9333 = vsyncadd [#allocation3], %s9332
      %s9335 = sshll.u32 [#allocation2], 4
      %s9336 = int_to_ptr.vmem [resolvable:$true] %s9335
      %9338 = dma.vmem_to_hbm [thread:$0]  %s9336, 896, %s9, [#allocation3]
    $region41: #{tpu_custom_call.1} parent=1 // pred_fallthru
      _
    // Predicated region
    $region42: #{tpu_custom_call.1} parent=1 // pred_check
      _
    $region43: #{tpu_custom_call.1} parent=1 // pred_check_branch
      %9340 = sbr.rel (0) target = $region45
    $region44: #{tpu_custom_call.1} parent=1 // pred_region
      %9341 = dma.done [#allocation3], 896
    $region45: #{tpu_custom_call.1} parent=1 // pred_fallthru
      _
    %9342 = vsyncpa [#allocation3], 1

</llo_original>
